<compile_context>
chip_gen: v7x
topology: tpu7x:2x2x1
jax: 0.10.0
libtpu: 0.0.40
codegen_flags: <defaults>
</compile_context>

<pallas_src>
import numpy as np
import jax
import jax.numpy as jnp
from jax.experimental import pallas as pl
from jax.experimental.pallas import tpu as pltpu

# ---- CMLps hyperparameters (module defaults) ----
N_FFT = 1724
HOP = 130
WIN_LEN = 1724
AMIN = 1e-30            # floor inside 10*log10(max(amin, |X|^2))
# ref = 1.0  ->  10*log10(max(amin, ref)) == 0, so no reference subtraction is needed.
MAX_LEN = 600           # Pad module target length along the frame axis
N_FREQ = N_FFT // 2 + 1                      # 863 onesided bins
N_FREQ_PAD = ((N_FREQ + 127) // 128) * 128   # 896, lane aligned
K_PAD = ((N_FFT + 255) // 256) * 256         # 1792, MXU-aligned contraction dim


def _round_up(x, m):
    return ((x + m - 1) // m) * m


def _cdiv(a, b):
    return -(-a // b)


# ---------------- deterministic parameter construction (numpy) ----------------
def build_dft_mats():
    """Two (K_PAD, N_FREQ_PAD) bf16 matrices: win*cos and -win*sin, zero padded to
    1792 rows x 896 cols (lane aligned).  (x*w) @ C == x @ (diag(w) C), so the
    window never touches the per-frame data path."""
    n = np.arange(N_FFT, dtype=np.float64)
    # torch.blackman_window(WIN_LEN, periodic=True)
    win = (0.42
           - 0.5 * np.cos(2.0 * np.pi * n / WIN_LEN)
           + 0.08 * np.cos(4.0 * np.pi * n / WIN_LEN))
    k = np.arange(N_FREQ, dtype=np.float64)
    ang = 2.0 * np.pi * np.outer(n, k) / N_FFT
    cos_m = np.zeros((K_PAD, N_FREQ_PAD), dtype=np.float32)
    sin_m = np.zeros((K_PAD, N_FREQ_PAD), dtype=np.float32)
    cos_m[:N_FFT, :N_FREQ] = (win[:, None] * np.cos(ang)).astype(np.float32)
    sin_m[:N_FFT, :N_FREQ] = (-win[:, None] * np.sin(ang)).astype(np.float32)
    return (jnp.asarray(cos_m, dtype=jnp.bfloat16),
            jnp.asarray(sin_m, dtype=jnp.bfloat16))


# ---------------- Pallas kernel ----------------
def lps_kernel(frames_ref, cos_ref, sin_ref, out_ref):
    # frames_ref: (1, TF, K_PAD)         bf16 -- one frame tile of one batch element
    # cos_ref:    (K_PAD, N_FREQ_PAD)    bf16 -- window-folded real-DFT cos matrix
    # sin_ref:    (K_PAD, N_FREQ_PAD)    bf16 -- window-folded real-DFT -sin matrix
    # out_ref:    (1, TF, N_FREQ_PAD)    f32  -- log-power spectrum (lane-padded)
    #
    # Two MXU matmuls (f32 accumulation); the square of the first half overlaps the
    # second matmul's drain, and only one (TF, 896) f32 intermediate stays live.
    # TODO(synk): frames stay bf16 (vs torch f32 STFT); bins near spectral nulls may
    #   deviate -- switch the LHS to f32 if the reference tolerance demands it.
    x = frames_ref[0]
    re = jnp.dot(x, cos_ref[...], preferred_element_type=jnp.float32)   # (TF, 896)
    power = re * re
    im = jnp.dot(x, sin_ref[...], preferred_element_type=jnp.float32)   # (TF, 896)
    power = power + im * im                                             # |rfft|^2
    ten_over_ln10 = np.float32(10.0 / np.log(10.0))
    out_ref[0] = ten_over_ln10 * jnp.log(jnp.maximum(power, np.float32(AMIN)))


# ---------------- wrapper (glue in plain JAX) ----------------
def cmlps_forward(audio):
    B, T = audio.shape
    x = audio.astype(jnp.float32)

    # torch.stft(center=True, pad_mode='reflect'): reflect pad by n_fft//2 (needs T > 862)
    pad = N_FFT // 2
    x_pad = jnp.pad(x, ((0, 0), (pad, pad)), mode='reflect')

    n_frames = 1 + T // HOP

    # Frame-axis tiling derived from the actual frame count: minimal zero-frame padding,
    # tf a multiple of 16 (bf16 sublane packing).  Force >=2 tiles when B==1 so both
    # v7x TensorCores get a grid step (free on single-TC v5e/v6e).
    n_tiles = _cdiv(n_frames, 256)
    if B == 1:
        n_tiles = max(n_tiles, 2)
    tf = _round_up(_cdiv(n_frames, n_tiles), 16)
    f_pad = n_tiles * tf

    # Zero-extend the padded audio so every (padded) frame's 1792-sample gather is in
    # bounds; samples past the true frame end hit zero DFT rows -> contribute nothing.
    need = (f_pad - 1) * HOP + K_PAD
    extra = max(0, need - x_pad.shape[1])
    if extra:
        x_pad = jnp.pad(x_pad, ((0, 0), (0, extra)))

    # Single bf16 materialization of the ~13x-expanded frames: cast before the gather,
    # gather straight at the padded frame count (no separate pad copy, no later astype).
    x_bf = x_pad.astype(jnp.bfloat16)
    idx = (jnp.arange(f_pad, dtype=jnp.int32)[:, None] * HOP
           + jnp.arange(K_PAD, dtype=jnp.int32)[None, :])
    frames = x_bf[:, idx]                                  # (B, f_pad, K_PAD) bf16
    # TODO(synk): build the overlapping frames in-kernel from the padded audio
    #   (hop=130 vs win=1724 -> ~13x HBM expansion here); the unaligned per-row
    #   extraction (starts at multiples of 130) costs more VPU/XLU cycles per tile than
    #   the MXU time with current lowering, so it stays wrapper-side.

    cos_m, sin_m = build_dft_mats()

    lps_padded = pl.pallas_call(
        lps_kernel,
        out_shape=jax.ShapeDtypeStruct((B, f_pad, N_FREQ_PAD), jnp.float32),
        grid_spec=pltpu.PrefetchScalarGridSpec(
            num_scalar_prefetch=0,
            grid=(B, n_tiles),
            in_specs=[
                pl.BlockSpec((1, tf, K_PAD), lambda b, f: (b, f, 0)),
                # grid-invariant DFT matrices: single-buffered, fetched once
                pl.BlockSpec((K_PAD, N_FREQ_PAD), lambda b, f: (0, 0),
                             pipeline_mode=pl.Buffered(buffer_count=1)),
                pl.BlockSpec((K_PAD, N_FREQ_PAD), lambda b, f: (0, 0),
                             pipeline_mode=pl.Buffered(buffer_count=1)),
            ],
            out_specs=pl.BlockSpec((1, tf, N_FREQ_PAD), lambda b, f: (b, f, 0)),
        ),
        compiler_params=pltpu.CompilerParams(
            dimension_semantics=("parallel", "parallel"),
            vmem_limit_bytes=48 * 1024 * 1024,
        ),
    )(frames, cos_m, sin_m)

    # drop frame/lane padding -> the lps result (B, F, 863)
    lps_out = lps_padded[:, :n_frames, :N_FREQ]

    # Pad module: repeat along the frame axis, crop to max_len, then unsqueeze(1).
    # (torch's ref-subtract promotes to float64; on TPU we keep float32.)
    repeats = MAX_LEN // n_frames + 1
    out = jnp.tile(lps_out, (1, repeats, 1))[:, :MAX_LEN]
    return out[:, None]                                    # (B, 1, 600, 863)


if __name__ == "__main__":
    key = jax.random.PRNGKey(0)
    B, T = 2, 2600   # small clip (T must exceed n_fft//2 = 862 for the reflect pad) -> 21 frames
    audio = jax.random.normal(key, (B, T), dtype=jnp.float32)

    out = jax.jit(cmlps_forward)(audio)
    jax.block_until_ready(out)

    assert out.shape == (B, 1, MAX_LEN, N_FREQ), out.shape
    assert out.dtype == jnp.float32
    assert bool(jnp.all(jnp.isfinite(out)))
    print("KERNEL_OK")
</pallas_src>

<mosaic_0001>
module attributes {stable_mosaic.version = 11 : i64} {
  func.func @lps_kernel(%arg0: i32, %arg1: i32, %arg2: memref<1x32x1792xbf16, #tpu.memory_space<vmem>>, %arg3: memref<1792x896xbf16, #tpu.memory_space<vmem>>, %arg4: memref<1792x896xbf16, #tpu.memory_space<vmem>>, %arg5: memref<1x32x896xf32, #tpu.memory_space<vmem>>) attributes {dimension_semantics = [#tpu.dimension_semantics<parallel>, #tpu.dimension_semantics<parallel>], iteration_bounds = array<i64: 2, 1>, scalar_prefetch = 0 : i64, scratch_operands = 0 : i64, tpu.core_type = #tpu.core_type<tc>, window_params = [{transform_indices = @transform_0, window_bounds = array<i64: 1, 32, 1792>}, {pipeline_mode = #tpu.pipeline_mode<synchronous>, transform_indices = @transform_1, window_bounds = array<i64: 1792, 896>}, {pipeline_mode = #tpu.pipeline_mode<synchronous>, transform_indices = @transform_2, window_bounds = array<i64: 1792, 896>}, {transform_indices = @transform_3, window_bounds = array<i64: 1, 32, 896>}]} {
    %c0 = arith.constant 0 : index
    %c0_0 = arith.constant 0 : index
    %c0_1 = arith.constant 0 : index
    %0 = vector.load %arg2[%c0, %c0_0, %c0_1] : memref<1x32x1792xbf16, #tpu.memory_space<vmem>>, vector<1x32x1792xbf16>
    %1 = vector.shape_cast %0 : vector<1x32x1792xbf16> to vector<32x1792xbf16>
    %c0_2 = arith.constant 0 : index
    %c0_3 = arith.constant 0 : index
    %2 = vector.load %arg3[%c0_2, %c0_3] : memref<1792x896xbf16, #tpu.memory_space<vmem>>, vector<1792x896xbf16>
    %cst = arith.constant dense<0.000000e+00> : vector<32x896xf32>
    %3 = tpu.matmul %1, %2, %cst {dimension_numbers = #tpu.dot_dimension_numbers<[1], [0], [0], [1], [0, 0, 1, 1], [], []>} : vector<32x1792xbf16>, vector<1792x896xbf16>, vector<32x896xf32> -> vector<32x896xf32>
    %4 = arith.mulf %3, %3 : vector<32x896xf32>
    %c0_4 = arith.constant 0 : index
    %c0_5 = arith.constant 0 : index
    %5 = vector.load %arg4[%c0_4, %c0_5] : memref<1792x896xbf16, #tpu.memory_space<vmem>>, vector<1792x896xbf16>
    %cst_6 = arith.constant dense<0.000000e+00> : vector<32x896xf32>
    %6 = tpu.matmul %1, %5, %cst_6 {dimension_numbers = #tpu.dot_dimension_numbers<[1], [0], [0], [1], [0, 0, 1, 1], [], []>} : vector<32x1792xbf16>, vector<1792x896xbf16>, vector<32x896xf32> -> vector<32x896xf32>
    %7 = arith.mulf %6, %6 : vector<32x896xf32>
    %8 = arith.addf %4, %7 : vector<32x896xf32>
    %cst_7 = arith.constant 1.000000e-30 : f32
    %9 = vector.broadcast %cst_7 : f32 to vector<32x896xf32>
    %10 = arith.maximumf %8, %9 : vector<32x896xf32>
    %11 = math.log %10 : vector<32x896xf32>
    %cst_8 = arith.constant 4.34294462 : f32
    %12 = vector.broadcast %cst_8 : f32 to vector<32x896xf32>
    %13 = arith.mulf %12, %11 : vector<32x896xf32>
    %c0_9 = arith.constant 0 : index
    %c0_10 = arith.constant 0 : index
    %c0_11 = arith.constant 0 : index
    %14 = vector.load %arg5[%c0_9, %c0_10, %c0_11] : memref<1x32x896xf32, #tpu.memory_space<vmem>>, vector<1x32x896xf32>
    %15 = vector.shape_cast %14 : vector<1x32x896xf32> to vector<32x896xf32>
    %16 = vector.shape_cast %13 : vector<32x896xf32> to vector<1x32x896xf32>
    tpu.vector_store %arg5[%c0_9, %c0_10, %c0_11], %16 {strides = array<i32>} : memref<1x32x896xf32, #tpu.memory_space<vmem>>, vector<1x32x896xf32>,
    return
  }
  func.func @transform_0(%arg0: i32, %arg1: i32) -> (i32, i32, i32) {
    %c0_i32 = arith.constant 0 : i32
    %c0_i32_0 = arith.constant 0 : i32
    return %arg0, %arg1, %c0_i32 : i32, i32, i32
  }
  func.func @transform_1(%arg0: i32, %arg1: i32) -> (i32, i32) {
    %c0_i32 = arith.constant 0 : i32
    %c0_i32_0 = arith.constant 0 : i32
    %c0_i32_1 = arith.constant 0 : i32
    return %c0_i32, %c0_i32_0 : i32, i32
  }
  func.func @transform_2(%arg0: i32, %arg1: i32) -> (i32, i32) {
    %c0_i32 = arith.constant 0 : i32
    %c0_i32_0 = arith.constant 0 : i32
    %c0_i32_1 = arith.constant 0 : i32
    return %c0_i32, %c0_i32_0 : i32, i32
  }
  func.func @transform_3(%arg0: i32, %arg1: i32) -> (i32, i32, i32) {
    %c0_i32 = arith.constant 0 : i32
    %c0_i32_0 = arith.constant 0 : i32
    return %arg0, %arg1, %c0_i32 : i32, i32, i32
  }
}

</mosaic_0001>

<llo_original>
// kernel: reverse
$region0: #{reverse}
  %s0 = inlined_call_operand.vmem [shape: bf16[2,896], index: 0, kind: input, shape index: {}]
  %s1 = inlined_call_operand.vmem [shape: bf16[2,896], index: 1, kind: output, shape index: {}]
  %v2 = vlaneseq
  %v3 = vsub.s32 127, %v2
  %4 = vset.pattern.permute.xlu0 %v3
  $region1: #{reverse} parent=0
    #allocation0 [shape = 'u8[4096]{0}', space=vmem, size = 0x1000, scoped, tag = 'operand span for operand 0']
    #allocation1 [shape = 'u8[1024]{0}', space=vmem, size = 0x400, scoped, tag = 'packed  for operand 0']
    #allocation2 [shape = 'u8[4096]{0}', space=vmem, size = 0x1000, scoped, tag = 'operand span for operand 1']
    #allocation3 [shape = 'u8[1024]{0}', space=vmem, size = 0x400, scoped, tag = 'packed  for operand 1']
    loop: start=0, step=1, limit=9
    $region2: #{reverse} parent=1 // loop_pre_header
      _
    $region3: #{reverse} parent=1 // loop_header
      %s6 = sphi 0, %s10
      %p7 = scmp.ge.s32.totalorder %s6, 9
      %s13 = sphi 0, %s25
      %s14 = sphi 0, %s21
      %s15 = sphi 0, %s13
      %s16 = sphi 0, %s14
      %s17 = sphi 0, %s15
      %s18 = sphi 0, %s16
    $region4: #{reverse} parent=1 // loop_header_branch
      %9 = sbr.rel (%p7) target = $region8
    $region5: #{reverse} parent=1 // loop_body
      %s11 = ssub.s32 %s6, 1
      %s12 = ssub.s32 %s6, 2
      %s19 = sadd.s32 1, %s14
      %p20 = scmp.ge.s32.totalorder %s19, 7
      %s21 = scalar_select %p20, 0, %s19
      %s22 = sadd.s32 1, %s13
      %s23 = scalar_select %p20, %s22, %s13
      %p24 = scmp.ge.s32.totalorder %s23, 1
      %s25 = scalar_select %p24, 0, %s23
      %p26 = scmp.le.s32.totalorder 1, %s6
      %p27 = scmp.lt.s32.totalorder %s6, 8
      %p28 = pnand %p26, %p27
      %p29 = pneg %p28
      // Predicated region
      $region9: #{reverse} parent=5 // pred_check
        _
      $region10: #{reverse} parent=5 // pred_check_branch
        %31 = sbr.rel (%p28) target = $region12
      $region11: #{reverse} parent=5 // pred_region
        %s32 = ssub.s32 %s6, 1
      $region12: #{reverse} parent=5 // pred_fallthru
        _
      %p33 = scmp.lt.s32.totalorder %s6, 7
      // Predicated region
      $region13: #{reverse} parent=5 // pred_check
        %p34 = pneg %p33
      $region14: #{reverse} parent=5 // pred_check_branch
        %36 = sbr.rel (%p34) target = $region16
      $region15: #{reverse} parent=5 // pred_region
        %s37 = sand.u32 %s6, 1
        %s38 = sand.u32 %s6, 1
        %s39 = scalar_lea.vmem [#allocation1], %s38
        %s40 = ssub.s32 6, %s14
        %s41 = smul.addr %s13, 7
        %s42 = sadd.s32 %s40, %s41
        %s43 = scalar_lea.vmem %s0, %s42
        // Predicated region
        $region17: #{reverse} parent=15 // pred_check
          _
        $region18: #{reverse} parent=15 // pred_check_branch
          %45 = sbr.rel (0) target = $region20
        $region19: #{reverse} parent=15 // pred_region
          // Predicated region
          $region21: #{reverse} parent=19 // pred_check
            _
          $region22: #{reverse} parent=19 // pred_check_branch
            %47 = sbr.rel target = $region24
          $region23: #{reverse} parent=19 // pred_region
            // Predicated region
            $region36: #{reverse} parent=23 // pred_check
              _
            $region37: #{reverse} parent=23 // pred_check_branch
              %62 = sbr.rel (0) target = $region39
            $region38: #{reverse} parent=23 // pred_region
              loop: start=0, step=1, limit=1
              $region40: #{reverse} parent=38 // loop_pre_header
                _
              $region41: #{reverse} parent=38 // loop_header
                %s65 = sphi 0, %s69
                %p66 = scmp.ge.s32.totalorder %s65, 1
                %s70 = sphi %s43, %s43
                %s71 = sphi %s39, %s39
              $region42: #{reverse} parent=38 // loop_header_branch
                %68 = sbr.rel (%p66) target = $region46
              $region43: #{reverse} parent=38 // loop_body
                %v72 = vld [vmem:[%s70] sm:$0x1]
                %73 = vst [vmem:[%s71] sm:$0x1] %v72
              $region44: #{reverse} parent=38 // loop_footer
                %s69 = sadd.s32 1, %s65
              $region45: #{reverse} parent=38 // loop_footer_branch
                %64 = sbr.rel target = $region41
              $region46: #{reverse} parent=38 // loop_exit
                _
            $region39: #{reverse} parent=23 // pred_fallthru
              _
          $region24: #{reverse} parent=19 // pred_fallthru
            _
          // Predicated region
          $region25: #{reverse} parent=19 // pred_check
            _
          $region26: #{reverse} parent=19 // pred_check_branch
            %49 = sbr.rel (0) target = $region28
          $region27: #{reverse} parent=19 // pred_region
            loop: start=0, step=1, limit=1
            $region29: #{reverse} parent=27 // loop_pre_header
              _
            $region30: #{reverse} parent=27 // loop_header
              %s52 = sphi 0, %s56
              %p53 = scmp.ge.s32.totalorder %s52, 1
              %s57 = sphi %s43, %s43
              %s58 = sphi %s39, %s39
            $region31: #{reverse} parent=27 // loop_header_branch
              %55 = sbr.rel (%p53) target = $region35
            $region32: #{reverse} parent=27 // loop_body
              %v59 = vld [vmem:[%s57] sm:$0x1]
              %60 = vst [vmem:[%s58] sm:$0x1] %v59
            $region33: #{reverse} parent=27 // loop_footer
              %s56 = sadd.s32 1, %s52
            $region34: #{reverse} parent=27 // loop_footer_branch
              %51 = sbr.rel target = $region30
            $region35: #{reverse} parent=27 // loop_exit
              _
          $region28: #{reverse} parent=19 // pred_fallthru
            _
        $region20: #{reverse} parent=15 // pred_fallthru
          _
        %74 = vnop
      $region16: #{reverse} parent=5 // pred_fallthru
        _
      %p75 = scmp.le.s32.totalorder 1, %s6
      %p76 = scmp.lt.s32.totalorder %s6, 8
      %p77 = pnand %p75, %p76
      %p78 = pneg %p77
      // Predicated region
      $region47: #{reverse} parent=5 // pred_check
        _
      $region48: #{reverse} parent=5 // pred_check_branch
        %80 = sbr.rel (%p77) target = $region50
      $region49: #{reverse} parent=5 // pred_region
        %s81 = ssub.s32 %s6, 1
        %s82 = sand.u32 %s11, 1
        %s83 = sand.u32 %s11, 1
        %s84 = scalar_lea.vmem [#allocation1], %s83
        %s85 = sand.u32 %s11, 1
        %s86 = sand.u32 %s11, 1
        %s87 = scalar_lea.vmem [#allocation1], %s86
        %s88 = sand.u32 %s11, 1
        %s89 = sand.u32 %s11, 1
        %s90 = scalar_lea.vmem [#allocation3], %s89
        %s92 = smul.u32 1, 2
        %s93 = sshllo.u32 0, %s92
        %s94 = sshrl.u32 %s93, 1
        %s95 = sor.u32 %s93, %s94
        %s96 = sand.u32 %s95, 85
        %s97 = sshrl.u32 %s96, 1
        %s98 = sor.u32 %s96, %s97
        %s99 = sand.u32 51, %s98
        %s100 = sshrl.u32 %s99, 2
        %s101 = sor.u32 %s99, %s100
        %s102 = sand.u32 15, %s101
        %v103 = vld [vmem:[%s87] sm:%s102]
        %v104 = vunpack.c.l.bf16 %v103
        %v105 = vunpack.c.h.bf16 %v103
        %106 = vst [vmem:[#allocation0] sm:%s93] %v104
        %s107 = ssub.s32 6, %s16
        %v108 = vld [vmem:[#allocation0] sm:$0xff]
        %109 = vperm.xlu0 %4, %v108
        %v110 = vpop.permute.xlu0 %109
        %111 = vst [vmem:[#allocation2] sm:$0xff] %v110
        %s113 = smul.u32 1, 2
        %s114 = sshllo.u32 0, %s113
        %s115 = sshrl.u32 %s113, 1
        %v116 = vld [vmem:[#allocation2] sm:%s114]
        %v117 = vpack.c.bf16 0.0, %v116
        %s118 = sshllo.u32 0, %s115
        %119 = vst [vmem:[%s90] sm:%s118] %v117
        %s120 = sand.u32 %s11, 1
        %s121 = sand.u32 %s11, 1
        %s122 = scalar_lea.vmem [#allocation3], %s121
        %s123 = smul.addr %s15, 7
        %s124 = sadd.s32 %s16, %s123
        %s125 = scalar_lea.vmem %s1, %s124
        // Predicated region
        $region51: #{reverse} parent=49 // pred_check
          _
        $region52: #{reverse} parent=49 // pred_check_branch
          %127 = sbr.rel (0) target = $region54
        $region53: #{reverse} parent=49 // pred_region
          // Predicated region
          $region55: #{reverse} parent=53 // pred_check
            _
          $region56: #{reverse} parent=53 // pred_check_branch
            %129 = sbr.rel target = $region58
          $region57: #{reverse} parent=53 // pred_region
            // Predicated region
            $region70: #{reverse} parent=57 // pred_check
              _
            $region71: #{reverse} parent=57 // pred_check_branch
              %144 = sbr.rel (0) target = $region73
            $region72: #{reverse} parent=57 // pred_region
              loop: start=0, step=1, limit=1
              $region74: #{reverse} parent=72 // loop_pre_header
                _
              $region75: #{reverse} parent=72 // loop_header
                %s147 = sphi 0, %s151
                %p148 = scmp.ge.s32.totalorder %s147, 1
                %s152 = sphi %s122, %s122
                %s153 = sphi %s125, %s125
              $region76: #{reverse} parent=72 // loop_header_branch
                %150 = sbr.rel (%p148) target = $region80
              $region77: #{reverse} parent=72 // loop_body
                %v154 = vld [vmem:[%s152] sm:$0x1]
                %155 = vst [vmem:[%s153] sm:$0x1] %v154
              $region78: #{reverse} parent=72 // loop_footer
                %s151 = sadd.s32 1, %s147
              $region79: #{reverse} parent=72 // loop_footer_branch
                %146 = sbr.rel target = $region75
              $region80: #{reverse} parent=72 // loop_exit
                _
            $region73: #{reverse} parent=57 // pred_fallthru
              _
          $region58: #{reverse} parent=53 // pred_fallthru
            _
          // Predicated region
          $region59: #{reverse} parent=53 // pred_check
            _
          $region60: #{reverse} parent=53 // pred_check_branch
            %131 = sbr.rel (0) target = $region62
          $region61: #{reverse} parent=53 // pred_region
            loop: start=0, step=1, limit=1
            $region63: #{reverse} parent=61 // loop_pre_header
              _
            $region64: #{reverse} parent=61 // loop_header
              %s134 = sphi 0, %s138
              %p135 = scmp.ge.s32.totalorder %s134, 1
              %s139 = sphi %s122, %s122
              %s140 = sphi %s125, %s125
            $region65: #{reverse} parent=61 // loop_header_branch
              %137 = sbr.rel (%p135) target = $region69
            $region66: #{reverse} parent=61 // loop_body
              %v141 = vld [vmem:[%s139] sm:$0x1]
              %142 = vst [vmem:[%s140] sm:$0x1] %v141
            $region67: #{reverse} parent=61 // loop_footer
              %s138 = sadd.s32 1, %s134
            $region68: #{reverse} parent=61 // loop_footer_branch
              %133 = sbr.rel target = $region64
            $region69: #{reverse} parent=61 // loop_exit
              _
          $region62: #{reverse} parent=53 // pred_fallthru
            _
        $region54: #{reverse} parent=49 // pred_fallthru
          _
        %156 = vnop
      $region50: #{reverse} parent=5 // pred_fallthru
        _
      %p157 = scmp.le.s32.totalorder 2, %s6
      // Predicated region
      $region81: #{reverse} parent=5 // pred_check
        %p158 = pneg %p157
      $region82: #{reverse} parent=5 // pred_check_branch
        %160 = sbr.rel (%p158) target = $region84
      $region83: #{reverse} parent=5 // pred_region
        %s161 = ssub.s32 %s6, 2
        %s162 = sand.u32 %s12, 1
        %s163 = sand.u32 %s12, 1
        %s164 = scalar_lea.vmem [#allocation3], %s163
      $region84: #{reverse} parent=5 // pred_fallthru
        _
    $region6: #{reverse} parent=1 // loop_footer
      %s10 = sadd.s32 1, %s6
    $region7: #{reverse} parent=1 // loop_footer_branch
      %5 = sbr.rel target = $region3
    $region8: #{reverse} parent=1 // loop_exit
      _

// kernel: cmlps_forward.1
$region0: #{cmlps_forward.1}
  #allocation0 [shape = 'u32[]', space=smem, size = 0x4, offset = 0x4, fixed_abs, tag = 'smem constant byte address 0x4 - core index']
  #allocation1 [shape = 'u32[144,128]{1,0:T(1,128)}', space=vmem, size = 0x12000, scoped, tag = 'internal scratch']
  %s0 = inlined_call_operand.vmem [shape: bf16[2,32,1792], index: 0, kind: input, shape index: {}]
  %s1 = inlined_call_operand.vmem [shape: bf16[1792,896], index: 1, kind: input, shape index: {}]
  %s2 = inlined_call_operand.vmem [shape: bf16[1792,896], index: 2, kind: input, shape index: {}]
  %s3 = inlined_call_operand.vmem [shape: f32[2,32,896], index: 3, kind: output, shape index: {}]
  %s4 = sld [smem:[#allocation0]]
  $region45: #{cmlps_forward.1} parent=0
    _
  %s6 = ssub.s32 1, %s4
  %s7 = scalar_select 0, %s6, %s4
  loop: start=0, step=1, limit=4
  $region2: #{cmlps_forward.1} parent=0 // loop_pre_header
    _
  $region3: #{cmlps_forward.1} parent=0 // loop_header
    %s9 = sphi 0, %s13
    %p10 = scmp.ge.s32.totalorder %s9, 4
    %s16 = sphi 0, %s28
    %s17 = sphi 0, %s24
    %s18 = sphi 0, %s16
    %s19 = sphi 0, %s17
    %s20 = sphi 0, %s18
    %s21 = sphi 0, %s19
    %s33 = sphi 0, %s35
    %s36 = sphi 0, %s33
    %s37 = sphi 0, %s36
    %s53 = sphi 0, %s37
    %s57 = sphi 0, %s57
    %s59 = sphi 0, %s57
    %s60 = sphi 0, %s59
    %s74 = sphi 0, %s60
    %s78 = sphi 0, %s78
    %s80 = sphi 0, %s78
    %s81 = sphi 0, %s80
    %s95 = sphi 0, %s81
    %s103 = sphi 0, %s105
    %s106 = sphi 0, %s103
    %s107 = sphi 0, %s106
    %s123 = sphi 0, %s107
  $region4: #{cmlps_forward.1} parent=0 // loop_header_branch
    %12 = sbr.rel (%p10) target = $region8
  $region5: #{cmlps_forward.1} parent=0 // loop_body
    %s14 = ssub.s32 %s9, 1
    %s15 = ssub.s32 %s9, 2
    %s22 = sadd.s32 1, %s17
    %p23 = scmp.ge.s32.totalorder %s22, 1
    %s24 = scalar_select %p23, 0, %s22
    %s25 = sadd.s32 1, %s16
    %s26 = scalar_select %p23, %s25, %s16
    %p27 = scmp.ge.s32.totalorder %s26, 2
    %s28 = scalar_select %p27, 0, %s26
    %s29 = ssub.s32 %s16, %s28
    %s30 = ssub.s32 %s17, %s24
    %s31 = sor.u32 %s29, %s30
    %p32 = scmp.eq.s32.totalorder %s31, 0
    %s34 = sadd.s32 %s33, 1
    %s35 = scalar_select %p32, %s33, %s34
    %p38 = pneg %p32
    %p39 = scmp.eq.s32.totalorder %s9, 1
    %p40 = por %p38, %p39
    %p41 = scmp.ne.s32.totalorder %s33, %s36
    %p42 = scmp.eq.s32.totalorder %s9, 0
    %p43 = por %p41, %p42
    %p44 = scmp.ne.s32.totalorder %s33, %s36
    %p45 = scmp.eq.s32.totalorder %s14, 1
    %p46 = por %p44, %p45
    %p47 = scmp.ne.s32.totalorder %s36, %s37
    %p48 = scmp.eq.s32.totalorder %s14, 0
    %p49 = por %p47, %p48
    %p50 = scmp.ne.s32.totalorder %s36, %s37
    %p51 = scmp.eq.s32.totalorder %s15, 1
    %p52 = por %p50, %p51
    %p54 = scmp.ne.s32.totalorder %s37, %s53
    %p55 = scmp.eq.s32.totalorder %s15, 0
    %p56 = por %p54, %p55
    %s58 = sadd.s32 %s57, 1
    %p61 = scmp.eq.s32.totalorder %s9, 1
    %p62 = scmp.ne.s32.totalorder %s57, %s59
    %p63 = scmp.eq.s32.totalorder %s9, 0
    %p64 = por %p62, %p63
    %p65 = scmp.ne.s32.totalorder %s57, %s59
    %p66 = scmp.eq.s32.totalorder %s14, 1
    %p67 = por %p65, %p66
    %p68 = scmp.ne.s32.totalorder %s59, %s60
    %p69 = scmp.eq.s32.totalorder %s14, 0
    %p70 = por %p68, %p69
    %p71 = scmp.ne.s32.totalorder %s59, %s60
    %p72 = scmp.eq.s32.totalorder %s15, 1
    %p73 = por %p71, %p72
    %p75 = scmp.ne.s32.totalorder %s60, %s74
    %p76 = scmp.eq.s32.totalorder %s15, 0
    %p77 = por %p75, %p76
    %s79 = sadd.s32 %s78, 1
    %p82 = scmp.eq.s32.totalorder %s9, 1
    %p83 = scmp.ne.s32.totalorder %s78, %s80
    %p84 = scmp.eq.s32.totalorder %s9, 0
    %p85 = por %p83, %p84
    %p86 = scmp.ne.s32.totalorder %s78, %s80
    %p87 = scmp.eq.s32.totalorder %s14, 1
    %p88 = por %p86, %p87
    %p89 = scmp.ne.s32.totalorder %s80, %s81
    %p90 = scmp.eq.s32.totalorder %s14, 0
    %p91 = por %p89, %p90
    %p92 = scmp.ne.s32.totalorder %s80, %s81
    %p93 = scmp.eq.s32.totalorder %s15, 1
    %p94 = por %p92, %p93
    %p96 = scmp.ne.s32.totalorder %s81, %s95
    %p97 = scmp.eq.s32.totalorder %s15, 0
    %p98 = por %p96, %p97
    %s99 = ssub.s32 %s16, %s28
    %s100 = ssub.s32 %s17, %s24
    %s101 = sor.u32 %s99, %s100
    %p102 = scmp.eq.s32.totalorder %s101, 0
    %s104 = sadd.s32 %s103, 1
    %s105 = scalar_select %p102, %s103, %s104
    %p108 = pneg %p102
    %p109 = scmp.eq.s32.totalorder %s9, 1
    %p110 = por %p108, %p109
    %p111 = scmp.ne.s32.totalorder %s103, %s106
    %p112 = scmp.eq.s32.totalorder %s9, 0
    %p113 = por %p111, %p112
    %p114 = scmp.ne.s32.totalorder %s103, %s106
    %p115 = scmp.eq.s32.totalorder %s14, 1
    %p116 = por %p114, %p115
    %p117 = scmp.ne.s32.totalorder %s106, %s107
    %p118 = scmp.eq.s32.totalorder %s14, 0
    %p119 = por %p117, %p118
    %p120 = scmp.ne.s32.totalorder %s106, %s107
    %p121 = scmp.eq.s32.totalorder %s15, 1
    %p122 = por %p120, %p121
    %p124 = scmp.ne.s32.totalorder %s107, %s123
    %p125 = scmp.eq.s32.totalorder %s15, 0
    %p126 = por %p124, %p125
    %p127 = scmp.le.s32.totalorder 1, %s9
    %p128 = scmp.lt.s32.totalorder %s9, 3
    %p129 = pnand %p127, %p128
    %p130 = pneg %p129
    // Predicated region
    $region9: #{cmlps_forward.1} parent=5 // pred_check
      _
    $region10: #{cmlps_forward.1} parent=5 // pred_check_branch
      %132 = sbr.rel (%p129) target = $region12
    $region11: #{cmlps_forward.1} parent=5 // pred_region
      %s133 = ssub.s32 %s9, 1
      // Predicated region
      $region13: #{cmlps_forward.1} parent=11 // pred_check
        %p134 = pneg %p70
      $region14: #{cmlps_forward.1} parent=11 // pred_check_branch
        %136 = sbr.rel (%p134) target = $region16
      $region15: #{cmlps_forward.1} parent=11 // pred_region
        _
      $region16: #{cmlps_forward.1} parent=11 // pred_fallthru
        _
      // Predicated region
      $region17: #{cmlps_forward.1} parent=11 // pred_check
        %p137 = pneg %p91
      $region18: #{cmlps_forward.1} parent=11 // pred_check_branch
        %139 = sbr.rel (%p137) target = $region20
      $region19: #{cmlps_forward.1} parent=11 // pred_region
        _
      $region20: #{cmlps_forward.1} parent=11 // pred_fallthru
        _
    $region12: #{cmlps_forward.1} parent=5 // pred_fallthru
      _
    %p140 = scmp.lt.s32.totalorder %s9, 2
    // Predicated region
    $region21: #{cmlps_forward.1} parent=5 // pred_check
      %p141 = pneg %p140
    $region22: #{cmlps_forward.1} parent=5 // pred_check_branch
      %143 = sbr.rel (%p141) target = $region24
    $region23: #{cmlps_forward.1} parent=5 // pred_region
      // Predicated region
      $region25: #{cmlps_forward.1} parent=23 // pred_check
        %p144 = pneg %p43
      $region26: #{cmlps_forward.1} parent=23 // pred_check_branch
        %146 = sbr.rel (%p144) target = $region28
      $region27: #{cmlps_forward.1} parent=23 // pred_region
        %s147 = smul.u32 4, %s17
        %p148 = scmp.lt.s32.totalorder %s16, 1
        %s149 = scalar_select %p148, %s16, 1
        %p150 = scmp.lt.s32.totalorder %s147, 3
        %s151 = scalar_select %p150, %s147, 3
        %s152 = smul.addr %s151, 14
        %s153 = smul.addr %s149, 56
        %s154 = sadd.s32 %s152, %s153
        %s155 = smul.addr %s154, 4
        %s156 = scalar_lea.vmem %s0, %s155
        %s157 = smul.u32 4, %s17
      $region28: #{cmlps_forward.1} parent=23 // pred_fallthru
        _
    $region24: #{cmlps_forward.1} parent=5 // pred_fallthru
      _
    %p158 = scmp.le.s32.totalorder 1, %s9
    %p159 = scmp.lt.s32.totalorder %s9, 3
    %p160 = pnand %p158, %p159
    %p161 = pneg %p160
    // Predicated region
    $region29: #{cmlps_forward.1} parent=5 // pred_check
      _
    $region30: #{cmlps_forward.1} parent=5 // pred_check_branch
      %163 = sbr.rel (%p160) target = $region32
    $region31: #{cmlps_forward.1} parent=5 // pred_region
      %s164 = ssub.s32 %s9, 1
      %s165 = smul.u32 4, %s19
      %p166 = scmp.lt.s32.totalorder %s18, 1
      %s167 = scalar_select %p166, %s18, 1
      %p168 = scmp.lt.s32.totalorder %s165, 3
      %s169 = scalar_select %p168, %s165, 3
      %s170 = smul.addr %s169, 14
      %s171 = smul.addr %s167, 56
      %s172 = sadd.s32 %s170, %s171
      %s173 = smul.addr %s172, 4
      %s174 = scalar_lea.vmem %s0, %s173
      %p175 = pneg %p49
      %p176 = pneg %p46
      %p177 = pneg %p70
      %p178 = pneg %p67
      %p179 = pneg %p91
      %p180 = pneg %p88
      %p181 = pneg %p119
      %p182 = pneg %p116
      %s183 = smul.u32 4, %s19
      %p184 = scmp.lt.s32.totalorder %s18, 1
      %s185 = scalar_select %p184, %s18, 1
      %p186 = scmp.lt.s32.totalorder %s183, 3
      %s187 = scalar_select %p186, %s183, 3
      %s188 = smul.addr %s187, 7
      %s189 = smul.addr %s185, 28
      %s190 = sadd.s32 %s188, %s189
      %s191 = smul.addr %s190, 8
      %s192 = scalar_lea.vmem %s3, %s191
      %s193 = smul.u32 4, %s19
      %p194 = scmp.lt.s32.totalorder %s18, 1
      %s195 = scalar_select %p194, %s18, 1
      %p196 = scmp.lt.s32.totalorder %s193, 3
      %s197 = scalar_select %p196, %s193, 3
      %s198 = smul.addr %s197, 14
      %s199 = smul.addr %s195, 56
      %s200 = sadd.s32 %s198, %s199
      %s201 = smul.addr %s200, 4
      %s202 = scalar_lea.vmem %s0, %s201
      %s203 = smul.u32 4, %s19
      %s204 = smul.u32 4, %s19
      %p205 = scmp.lt.s32.totalorder %s18, 1
      %s206 = scalar_select %p205, %s18, 1
      %p207 = scmp.lt.s32.totalorder %s204, 3
      %s208 = scalar_select %p207, %s204, 3
      %s209 = smul.addr %s208, 7
      %s210 = smul.addr %s206, 28
      %s211 = sadd.s32 %s209, %s210
      %s212 = smul.addr %s211, 8
      %s213 = scalar_lea.vmem %s3, %s212
      %s214 = smul.u32 4, %s19
      %v216 = vld [vmem:[%s202] sm:$0xff]
      %v217 = vld [vmem:[%s202 + $0x8] sm:$0xff]
      %v218 = vld [vmem:[%s202 + $0x10] sm:$0xff]
      %v219 = vld [vmem:[%s202 + $0x18] sm:$0xff]
      %v220 = vld [vmem:[%s202 + $0x20] sm:$0xff]
      %v221 = vld [vmem:[%s202 + $0x28] sm:$0xff]
      %v222 = vld [vmem:[%s202 + $0x30] sm:$0xff]
      %v223 = vld [vmem:[%s202 + $0x38] sm:$0xff]
      %v224 = vld [vmem:[%s202 + $0x40] sm:$0xff]
      %v225 = vld [vmem:[%s202 + $0x48] sm:$0xff]
      %v226 = vld [vmem:[%s202 + $0x50] sm:$0xff]
      %v227 = vld [vmem:[%s202 + $0x58] sm:$0xff]
      %v228 = vld [vmem:[%s202 + $0x60] sm:$0xff]
      %v229 = vld [vmem:[%s202 + $0x68] sm:$0xff]
      %v230 = vld [vmem:[%s202 + $0x70] sm:$0xff]
      %v231 = vld [vmem:[%s202 + $0x78] sm:$0xff]
      %v232 = vld [vmem:[%s202 + $0x80] sm:$0xff]
      %v233 = vld [vmem:[%s202 + $0x88] sm:$0xff]
      %v234 = vld [vmem:[%s202 + $0x90] sm:$0xff]
      %v235 = vld [vmem:[%s202 + $0x98] sm:$0xff]
      %v236 = vld [vmem:[%s202 + $0xa0] sm:$0xff]
      %v237 = vld [vmem:[%s202 + $0xa8] sm:$0xff]
      %v238 = vld [vmem:[%s202 + $0xb0] sm:$0xff]
      %v239 = vld [vmem:[%s202 + $0xb8] sm:$0xff]
      %v240 = vld [vmem:[%s202 + $0xc0] sm:$0xff]
      %v241 = vld [vmem:[%s202 + $0xc8] sm:$0xff]
      %v242 = vld [vmem:[%s202 + $0xd0] sm:$0xff]
      %v243 = vld [vmem:[%s202 + $0xd8] sm:$0xff]
      %v244 = vld [vmem:[%s1] sm:$0xff]
      %v245 = vld [vmem:[%s1 + $0x8] sm:$0xff]
      %v246 = vld [vmem:[%s1 + $0x10] sm:$0xff]
      %v247 = vld [vmem:[%s1 + $0x18] sm:$0xf]
      %v248 = vld [vmem:[%s1 + $0x1c] sm:$0xff]
      %v249 = vld [vmem:[%s1 + $0x24] sm:$0xff]
      %v250 = vld [vmem:[%s1 + $0x2c] sm:$0xff]
      %v251 = vld [vmem:[%s1 + $0x34] sm:$0xf]
      %v252 = vld [vmem:[%s1 + $0x38] sm:$0xff]
      %v253 = vld [vmem:[%s1 + $0x40] sm:$0xff]
      %v254 = vld [vmem:[%s1 + $0x48] sm:$0xff]
      %v255 = vld [vmem:[%s1 + $0x50] sm:$0xf]
      %v256 = vld [vmem:[%s1 + $0x54] sm:$0xff]
      %v257 = vld [vmem:[%s1 + $0x5c] sm:$0xff]
      %v258 = vld [vmem:[%s1 + $0x64] sm:$0xff]
      %v259 = vld [vmem:[%s1 + $0x6c] sm:$0xf]
      %v260 = vld [vmem:[%s1 + $0x70] sm:$0xff]
      %v261 = vld [vmem:[%s1 + $0x78] sm:$0xff]
      %v262 = vld [vmem:[%s1 + $0x80] sm:$0xff]
      %v263 = vld [vmem:[%s1 + $0x88] sm:$0xf]
      %v264 = vld [vmem:[%s1 + $0x8c] sm:$0xff]
      %v265 = vld [vmem:[%s1 + $0x94] sm:$0xff]
      %v266 = vld [vmem:[%s1 + $0x9c] sm:$0xff]
      %v267 = vld [vmem:[%s1 + $0xa4] sm:$0xf]
      %v268 = vld [vmem:[%s1 + $0xa8] sm:$0xff]
      %v269 = vld [vmem:[%s1 + $0xb0] sm:$0xff]
      %v270 = vld [vmem:[%s1 + $0xb8] sm:$0xff]
      %v271 = vld [vmem:[%s1 + $0xc0] sm:$0xf]
      %v272 = vld [vmem:[%s1 + $0xc4] sm:$0xff]
      %v273 = vld [vmem:[%s1 + $0xcc] sm:$0xff]
      %v274 = vld [vmem:[%s1 + $0xd4] sm:$0xff]
      %v275 = vld [vmem:[%s1 + $0xdc] sm:$0xf]
      %v276 = vld [vmem:[%s1 + $0xe0] sm:$0xff]
      %v277 = vld [vmem:[%s1 + $0xe8] sm:$0xff]
      %v278 = vld [vmem:[%s1 + $0xf0] sm:$0xff]
      %v279 = vld [vmem:[%s1 + $0xf8] sm:$0xf]
      %v280 = vld [vmem:[%s1 + $0xfc] sm:$0xff]
      %v281 = vld [vmem:[%s1 + $0x104] sm:$0xff]
      %v282 = vld [vmem:[%s1 + $0x10c] sm:$0xff]
      %v283 = vld [vmem:[%s1 + $0x114] sm:$0xf]
      %v284 = vld [vmem:[%s1 + $0x118] sm:$0xff]
      %v285 = vld [vmem:[%s1 + $0x120] sm:$0xff]
      %v286 = vld [vmem:[%s1 + $0x128] sm:$0xff]
      %v287 = vld [vmem:[%s1 + $0x130] sm:$0xf]
      %v288 = vld [vmem:[%s1 + $0x134] sm:$0xff]
      %v289 = vld [vmem:[%s1 + $0x13c] sm:$0xff]
      %v290 = vld [vmem:[%s1 + $0x144] sm:$0xff]
      %v291 = vld [vmem:[%s1 + $0x14c] sm:$0xf]
      %v292 = vld [vmem:[%s1 + $0x150] sm:$0xff]
      %v293 = vld [vmem:[%s1 + $0x158] sm:$0xff]
      %v294 = vld [vmem:[%s1 + $0x160] sm:$0xff]
      %v295 = vld [vmem:[%s1 + $0x168] sm:$0xf]
      %v296 = vld [vmem:[%s1 + $0x16c] sm:$0xff]
      %v297 = vld [vmem:[%s1 + $0x174] sm:$0xff]
      %v298 = vld [vmem:[%s1 + $0x17c] sm:$0xff]
      %v299 = vld [vmem:[%s1 + $0x184] sm:$0xf]
      %v300 = vld [vmem:[%s1 + $0x188] sm:$0xff]
      %v301 = vld [vmem:[%s1 + $0x190] sm:$0xff]
      %v302 = vld [vmem:[%s1 + $0x198] sm:$0xff]
      %v303 = vld [vmem:[%s1 + $0x1a0] sm:$0xf]
      %v304 = vld [vmem:[%s1 + $0x1a4] sm:$0xff]
      %v305 = vld [vmem:[%s1 + $0x1ac] sm:$0xff]
      %v306 = vld [vmem:[%s1 + $0x1b4] sm:$0xff]
      %v307 = vld [vmem:[%s1 + $0x1bc] sm:$0xf]
      %v308 = vld [vmem:[%s1 + $0x1c0] sm:$0xff]
      %v309 = vld [vmem:[%s1 + $0x1c8] sm:$0xff]
      %v310 = vld [vmem:[%s1 + $0x1d0] sm:$0xff]
      %v311 = vld [vmem:[%s1 + $0x1d8] sm:$0xf]
      %v312 = vld [vmem:[%s1 + $0x1dc] sm:$0xff]
      %v313 = vld [vmem:[%s1 + $0x1e4] sm:$0xff]
      %v314 = vld [vmem:[%s1 + $0x1ec] sm:$0xff]
      %v315 = vld [vmem:[%s1 + $0x1f4] sm:$0xf]
      %v316 = vld [vmem:[%s1 + $0x1f8] sm:$0xff]
      %v317 = vld [vmem:[%s1 + $0x200] sm:$0xff]
      %v318 = vld [vmem:[%s1 + $0x208] sm:$0xff]
      %v319 = vld [vmem:[%s1 + $0x210] sm:$0xf]
      %v320 = vld [vmem:[%s1 + $0x214] sm:$0xff]
      %v321 = vld [vmem:[%s1 + $0x21c] sm:$0xff]
      %v322 = vld [vmem:[%s1 + $0x224] sm:$0xff]
      %v323 = vld [vmem:[%s1 + $0x22c] sm:$0xf]
      %v324 = vld [vmem:[%s1 + $0x230] sm:$0xff]
      %v325 = vld [vmem:[%s1 + $0x238] sm:$0xff]
      %v326 = vld [vmem:[%s1 + $0x240] sm:$0xff]
      %v327 = vld [vmem:[%s1 + $0x248] sm:$0xf]
      %v328 = vld [vmem:[%s1 + $0x24c] sm:$0xff]
      %v329 = vld [vmem:[%s1 + $0x254] sm:$0xff]
      %v330 = vld [vmem:[%s1 + $0x25c] sm:$0xff]
      %v331 = vld [vmem:[%s1 + $0x264] sm:$0xf]
      %v332 = vld [vmem:[%s1 + $0x268] sm:$0xff]
      %v333 = vld [vmem:[%s1 + $0x270] sm:$0xff]
      %v334 = vld [vmem:[%s1 + $0x278] sm:$0xff]
      %v335 = vld [vmem:[%s1 + $0x280] sm:$0xf]
      %v336 = vld [vmem:[%s1 + $0x284] sm:$0xff]
      %v337 = vld [vmem:[%s1 + $0x28c] sm:$0xff]
      %v338 = vld [vmem:[%s1 + $0x294] sm:$0xff]
      %v339 = vld [vmem:[%s1 + $0x29c] sm:$0xf]
      %v340 = vld [vmem:[%s1 + $0x2a0] sm:$0xff]
      %v341 = vld [vmem:[%s1 + $0x2a8] sm:$0xff]
      %v342 = vld [vmem:[%s1 + $0x2b0] sm:$0xff]
      %v343 = vld [vmem:[%s1 + $0x2b8] sm:$0xf]
      %v344 = vld [vmem:[%s1 + $0x2bc] sm:$0xff]
      %v345 = vld [vmem:[%s1 + $0x2c4] sm:$0xff]
      %v346 = vld [vmem:[%s1 + $0x2cc] sm:$0xff]
      %v347 = vld [vmem:[%s1 + $0x2d4] sm:$0xf]
      %v348 = vld [vmem:[%s1 + $0x2d8] sm:$0xff]
      %v349 = vld [vmem:[%s1 + $0x2e0] sm:$0xff]
      %v350 = vld [vmem:[%s1 + $0x2e8] sm:$0xff]
      %v351 = vld [vmem:[%s1 + $0x2f0] sm:$0xf]
      %v352 = vld [vmem:[%s1 + $0x2f4] sm:$0xff]
      %v353 = vld [vmem:[%s1 + $0x2fc] sm:$0xff]
      %v354 = vld [vmem:[%s1 + $0x304] sm:$0xff]
      %v355 = vld [vmem:[%s1 + $0x30c] sm:$0xf]
      %v356 = vld [vmem:[%s1 + $0x310] sm:$0xff]
      %v357 = vld [vmem:[%s1 + $0x318] sm:$0xff]
      %v358 = vld [vmem:[%s1 + $0x320] sm:$0xff]
      %v359 = vld [vmem:[%s1 + $0x328] sm:$0xf]
      %v360 = vld [vmem:[%s1 + $0x32c] sm:$0xff]
      %v361 = vld [vmem:[%s1 + $0x334] sm:$0xff]
      %v362 = vld [vmem:[%s1 + $0x33c] sm:$0xff]
      %v363 = vld [vmem:[%s1 + $0x344] sm:$0xf]
      %v364 = vld [vmem:[%s1 + $0x348] sm:$0xff]
      %v365 = vld [vmem:[%s1 + $0x350] sm:$0xff]
      %v366 = vld [vmem:[%s1 + $0x358] sm:$0xff]
      %v367 = vld [vmem:[%s1 + $0x360] sm:$0xf]
      %v368 = vld [vmem:[%s1 + $0x364] sm:$0xff]
      %v369 = vld [vmem:[%s1 + $0x36c] sm:$0xff]
      %v370 = vld [vmem:[%s1 + $0x374] sm:$0xff]
      %v371 = vld [vmem:[%s1 + $0x37c] sm:$0xf]
      %v372 = vld [vmem:[%s1 + $0x380] sm:$0xff]
      %v373 = vld [vmem:[%s1 + $0x388] sm:$0xff]
      %v374 = vld [vmem:[%s1 + $0x390] sm:$0xff]
      %v375 = vld [vmem:[%s1 + $0x398] sm:$0xf]
      %v376 = vld [vmem:[%s1 + $0x39c] sm:$0xff]
      %v377 = vld [vmem:[%s1 + $0x3a4] sm:$0xff]
      %v378 = vld [vmem:[%s1 + $0x3ac] sm:$0xff]
      %v379 = vld [vmem:[%s1 + $0x3b4] sm:$0xf]
      %v380 = vld [vmem:[%s1 + $0x3b8] sm:$0xff]
      %v381 = vld [vmem:[%s1 + $0x3c0] sm:$0xff]
      %v382 = vld [vmem:[%s1 + $0x3c8] sm:$0xff]
      %v383 = vld [vmem:[%s1 + $0x3d0] sm:$0xf]
      %v384 = vld [vmem:[%s1 + $0x3d4] sm:$0xff]
      %v385 = vld [vmem:[%s1 + $0x3dc] sm:$0xff]
      %v386 = vld [vmem:[%s1 + $0x3e4] sm:$0xff]
      %v387 = vld [vmem:[%s1 + $0x3ec] sm:$0xf]
      %v388 = vld [vmem:[%s1 + $0x3f0] sm:$0xff]
      %v389 = vld [vmem:[%s1 + $0x3f8] sm:$0xff]
      %v390 = vld [vmem:[%s1 + $0x400] sm:$0xff]
      %v391 = vld [vmem:[%s1 + $0x408] sm:$0xf]
      %v392 = vld [vmem:[%s1 + $0x40c] sm:$0xff]
      %v393 = vld [vmem:[%s1 + $0x414] sm:$0xff]
      %v394 = vld [vmem:[%s1 + $0x41c] sm:$0xff]
      %v395 = vld [vmem:[%s1 + $0x424] sm:$0xf]
      %v396 = vld [vmem:[%s1 + $0x428] sm:$0xff]
      %v397 = vld [vmem:[%s1 + $0x430] sm:$0xff]
      %v398 = vld [vmem:[%s1 + $0x438] sm:$0xff]
      %v399 = vld [vmem:[%s1 + $0x440] sm:$0xf]
      %v400 = vld [vmem:[%s1 + $0x444] sm:$0xff]
      %v401 = vld [vmem:[%s1 + $0x44c] sm:$0xff]
      %v402 = vld [vmem:[%s1 + $0x454] sm:$0xff]
      %v403 = vld [vmem:[%s1 + $0x45c] sm:$0xf]
      %v404 = vld [vmem:[%s1 + $0x460] sm:$0xff]
      %v405 = vld [vmem:[%s1 + $0x468] sm:$0xff]
      %v406 = vld [vmem:[%s1 + $0x470] sm:$0xff]
      %v407 = vld [vmem:[%s1 + $0x478] sm:$0xf]
      %v408 = vld [vmem:[%s1 + $0x47c] sm:$0xff]
      %v409 = vld [vmem:[%s1 + $0x484] sm:$0xff]
      %v410 = vld [vmem:[%s1 + $0x48c] sm:$0xff]
      %v411 = vld [vmem:[%s1 + $0x494] sm:$0xf]
      %v412 = vld [vmem:[%s1 + $0x498] sm:$0xff]
      %v413 = vld [vmem:[%s1 + $0x4a0] sm:$0xff]
      %v414 = vld [vmem:[%s1 + $0x4a8] sm:$0xff]
      %v415 = vld [vmem:[%s1 + $0x4b0] sm:$0xf]
      %v416 = vld [vmem:[%s1 + $0x4b4] sm:$0xff]
      %v417 = vld [vmem:[%s1 + $0x4bc] sm:$0xff]
      %v418 = vld [vmem:[%s1 + $0x4c4] sm:$0xff]
      %v419 = vld [vmem:[%s1 + $0x4cc] sm:$0xf]
      %v420 = vld [vmem:[%s1 + $0x4d0] sm:$0xff]
      %v421 = vld [vmem:[%s1 + $0x4d8] sm:$0xff]
      %v422 = vld [vmem:[%s1 + $0x4e0] sm:$0xff]
      %v423 = vld [vmem:[%s1 + $0x4e8] sm:$0xf]
      %v424 = vld [vmem:[%s1 + $0x4ec] sm:$0xff]
      %v425 = vld [vmem:[%s1 + $0x4f4] sm:$0xff]
      %v426 = vld [vmem:[%s1 + $0x4fc] sm:$0xff]
      %v427 = vld [vmem:[%s1 + $0x504] sm:$0xf]
      %v428 = vld [vmem:[%s1 + $0x508] sm:$0xff]
      %v429 = vld [vmem:[%s1 + $0x510] sm:$0xff]
      %v430 = vld [vmem:[%s1 + $0x518] sm:$0xff]
      %v431 = vld [vmem:[%s1 + $0x520] sm:$0xf]
      %v432 = vld [vmem:[%s1 + $0x524] sm:$0xff]
      %v433 = vld [vmem:[%s1 + $0x52c] sm:$0xff]
      %v434 = vld [vmem:[%s1 + $0x534] sm:$0xff]
      %v435 = vld [vmem:[%s1 + $0x53c] sm:$0xf]
      %v436 = vld [vmem:[%s1 + $0x540] sm:$0xff]
      %v437 = vld [vmem:[%s1 + $0x548] sm:$0xff]
      %v438 = vld [vmem:[%s1 + $0x550] sm:$0xff]
      %v439 = vld [vmem:[%s1 + $0x558] sm:$0xf]
      %v440 = vld [vmem:[%s1 + $0x55c] sm:$0xff]
      %v441 = vld [vmem:[%s1 + $0x564] sm:$0xff]
      %v442 = vld [vmem:[%s1 + $0x56c] sm:$0xff]
      %v443 = vld [vmem:[%s1 + $0x574] sm:$0xf]
      %v444 = vld [vmem:[%s1 + $0x578] sm:$0xff]
      %v445 = vld [vmem:[%s1 + $0x580] sm:$0xff]
      %v446 = vld [vmem:[%s1 + $0x588] sm:$0xff]
      %v447 = vld [vmem:[%s1 + $0x590] sm:$0xf]
      %v448 = vld [vmem:[%s1 + $0x594] sm:$0xff]
      %v449 = vld [vmem:[%s1 + $0x59c] sm:$0xff]
      %v450 = vld [vmem:[%s1 + $0x5a4] sm:$0xff]
      %v451 = vld [vmem:[%s1 + $0x5ac] sm:$0xf]
      %v452 = vld [vmem:[%s1 + $0x5b0] sm:$0xff]
      %v453 = vld [vmem:[%s1 + $0x5b8] sm:$0xff]
      %v454 = vld [vmem:[%s1 + $0x5c0] sm:$0xff]
      %v455 = vld [vmem:[%s1 + $0x5c8] sm:$0xf]
      %v456 = vld [vmem:[%s1 + $0x5cc] sm:$0xff]
      %v457 = vld [vmem:[%s1 + $0x5d4] sm:$0xff]
      %v458 = vld [vmem:[%s1 + $0x5dc] sm:$0xff]
      %v459 = vld [vmem:[%s1 + $0x5e4] sm:$0xf]
      %v460 = vld [vmem:[%s1 + $0x5e8] sm:$0xff]
      %v461 = vld [vmem:[%s1 + $0x5f0] sm:$0xff]
      %v462 = vld [vmem:[%s1 + $0x5f8] sm:$0xff]
      %v463 = vld [vmem:[%s1 + $0x600] sm:$0xf]
      %v464 = vld [vmem:[%s1 + $0x604] sm:$0xff]
      %v465 = vld [vmem:[%s1 + $0x60c] sm:$0xff]
      %v466 = vld [vmem:[%s1 + $0x614] sm:$0xff]
      %v467 = vld [vmem:[%s1 + $0x61c] sm:$0xf]
      %v468 = vld [vmem:[%s1 + $0x620] sm:$0xff]
      %v469 = vld [vmem:[%s1 + $0x628] sm:$0xff]
      %v470 = vld [vmem:[%s1 + $0x630] sm:$0xff]
      %v471 = vld [vmem:[%s1 + $0x638] sm:$0xf]
      %v472 = vld [vmem:[%s1 + $0x63c] sm:$0xff]
      %v473 = vld [vmem:[%s1 + $0x644] sm:$0xff]
      %v474 = vld [vmem:[%s1 + $0x64c] sm:$0xff]
      %v475 = vld [vmem:[%s1 + $0x654] sm:$0xf]
      %v476 = vld [vmem:[%s1 + $0x658] sm:$0xff]
      %v477 = vld [vmem:[%s1 + $0x660] sm:$0xff]
      %v478 = vld [vmem:[%s1 + $0x668] sm:$0xff]
      %v479 = vld [vmem:[%s1 + $0x670] sm:$0xf]
      %v480 = vld [vmem:[%s1 + $0x674] sm:$0xff]
      %v481 = vld [vmem:[%s1 + $0x67c] sm:$0xff]
      %v482 = vld [vmem:[%s1 + $0x684] sm:$0xff]
      %v483 = vld [vmem:[%s1 + $0x68c] sm:$0xf]
      %v484 = vld [vmem:[%s1 + $0x690] sm:$0xff]
      %v485 = vld [vmem:[%s1 + $0x698] sm:$0xff]
      %v486 = vld [vmem:[%s1 + $0x6a0] sm:$0xff]
      %v487 = vld [vmem:[%s1 + $0x6a8] sm:$0xf]
      %v488 = vld [vmem:[%s1 + $0x6ac] sm:$0xff]
      %v489 = vld [vmem:[%s1 + $0x6b4] sm:$0xff]
      %v490 = vld [vmem:[%s1 + $0x6bc] sm:$0xff]
      %v491 = vld [vmem:[%s1 + $0x6c4] sm:$0xf]
      %v492 = vld [vmem:[%s1 + $0x6c8] sm:$0xff]
      %v493 = vld [vmem:[%s1 + $0x6d0] sm:$0xff]
      %v494 = vld [vmem:[%s1 + $0x6d8] sm:$0xff]
      %v495 = vld [vmem:[%s1 + $0x6e0] sm:$0xf]
      %v496 = vld [vmem:[%s1 + $0x6e4] sm:$0xff]
      %v497 = vld [vmem:[%s1 + $0x6ec] sm:$0xff]
      %v498 = vld [vmem:[%s1 + $0x6f4] sm:$0xff]
      %v499 = vld [vmem:[%s1 + $0x6fc] sm:$0xf]
      %v500 = vld [vmem:[%s1 + $0x700] sm:$0xff]
      %v501 = vld [vmem:[%s1 + $0x708] sm:$0xff]
      %v502 = vld [vmem:[%s1 + $0x710] sm:$0xff]
      %v503 = vld [vmem:[%s1 + $0x718] sm:$0xf]
      %v504 = vld [vmem:[%s1 + $0x71c] sm:$0xff]
      %v505 = vld [vmem:[%s1 + $0x724] sm:$0xff]
      %v506 = vld [vmem:[%s1 + $0x72c] sm:$0xff]
      %v507 = vld [vmem:[%s1 + $0x734] sm:$0xf]
      %v508 = vld [vmem:[%s1 + $0x738] sm:$0xff]
      %v509 = vld [vmem:[%s1 + $0x740] sm:$0xff]
      %v510 = vld [vmem:[%s1 + $0x748] sm:$0xff]
      %v511 = vld [vmem:[%s1 + $0x750] sm:$0xf]
      %v512 = vld [vmem:[%s1 + $0x754] sm:$0xff]
      %v513 = vld [vmem:[%s1 + $0x75c] sm:$0xff]
      %v514 = vld [vmem:[%s1 + $0x764] sm:$0xff]
      %v515 = vld [vmem:[%s1 + $0x76c] sm:$0xf]
      %v516 = vld [vmem:[%s1 + $0x770] sm:$0xff]
      %v517 = vld [vmem:[%s1 + $0x778] sm:$0xff]
      %v518 = vld [vmem:[%s1 + $0x780] sm:$0xff]
      %v519 = vld [vmem:[%s1 + $0x788] sm:$0xf]
      %v520 = vld [vmem:[%s1 + $0x78c] sm:$0xff]
      %v521 = vld [vmem:[%s1 + $0x794] sm:$0xff]
      %v522 = vld [vmem:[%s1 + $0x79c] sm:$0xff]
      %v523 = vld [vmem:[%s1 + $0x7a4] sm:$0xf]
      %v524 = vld [vmem:[%s1 + $0x7a8] sm:$0xff]
      %v525 = vld [vmem:[%s1 + $0x7b0] sm:$0xff]
      %v526 = vld [vmem:[%s1 + $0x7b8] sm:$0xff]
      %v527 = vld [vmem:[%s1 + $0x7c0] sm:$0xf]
      %v528 = vld [vmem:[%s1 + $0x7c4] sm:$0xff]
      %v529 = vld [vmem:[%s1 + $0x7cc] sm:$0xff]
      %v530 = vld [vmem:[%s1 + $0x7d4] sm:$0xff]
      %v531 = vld [vmem:[%s1 + $0x7dc] sm:$0xf]
      %v532 = vld [vmem:[%s1 + $0x7e0] sm:$0xff]
      %v533 = vld [vmem:[%s1 + $0x7e8] sm:$0xff]
      %v534 = vld [vmem:[%s1 + $0x7f0] sm:$0xff]
      %v535 = vld [vmem:[%s1 + $0x7f8] sm:$0xf]
      %v536 = vld [vmem:[%s1 + $0x7fc] sm:$0xff]
      %v537 = vld [vmem:[%s1 + $0x804] sm:$0xff]
      %v538 = vld [vmem:[%s1 + $0x80c] sm:$0xff]
      %v539 = vld [vmem:[%s1 + $0x814] sm:$0xf]
      %v540 = vld [vmem:[%s1 + $0x818] sm:$0xff]
      %v541 = vld [vmem:[%s1 + $0x820] sm:$0xff]
      %v542 = vld [vmem:[%s1 + $0x828] sm:$0xff]
      %v543 = vld [vmem:[%s1 + $0x830] sm:$0xf]
      %v544 = vld [vmem:[%s1 + $0x834] sm:$0xff]
      %v545 = vld [vmem:[%s1 + $0x83c] sm:$0xff]
      %v546 = vld [vmem:[%s1 + $0x844] sm:$0xff]
      %v547 = vld [vmem:[%s1 + $0x84c] sm:$0xf]
      %v548 = vld [vmem:[%s1 + $0x850] sm:$0xff]
      %v549 = vld [vmem:[%s1 + $0x858] sm:$0xff]
      %v550 = vld [vmem:[%s1 + $0x860] sm:$0xff]
      %v551 = vld [vmem:[%s1 + $0x868] sm:$0xf]
      %v552 = vld [vmem:[%s1 + $0x86c] sm:$0xff]
      %v553 = vld [vmem:[%s1 + $0x874] sm:$0xff]
      %v554 = vld [vmem:[%s1 + $0x87c] sm:$0xff]
      %v555 = vld [vmem:[%s1 + $0x884] sm:$0xf]
      %v556 = vld [vmem:[%s1 + $0x888] sm:$0xff]
      %v557 = vld [vmem:[%s1 + $0x890] sm:$0xff]
      %v558 = vld [vmem:[%s1 + $0x898] sm:$0xff]
      %v559 = vld [vmem:[%s1 + $0x8a0] sm:$0xf]
      %v560 = vld [vmem:[%s1 + $0x8a4] sm:$0xff]
      %v561 = vld [vmem:[%s1 + $0x8ac] sm:$0xff]
      %v562 = vld [vmem:[%s1 + $0x8b4] sm:$0xff]
      %v563 = vld [vmem:[%s1 + $0x8bc] sm:$0xf]
      %v564 = vld [vmem:[%s1 + $0x8c0] sm:$0xff]
      %v565 = vld [vmem:[%s1 + $0x8c8] sm:$0xff]
      %v566 = vld [vmem:[%s1 + $0x8d0] sm:$0xff]
      %v567 = vld [vmem:[%s1 + $0x8d8] sm:$0xf]
      %v568 = vld [vmem:[%s1 + $0x8dc] sm:$0xff]
      %v569 = vld [vmem:[%s1 + $0x8e4] sm:$0xff]
      %v570 = vld [vmem:[%s1 + $0x8ec] sm:$0xff]
      %v571 = vld [vmem:[%s1 + $0x8f4] sm:$0xf]
      %v572 = vld [vmem:[%s1 + $0x8f8] sm:$0xff]
      %v573 = vld [vmem:[%s1 + $0x900] sm:$0xff]
      %v574 = vld [vmem:[%s1 + $0x908] sm:$0xff]
      %v575 = vld [vmem:[%s1 + $0x910] sm:$0xf]
      %v576 = vld [vmem:[%s1 + $0x914] sm:$0xff]
      %v577 = vld [vmem:[%s1 + $0x91c] sm:$0xff]
      %v578 = vld [vmem:[%s1 + $0x924] sm:$0xff]
      %v579 = vld [vmem:[%s1 + $0x92c] sm:$0xf]
      %v580 = vld [vmem:[%s1 + $0x930] sm:$0xff]
      %v581 = vld [vmem:[%s1 + $0x938] sm:$0xff]
      %v582 = vld [vmem:[%s1 + $0x940] sm:$0xff]
      %v583 = vld [vmem:[%s1 + $0x948] sm:$0xf]
      %v584 = vld [vmem:[%s1 + $0x94c] sm:$0xff]
      %v585 = vld [vmem:[%s1 + $0x954] sm:$0xff]
      %v586 = vld [vmem:[%s1 + $0x95c] sm:$0xff]
      %v587 = vld [vmem:[%s1 + $0x964] sm:$0xf]
      %v588 = vld [vmem:[%s1 + $0x968] sm:$0xff]
      %v589 = vld [vmem:[%s1 + $0x970] sm:$0xff]
      %v590 = vld [vmem:[%s1 + $0x978] sm:$0xff]
      %v591 = vld [vmem:[%s1 + $0x980] sm:$0xf]
      %v592 = vld [vmem:[%s1 + $0x984] sm:$0xff]
      %v593 = vld [vmem:[%s1 + $0x98c] sm:$0xff]
      %v594 = vld [vmem:[%s1 + $0x994] sm:$0xff]
      %v595 = vld [vmem:[%s1 + $0x99c] sm:$0xf]
      %v596 = vld [vmem:[%s1 + $0x9a0] sm:$0xff]
      %v597 = vld [vmem:[%s1 + $0x9a8] sm:$0xff]
      %v598 = vld [vmem:[%s1 + $0x9b0] sm:$0xff]
      %v599 = vld [vmem:[%s1 + $0x9b8] sm:$0xf]
      %v600 = vld [vmem:[%s1 + $0x9bc] sm:$0xff]
      %v601 = vld [vmem:[%s1 + $0x9c4] sm:$0xff]
      %v602 = vld [vmem:[%s1 + $0x9cc] sm:$0xff]
      %v603 = vld [vmem:[%s1 + $0x9d4] sm:$0xf]
      %v604 = vld [vmem:[%s1 + $0x9d8] sm:$0xff]
      %v605 = vld [vmem:[%s1 + $0x9e0] sm:$0xff]
      %v606 = vld [vmem:[%s1 + $0x9e8] sm:$0xff]
      %v607 = vld [vmem:[%s1 + $0x9f0] sm:$0xf]
      %v608 = vld [vmem:[%s1 + $0x9f4] sm:$0xff]
      %v609 = vld [vmem:[%s1 + $0x9fc] sm:$0xff]
      %v610 = vld [vmem:[%s1 + $0xa04] sm:$0xff]
      %v611 = vld [vmem:[%s1 + $0xa0c] sm:$0xf]
      %v612 = vld [vmem:[%s1 + $0xa10] sm:$0xff]
      %v613 = vld [vmem:[%s1 + $0xa18] sm:$0xff]
      %v614 = vld [vmem:[%s1 + $0xa20] sm:$0xff]
      %v615 = vld [vmem:[%s1 + $0xa28] sm:$0xf]
      %v616 = vld [vmem:[%s1 + $0xa2c] sm:$0xff]
      %v617 = vld [vmem:[%s1 + $0xa34] sm:$0xff]
      %v618 = vld [vmem:[%s1 + $0xa3c] sm:$0xff]
      %v619 = vld [vmem:[%s1 + $0xa44] sm:$0xf]
      %v620 = vld [vmem:[%s1 + $0xa48] sm:$0xff]
      %v621 = vld [vmem:[%s1 + $0xa50] sm:$0xff]
      %v622 = vld [vmem:[%s1 + $0xa58] sm:$0xff]
      %v623 = vld [vmem:[%s1 + $0xa60] sm:$0xf]
      %v624 = vld [vmem:[%s1 + $0xa64] sm:$0xff]
      %v625 = vld [vmem:[%s1 + $0xa6c] sm:$0xff]
      %v626 = vld [vmem:[%s1 + $0xa74] sm:$0xff]
      %v627 = vld [vmem:[%s1 + $0xa7c] sm:$0xf]
      %v628 = vld [vmem:[%s1 + $0xa80] sm:$0xff]
      %v629 = vld [vmem:[%s1 + $0xa88] sm:$0xff]
      %v630 = vld [vmem:[%s1 + $0xa90] sm:$0xff]
      %v631 = vld [vmem:[%s1 + $0xa98] sm:$0xf]
      %v632 = vld [vmem:[%s1 + $0xa9c] sm:$0xff]
      %v633 = vld [vmem:[%s1 + $0xaa4] sm:$0xff]
      %v634 = vld [vmem:[%s1 + $0xaac] sm:$0xff]
      %v635 = vld [vmem:[%s1 + $0xab4] sm:$0xf]
      %v636 = vld [vmem:[%s1 + $0xab8] sm:$0xff]
      %v637 = vld [vmem:[%s1 + $0xac0] sm:$0xff]
      %v638 = vld [vmem:[%s1 + $0xac8] sm:$0xff]
      %v639 = vld [vmem:[%s1 + $0xad0] sm:$0xf]
      %v640 = vld [vmem:[%s1 + $0xad4] sm:$0xff]
      %v641 = vld [vmem:[%s1 + $0xadc] sm:$0xff]
      %v642 = vld [vmem:[%s1 + $0xae4] sm:$0xff]
      %v643 = vld [vmem:[%s1 + $0xaec] sm:$0xf]
      %v644 = vld [vmem:[%s1 + $0xaf0] sm:$0xff]
      %v645 = vld [vmem:[%s1 + $0xaf8] sm:$0xff]
      %v646 = vld [vmem:[%s1 + $0xb00] sm:$0xff]
      %v647 = vld [vmem:[%s1 + $0xb08] sm:$0xf]
      %v648 = vld [vmem:[%s1 + $0xb0c] sm:$0xff]
      %v649 = vld [vmem:[%s1 + $0xb14] sm:$0xff]
      %v650 = vld [vmem:[%s1 + $0xb1c] sm:$0xff]
      %v651 = vld [vmem:[%s1 + $0xb24] sm:$0xf]
      %v652 = vld [vmem:[%s1 + $0xb28] sm:$0xff]
      %v653 = vld [vmem:[%s1 + $0xb30] sm:$0xff]
      %v654 = vld [vmem:[%s1 + $0xb38] sm:$0xff]
      %v655 = vld [vmem:[%s1 + $0xb40] sm:$0xf]
      %v656 = vld [vmem:[%s1 + $0xb44] sm:$0xff]
      %v657 = vld [vmem:[%s1 + $0xb4c] sm:$0xff]
      %v658 = vld [vmem:[%s1 + $0xb54] sm:$0xff]
      %v659 = vld [vmem:[%s1 + $0xb5c] sm:$0xf]
      %v660 = vld [vmem:[%s1 + $0xb60] sm:$0xff]
      %v661 = vld [vmem:[%s1 + $0xb68] sm:$0xff]
      %v662 = vld [vmem:[%s1 + $0xb70] sm:$0xff]
      %v663 = vld [vmem:[%s1 + $0xb78] sm:$0xf]
      %v664 = vld [vmem:[%s1 + $0xb7c] sm:$0xff]
      %v665 = vld [vmem:[%s1 + $0xb84] sm:$0xff]
      %v666 = vld [vmem:[%s1 + $0xb8c] sm:$0xff]
      %v667 = vld [vmem:[%s1 + $0xb94] sm:$0xf]
      %v668 = vld [vmem:[%s1 + $0xb98] sm:$0xff]
      %v669 = vld [vmem:[%s1 + $0xba0] sm:$0xff]
      %v670 = vld [vmem:[%s1 + $0xba8] sm:$0xff]
      %v671 = vld [vmem:[%s1 + $0xbb0] sm:$0xf]
      %v672 = vld [vmem:[%s1 + $0xbb4] sm:$0xff]
      %v673 = vld [vmem:[%s1 + $0xbbc] sm:$0xff]
      %v674 = vld [vmem:[%s1 + $0xbc4] sm:$0xff]
      %v675 = vld [vmem:[%s1 + $0xbcc] sm:$0xf]
      %v676 = vld [vmem:[%s1 + $0xbd0] sm:$0xff]
      %v677 = vld [vmem:[%s1 + $0xbd8] sm:$0xff]
      %v678 = vld [vmem:[%s1 + $0xbe0] sm:$0xff]
      %v679 = vld [vmem:[%s1 + $0xbe8] sm:$0xf]
      %v680 = vld [vmem:[%s1 + $0xbec] sm:$0xff]
      %v681 = vld [vmem:[%s1 + $0xbf4] sm:$0xff]
      %v682 = vld [vmem:[%s1 + $0xbfc] sm:$0xff]
      %v683 = vld [vmem:[%s1 + $0xc04] sm:$0xf]
      %v684 = vld [vmem:[%s1 + $0xc08] sm:$0xff]
      %v685 = vld [vmem:[%s1 + $0xc10] sm:$0xff]
      %v686 = vld [vmem:[%s1 + $0xc18] sm:$0xff]
      %v687 = vld [vmem:[%s1 + $0xc20] sm:$0xf]
      %v688 = vld [vmem:[%s1 + $0xc24] sm:$0xff]
      %v689 = vld [vmem:[%s1 + $0xc2c] sm:$0xff]
      %v690 = vld [vmem:[%s1 + $0xc34] sm:$0xff]
      %v691 = vld [vmem:[%s1 + $0xc3c] sm:$0xf]
      %v692 = vld [vmem:[%s1 + $0xc40] sm:$0xff]
      %v693 = vld [vmem:[%s1 + $0xc48] sm:$0xff]
      %v694 = vld [vmem:[%s1 + $0xc50] sm:$0xff]
      %v695 = vld [vmem:[%s1 + $0xc58] sm:$0xf]
      %v696 = vld [vmem:[%s1 + $0xc5c] sm:$0xff]
      %v697 = vld [vmem:[%s1 + $0xc64] sm:$0xff]
      %v698 = vld [vmem:[%s1 + $0xc6c] sm:$0xff]
      %v699 = vld [vmem:[%s1 + $0xc74] sm:$0xf]
      %v700 = vld [vmem:[%s1 + $0xc78] sm:$0xff]
      %v701 = vld [vmem:[%s1 + $0xc80] sm:$0xff]
      %v702 = vld [vmem:[%s1 + $0xc88] sm:$0xff]
      %v703 = vld [vmem:[%s1 + $0xc90] sm:$0xf]
      %v704 = vld [vmem:[%s1 + $0xc94] sm:$0xff]
      %v705 = vld [vmem:[%s1 + $0xc9c] sm:$0xff]
      %v706 = vld [vmem:[%s1 + $0xca4] sm:$0xff]
      %v707 = vld [vmem:[%s1 + $0xcac] sm:$0xf]
      %v708 = vld [vmem:[%s1 + $0xcb0] sm:$0xff]
      %v709 = vld [vmem:[%s1 + $0xcb8] sm:$0xff]
      %v710 = vld [vmem:[%s1 + $0xcc0] sm:$0xff]
      %v711 = vld [vmem:[%s1 + $0xcc8] sm:$0xf]
      %v712 = vld [vmem:[%s1 + $0xccc] sm:$0xff]
      %v713 = vld [vmem:[%s1 + $0xcd4] sm:$0xff]
      %v714 = vld [vmem:[%s1 + $0xcdc] sm:$0xff]
      %v715 = vld [vmem:[%s1 + $0xce4] sm:$0xf]
      %v716 = vld [vmem:[%s1 + $0xce8] sm:$0xff]
      %v717 = vld [vmem:[%s1 + $0xcf0] sm:$0xff]
      %v718 = vld [vmem:[%s1 + $0xcf8] sm:$0xff]
      %v719 = vld [vmem:[%s1 + $0xd00] sm:$0xf]
      %v720 = vld [vmem:[%s1 + $0xd04] sm:$0xff]
      %v721 = vld [vmem:[%s1 + $0xd0c] sm:$0xff]
      %v722 = vld [vmem:[%s1 + $0xd14] sm:$0xff]
      %v723 = vld [vmem:[%s1 + $0xd1c] sm:$0xf]
      %v724 = vld [vmem:[%s1 + $0xd20] sm:$0xff]
      %v725 = vld [vmem:[%s1 + $0xd28] sm:$0xff]
      %v726 = vld [vmem:[%s1 + $0xd30] sm:$0xff]
      %v727 = vld [vmem:[%s1 + $0xd38] sm:$0xf]
      %v728 = vld [vmem:[%s1 + $0xd3c] sm:$0xff]
      %v729 = vld [vmem:[%s1 + $0xd44] sm:$0xff]
      %v730 = vld [vmem:[%s1 + $0xd4c] sm:$0xff]
      %v731 = vld [vmem:[%s1 + $0xd54] sm:$0xf]
      %v732 = vld [vmem:[%s1 + $0xd58] sm:$0xff]
      %v733 = vld [vmem:[%s1 + $0xd60] sm:$0xff]
      %v734 = vld [vmem:[%s1 + $0xd68] sm:$0xff]
      %v735 = vld [vmem:[%s1 + $0xd70] sm:$0xf]
      %v736 = vld [vmem:[%s1 + $0xd74] sm:$0xff]
      %v737 = vld [vmem:[%s1 + $0xd7c] sm:$0xff]
      %v738 = vld [vmem:[%s1 + $0xd84] sm:$0xff]
      %v739 = vld [vmem:[%s1 + $0xd8c] sm:$0xf]
      %v740 = vld [vmem:[%s1 + $0xd90] sm:$0xff]
      %v741 = vld [vmem:[%s1 + $0xd98] sm:$0xff]
      %v742 = vld [vmem:[%s1 + $0xda0] sm:$0xff]
      %v743 = vld [vmem:[%s1 + $0xda8] sm:$0xf]
      %v744 = vld [vmem:[%s1 + $0xdac] sm:$0xff]
      %v745 = vld [vmem:[%s1 + $0xdb4] sm:$0xff]
      %v746 = vld [vmem:[%s1 + $0xdbc] sm:$0xff]
      %v747 = vld [vmem:[%s1 + $0xdc4] sm:$0xf]
      %v748 = vld [vmem:[%s1 + $0xdc8] sm:$0xff]
      %v749 = vld [vmem:[%s1 + $0xdd0] sm:$0xff]
      %v750 = vld [vmem:[%s1 + $0xdd8] sm:$0xff]
      %v751 = vld [vmem:[%s1 + $0xde0] sm:$0xf]
      %v752 = vld [vmem:[%s1 + $0xde4] sm:$0xff]
      %v753 = vld [vmem:[%s1 + $0xdec] sm:$0xff]
      %v754 = vld [vmem:[%s1 + $0xdf4] sm:$0xff]
      %v755 = vld [vmem:[%s1 + $0xdfc] sm:$0xf]
      %v756 = vld [vmem:[%s1 + $0xe00] sm:$0xff]
      %v757 = vld [vmem:[%s1 + $0xe08] sm:$0xff]
      %v758 = vld [vmem:[%s1 + $0xe10] sm:$0xff]
      %v759 = vld [vmem:[%s1 + $0xe18] sm:$0xf]
      %v760 = vld [vmem:[%s1 + $0xe1c] sm:$0xff]
      %v761 = vld [vmem:[%s1 + $0xe24] sm:$0xff]
      %v762 = vld [vmem:[%s1 + $0xe2c] sm:$0xff]
      %v763 = vld [vmem:[%s1 + $0xe34] sm:$0xf]
      %v764 = vld [vmem:[%s1 + $0xe38] sm:$0xff]
      %v765 = vld [vmem:[%s1 + $0xe40] sm:$0xff]
      %v766 = vld [vmem:[%s1 + $0xe48] sm:$0xff]
      %v767 = vld [vmem:[%s1 + $0xe50] sm:$0xf]
      %v768 = vld [vmem:[%s1 + $0xe54] sm:$0xff]
      %v769 = vld [vmem:[%s1 + $0xe5c] sm:$0xff]
      %v770 = vld [vmem:[%s1 + $0xe64] sm:$0xff]
      %v771 = vld [vmem:[%s1 + $0xe6c] sm:$0xf]
      %v772 = vld [vmem:[%s1 + $0xe70] sm:$0xff]
      %v773 = vld [vmem:[%s1 + $0xe78] sm:$0xff]
      %v774 = vld [vmem:[%s1 + $0xe80] sm:$0xff]
      %v775 = vld [vmem:[%s1 + $0xe88] sm:$0xf]
      %v776 = vld [vmem:[%s1 + $0xe8c] sm:$0xff]
      %v777 = vld [vmem:[%s1 + $0xe94] sm:$0xff]
      %v778 = vld [vmem:[%s1 + $0xe9c] sm:$0xff]
      %v779 = vld [vmem:[%s1 + $0xea4] sm:$0xf]
      %v780 = vld [vmem:[%s1 + $0xea8] sm:$0xff]
      %v781 = vld [vmem:[%s1 + $0xeb0] sm:$0xff]
      %v782 = vld [vmem:[%s1 + $0xeb8] sm:$0xff]
      %v783 = vld [vmem:[%s1 + $0xec0] sm:$0xf]
      %v784 = vld [vmem:[%s1 + $0xec4] sm:$0xff]
      %v785 = vld [vmem:[%s1 + $0xecc] sm:$0xff]
      %v786 = vld [vmem:[%s1 + $0xed4] sm:$0xff]
      %v787 = vld [vmem:[%s1 + $0xedc] sm:$0xf]
      %v788 = vld [vmem:[%s1 + $0xee0] sm:$0xff]
      %v789 = vld [vmem:[%s1 + $0xee8] sm:$0xff]
      %v790 = vld [vmem:[%s1 + $0xef0] sm:$0xff]
      %v791 = vld [vmem:[%s1 + $0xef8] sm:$0xf]
      %v792 = vld [vmem:[%s1 + $0xefc] sm:$0xff]
      %v793 = vld [vmem:[%s1 + $0xf04] sm:$0xff]
      %v794 = vld [vmem:[%s1 + $0xf0c] sm:$0xff]
      %v795 = vld [vmem:[%s1 + $0xf14] sm:$0xf]
      %v796 = vld [vmem:[%s1 + $0xf18] sm:$0xff]
      %v797 = vld [vmem:[%s1 + $0xf20] sm:$0xff]
      %v798 = vld [vmem:[%s1 + $0xf28] sm:$0xff]
      %v799 = vld [vmem:[%s1 + $0xf30] sm:$0xf]
      %v800 = vld [vmem:[%s1 + $0xf34] sm:$0xff]
      %v801 = vld [vmem:[%s1 + $0xf3c] sm:$0xff]
      %v802 = vld [vmem:[%s1 + $0xf44] sm:$0xff]
      %v803 = vld [vmem:[%s1 + $0xf4c] sm:$0xf]
      %v804 = vld [vmem:[%s1 + $0xf50] sm:$0xff]
      %v805 = vld [vmem:[%s1 + $0xf58] sm:$0xff]
      %v806 = vld [vmem:[%s1 + $0xf60] sm:$0xff]
      %v807 = vld [vmem:[%s1 + $0xf68] sm:$0xf]
      %v808 = vld [vmem:[%s1 + $0xf6c] sm:$0xff]
      %v809 = vld [vmem:[%s1 + $0xf74] sm:$0xff]
      %v810 = vld [vmem:[%s1 + $0xf7c] sm:$0xff]
      %v811 = vld [vmem:[%s1 + $0xf84] sm:$0xf]
      %v812 = vld [vmem:[%s1 + $0xf88] sm:$0xff]
      %v813 = vld [vmem:[%s1 + $0xf90] sm:$0xff]
      %v814 = vld [vmem:[%s1 + $0xf98] sm:$0xff]
      %v815 = vld [vmem:[%s1 + $0xfa0] sm:$0xf]
      %v816 = vld [vmem:[%s1 + $0xfa4] sm:$0xff]
      %v817 = vld [vmem:[%s1 + $0xfac] sm:$0xff]
      %v818 = vld [vmem:[%s1 + $0xfb4] sm:$0xff]
      %v819 = vld [vmem:[%s1 + $0xfbc] sm:$0xf]
      %v820 = vld [vmem:[%s1 + $0xfc0] sm:$0xff]
      %v821 = vld [vmem:[%s1 + $0xfc8] sm:$0xff]
      %v822 = vld [vmem:[%s1 + $0xfd0] sm:$0xff]
      %v823 = vld [vmem:[%s1 + $0xfd8] sm:$0xf]
      %v824 = vld [vmem:[%s1 + $0xfdc] sm:$0xff]
      %v825 = vld [vmem:[%s1 + $0xfe4] sm:$0xff]
      %v826 = vld [vmem:[%s1 + $0xfec] sm:$0xff]
      %v827 = vld [vmem:[%s1 + $0xff4] sm:$0xf]
      %v828 = vld [vmem:[%s1 + $0xff8] sm:$0xff]
      %v829 = vld [vmem:[%s1 + $0x1000] sm:$0xff]
      %v830 = vld [vmem:[%s1 + $0x1008] sm:$0xff]
      %v831 = vld [vmem:[%s1 + $0x1010] sm:$0xf]
      %v832 = vld [vmem:[%s1 + $0x1014] sm:$0xff]
      %v833 = vld [vmem:[%s1 + $0x101c] sm:$0xff]
      %v834 = vld [vmem:[%s1 + $0x1024] sm:$0xff]
      %v835 = vld [vmem:[%s1 + $0x102c] sm:$0xf]
      %v836 = vld [vmem:[%s1 + $0x1030] sm:$0xff]
      %v837 = vld [vmem:[%s1 + $0x1038] sm:$0xff]
      %v838 = vld [vmem:[%s1 + $0x1040] sm:$0xff]
      %v839 = vld [vmem:[%s1 + $0x1048] sm:$0xf]
      %v840 = vld [vmem:[%s1 + $0x104c] sm:$0xff]
      %v841 = vld [vmem:[%s1 + $0x1054] sm:$0xff]
      %v842 = vld [vmem:[%s1 + $0x105c] sm:$0xff]
      %v843 = vld [vmem:[%s1 + $0x1064] sm:$0xf]
      %v844 = vld [vmem:[%s1 + $0x1068] sm:$0xff]
      %v845 = vld [vmem:[%s1 + $0x1070] sm:$0xff]
      %v846 = vld [vmem:[%s1 + $0x1078] sm:$0xff]
      %v847 = vld [vmem:[%s1 + $0x1080] sm:$0xf]
      %v848 = vld [vmem:[%s1 + $0x1084] sm:$0xff]
      %v849 = vld [vmem:[%s1 + $0x108c] sm:$0xff]
      %v850 = vld [vmem:[%s1 + $0x1094] sm:$0xff]
      %v851 = vld [vmem:[%s1 + $0x109c] sm:$0xf]
      %v852 = vld [vmem:[%s1 + $0x10a0] sm:$0xff]
      %v853 = vld [vmem:[%s1 + $0x10a8] sm:$0xff]
      %v854 = vld [vmem:[%s1 + $0x10b0] sm:$0xff]
      %v855 = vld [vmem:[%s1 + $0x10b8] sm:$0xf]
      %v856 = vld [vmem:[%s1 + $0x10bc] sm:$0xff]
      %v857 = vld [vmem:[%s1 + $0x10c4] sm:$0xff]
      %v858 = vld [vmem:[%s1 + $0x10cc] sm:$0xff]
      %v859 = vld [vmem:[%s1 + $0x10d4] sm:$0xf]
      %v860 = vld [vmem:[%s1 + $0x10d8] sm:$0xff]
      %v861 = vld [vmem:[%s1 + $0x10e0] sm:$0xff]
      %v862 = vld [vmem:[%s1 + $0x10e8] sm:$0xff]
      %v863 = vld [vmem:[%s1 + $0x10f0] sm:$0xf]
      %v864 = vld [vmem:[%s1 + $0x10f4] sm:$0xff]
      %v865 = vld [vmem:[%s1 + $0x10fc] sm:$0xff]
      %v866 = vld [vmem:[%s1 + $0x1104] sm:$0xff]
      %v867 = vld [vmem:[%s1 + $0x110c] sm:$0xf]
      %v868 = vld [vmem:[%s1 + $0x1110] sm:$0xff]
      %v869 = vld [vmem:[%s1 + $0x1118] sm:$0xff]
      %v870 = vld [vmem:[%s1 + $0x1120] sm:$0xff]
      %v871 = vld [vmem:[%s1 + $0x1128] sm:$0xf]
      %v872 = vld [vmem:[%s1 + $0x112c] sm:$0xff]
      %v873 = vld [vmem:[%s1 + $0x1134] sm:$0xff]
      %v874 = vld [vmem:[%s1 + $0x113c] sm:$0xff]
      %v875 = vld [vmem:[%s1 + $0x1144] sm:$0xf]
      %v876 = vld [vmem:[%s1 + $0x1148] sm:$0xff]
      %v877 = vld [vmem:[%s1 + $0x1150] sm:$0xff]
      %v878 = vld [vmem:[%s1 + $0x1158] sm:$0xff]
      %v879 = vld [vmem:[%s1 + $0x1160] sm:$0xf]
      %v880 = vld [vmem:[%s1 + $0x1164] sm:$0xff]
      %v881 = vld [vmem:[%s1 + $0x116c] sm:$0xff]
      %v882 = vld [vmem:[%s1 + $0x1174] sm:$0xff]
      %v883 = vld [vmem:[%s1 + $0x117c] sm:$0xf]
      %v884 = vld [vmem:[%s1 + $0x1180] sm:$0xff]
      %v885 = vld [vmem:[%s1 + $0x1188] sm:$0xff]
      %v886 = vld [vmem:[%s1 + $0x1190] sm:$0xff]
      %v887 = vld [vmem:[%s1 + $0x1198] sm:$0xf]
      %v888 = vld [vmem:[%s1 + $0x119c] sm:$0xff]
      %v889 = vld [vmem:[%s1 + $0x11a4] sm:$0xff]
      %v890 = vld [vmem:[%s1 + $0x11ac] sm:$0xff]
      %v891 = vld [vmem:[%s1 + $0x11b4] sm:$0xf]
      %v892 = vld [vmem:[%s1 + $0x11b8] sm:$0xff]
      %v893 = vld [vmem:[%s1 + $0x11c0] sm:$0xff]
      %v894 = vld [vmem:[%s1 + $0x11c8] sm:$0xff]
      %v895 = vld [vmem:[%s1 + $0x11d0] sm:$0xf]
      %v896 = vld [vmem:[%s1 + $0x11d4] sm:$0xff]
      %v897 = vld [vmem:[%s1 + $0x11dc] sm:$0xff]
      %v898 = vld [vmem:[%s1 + $0x11e4] sm:$0xff]
      %v899 = vld [vmem:[%s1 + $0x11ec] sm:$0xf]
      %v900 = vld [vmem:[%s1 + $0x11f0] sm:$0xff]
      %v901 = vld [vmem:[%s1 + $0x11f8] sm:$0xff]
      %v902 = vld [vmem:[%s1 + $0x1200] sm:$0xff]
      %v903 = vld [vmem:[%s1 + $0x1208] sm:$0xf]
      %v904 = vld [vmem:[%s1 + $0x120c] sm:$0xff]
      %v905 = vld [vmem:[%s1 + $0x1214] sm:$0xff]
      %v906 = vld [vmem:[%s1 + $0x121c] sm:$0xff]
      %v907 = vld [vmem:[%s1 + $0x1224] sm:$0xf]
      %v908 = vld [vmem:[%s1 + $0x1228] sm:$0xff]
      %v909 = vld [vmem:[%s1 + $0x1230] sm:$0xff]
      %v910 = vld [vmem:[%s1 + $0x1238] sm:$0xff]
      %v911 = vld [vmem:[%s1 + $0x1240] sm:$0xf]
      %v912 = vld [vmem:[%s1 + $0x1244] sm:$0xff]
      %v913 = vld [vmem:[%s1 + $0x124c] sm:$0xff]
      %v914 = vld [vmem:[%s1 + $0x1254] sm:$0xff]
      %v915 = vld [vmem:[%s1 + $0x125c] sm:$0xf]
      %v916 = vld [vmem:[%s1 + $0x1260] sm:$0xff]
      %v917 = vld [vmem:[%s1 + $0x1268] sm:$0xff]
      %v918 = vld [vmem:[%s1 + $0x1270] sm:$0xff]
      %v919 = vld [vmem:[%s1 + $0x1278] sm:$0xf]
      %v920 = vld [vmem:[%s1 + $0x127c] sm:$0xff]
      %v921 = vld [vmem:[%s1 + $0x1284] sm:$0xff]
      %v922 = vld [vmem:[%s1 + $0x128c] sm:$0xff]
      %v923 = vld [vmem:[%s1 + $0x1294] sm:$0xf]
      %v924 = vld [vmem:[%s1 + $0x1298] sm:$0xff]
      %v925 = vld [vmem:[%s1 + $0x12a0] sm:$0xff]
      %v926 = vld [vmem:[%s1 + $0x12a8] sm:$0xff]
      %v927 = vld [vmem:[%s1 + $0x12b0] sm:$0xf]
      %v928 = vld [vmem:[%s1 + $0x12b4] sm:$0xff]
      %v929 = vld [vmem:[%s1 + $0x12bc] sm:$0xff]
      %v930 = vld [vmem:[%s1 + $0x12c4] sm:$0xff]
      %v931 = vld [vmem:[%s1 + $0x12cc] sm:$0xf]
      %v932 = vld [vmem:[%s1 + $0x12d0] sm:$0xff]
      %v933 = vld [vmem:[%s1 + $0x12d8] sm:$0xff]
      %v934 = vld [vmem:[%s1 + $0x12e0] sm:$0xff]
      %v935 = vld [vmem:[%s1 + $0x12e8] sm:$0xf]
      %v936 = vld [vmem:[%s1 + $0x12ec] sm:$0xff]
      %v937 = vld [vmem:[%s1 + $0x12f4] sm:$0xff]
      %v938 = vld [vmem:[%s1 + $0x12fc] sm:$0xff]
      %v939 = vld [vmem:[%s1 + $0x1304] sm:$0xf]
      %v940 = vld [vmem:[%s1 + $0x1308] sm:$0xff]
      %v941 = vld [vmem:[%s1 + $0x1310] sm:$0xff]
      %v942 = vld [vmem:[%s1 + $0x1318] sm:$0xff]
      %v943 = vld [vmem:[%s1 + $0x1320] sm:$0xf]
      %v944 = vld [vmem:[%s1 + $0x1324] sm:$0xff]
      %v945 = vld [vmem:[%s1 + $0x132c] sm:$0xff]
      %v946 = vld [vmem:[%s1 + $0x1334] sm:$0xff]
      %v947 = vld [vmem:[%s1 + $0x133c] sm:$0xf]
      %v948 = vld [vmem:[%s1 + $0x1340] sm:$0xff]
      %v949 = vld [vmem:[%s1 + $0x1348] sm:$0xff]
      %v950 = vld [vmem:[%s1 + $0x1350] sm:$0xff]
      %v951 = vld [vmem:[%s1 + $0x1358] sm:$0xf]
      %v952 = vld [vmem:[%s1 + $0x135c] sm:$0xff]
      %v953 = vld [vmem:[%s1 + $0x1364] sm:$0xff]
      %v954 = vld [vmem:[%s1 + $0x136c] sm:$0xff]
      %v955 = vld [vmem:[%s1 + $0x1374] sm:$0xf]
      %v956 = vld [vmem:[%s1 + $0x1378] sm:$0xff]
      %v957 = vld [vmem:[%s1 + $0x1380] sm:$0xff]
      %v958 = vld [vmem:[%s1 + $0x1388] sm:$0xff]
      %v959 = vld [vmem:[%s1 + $0x1390] sm:$0xf]
      %v960 = vld [vmem:[%s1 + $0x1394] sm:$0xff]
      %v961 = vld [vmem:[%s1 + $0x139c] sm:$0xff]
      %v962 = vld [vmem:[%s1 + $0x13a4] sm:$0xff]
      %v963 = vld [vmem:[%s1 + $0x13ac] sm:$0xf]
      %v964 = vld [vmem:[%s1 + $0x13b0] sm:$0xff]
      %v965 = vld [vmem:[%s1 + $0x13b8] sm:$0xff]
      %v966 = vld [vmem:[%s1 + $0x13c0] sm:$0xff]
      %v967 = vld [vmem:[%s1 + $0x13c8] sm:$0xf]
      %v968 = vld [vmem:[%s1 + $0x13cc] sm:$0xff]
      %v969 = vld [vmem:[%s1 + $0x13d4] sm:$0xff]
      %v970 = vld [vmem:[%s1 + $0x13dc] sm:$0xff]
      %v971 = vld [vmem:[%s1 + $0x13e4] sm:$0xf]
      %v972 = vld [vmem:[%s1 + $0x13e8] sm:$0xff]
      %v973 = vld [vmem:[%s1 + $0x13f0] sm:$0xff]
      %v974 = vld [vmem:[%s1 + $0x13f8] sm:$0xff]
      %v975 = vld [vmem:[%s1 + $0x1400] sm:$0xf]
      %v976 = vld [vmem:[%s1 + $0x1404] sm:$0xff]
      %v977 = vld [vmem:[%s1 + $0x140c] sm:$0xff]
      %v978 = vld [vmem:[%s1 + $0x1414] sm:$0xff]
      %v979 = vld [vmem:[%s1 + $0x141c] sm:$0xf]
      %v980 = vld [vmem:[%s1 + $0x1420] sm:$0xff]
      %v981 = vld [vmem:[%s1 + $0x1428] sm:$0xff]
      %v982 = vld [vmem:[%s1 + $0x1430] sm:$0xff]
      %v983 = vld [vmem:[%s1 + $0x1438] sm:$0xf]
      %v984 = vld [vmem:[%s1 + $0x143c] sm:$0xff]
      %v985 = vld [vmem:[%s1 + $0x1444] sm:$0xff]
      %v986 = vld [vmem:[%s1 + $0x144c] sm:$0xff]
      %v987 = vld [vmem:[%s1 + $0x1454] sm:$0xf]
      %v988 = vld [vmem:[%s1 + $0x1458] sm:$0xff]
      %v989 = vld [vmem:[%s1 + $0x1460] sm:$0xff]
      %v990 = vld [vmem:[%s1 + $0x1468] sm:$0xff]
      %v991 = vld [vmem:[%s1 + $0x1470] sm:$0xf]
      %v992 = vld [vmem:[%s1 + $0x1474] sm:$0xff]
      %v993 = vld [vmem:[%s1 + $0x147c] sm:$0xff]
      %v994 = vld [vmem:[%s1 + $0x1484] sm:$0xff]
      %v995 = vld [vmem:[%s1 + $0x148c] sm:$0xf]
      %v996 = vld [vmem:[%s1 + $0x1490] sm:$0xff]
      %v997 = vld [vmem:[%s1 + $0x1498] sm:$0xff]
      %v998 = vld [vmem:[%s1 + $0x14a0] sm:$0xff]
      %v999 = vld [vmem:[%s1 + $0x14a8] sm:$0xf]
      %v1000 = vld [vmem:[%s1 + $0x14ac] sm:$0xff]
      %v1001 = vld [vmem:[%s1 + $0x14b4] sm:$0xff]
      %v1002 = vld [vmem:[%s1 + $0x14bc] sm:$0xff]
      %v1003 = vld [vmem:[%s1 + $0x14c4] sm:$0xf]
      %v1004 = vld [vmem:[%s1 + $0x14c8] sm:$0xff]
      %v1005 = vld [vmem:[%s1 + $0x14d0] sm:$0xff]
      %v1006 = vld [vmem:[%s1 + $0x14d8] sm:$0xff]
      %v1007 = vld [vmem:[%s1 + $0x14e0] sm:$0xf]
      %v1008 = vld [vmem:[%s1 + $0x14e4] sm:$0xff]
      %v1009 = vld [vmem:[%s1 + $0x14ec] sm:$0xff]
      %v1010 = vld [vmem:[%s1 + $0x14f4] sm:$0xff]
      %v1011 = vld [vmem:[%s1 + $0x14fc] sm:$0xf]
      %v1012 = vld [vmem:[%s1 + $0x1500] sm:$0xff]
      %v1013 = vld [vmem:[%s1 + $0x1508] sm:$0xff]
      %v1014 = vld [vmem:[%s1 + $0x1510] sm:$0xff]
      %v1015 = vld [vmem:[%s1 + $0x1518] sm:$0xf]
      %v1016 = vld [vmem:[%s1 + $0x151c] sm:$0xff]
      %v1017 = vld [vmem:[%s1 + $0x1524] sm:$0xff]
      %v1018 = vld [vmem:[%s1 + $0x152c] sm:$0xff]
      %v1019 = vld [vmem:[%s1 + $0x1534] sm:$0xf]
      %v1020 = vld [vmem:[%s1 + $0x1538] sm:$0xff]
      %v1021 = vld [vmem:[%s1 + $0x1540] sm:$0xff]
      %v1022 = vld [vmem:[%s1 + $0x1548] sm:$0xff]
      %v1023 = vld [vmem:[%s1 + $0x1550] sm:$0xf]
      %v1024 = vld [vmem:[%s1 + $0x1554] sm:$0xff]
      %v1025 = vld [vmem:[%s1 + $0x155c] sm:$0xff]
      %v1026 = vld [vmem:[%s1 + $0x1564] sm:$0xff]
      %v1027 = vld [vmem:[%s1 + $0x156c] sm:$0xf]
      %v1028 = vld [vmem:[%s1 + $0x1570] sm:$0xff]
      %v1029 = vld [vmem:[%s1 + $0x1578] sm:$0xff]
      %v1030 = vld [vmem:[%s1 + $0x1580] sm:$0xff]
      %v1031 = vld [vmem:[%s1 + $0x1588] sm:$0xf]
      %v1032 = vld [vmem:[%s1 + $0x158c] sm:$0xff]
      %v1033 = vld [vmem:[%s1 + $0x1594] sm:$0xff]
      %v1034 = vld [vmem:[%s1 + $0x159c] sm:$0xff]
      %v1035 = vld [vmem:[%s1 + $0x15a4] sm:$0xf]
      %v1036 = vld [vmem:[%s1 + $0x15a8] sm:$0xff]
      %v1037 = vld [vmem:[%s1 + $0x15b0] sm:$0xff]
      %v1038 = vld [vmem:[%s1 + $0x15b8] sm:$0xff]
      %v1039 = vld [vmem:[%s1 + $0x15c0] sm:$0xf]
      %v1040 = vld [vmem:[%s1 + $0x15c4] sm:$0xff]
      %v1041 = vld [vmem:[%s1 + $0x15cc] sm:$0xff]
      %v1042 = vld [vmem:[%s1 + $0x15d4] sm:$0xff]
      %v1043 = vld [vmem:[%s1 + $0x15dc] sm:$0xf]
      %v1044 = vld [vmem:[%s1 + $0x15e0] sm:$0xff]
      %v1045 = vld [vmem:[%s1 + $0x15e8] sm:$0xff]
      %v1046 = vld [vmem:[%s1 + $0x15f0] sm:$0xff]
      %v1047 = vld [vmem:[%s1 + $0x15f8] sm:$0xf]
      %v1048 = vld [vmem:[%s1 + $0x15fc] sm:$0xff]
      %v1049 = vld [vmem:[%s1 + $0x1604] sm:$0xff]
      %v1050 = vld [vmem:[%s1 + $0x160c] sm:$0xff]
      %v1051 = vld [vmem:[%s1 + $0x1614] sm:$0xf]
      %v1052 = vld [vmem:[%s1 + $0x1618] sm:$0xff]
      %v1053 = vld [vmem:[%s1 + $0x1620] sm:$0xff]
      %v1054 = vld [vmem:[%s1 + $0x1628] sm:$0xff]
      %v1055 = vld [vmem:[%s1 + $0x1630] sm:$0xf]
      %v1056 = vld [vmem:[%s1 + $0x1634] sm:$0xff]
      %v1057 = vld [vmem:[%s1 + $0x163c] sm:$0xff]
      %v1058 = vld [vmem:[%s1 + $0x1644] sm:$0xff]
      %v1059 = vld [vmem:[%s1 + $0x164c] sm:$0xf]
      %v1060 = vld [vmem:[%s1 + $0x1650] sm:$0xff]
      %v1061 = vld [vmem:[%s1 + $0x1658] sm:$0xff]
      %v1062 = vld [vmem:[%s1 + $0x1660] sm:$0xff]
      %v1063 = vld [vmem:[%s1 + $0x1668] sm:$0xf]
      %v1064 = vld [vmem:[%s1 + $0x166c] sm:$0xff]
      %v1065 = vld [vmem:[%s1 + $0x1674] sm:$0xff]
      %v1066 = vld [vmem:[%s1 + $0x167c] sm:$0xff]
      %v1067 = vld [vmem:[%s1 + $0x1684] sm:$0xf]
      %v1068 = vld [vmem:[%s1 + $0x1688] sm:$0xff]
      %v1069 = vld [vmem:[%s1 + $0x1690] sm:$0xff]
      %v1070 = vld [vmem:[%s1 + $0x1698] sm:$0xff]
      %v1071 = vld [vmem:[%s1 + $0x16a0] sm:$0xf]
      %v1072 = vld [vmem:[%s1 + $0x16a4] sm:$0xff]
      %v1073 = vld [vmem:[%s1 + $0x16ac] sm:$0xff]
      %v1074 = vld [vmem:[%s1 + $0x16b4] sm:$0xff]
      %v1075 = vld [vmem:[%s1 + $0x16bc] sm:$0xf]
      %v1076 = vld [vmem:[%s1 + $0x16c0] sm:$0xff]
      %v1077 = vld [vmem:[%s1 + $0x16c8] sm:$0xff]
      %v1078 = vld [vmem:[%s1 + $0x16d0] sm:$0xff]
      %v1079 = vld [vmem:[%s1 + $0x16d8] sm:$0xf]
      %v1080 = vld [vmem:[%s1 + $0x16dc] sm:$0xff]
      %v1081 = vld [vmem:[%s1 + $0x16e4] sm:$0xff]
      %v1082 = vld [vmem:[%s1 + $0x16ec] sm:$0xff]
      %v1083 = vld [vmem:[%s1 + $0x16f4] sm:$0xf]
      %v1084 = vld [vmem:[%s1 + $0x16f8] sm:$0xff]
      %v1085 = vld [vmem:[%s1 + $0x1700] sm:$0xff]
      %v1086 = vld [vmem:[%s1 + $0x1708] sm:$0xff]
      %v1087 = vld [vmem:[%s1 + $0x1710] sm:$0xf]
      %v1088 = vld [vmem:[%s1 + $0x1714] sm:$0xff]
      %v1089 = vld [vmem:[%s1 + $0x171c] sm:$0xff]
      %v1090 = vld [vmem:[%s1 + $0x1724] sm:$0xff]
      %v1091 = vld [vmem:[%s1 + $0x172c] sm:$0xf]
      %v1092 = vld [vmem:[%s1 + $0x1730] sm:$0xff]
      %v1093 = vld [vmem:[%s1 + $0x1738] sm:$0xff]
      %v1094 = vld [vmem:[%s1 + $0x1740] sm:$0xff]
      %v1095 = vld [vmem:[%s1 + $0x1748] sm:$0xf]
      %v1096 = vld [vmem:[%s1 + $0x174c] sm:$0xff]
      %v1097 = vld [vmem:[%s1 + $0x1754] sm:$0xff]
      %v1098 = vld [vmem:[%s1 + $0x175c] sm:$0xff]
      %v1099 = vld [vmem:[%s1 + $0x1764] sm:$0xf]
      %v1100 = vld [vmem:[%s1 + $0x1768] sm:$0xff]
      %v1101 = vld [vmem:[%s1 + $0x1770] sm:$0xff]
      %v1102 = vld [vmem:[%s1 + $0x1778] sm:$0xff]
      %v1103 = vld [vmem:[%s1 + $0x1780] sm:$0xf]
      %v1104 = vld [vmem:[%s1 + $0x1784] sm:$0xff]
      %v1105 = vld [vmem:[%s1 + $0x178c] sm:$0xff]
      %v1106 = vld [vmem:[%s1 + $0x1794] sm:$0xff]
      %v1107 = vld [vmem:[%s1 + $0x179c] sm:$0xf]
      %v1108 = vld [vmem:[%s1 + $0x17a0] sm:$0xff]
      %v1109 = vld [vmem:[%s1 + $0x17a8] sm:$0xff]
      %v1110 = vld [vmem:[%s1 + $0x17b0] sm:$0xff]
      %v1111 = vld [vmem:[%s1 + $0x17b8] sm:$0xf]
      %v1112 = vld [vmem:[%s1 + $0x17bc] sm:$0xff]
      %v1113 = vld [vmem:[%s1 + $0x17c4] sm:$0xff]
      %v1114 = vld [vmem:[%s1 + $0x17cc] sm:$0xff]
      %v1115 = vld [vmem:[%s1 + $0x17d4] sm:$0xf]
      %v1116 = vld [vmem:[%s1 + $0x17d8] sm:$0xff]
      %v1117 = vld [vmem:[%s1 + $0x17e0] sm:$0xff]
      %v1118 = vld [vmem:[%s1 + $0x17e8] sm:$0xff]
      %v1119 = vld [vmem:[%s1 + $0x17f0] sm:$0xf]
      %v1120 = vld [vmem:[%s1 + $0x17f4] sm:$0xff]
      %v1121 = vld [vmem:[%s1 + $0x17fc] sm:$0xff]
      %v1122 = vld [vmem:[%s1 + $0x1804] sm:$0xff]
      %v1123 = vld [vmem:[%s1 + $0x180c] sm:$0xf]
      %v1124 = vld [vmem:[%s1 + $0x1810] sm:$0xff]
      %v1125 = vld [vmem:[%s1 + $0x1818] sm:$0xff]
      %v1126 = vld [vmem:[%s1 + $0x1820] sm:$0xff]
      %v1127 = vld [vmem:[%s1 + $0x1828] sm:$0xf]
      %v1128 = vld [vmem:[%s1 + $0x182c] sm:$0xff]
      %v1129 = vld [vmem:[%s1 + $0x1834] sm:$0xff]
      %v1130 = vld [vmem:[%s1 + $0x183c] sm:$0xff]
      %v1131 = vld [vmem:[%s1 + $0x1844] sm:$0xf]
      %v1132 = vld [vmem:[%s1 + $0x1848] sm:$0xff]
      %v1133 = vld [vmem:[%s1 + $0x1850] sm:$0xff]
      %v1134 = vld [vmem:[%s1 + $0x1858] sm:$0xff]
      %v1135 = vld [vmem:[%s1 + $0x1860] sm:$0xf]
      %v1136 = vld [vmem:[%s1 + $0x1864] sm:$0xff]
      %v1137 = vld [vmem:[%s1 + $0x186c] sm:$0xff]
      %v1138 = vld [vmem:[%s1 + $0x1874] sm:$0xff]
      %v1139 = vld [vmem:[%s1 + $0x187c] sm:$0xf]
      %v1168 = vunpack.c.l.b16 %v216
      %v1169 = vunpack.c.h.b16 %v216
      %v1170 = vunpack.c.l.b16 %v217
      %v1171 = vunpack.c.h.b16 %v217
      %v1172 = vunpack.c.l.b16 %v218
      %v1173 = vunpack.c.h.b16 %v218
      %v1174 = vunpack.c.l.b16 %v219
      %v1175 = vunpack.c.h.b16 %v219
      %v1176 = vunpack.c.l.b16 %v220
      %v1177 = vunpack.c.h.b16 %v220
      %v1178 = vunpack.c.l.b16 %v221
      %v1179 = vunpack.c.h.b16 %v221
      %v1180 = vunpack.c.l.b16 %v222
      %v1181 = vunpack.c.h.b16 %v222
      %v1182 = vunpack.c.l.b16 %v223
      %v1183 = vunpack.c.h.b16 %v223
      %v1184 = vunpack.c.l.b16 %v224
      %v1185 = vunpack.c.h.b16 %v224
      %v1186 = vunpack.c.l.b16 %v225
      %v1187 = vunpack.c.h.b16 %v225
      %v1188 = vunpack.c.l.b16 %v226
      %v1189 = vunpack.c.h.b16 %v226
      %v1190 = vunpack.c.l.b16 %v227
      %v1191 = vunpack.c.h.b16 %v227
      %v1192 = vunpack.c.l.b16 %v228
      %v1193 = vunpack.c.h.b16 %v228
      %v1194 = vunpack.c.l.b16 %v229
      %v1195 = vunpack.c.h.b16 %v229
      %v1196 = vunpack.c.l.b16 %v230
      %v1197 = vunpack.c.h.b16 %v230
      %v1198 = vunpack.c.l.b16 %v231
      %v1199 = vunpack.c.h.b16 %v231
      %v1200 = vunpack.c.l.b16 %v232
      %v1201 = vunpack.c.h.b16 %v232
      %v1202 = vunpack.c.l.b16 %v233
      %v1203 = vunpack.c.h.b16 %v233
      %v1204 = vunpack.c.l.b16 %v234
      %v1205 = vunpack.c.h.b16 %v234
      %v1206 = vunpack.c.l.b16 %v235
      %v1207 = vunpack.c.h.b16 %v235
      %v1208 = vunpack.c.l.b16 %v236
      %v1209 = vunpack.c.h.b16 %v236
      %v1210 = vunpack.c.l.b16 %v237
      %v1211 = vunpack.c.h.b16 %v237
      %v1212 = vunpack.c.l.b16 %v238
      %v1213 = vunpack.c.h.b16 %v238
      %v1214 = vunpack.c.l.b16 %v239
      %v1215 = vunpack.c.h.b16 %v239
      %v1216 = vunpack.c.l.b16 %v240
      %v1217 = vunpack.c.h.b16 %v240
      %v1218 = vunpack.c.l.b16 %v241
      %v1219 = vunpack.c.h.b16 %v241
      %v1220 = vunpack.c.l.b16 %v242
      %v1221 = vunpack.c.h.b16 %v242
      %v1222 = vunpack.c.l.b16 %v243
      %v1223 = vunpack.c.h.b16 %v243
      %v1224 = vpack.c.b16 %v1182, %v1168
      %v1225 = vpack.c.b16 %v1183, %v1169
      %v1226 = vpack.c.b16 %v1184, %v1170
      %v1227 = vpack.c.b16 %v1185, %v1171
      %v1228 = vpack.c.b16 %v1186, %v1172
      %v1229 = vpack.c.b16 %v1187, %v1173
      %v1230 = vpack.c.b16 %v1188, %v1174
      %v1231 = vpack.c.b16 %v1189, %v1175
      %v1232 = vpack.c.b16 %v1190, %v1176
      %v1233 = vpack.c.b16 %v1191, %v1177
      %v1234 = vpack.c.b16 %v1192, %v1178
      %v1235 = vpack.c.b16 %v1193, %v1179
      %v1236 = vpack.c.b16 %v1194, %v1180
      %v1237 = vpack.c.b16 %v1195, %v1181
      %v1238 = vpack.c.b16 %v1210, %v1196
      %v1239 = vpack.c.b16 %v1211, %v1197
      %v1240 = vpack.c.b16 %v1212, %v1198
      %v1241 = vpack.c.b16 %v1213, %v1199
      %v1242 = vpack.c.b16 %v1214, %v1200
      %v1243 = vpack.c.b16 %v1215, %v1201
      %v1244 = vpack.c.b16 %v1216, %v1202
      %v1245 = vpack.c.b16 %v1217, %v1203
      %v1246 = vpack.c.b16 %v1218, %v1204
      %v1247 = vpack.c.b16 %v1219, %v1205
      %v1248 = vpack.c.b16 %v1220, %v1206
      %v1249 = vpack.c.b16 %v1221, %v1207
      %v1250 = vpack.c.b16 %v1222, %v1208
      %v1251 = vpack.c.b16 %v1223, %v1209
      %v2176 = vunpack.c.l.b16 %v244
      %v2177 = vunpack.c.h.b16 %v244
      %v2178 = vunpack.c.l.b16 %v245
      %v2179 = vunpack.c.h.b16 %v245
      %v2180 = vunpack.c.l.b16 %v246
      %v2181 = vunpack.c.h.b16 %v246
      %v2182 = vunpack.c.l.b16 %v247
      %v2183 = vunpack.c.l.b16 %v248
      %v2184 = vunpack.c.h.b16 %v248
      %v2185 = vunpack.c.l.b16 %v249
      %v2186 = vunpack.c.h.b16 %v249
      %v2187 = vunpack.c.l.b16 %v250
      %v2188 = vunpack.c.h.b16 %v250
      %v2189 = vunpack.c.l.b16 %v251
      %v2190 = vunpack.c.l.b16 %v252
      %v2191 = vunpack.c.h.b16 %v252
      %v2192 = vunpack.c.l.b16 %v253
      %v2193 = vunpack.c.h.b16 %v253
      %v2194 = vunpack.c.l.b16 %v254
      %v2195 = vunpack.c.h.b16 %v254
      %v2196 = vunpack.c.l.b16 %v255
      %v2197 = vunpack.c.l.b16 %v256
      %v2198 = vunpack.c.h.b16 %v256
      %v2199 = vunpack.c.l.b16 %v257
      %v2200 = vunpack.c.h.b16 %v257
      %v2201 = vunpack.c.l.b16 %v258
      %v2202 = vunpack.c.h.b16 %v258
      %v2203 = vunpack.c.l.b16 %v259
      %v2204 = vunpack.c.l.b16 %v260
      %v2205 = vunpack.c.h.b16 %v260
      %v2206 = vunpack.c.l.b16 %v261
      %v2207 = vunpack.c.h.b16 %v261
      %v2208 = vunpack.c.l.b16 %v262
      %v2209 = vunpack.c.h.b16 %v262
      %v2210 = vunpack.c.l.b16 %v263
      %v2211 = vunpack.c.l.b16 %v264
      %v2212 = vunpack.c.h.b16 %v264
      %v2213 = vunpack.c.l.b16 %v265
      %v2214 = vunpack.c.h.b16 %v265
      %v2215 = vunpack.c.l.b16 %v266
      %v2216 = vunpack.c.h.b16 %v266
      %v2217 = vunpack.c.l.b16 %v267
      %v2218 = vunpack.c.l.b16 %v268
      %v2219 = vunpack.c.h.b16 %v268
      %v2220 = vunpack.c.l.b16 %v269
      %v2221 = vunpack.c.h.b16 %v269
      %v2222 = vunpack.c.l.b16 %v270
      %v2223 = vunpack.c.h.b16 %v270
      %v2224 = vunpack.c.l.b16 %v271
      %v2225 = vunpack.c.l.b16 %v272
      %v2226 = vunpack.c.h.b16 %v272
      %v2227 = vunpack.c.l.b16 %v273
      %v2228 = vunpack.c.h.b16 %v273
      %v2229 = vunpack.c.l.b16 %v274
      %v2230 = vunpack.c.h.b16 %v274
      %v2231 = vunpack.c.l.b16 %v275
      %v2232 = vunpack.c.l.b16 %v276
      %v2233 = vunpack.c.h.b16 %v276
      %v2234 = vunpack.c.l.b16 %v277
      %v2235 = vunpack.c.h.b16 %v277
      %v2236 = vunpack.c.l.b16 %v278
      %v2237 = vunpack.c.h.b16 %v278
      %v2238 = vunpack.c.l.b16 %v279
      %v2239 = vunpack.c.l.b16 %v280
      %v2240 = vunpack.c.h.b16 %v280
      %v2241 = vunpack.c.l.b16 %v281
      %v2242 = vunpack.c.h.b16 %v281
      %v2243 = vunpack.c.l.b16 %v282
      %v2244 = vunpack.c.h.b16 %v282
      %v2245 = vunpack.c.l.b16 %v283
      %v2246 = vunpack.c.l.b16 %v284
      %v2247 = vunpack.c.h.b16 %v284
      %v2248 = vunpack.c.l.b16 %v285
      %v2249 = vunpack.c.h.b16 %v285
      %v2250 = vunpack.c.l.b16 %v286
      %v2251 = vunpack.c.h.b16 %v286
      %v2252 = vunpack.c.l.b16 %v287
      %v2253 = vunpack.c.l.b16 %v288
      %v2254 = vunpack.c.h.b16 %v288
      %v2255 = vunpack.c.l.b16 %v289
      %v2256 = vunpack.c.h.b16 %v289
      %v2257 = vunpack.c.l.b16 %v290
      %v2258 = vunpack.c.h.b16 %v290
      %v2259 = vunpack.c.l.b16 %v291
      %v2260 = vunpack.c.l.b16 %v292
      %v2261 = vunpack.c.h.b16 %v292
      %v2262 = vunpack.c.l.b16 %v293
      %v2263 = vunpack.c.h.b16 %v293
      %v2264 = vunpack.c.l.b16 %v294
      %v2265 = vunpack.c.h.b16 %v294
      %v2266 = vunpack.c.l.b16 %v295
      %v2267 = vunpack.c.l.b16 %v296
      %v2268 = vunpack.c.h.b16 %v296
      %v2269 = vunpack.c.l.b16 %v297
      %v2270 = vunpack.c.h.b16 %v297
      %v2271 = vunpack.c.l.b16 %v298
      %v2272 = vunpack.c.h.b16 %v298
      %v2273 = vunpack.c.l.b16 %v299
      %v2274 = vunpack.c.l.b16 %v300
      %v2275 = vunpack.c.h.b16 %v300
      %v2276 = vunpack.c.l.b16 %v301
      %v2277 = vunpack.c.h.b16 %v301
      %v2278 = vunpack.c.l.b16 %v302
      %v2279 = vunpack.c.h.b16 %v302
      %v2280 = vunpack.c.l.b16 %v303
      %v2281 = vunpack.c.l.b16 %v304
      %v2282 = vunpack.c.h.b16 %v304
      %v2283 = vunpack.c.l.b16 %v305
      %v2284 = vunpack.c.h.b16 %v305
      %v2285 = vunpack.c.l.b16 %v306
      %v2286 = vunpack.c.h.b16 %v306
      %v2287 = vunpack.c.l.b16 %v307
      %v2288 = vunpack.c.l.b16 %v308
      %v2289 = vunpack.c.h.b16 %v308
      %v2290 = vunpack.c.l.b16 %v309
      %v2291 = vunpack.c.h.b16 %v309
      %v2292 = vunpack.c.l.b16 %v310
      %v2293 = vunpack.c.h.b16 %v310
      %v2294 = vunpack.c.l.b16 %v311
      %v2295 = vunpack.c.l.b16 %v312
      %v2296 = vunpack.c.h.b16 %v312
      %v2297 = vunpack.c.l.b16 %v313
      %v2298 = vunpack.c.h.b16 %v313
      %v2299 = vunpack.c.l.b16 %v314
      %v2300 = vunpack.c.h.b16 %v314
      %v2301 = vunpack.c.l.b16 %v315
      %v2302 = vunpack.c.l.b16 %v316
      %v2303 = vunpack.c.h.b16 %v316
      %v2304 = vunpack.c.l.b16 %v317
      %v2305 = vunpack.c.h.b16 %v317
      %v2306 = vunpack.c.l.b16 %v318
      %v2307 = vunpack.c.h.b16 %v318
      %v2308 = vunpack.c.l.b16 %v319
      %v2309 = vunpack.c.l.b16 %v320
      %v2310 = vunpack.c.h.b16 %v320
      %v2311 = vunpack.c.l.b16 %v321
      %v2312 = vunpack.c.h.b16 %v321
      %v2313 = vunpack.c.l.b16 %v322
      %v2314 = vunpack.c.h.b16 %v322
      %v2315 = vunpack.c.l.b16 %v323
      %v2316 = vunpack.c.l.b16 %v324
      %v2317 = vunpack.c.h.b16 %v324
      %v2318 = vunpack.c.l.b16 %v325
      %v2319 = vunpack.c.h.b16 %v325
      %v2320 = vunpack.c.l.b16 %v326
      %v2321 = vunpack.c.h.b16 %v326
      %v2322 = vunpack.c.l.b16 %v327
      %v2323 = vunpack.c.l.b16 %v328
      %v2324 = vunpack.c.h.b16 %v328
      %v2325 = vunpack.c.l.b16 %v329
      %v2326 = vunpack.c.h.b16 %v329
      %v2327 = vunpack.c.l.b16 %v330
      %v2328 = vunpack.c.h.b16 %v330
      %v2329 = vunpack.c.l.b16 %v331
      %v2330 = vunpack.c.l.b16 %v332
      %v2331 = vunpack.c.h.b16 %v332
      %v2332 = vunpack.c.l.b16 %v333
      %v2333 = vunpack.c.h.b16 %v333
      %v2334 = vunpack.c.l.b16 %v334
      %v2335 = vunpack.c.h.b16 %v334
      %v2336 = vunpack.c.l.b16 %v335
      %v2337 = vunpack.c.l.b16 %v336
      %v2338 = vunpack.c.h.b16 %v336
      %v2339 = vunpack.c.l.b16 %v337
      %v2340 = vunpack.c.h.b16 %v337
      %v2341 = vunpack.c.l.b16 %v338
      %v2342 = vunpack.c.h.b16 %v338
      %v2343 = vunpack.c.l.b16 %v339
      %v2344 = vunpack.c.l.b16 %v340
      %v2345 = vunpack.c.h.b16 %v340
      %v2346 = vunpack.c.l.b16 %v341
      %v2347 = vunpack.c.h.b16 %v341
      %v2348 = vunpack.c.l.b16 %v342
      %v2349 = vunpack.c.h.b16 %v342
      %v2350 = vunpack.c.l.b16 %v343
      %v2351 = vunpack.c.l.b16 %v344
      %v2352 = vunpack.c.h.b16 %v344
      %v2353 = vunpack.c.l.b16 %v345
      %v2354 = vunpack.c.h.b16 %v345
      %v2355 = vunpack.c.l.b16 %v346
      %v2356 = vunpack.c.h.b16 %v346
      %v2357 = vunpack.c.l.b16 %v347
      %v2358 = vunpack.c.l.b16 %v348
      %v2359 = vunpack.c.h.b16 %v348
      %v2360 = vunpack.c.l.b16 %v349
      %v2361 = vunpack.c.h.b16 %v349
      %v2362 = vunpack.c.l.b16 %v350
      %v2363 = vunpack.c.h.b16 %v350
      %v2364 = vunpack.c.l.b16 %v351
      %v2365 = vunpack.c.l.b16 %v352
      %v2366 = vunpack.c.h.b16 %v352
      %v2367 = vunpack.c.l.b16 %v353
      %v2368 = vunpack.c.h.b16 %v353
      %v2369 = vunpack.c.l.b16 %v354
      %v2370 = vunpack.c.h.b16 %v354
      %v2371 = vunpack.c.l.b16 %v355
      %v2372 = vunpack.c.l.b16 %v356
      %v2373 = vunpack.c.h.b16 %v356
      %v2374 = vunpack.c.l.b16 %v357
      %v2375 = vunpack.c.h.b16 %v357
      %v2376 = vunpack.c.l.b16 %v358
      %v2377 = vunpack.c.h.b16 %v358
      %v2378 = vunpack.c.l.b16 %v359
      %v2379 = vunpack.c.l.b16 %v360
      %v2380 = vunpack.c.h.b16 %v360
      %v2381 = vunpack.c.l.b16 %v361
      %v2382 = vunpack.c.h.b16 %v361
      %v2383 = vunpack.c.l.b16 %v362
      %v2384 = vunpack.c.h.b16 %v362
      %v2385 = vunpack.c.l.b16 %v363
      %v2386 = vunpack.c.l.b16 %v364
      %v2387 = vunpack.c.h.b16 %v364
      %v2388 = vunpack.c.l.b16 %v365
      %v2389 = vunpack.c.h.b16 %v365
      %v2390 = vunpack.c.l.b16 %v366
      %v2391 = vunpack.c.h.b16 %v366
      %v2392 = vunpack.c.l.b16 %v367
      %v2393 = vunpack.c.l.b16 %v368
      %v2394 = vunpack.c.h.b16 %v368
      %v2395 = vunpack.c.l.b16 %v369
      %v2396 = vunpack.c.h.b16 %v369
      %v2397 = vunpack.c.l.b16 %v370
      %v2398 = vunpack.c.h.b16 %v370
      %v2399 = vunpack.c.l.b16 %v371
      %v2400 = vunpack.c.l.b16 %v372
      %v2401 = vunpack.c.h.b16 %v372
      %v2402 = vunpack.c.l.b16 %v373
      %v2403 = vunpack.c.h.b16 %v373
      %v2404 = vunpack.c.l.b16 %v374
      %v2405 = vunpack.c.h.b16 %v374
      %v2406 = vunpack.c.l.b16 %v375
      %v2407 = vunpack.c.l.b16 %v376
      %v2408 = vunpack.c.h.b16 %v376
      %v2409 = vunpack.c.l.b16 %v377
      %v2410 = vunpack.c.h.b16 %v377
      %v2411 = vunpack.c.l.b16 %v378
      %v2412 = vunpack.c.h.b16 %v378
      %v2413 = vunpack.c.l.b16 %v379
      %v2414 = vunpack.c.l.b16 %v380
      %v2415 = vunpack.c.h.b16 %v380
      %v2416 = vunpack.c.l.b16 %v381
      %v2417 = vunpack.c.h.b16 %v381
      %v2418 = vunpack.c.l.b16 %v382
      %v2419 = vunpack.c.h.b16 %v382
      %v2420 = vunpack.c.l.b16 %v383
      %v2421 = vunpack.c.l.b16 %v384
      %v2422 = vunpack.c.h.b16 %v384
      %v2423 = vunpack.c.l.b16 %v385
      %v2424 = vunpack.c.h.b16 %v385
      %v2425 = vunpack.c.l.b16 %v386
      %v2426 = vunpack.c.h.b16 %v386
      %v2427 = vunpack.c.l.b16 %v387
      %v2428 = vunpack.c.l.b16 %v388
      %v2429 = vunpack.c.h.b16 %v388
      %v2430 = vunpack.c.l.b16 %v389
      %v2431 = vunpack.c.h.b16 %v389
      %v2432 = vunpack.c.l.b16 %v390
      %v2433 = vunpack.c.h.b16 %v390
      %v2434 = vunpack.c.l.b16 %v391
      %v2435 = vunpack.c.l.b16 %v392
      %v2436 = vunpack.c.h.b16 %v392
      %v2437 = vunpack.c.l.b16 %v393
      %v2438 = vunpack.c.h.b16 %v393
      %v2439 = vunpack.c.l.b16 %v394
      %v2440 = vunpack.c.h.b16 %v394
      %v2441 = vunpack.c.l.b16 %v395
      %v2442 = vunpack.c.l.b16 %v396
      %v2443 = vunpack.c.h.b16 %v396
      %v2444 = vunpack.c.l.b16 %v397
      %v2445 = vunpack.c.h.b16 %v397
      %v2446 = vunpack.c.l.b16 %v398
      %v2447 = vunpack.c.h.b16 %v398
      %v2448 = vunpack.c.l.b16 %v399
      %v2449 = vunpack.c.l.b16 %v400
      %v2450 = vunpack.c.h.b16 %v400
      %v2451 = vunpack.c.l.b16 %v401
      %v2452 = vunpack.c.h.b16 %v401
      %v2453 = vunpack.c.l.b16 %v402
      %v2454 = vunpack.c.h.b16 %v402
      %v2455 = vunpack.c.l.b16 %v403
      %v2456 = vunpack.c.l.b16 %v404
      %v2457 = vunpack.c.h.b16 %v404
      %v2458 = vunpack.c.l.b16 %v405
      %v2459 = vunpack.c.h.b16 %v405
      %v2460 = vunpack.c.l.b16 %v406
      %v2461 = vunpack.c.h.b16 %v406
      %v2462 = vunpack.c.l.b16 %v407
      %v2463 = vunpack.c.l.b16 %v408
      %v2464 = vunpack.c.h.b16 %v408
      %v2465 = vunpack.c.l.b16 %v409
      %v2466 = vunpack.c.h.b16 %v409
      %v2467 = vunpack.c.l.b16 %v410
      %v2468 = vunpack.c.h.b16 %v410
      %v2469 = vunpack.c.l.b16 %v411
      %v2470 = vunpack.c.l.b16 %v412
      %v2471 = vunpack.c.h.b16 %v412
      %v2472 = vunpack.c.l.b16 %v413
      %v2473 = vunpack.c.h.b16 %v413
      %v2474 = vunpack.c.l.b16 %v414
      %v2475 = vunpack.c.h.b16 %v414
      %v2476 = vunpack.c.l.b16 %v415
      %v2477 = vunpack.c.l.b16 %v416
      %v2478 = vunpack.c.h.b16 %v416
      %v2479 = vunpack.c.l.b16 %v417
      %v2480 = vunpack.c.h.b16 %v417
      %v2481 = vunpack.c.l.b16 %v418
      %v2482 = vunpack.c.h.b16 %v418
      %v2483 = vunpack.c.l.b16 %v419
      %v2484 = vunpack.c.l.b16 %v420
      %v2485 = vunpack.c.h.b16 %v420
      %v2486 = vunpack.c.l.b16 %v421
      %v2487 = vunpack.c.h.b16 %v421
      %v2488 = vunpack.c.l.b16 %v422
      %v2489 = vunpack.c.h.b16 %v422
      %v2490 = vunpack.c.l.b16 %v423
      %v2491 = vunpack.c.l.b16 %v424
      %v2492 = vunpack.c.h.b16 %v424
      %v2493 = vunpack.c.l.b16 %v425
      %v2494 = vunpack.c.h.b16 %v425
      %v2495 = vunpack.c.l.b16 %v426
      %v2496 = vunpack.c.h.b16 %v426
      %v2497 = vunpack.c.l.b16 %v427
      %v2498 = vunpack.c.l.b16 %v428
      %v2499 = vunpack.c.h.b16 %v428
      %v2500 = vunpack.c.l.b16 %v429
      %v2501 = vunpack.c.h.b16 %v429
      %v2502 = vunpack.c.l.b16 %v430
      %v2503 = vunpack.c.h.b16 %v430
      %v2504 = vunpack.c.l.b16 %v431
      %v2505 = vunpack.c.l.b16 %v432
      %v2506 = vunpack.c.h.b16 %v432
      %v2507 = vunpack.c.l.b16 %v433
      %v2508 = vunpack.c.h.b16 %v433
      %v2509 = vunpack.c.l.b16 %v434
      %v2510 = vunpack.c.h.b16 %v434
      %v2511 = vunpack.c.l.b16 %v435
      %v2512 = vunpack.c.l.b16 %v436
      %v2513 = vunpack.c.h.b16 %v436
      %v2514 = vunpack.c.l.b16 %v437
      %v2515 = vunpack.c.h.b16 %v437
      %v2516 = vunpack.c.l.b16 %v438
      %v2517 = vunpack.c.h.b16 %v438
      %v2518 = vunpack.c.l.b16 %v439
      %v2519 = vunpack.c.l.b16 %v440
      %v2520 = vunpack.c.h.b16 %v440
      %v2521 = vunpack.c.l.b16 %v441
      %v2522 = vunpack.c.h.b16 %v441
      %v2523 = vunpack.c.l.b16 %v442
      %v2524 = vunpack.c.h.b16 %v442
      %v2525 = vunpack.c.l.b16 %v443
      %v2526 = vunpack.c.l.b16 %v444
      %v2527 = vunpack.c.h.b16 %v444
      %v2528 = vunpack.c.l.b16 %v445
      %v2529 = vunpack.c.h.b16 %v445
      %v2530 = vunpack.c.l.b16 %v446
      %v2531 = vunpack.c.h.b16 %v446
      %v2532 = vunpack.c.l.b16 %v447
      %v2533 = vunpack.c.l.b16 %v448
      %v2534 = vunpack.c.h.b16 %v448
      %v2535 = vunpack.c.l.b16 %v449
      %v2536 = vunpack.c.h.b16 %v449
      %v2537 = vunpack.c.l.b16 %v450
      %v2538 = vunpack.c.h.b16 %v450
      %v2539 = vunpack.c.l.b16 %v451
      %v2540 = vunpack.c.l.b16 %v452
      %v2541 = vunpack.c.h.b16 %v452
      %v2542 = vunpack.c.l.b16 %v453
      %v2543 = vunpack.c.h.b16 %v453
      %v2544 = vunpack.c.l.b16 %v454
      %v2545 = vunpack.c.h.b16 %v454
      %v2546 = vunpack.c.l.b16 %v455
      %v2547 = vunpack.c.l.b16 %v456
      %v2548 = vunpack.c.h.b16 %v456
      %v2549 = vunpack.c.l.b16 %v457
      %v2550 = vunpack.c.h.b16 %v457
      %v2551 = vunpack.c.l.b16 %v458
      %v2552 = vunpack.c.h.b16 %v458
      %v2553 = vunpack.c.l.b16 %v459
      %v2554 = vunpack.c.l.b16 %v460
      %v2555 = vunpack.c.h.b16 %v460
      %v2556 = vunpack.c.l.b16 %v461
      %v2557 = vunpack.c.h.b16 %v461
      %v2558 = vunpack.c.l.b16 %v462
      %v2559 = vunpack.c.h.b16 %v462
      %v2560 = vunpack.c.l.b16 %v463
      %v2561 = vunpack.c.l.b16 %v464
      %v2562 = vunpack.c.h.b16 %v464
      %v2563 = vunpack.c.l.b16 %v465
      %v2564 = vunpack.c.h.b16 %v465
      %v2565 = vunpack.c.l.b16 %v466
      %v2566 = vunpack.c.h.b16 %v466
      %v2567 = vunpack.c.l.b16 %v467
      %v2568 = vunpack.c.l.b16 %v468
      %v2569 = vunpack.c.h.b16 %v468
      %v2570 = vunpack.c.l.b16 %v469
      %v2571 = vunpack.c.h.b16 %v469
      %v2572 = vunpack.c.l.b16 %v470
      %v2573 = vunpack.c.h.b16 %v470
      %v2574 = vunpack.c.l.b16 %v471
      %v2575 = vunpack.c.l.b16 %v472
      %v2576 = vunpack.c.h.b16 %v472
      %v2577 = vunpack.c.l.b16 %v473
      %v2578 = vunpack.c.h.b16 %v473
      %v2579 = vunpack.c.l.b16 %v474
      %v2580 = vunpack.c.h.b16 %v474
      %v2581 = vunpack.c.l.b16 %v475
      %v2582 = vunpack.c.l.b16 %v476
      %v2583 = vunpack.c.h.b16 %v476
      %v2584 = vunpack.c.l.b16 %v477
      %v2585 = vunpack.c.h.b16 %v477
      %v2586 = vunpack.c.l.b16 %v478
      %v2587 = vunpack.c.h.b16 %v478
      %v2588 = vunpack.c.l.b16 %v479
      %v2589 = vunpack.c.l.b16 %v480
      %v2590 = vunpack.c.h.b16 %v480
      %v2591 = vunpack.c.l.b16 %v481
      %v2592 = vunpack.c.h.b16 %v481
      %v2593 = vunpack.c.l.b16 %v482
      %v2594 = vunpack.c.h.b16 %v482
      %v2595 = vunpack.c.l.b16 %v483
      %v2596 = vunpack.c.l.b16 %v484
      %v2597 = vunpack.c.h.b16 %v484
      %v2598 = vunpack.c.l.b16 %v485
      %v2599 = vunpack.c.h.b16 %v485
      %v2600 = vunpack.c.l.b16 %v486
      %v2601 = vunpack.c.h.b16 %v486
      %v2602 = vunpack.c.l.b16 %v487
      %v2603 = vunpack.c.l.b16 %v488
      %v2604 = vunpack.c.h.b16 %v488
      %v2605 = vunpack.c.l.b16 %v489
      %v2606 = vunpack.c.h.b16 %v489
      %v2607 = vunpack.c.l.b16 %v490
      %v2608 = vunpack.c.h.b16 %v490
      %v2609 = vunpack.c.l.b16 %v491
      %v2610 = vunpack.c.l.b16 %v492
      %v2611 = vunpack.c.h.b16 %v492
      %v2612 = vunpack.c.l.b16 %v493
      %v2613 = vunpack.c.h.b16 %v493
      %v2614 = vunpack.c.l.b16 %v494
      %v2615 = vunpack.c.h.b16 %v494
      %v2616 = vunpack.c.l.b16 %v495
      %v2617 = vunpack.c.l.b16 %v496
      %v2618 = vunpack.c.h.b16 %v496
      %v2619 = vunpack.c.l.b16 %v497
      %v2620 = vunpack.c.h.b16 %v497
      %v2621 = vunpack.c.l.b16 %v498
      %v2622 = vunpack.c.h.b16 %v498
      %v2623 = vunpack.c.l.b16 %v499
      %v2624 = vunpack.c.l.b16 %v500
      %v2625 = vunpack.c.h.b16 %v500
      %v2626 = vunpack.c.l.b16 %v501
      %v2627 = vunpack.c.h.b16 %v501
      %v2628 = vunpack.c.l.b16 %v502
      %v2629 = vunpack.c.h.b16 %v502
      %v2630 = vunpack.c.l.b16 %v503
      %v2631 = vunpack.c.l.b16 %v504
      %v2632 = vunpack.c.h.b16 %v504
      %v2633 = vunpack.c.l.b16 %v505
      %v2634 = vunpack.c.h.b16 %v505
      %v2635 = vunpack.c.l.b16 %v506
      %v2636 = vunpack.c.h.b16 %v506
      %v2637 = vunpack.c.l.b16 %v507
      %v2638 = vunpack.c.l.b16 %v508
      %v2639 = vunpack.c.h.b16 %v508
      %v2640 = vunpack.c.l.b16 %v509
      %v2641 = vunpack.c.h.b16 %v509
      %v2642 = vunpack.c.l.b16 %v510
      %v2643 = vunpack.c.h.b16 %v510
      %v2644 = vunpack.c.l.b16 %v511
      %v2645 = vunpack.c.l.b16 %v512
      %v2646 = vunpack.c.h.b16 %v512
      %v2647 = vunpack.c.l.b16 %v513
      %v2648 = vunpack.c.h.b16 %v513
      %v2649 = vunpack.c.l.b16 %v514
      %v2650 = vunpack.c.h.b16 %v514
      %v2651 = vunpack.c.l.b16 %v515
      %v2652 = vunpack.c.l.b16 %v516
      %v2653 = vunpack.c.h.b16 %v516
      %v2654 = vunpack.c.l.b16 %v517
      %v2655 = vunpack.c.h.b16 %v517
      %v2656 = vunpack.c.l.b16 %v518
      %v2657 = vunpack.c.h.b16 %v518
      %v2658 = vunpack.c.l.b16 %v519
      %v2659 = vunpack.c.l.b16 %v520
      %v2660 = vunpack.c.h.b16 %v520
      %v2661 = vunpack.c.l.b16 %v521
      %v2662 = vunpack.c.h.b16 %v521
      %v2663 = vunpack.c.l.b16 %v522
      %v2664 = vunpack.c.h.b16 %v522
      %v2665 = vunpack.c.l.b16 %v523
      %v2666 = vunpack.c.l.b16 %v524
      %v2667 = vunpack.c.h.b16 %v524
      %v2668 = vunpack.c.l.b16 %v525
      %v2669 = vunpack.c.h.b16 %v525
      %v2670 = vunpack.c.l.b16 %v526
      %v2671 = vunpack.c.h.b16 %v526
      %v2672 = vunpack.c.l.b16 %v527
      %v2673 = vunpack.c.l.b16 %v528
      %v2674 = vunpack.c.h.b16 %v528
      %v2675 = vunpack.c.l.b16 %v529
      %v2676 = vunpack.c.h.b16 %v529
      %v2677 = vunpack.c.l.b16 %v530
      %v2678 = vunpack.c.h.b16 %v530
      %v2679 = vunpack.c.l.b16 %v531
      %v2680 = vunpack.c.l.b16 %v532
      %v2681 = vunpack.c.h.b16 %v532
      %v2682 = vunpack.c.l.b16 %v533
      %v2683 = vunpack.c.h.b16 %v533
      %v2684 = vunpack.c.l.b16 %v534
      %v2685 = vunpack.c.h.b16 %v534
      %v2686 = vunpack.c.l.b16 %v535
      %v2687 = vunpack.c.l.b16 %v536
      %v2688 = vunpack.c.h.b16 %v536
      %v2689 = vunpack.c.l.b16 %v537
      %v2690 = vunpack.c.h.b16 %v537
      %v2691 = vunpack.c.l.b16 %v538
      %v2692 = vunpack.c.h.b16 %v538
      %v2693 = vunpack.c.l.b16 %v539
      %v2694 = vunpack.c.l.b16 %v540
      %v2695 = vunpack.c.h.b16 %v540
      %v2696 = vunpack.c.l.b16 %v541
      %v2697 = vunpack.c.h.b16 %v541
      %v2698 = vunpack.c.l.b16 %v542
      %v2699 = vunpack.c.h.b16 %v542
      %v2700 = vunpack.c.l.b16 %v543
      %v2701 = vunpack.c.l.b16 %v544
      %v2702 = vunpack.c.h.b16 %v544
      %v2703 = vunpack.c.l.b16 %v545
      %v2704 = vunpack.c.h.b16 %v545
      %v2705 = vunpack.c.l.b16 %v546
      %v2706 = vunpack.c.h.b16 %v546
      %v2707 = vunpack.c.l.b16 %v547
      %v2708 = vunpack.c.l.b16 %v548
      %v2709 = vunpack.c.h.b16 %v548
      %v2710 = vunpack.c.l.b16 %v549
      %v2711 = vunpack.c.h.b16 %v549
      %v2712 = vunpack.c.l.b16 %v550
      %v2713 = vunpack.c.h.b16 %v550
      %v2714 = vunpack.c.l.b16 %v551
      %v2715 = vunpack.c.l.b16 %v552
      %v2716 = vunpack.c.h.b16 %v552
      %v2717 = vunpack.c.l.b16 %v553
      %v2718 = vunpack.c.h.b16 %v553
      %v2719 = vunpack.c.l.b16 %v554
      %v2720 = vunpack.c.h.b16 %v554
      %v2721 = vunpack.c.l.b16 %v555
      %v2722 = vunpack.c.l.b16 %v556
      %v2723 = vunpack.c.h.b16 %v556
      %v2724 = vunpack.c.l.b16 %v557
      %v2725 = vunpack.c.h.b16 %v557
      %v2726 = vunpack.c.l.b16 %v558
      %v2727 = vunpack.c.h.b16 %v558
      %v2728 = vunpack.c.l.b16 %v559
      %v2729 = vunpack.c.l.b16 %v560
      %v2730 = vunpack.c.h.b16 %v560
      %v2731 = vunpack.c.l.b16 %v561
      %v2732 = vunpack.c.h.b16 %v561
      %v2733 = vunpack.c.l.b16 %v562
      %v2734 = vunpack.c.h.b16 %v562
      %v2735 = vunpack.c.l.b16 %v563
      %v2736 = vunpack.c.l.b16 %v564
      %v2737 = vunpack.c.h.b16 %v564
      %v2738 = vunpack.c.l.b16 %v565
      %v2739 = vunpack.c.h.b16 %v565
      %v2740 = vunpack.c.l.b16 %v566
      %v2741 = vunpack.c.h.b16 %v566
      %v2742 = vunpack.c.l.b16 %v567
      %v2743 = vunpack.c.l.b16 %v568
      %v2744 = vunpack.c.h.b16 %v568
      %v2745 = vunpack.c.l.b16 %v569
      %v2746 = vunpack.c.h.b16 %v569
      %v2747 = vunpack.c.l.b16 %v570
      %v2748 = vunpack.c.h.b16 %v570
      %v2749 = vunpack.c.l.b16 %v571
      %v2750 = vunpack.c.l.b16 %v572
      %v2751 = vunpack.c.h.b16 %v572
      %v2752 = vunpack.c.l.b16 %v573
      %v2753 = vunpack.c.h.b16 %v573
      %v2754 = vunpack.c.l.b16 %v574
      %v2755 = vunpack.c.h.b16 %v574
      %v2756 = vunpack.c.l.b16 %v575
      %v2757 = vunpack.c.l.b16 %v576
      %v2758 = vunpack.c.h.b16 %v576
      %v2759 = vunpack.c.l.b16 %v577
      %v2760 = vunpack.c.h.b16 %v577
      %v2761 = vunpack.c.l.b16 %v578
      %v2762 = vunpack.c.h.b16 %v578
      %v2763 = vunpack.c.l.b16 %v579
      %v2764 = vunpack.c.l.b16 %v580
      %v2765 = vunpack.c.h.b16 %v580
      %v2766 = vunpack.c.l.b16 %v581
      %v2767 = vunpack.c.h.b16 %v581
      %v2768 = vunpack.c.l.b16 %v582
      %v2769 = vunpack.c.h.b16 %v582
      %v2770 = vunpack.c.l.b16 %v583
      %v2771 = vunpack.c.l.b16 %v584
      %v2772 = vunpack.c.h.b16 %v584
      %v2773 = vunpack.c.l.b16 %v585
      %v2774 = vunpack.c.h.b16 %v585
      %v2775 = vunpack.c.l.b16 %v586
      %v2776 = vunpack.c.h.b16 %v586
      %v2777 = vunpack.c.l.b16 %v587
      %v2778 = vunpack.c.l.b16 %v588
      %v2779 = vunpack.c.h.b16 %v588
      %v2780 = vunpack.c.l.b16 %v589
      %v2781 = vunpack.c.h.b16 %v589
      %v2782 = vunpack.c.l.b16 %v590
      %v2783 = vunpack.c.h.b16 %v590
      %v2784 = vunpack.c.l.b16 %v591
      %v2785 = vunpack.c.l.b16 %v592
      %v2786 = vunpack.c.h.b16 %v592
      %v2787 = vunpack.c.l.b16 %v593
      %v2788 = vunpack.c.h.b16 %v593
      %v2789 = vunpack.c.l.b16 %v594
      %v2790 = vunpack.c.h.b16 %v594
      %v2791 = vunpack.c.l.b16 %v595
      %v2792 = vunpack.c.l.b16 %v596
      %v2793 = vunpack.c.h.b16 %v596
      %v2794 = vunpack.c.l.b16 %v597
      %v2795 = vunpack.c.h.b16 %v597
      %v2796 = vunpack.c.l.b16 %v598
      %v2797 = vunpack.c.h.b16 %v598
      %v2798 = vunpack.c.l.b16 %v599
      %v2799 = vunpack.c.l.b16 %v600
      %v2800 = vunpack.c.h.b16 %v600
      %v2801 = vunpack.c.l.b16 %v601
      %v2802 = vunpack.c.h.b16 %v601
      %v2803 = vunpack.c.l.b16 %v602
      %v2804 = vunpack.c.h.b16 %v602
      %v2805 = vunpack.c.l.b16 %v603
      %v2806 = vunpack.c.l.b16 %v604
      %v2807 = vunpack.c.h.b16 %v604
      %v2808 = vunpack.c.l.b16 %v605
      %v2809 = vunpack.c.h.b16 %v605
      %v2810 = vunpack.c.l.b16 %v606
      %v2811 = vunpack.c.h.b16 %v606
      %v2812 = vunpack.c.l.b16 %v607
      %v2813 = vunpack.c.l.b16 %v608
      %v2814 = vunpack.c.h.b16 %v608
      %v2815 = vunpack.c.l.b16 %v609
      %v2816 = vunpack.c.h.b16 %v609
      %v2817 = vunpack.c.l.b16 %v610
      %v2818 = vunpack.c.h.b16 %v610
      %v2819 = vunpack.c.l.b16 %v611
      %v2820 = vunpack.c.l.b16 %v612
      %v2821 = vunpack.c.h.b16 %v612
      %v2822 = vunpack.c.l.b16 %v613
      %v2823 = vunpack.c.h.b16 %v613
      %v2824 = vunpack.c.l.b16 %v614
      %v2825 = vunpack.c.h.b16 %v614
      %v2826 = vunpack.c.l.b16 %v615
      %v2827 = vunpack.c.l.b16 %v616
      %v2828 = vunpack.c.h.b16 %v616
      %v2829 = vunpack.c.l.b16 %v617
      %v2830 = vunpack.c.h.b16 %v617
      %v2831 = vunpack.c.l.b16 %v618
      %v2832 = vunpack.c.h.b16 %v618
      %v2833 = vunpack.c.l.b16 %v619
      %v2834 = vunpack.c.l.b16 %v620
      %v2835 = vunpack.c.h.b16 %v620
      %v2836 = vunpack.c.l.b16 %v621
      %v2837 = vunpack.c.h.b16 %v621
      %v2838 = vunpack.c.l.b16 %v622
      %v2839 = vunpack.c.h.b16 %v622
      %v2840 = vunpack.c.l.b16 %v623
      %v2841 = vunpack.c.l.b16 %v624
      %v2842 = vunpack.c.h.b16 %v624
      %v2843 = vunpack.c.l.b16 %v625
      %v2844 = vunpack.c.h.b16 %v625
      %v2845 = vunpack.c.l.b16 %v626
      %v2846 = vunpack.c.h.b16 %v626
      %v2847 = vunpack.c.l.b16 %v627
      %v2848 = vunpack.c.l.b16 %v628
      %v2849 = vunpack.c.h.b16 %v628
      %v2850 = vunpack.c.l.b16 %v629
      %v2851 = vunpack.c.h.b16 %v629
      %v2852 = vunpack.c.l.b16 %v630
      %v2853 = vunpack.c.h.b16 %v630
      %v2854 = vunpack.c.l.b16 %v631
      %v2855 = vunpack.c.l.b16 %v632
      %v2856 = vunpack.c.h.b16 %v632
      %v2857 = vunpack.c.l.b16 %v633
      %v2858 = vunpack.c.h.b16 %v633
      %v2859 = vunpack.c.l.b16 %v634
      %v2860 = vunpack.c.h.b16 %v634
      %v2861 = vunpack.c.l.b16 %v635
      %v2862 = vunpack.c.l.b16 %v636
      %v2863 = vunpack.c.h.b16 %v636
      %v2864 = vunpack.c.l.b16 %v637
      %v2865 = vunpack.c.h.b16 %v637
      %v2866 = vunpack.c.l.b16 %v638
      %v2867 = vunpack.c.h.b16 %v638
      %v2868 = vunpack.c.l.b16 %v639
      %v2869 = vunpack.c.l.b16 %v640
      %v2870 = vunpack.c.h.b16 %v640
      %v2871 = vunpack.c.l.b16 %v641
      %v2872 = vunpack.c.h.b16 %v641
      %v2873 = vunpack.c.l.b16 %v642
      %v2874 = vunpack.c.h.b16 %v642
      %v2875 = vunpack.c.l.b16 %v643
      %v2876 = vunpack.c.l.b16 %v644
      %v2877 = vunpack.c.h.b16 %v644
      %v2878 = vunpack.c.l.b16 %v645
      %v2879 = vunpack.c.h.b16 %v645
      %v2880 = vunpack.c.l.b16 %v646
      %v2881 = vunpack.c.h.b16 %v646
      %v2882 = vunpack.c.l.b16 %v647
      %v2883 = vunpack.c.l.b16 %v648
      %v2884 = vunpack.c.h.b16 %v648
      %v2885 = vunpack.c.l.b16 %v649
      %v2886 = vunpack.c.h.b16 %v649
      %v2887 = vunpack.c.l.b16 %v650
      %v2888 = vunpack.c.h.b16 %v650
      %v2889 = vunpack.c.l.b16 %v651
      %v2890 = vunpack.c.l.b16 %v652
      %v2891 = vunpack.c.h.b16 %v652
      %v2892 = vunpack.c.l.b16 %v653
      %v2893 = vunpack.c.h.b16 %v653
      %v2894 = vunpack.c.l.b16 %v654
      %v2895 = vunpack.c.h.b16 %v654
      %v2896 = vunpack.c.l.b16 %v655
      %v2897 = vunpack.c.l.b16 %v656
      %v2898 = vunpack.c.h.b16 %v656
      %v2899 = vunpack.c.l.b16 %v657
      %v2900 = vunpack.c.h.b16 %v657
      %v2901 = vunpack.c.l.b16 %v658
      %v2902 = vunpack.c.h.b16 %v658
      %v2903 = vunpack.c.l.b16 %v659
      %v2904 = vunpack.c.l.b16 %v660
      %v2905 = vunpack.c.h.b16 %v660
      %v2906 = vunpack.c.l.b16 %v661
      %v2907 = vunpack.c.h.b16 %v661
      %v2908 = vunpack.c.l.b16 %v662
      %v2909 = vunpack.c.h.b16 %v662
      %v2910 = vunpack.c.l.b16 %v663
      %v2911 = vunpack.c.l.b16 %v664
      %v2912 = vunpack.c.h.b16 %v664
      %v2913 = vunpack.c.l.b16 %v665
      %v2914 = vunpack.c.h.b16 %v665
      %v2915 = vunpack.c.l.b16 %v666
      %v2916 = vunpack.c.h.b16 %v666
      %v2917 = vunpack.c.l.b16 %v667
      %v2918 = vunpack.c.l.b16 %v668
      %v2919 = vunpack.c.h.b16 %v668
      %v2920 = vunpack.c.l.b16 %v669
      %v2921 = vunpack.c.h.b16 %v669
      %v2922 = vunpack.c.l.b16 %v670
      %v2923 = vunpack.c.h.b16 %v670
      %v2924 = vunpack.c.l.b16 %v671
      %v2925 = vunpack.c.l.b16 %v672
      %v2926 = vunpack.c.h.b16 %v672
      %v2927 = vunpack.c.l.b16 %v673
      %v2928 = vunpack.c.h.b16 %v673
      %v2929 = vunpack.c.l.b16 %v674
      %v2930 = vunpack.c.h.b16 %v674
      %v2931 = vunpack.c.l.b16 %v675
      %v2932 = vunpack.c.l.b16 %v676
      %v2933 = vunpack.c.h.b16 %v676
      %v2934 = vunpack.c.l.b16 %v677
      %v2935 = vunpack.c.h.b16 %v677
      %v2936 = vunpack.c.l.b16 %v678
      %v2937 = vunpack.c.h.b16 %v678
      %v2938 = vunpack.c.l.b16 %v679
      %v2939 = vunpack.c.l.b16 %v680
      %v2940 = vunpack.c.h.b16 %v680
      %v2941 = vunpack.c.l.b16 %v681
      %v2942 = vunpack.c.h.b16 %v681
      %v2943 = vunpack.c.l.b16 %v682
      %v2944 = vunpack.c.h.b16 %v682
      %v2945 = vunpack.c.l.b16 %v683
      %v2946 = vunpack.c.l.b16 %v684
      %v2947 = vunpack.c.h.b16 %v684
      %v2948 = vunpack.c.l.b16 %v685
      %v2949 = vunpack.c.h.b16 %v685
      %v2950 = vunpack.c.l.b16 %v686
      %v2951 = vunpack.c.h.b16 %v686
      %v2952 = vunpack.c.l.b16 %v687
      %v2953 = vunpack.c.l.b16 %v688
      %v2954 = vunpack.c.h.b16 %v688
      %v2955 = vunpack.c.l.b16 %v689
      %v2956 = vunpack.c.h.b16 %v689
      %v2957 = vunpack.c.l.b16 %v690
      %v2958 = vunpack.c.h.b16 %v690
      %v2959 = vunpack.c.l.b16 %v691
      %v2960 = vunpack.c.l.b16 %v692
      %v2961 = vunpack.c.h.b16 %v692
      %v2962 = vunpack.c.l.b16 %v693
      %v2963 = vunpack.c.h.b16 %v693
      %v2964 = vunpack.c.l.b16 %v694
      %v2965 = vunpack.c.h.b16 %v694
      %v2966 = vunpack.c.l.b16 %v695
      %v2967 = vunpack.c.l.b16 %v696
      %v2968 = vunpack.c.h.b16 %v696
      %v2969 = vunpack.c.l.b16 %v697
      %v2970 = vunpack.c.h.b16 %v697
      %v2971 = vunpack.c.l.b16 %v698
      %v2972 = vunpack.c.h.b16 %v698
      %v2973 = vunpack.c.l.b16 %v699
      %v2974 = vunpack.c.l.b16 %v700
      %v2975 = vunpack.c.h.b16 %v700
      %v2976 = vunpack.c.l.b16 %v701
      %v2977 = vunpack.c.h.b16 %v701
      %v2978 = vunpack.c.l.b16 %v702
      %v2979 = vunpack.c.h.b16 %v702
      %v2980 = vunpack.c.l.b16 %v703
      %v2981 = vunpack.c.l.b16 %v704
      %v2982 = vunpack.c.h.b16 %v704
      %v2983 = vunpack.c.l.b16 %v705
      %v2984 = vunpack.c.h.b16 %v705
      %v2985 = vunpack.c.l.b16 %v706
      %v2986 = vunpack.c.h.b16 %v706
      %v2987 = vunpack.c.l.b16 %v707
      %v2988 = vunpack.c.l.b16 %v708
      %v2989 = vunpack.c.h.b16 %v708
      %v2990 = vunpack.c.l.b16 %v709
      %v2991 = vunpack.c.h.b16 %v709
      %v2992 = vunpack.c.l.b16 %v710
      %v2993 = vunpack.c.h.b16 %v710
      %v2994 = vunpack.c.l.b16 %v711
      %v2995 = vunpack.c.l.b16 %v712
      %v2996 = vunpack.c.h.b16 %v712
      %v2997 = vunpack.c.l.b16 %v713
      %v2998 = vunpack.c.h.b16 %v713
      %v2999 = vunpack.c.l.b16 %v714
      %v3000 = vunpack.c.h.b16 %v714
      %v3001 = vunpack.c.l.b16 %v715
      %v3002 = vunpack.c.l.b16 %v716
      %v3003 = vunpack.c.h.b16 %v716
      %v3004 = vunpack.c.l.b16 %v717
      %v3005 = vunpack.c.h.b16 %v717
      %v3006 = vunpack.c.l.b16 %v718
      %v3007 = vunpack.c.h.b16 %v718
      %v3008 = vunpack.c.l.b16 %v719
      %v3009 = vunpack.c.l.b16 %v720
      %v3010 = vunpack.c.h.b16 %v720
      %v3011 = vunpack.c.l.b16 %v721
      %v3012 = vunpack.c.h.b16 %v721
      %v3013 = vunpack.c.l.b16 %v722
      %v3014 = vunpack.c.h.b16 %v722
      %v3015 = vunpack.c.l.b16 %v723
      %v3016 = vunpack.c.l.b16 %v724
      %v3017 = vunpack.c.h.b16 %v724
      %v3018 = vunpack.c.l.b16 %v725
      %v3019 = vunpack.c.h.b16 %v725
      %v3020 = vunpack.c.l.b16 %v726
      %v3021 = vunpack.c.h.b16 %v726
      %v3022 = vunpack.c.l.b16 %v727
      %v3023 = vunpack.c.l.b16 %v728
      %v3024 = vunpack.c.h.b16 %v728
      %v3025 = vunpack.c.l.b16 %v729
      %v3026 = vunpack.c.h.b16 %v729
      %v3027 = vunpack.c.l.b16 %v730
      %v3028 = vunpack.c.h.b16 %v730
      %v3029 = vunpack.c.l.b16 %v731
      %v3030 = vunpack.c.l.b16 %v732
      %v3031 = vunpack.c.h.b16 %v732
      %v3032 = vunpack.c.l.b16 %v733
      %v3033 = vunpack.c.h.b16 %v733
      %v3034 = vunpack.c.l.b16 %v734
      %v3035 = vunpack.c.h.b16 %v734
      %v3036 = vunpack.c.l.b16 %v735
      %v3037 = vunpack.c.l.b16 %v736
      %v3038 = vunpack.c.h.b16 %v736
      %v3039 = vunpack.c.l.b16 %v737
      %v3040 = vunpack.c.h.b16 %v737
      %v3041 = vunpack.c.l.b16 %v738
      %v3042 = vunpack.c.h.b16 %v738
      %v3043 = vunpack.c.l.b16 %v739
      %v3044 = vunpack.c.l.b16 %v740
      %v3045 = vunpack.c.h.b16 %v740
      %v3046 = vunpack.c.l.b16 %v741
      %v3047 = vunpack.c.h.b16 %v741
      %v3048 = vunpack.c.l.b16 %v742
      %v3049 = vunpack.c.h.b16 %v742
      %v3050 = vunpack.c.l.b16 %v743
      %v3051 = vunpack.c.l.b16 %v744
      %v3052 = vunpack.c.h.b16 %v744
      %v3053 = vunpack.c.l.b16 %v745
      %v3054 = vunpack.c.h.b16 %v745
      %v3055 = vunpack.c.l.b16 %v746
      %v3056 = vunpack.c.h.b16 %v746
      %v3057 = vunpack.c.l.b16 %v747
      %v3058 = vunpack.c.l.b16 %v748
      %v3059 = vunpack.c.h.b16 %v748
      %v3060 = vunpack.c.l.b16 %v749
      %v3061 = vunpack.c.h.b16 %v749
      %v3062 = vunpack.c.l.b16 %v750
      %v3063 = vunpack.c.h.b16 %v750
      %v3064 = vunpack.c.l.b16 %v751
      %v3065 = vunpack.c.l.b16 %v752
      %v3066 = vunpack.c.h.b16 %v752
      %v3067 = vunpack.c.l.b16 %v753
      %v3068 = vunpack.c.h.b16 %v753
      %v3069 = vunpack.c.l.b16 %v754
      %v3070 = vunpack.c.h.b16 %v754
      %v3071 = vunpack.c.l.b16 %v755
      %v3072 = vunpack.c.l.b16 %v756
      %v3073 = vunpack.c.h.b16 %v756
      %v3074 = vunpack.c.l.b16 %v757
      %v3075 = vunpack.c.h.b16 %v757
      %v3076 = vunpack.c.l.b16 %v758
      %v3077 = vunpack.c.h.b16 %v758
      %v3078 = vunpack.c.l.b16 %v759
      %v3079 = vunpack.c.l.b16 %v760
      %v3080 = vunpack.c.h.b16 %v760
      %v3081 = vunpack.c.l.b16 %v761
      %v3082 = vunpack.c.h.b16 %v761
      %v3083 = vunpack.c.l.b16 %v762
      %v3084 = vunpack.c.h.b16 %v762
      %v3085 = vunpack.c.l.b16 %v763
      %v3086 = vunpack.c.l.b16 %v764
      %v3087 = vunpack.c.h.b16 %v764
      %v3088 = vunpack.c.l.b16 %v765
      %v3089 = vunpack.c.h.b16 %v765
      %v3090 = vunpack.c.l.b16 %v766
      %v3091 = vunpack.c.h.b16 %v766
      %v3092 = vunpack.c.l.b16 %v767
      %v3093 = vunpack.c.l.b16 %v768
      %v3094 = vunpack.c.h.b16 %v768
      %v3095 = vunpack.c.l.b16 %v769
      %v3096 = vunpack.c.h.b16 %v769
      %v3097 = vunpack.c.l.b16 %v770
      %v3098 = vunpack.c.h.b16 %v770
      %v3099 = vunpack.c.l.b16 %v771
      %v3100 = vunpack.c.l.b16 %v772
      %v3101 = vunpack.c.h.b16 %v772
      %v3102 = vunpack.c.l.b16 %v773
      %v3103 = vunpack.c.h.b16 %v773
      %v3104 = vunpack.c.l.b16 %v774
      %v3105 = vunpack.c.h.b16 %v774
      %v3106 = vunpack.c.l.b16 %v775
      %v3107 = vunpack.c.l.b16 %v776
      %v3108 = vunpack.c.h.b16 %v776
      %v3109 = vunpack.c.l.b16 %v777
      %v3110 = vunpack.c.h.b16 %v777
      %v3111 = vunpack.c.l.b16 %v778
      %v3112 = vunpack.c.h.b16 %v778
      %v3113 = vunpack.c.l.b16 %v779
      %v3114 = vunpack.c.l.b16 %v780
      %v3115 = vunpack.c.h.b16 %v780
      %v3116 = vunpack.c.l.b16 %v781
      %v3117 = vunpack.c.h.b16 %v781
      %v3118 = vunpack.c.l.b16 %v782
      %v3119 = vunpack.c.h.b16 %v782
      %v3120 = vunpack.c.l.b16 %v783
      %v3121 = vunpack.c.l.b16 %v784
      %v3122 = vunpack.c.h.b16 %v784
      %v3123 = vunpack.c.l.b16 %v785
      %v3124 = vunpack.c.h.b16 %v785
      %v3125 = vunpack.c.l.b16 %v786
      %v3126 = vunpack.c.h.b16 %v786
      %v3127 = vunpack.c.l.b16 %v787
      %v3128 = vunpack.c.l.b16 %v788
      %v3129 = vunpack.c.h.b16 %v788
      %v3130 = vunpack.c.l.b16 %v789
      %v3131 = vunpack.c.h.b16 %v789
      %v3132 = vunpack.c.l.b16 %v790
      %v3133 = vunpack.c.h.b16 %v790
      %v3134 = vunpack.c.l.b16 %v791
      %v3135 = vunpack.c.l.b16 %v792
      %v3136 = vunpack.c.h.b16 %v792
      %v3137 = vunpack.c.l.b16 %v793
      %v3138 = vunpack.c.h.b16 %v793
      %v3139 = vunpack.c.l.b16 %v794
      %v3140 = vunpack.c.h.b16 %v794
      %v3141 = vunpack.c.l.b16 %v795
      %v3142 = vunpack.c.l.b16 %v796
      %v3143 = vunpack.c.h.b16 %v796
      %v3144 = vunpack.c.l.b16 %v797
      %v3145 = vunpack.c.h.b16 %v797
      %v3146 = vunpack.c.l.b16 %v798
      %v3147 = vunpack.c.h.b16 %v798
      %v3148 = vunpack.c.l.b16 %v799
      %v3149 = vunpack.c.l.b16 %v800
      %v3150 = vunpack.c.h.b16 %v800
      %v3151 = vunpack.c.l.b16 %v801
      %v3152 = vunpack.c.h.b16 %v801
      %v3153 = vunpack.c.l.b16 %v802
      %v3154 = vunpack.c.h.b16 %v802
      %v3155 = vunpack.c.l.b16 %v803
      %v3156 = vunpack.c.l.b16 %v804
      %v3157 = vunpack.c.h.b16 %v804
      %v3158 = vunpack.c.l.b16 %v805
      %v3159 = vunpack.c.h.b16 %v805
      %v3160 = vunpack.c.l.b16 %v806
      %v3161 = vunpack.c.h.b16 %v806
      %v3162 = vunpack.c.l.b16 %v807
      %v3163 = vunpack.c.l.b16 %v808
      %v3164 = vunpack.c.h.b16 %v808
      %v3165 = vunpack.c.l.b16 %v809
      %v3166 = vunpack.c.h.b16 %v809
      %v3167 = vunpack.c.l.b16 %v810
      %v3168 = vunpack.c.h.b16 %v810
      %v3169 = vunpack.c.l.b16 %v811
      %v3170 = vunpack.c.l.b16 %v812
      %v3171 = vunpack.c.h.b16 %v812
      %v3172 = vunpack.c.l.b16 %v813
      %v3173 = vunpack.c.h.b16 %v813
      %v3174 = vunpack.c.l.b16 %v814
      %v3175 = vunpack.c.h.b16 %v814
      %v3176 = vunpack.c.l.b16 %v815
      %v3177 = vunpack.c.l.b16 %v816
      %v3178 = vunpack.c.h.b16 %v816
      %v3179 = vunpack.c.l.b16 %v817
      %v3180 = vunpack.c.h.b16 %v817
      %v3181 = vunpack.c.l.b16 %v818
      %v3182 = vunpack.c.h.b16 %v818
      %v3183 = vunpack.c.l.b16 %v819
      %v3184 = vunpack.c.l.b16 %v820
      %v3185 = vunpack.c.h.b16 %v820
      %v3186 = vunpack.c.l.b16 %v821
      %v3187 = vunpack.c.h.b16 %v821
      %v3188 = vunpack.c.l.b16 %v822
      %v3189 = vunpack.c.h.b16 %v822
      %v3190 = vunpack.c.l.b16 %v823
      %v3191 = vunpack.c.l.b16 %v824
      %v3192 = vunpack.c.h.b16 %v824
      %v3193 = vunpack.c.l.b16 %v825
      %v3194 = vunpack.c.h.b16 %v825
      %v3195 = vunpack.c.l.b16 %v826
      %v3196 = vunpack.c.h.b16 %v826
      %v3197 = vunpack.c.l.b16 %v827
      %v3198 = vunpack.c.l.b16 %v828
      %v3199 = vunpack.c.h.b16 %v828
      %v3200 = vunpack.c.l.b16 %v829
      %v3201 = vunpack.c.h.b16 %v829
      %v3202 = vunpack.c.l.b16 %v830
      %v3203 = vunpack.c.h.b16 %v830
      %v3204 = vunpack.c.l.b16 %v831
      %v3205 = vunpack.c.l.b16 %v832
      %v3206 = vunpack.c.h.b16 %v832
      %v3207 = vunpack.c.l.b16 %v833
      %v3208 = vunpack.c.h.b16 %v833
      %v3209 = vunpack.c.l.b16 %v834
      %v3210 = vunpack.c.h.b16 %v834
      %v3211 = vunpack.c.l.b16 %v835
      %v3212 = vunpack.c.l.b16 %v836
      %v3213 = vunpack.c.h.b16 %v836
      %v3214 = vunpack.c.l.b16 %v837
      %v3215 = vunpack.c.h.b16 %v837
      %v3216 = vunpack.c.l.b16 %v838
      %v3217 = vunpack.c.h.b16 %v838
      %v3218 = vunpack.c.l.b16 %v839
      %v3219 = vunpack.c.l.b16 %v840
      %v3220 = vunpack.c.h.b16 %v840
      %v3221 = vunpack.c.l.b16 %v841
      %v3222 = vunpack.c.h.b16 %v841
      %v3223 = vunpack.c.l.b16 %v842
      %v3224 = vunpack.c.h.b16 %v842
      %v3225 = vunpack.c.l.b16 %v843
      %v3226 = vunpack.c.l.b16 %v844
      %v3227 = vunpack.c.h.b16 %v844
      %v3228 = vunpack.c.l.b16 %v845
      %v3229 = vunpack.c.h.b16 %v845
      %v3230 = vunpack.c.l.b16 %v846
      %v3231 = vunpack.c.h.b16 %v846
      %v3232 = vunpack.c.l.b16 %v847
      %v3233 = vunpack.c.l.b16 %v848
      %v3234 = vunpack.c.h.b16 %v848
      %v3235 = vunpack.c.l.b16 %v849
      %v3236 = vunpack.c.h.b16 %v849
      %v3237 = vunpack.c.l.b16 %v850
      %v3238 = vunpack.c.h.b16 %v850
      %v3239 = vunpack.c.l.b16 %v851
      %v3240 = vunpack.c.l.b16 %v852
      %v3241 = vunpack.c.h.b16 %v852
      %v3242 = vunpack.c.l.b16 %v853
      %v3243 = vunpack.c.h.b16 %v853
      %v3244 = vunpack.c.l.b16 %v854
      %v3245 = vunpack.c.h.b16 %v854
      %v3246 = vunpack.c.l.b16 %v855
      %v3247 = vunpack.c.l.b16 %v856
      %v3248 = vunpack.c.h.b16 %v856
      %v3249 = vunpack.c.l.b16 %v857
      %v3250 = vunpack.c.h.b16 %v857
      %v3251 = vunpack.c.l.b16 %v858
      %v3252 = vunpack.c.h.b16 %v858
      %v3253 = vunpack.c.l.b16 %v859
      %v3254 = vunpack.c.l.b16 %v860
      %v3255 = vunpack.c.h.b16 %v860
      %v3256 = vunpack.c.l.b16 %v861
      %v3257 = vunpack.c.h.b16 %v861
      %v3258 = vunpack.c.l.b16 %v862
      %v3259 = vunpack.c.h.b16 %v862
      %v3260 = vunpack.c.l.b16 %v863
      %v3261 = vunpack.c.l.b16 %v864
      %v3262 = vunpack.c.h.b16 %v864
      %v3263 = vunpack.c.l.b16 %v865
      %v3264 = vunpack.c.h.b16 %v865
      %v3265 = vunpack.c.l.b16 %v866
      %v3266 = vunpack.c.h.b16 %v866
      %v3267 = vunpack.c.l.b16 %v867
      %v3268 = vunpack.c.l.b16 %v868
      %v3269 = vunpack.c.h.b16 %v868
      %v3270 = vunpack.c.l.b16 %v869
      %v3271 = vunpack.c.h.b16 %v869
      %v3272 = vunpack.c.l.b16 %v870
      %v3273 = vunpack.c.h.b16 %v870
      %v3274 = vunpack.c.l.b16 %v871
      %v3275 = vunpack.c.l.b16 %v872
      %v3276 = vunpack.c.h.b16 %v872
      %v3277 = vunpack.c.l.b16 %v873
      %v3278 = vunpack.c.h.b16 %v873
      %v3279 = vunpack.c.l.b16 %v874
      %v3280 = vunpack.c.h.b16 %v874
      %v3281 = vunpack.c.l.b16 %v875
      %v3282 = vunpack.c.l.b16 %v876
      %v3283 = vunpack.c.h.b16 %v876
      %v3284 = vunpack.c.l.b16 %v877
      %v3285 = vunpack.c.h.b16 %v877
      %v3286 = vunpack.c.l.b16 %v878
      %v3287 = vunpack.c.h.b16 %v878
      %v3288 = vunpack.c.l.b16 %v879
      %v3289 = vunpack.c.l.b16 %v880
      %v3290 = vunpack.c.h.b16 %v880
      %v3291 = vunpack.c.l.b16 %v881
      %v3292 = vunpack.c.h.b16 %v881
      %v3293 = vunpack.c.l.b16 %v882
      %v3294 = vunpack.c.h.b16 %v882
      %v3295 = vunpack.c.l.b16 %v883
      %v3296 = vunpack.c.l.b16 %v884
      %v3297 = vunpack.c.h.b16 %v884
      %v3298 = vunpack.c.l.b16 %v885
      %v3299 = vunpack.c.h.b16 %v885
      %v3300 = vunpack.c.l.b16 %v886
      %v3301 = vunpack.c.h.b16 %v886
      %v3302 = vunpack.c.l.b16 %v887
      %v3303 = vunpack.c.l.b16 %v888
      %v3304 = vunpack.c.h.b16 %v888
      %v3305 = vunpack.c.l.b16 %v889
      %v3306 = vunpack.c.h.b16 %v889
      %v3307 = vunpack.c.l.b16 %v890
      %v3308 = vunpack.c.h.b16 %v890
      %v3309 = vunpack.c.l.b16 %v891
      %v3310 = vunpack.c.l.b16 %v892
      %v3311 = vunpack.c.h.b16 %v892
      %v3312 = vunpack.c.l.b16 %v893
      %v3313 = vunpack.c.h.b16 %v893
      %v3314 = vunpack.c.l.b16 %v894
      %v3315 = vunpack.c.h.b16 %v894
      %v3316 = vunpack.c.l.b16 %v895
      %v3317 = vunpack.c.l.b16 %v896
      %v3318 = vunpack.c.h.b16 %v896
      %v3319 = vunpack.c.l.b16 %v897
      %v3320 = vunpack.c.h.b16 %v897
      %v3321 = vunpack.c.l.b16 %v898
      %v3322 = vunpack.c.h.b16 %v898
      %v3323 = vunpack.c.l.b16 %v899
      %v3324 = vunpack.c.l.b16 %v900
      %v3325 = vunpack.c.h.b16 %v900
      %v3326 = vunpack.c.l.b16 %v901
      %v3327 = vunpack.c.h.b16 %v901
      %v3328 = vunpack.c.l.b16 %v902
      %v3329 = vunpack.c.h.b16 %v902
      %v3330 = vunpack.c.l.b16 %v903
      %v3331 = vunpack.c.l.b16 %v904
      %v3332 = vunpack.c.h.b16 %v904
      %v3333 = vunpack.c.l.b16 %v905
      %v3334 = vunpack.c.h.b16 %v905
      %v3335 = vunpack.c.l.b16 %v906
      %v3336 = vunpack.c.h.b16 %v906
      %v3337 = vunpack.c.l.b16 %v907
      %v3338 = vunpack.c.l.b16 %v908
      %v3339 = vunpack.c.h.b16 %v908
      %v3340 = vunpack.c.l.b16 %v909
      %v3341 = vunpack.c.h.b16 %v909
      %v3342 = vunpack.c.l.b16 %v910
      %v3343 = vunpack.c.h.b16 %v910
      %v3344 = vunpack.c.l.b16 %v911
      %v3345 = vunpack.c.l.b16 %v912
      %v3346 = vunpack.c.h.b16 %v912
      %v3347 = vunpack.c.l.b16 %v913
      %v3348 = vunpack.c.h.b16 %v913
      %v3349 = vunpack.c.l.b16 %v914
      %v3350 = vunpack.c.h.b16 %v914
      %v3351 = vunpack.c.l.b16 %v915
      %v3352 = vunpack.c.l.b16 %v916
      %v3353 = vunpack.c.h.b16 %v916
      %v3354 = vunpack.c.l.b16 %v917
      %v3355 = vunpack.c.h.b16 %v917
      %v3356 = vunpack.c.l.b16 %v918
      %v3357 = vunpack.c.h.b16 %v918
      %v3358 = vunpack.c.l.b16 %v919
      %v3359 = vunpack.c.l.b16 %v920
      %v3360 = vunpack.c.h.b16 %v920
      %v3361 = vunpack.c.l.b16 %v921
      %v3362 = vunpack.c.h.b16 %v921
      %v3363 = vunpack.c.l.b16 %v922
      %v3364 = vunpack.c.h.b16 %v922
      %v3365 = vunpack.c.l.b16 %v923
      %v3366 = vunpack.c.l.b16 %v924
      %v3367 = vunpack.c.h.b16 %v924
      %v3368 = vunpack.c.l.b16 %v925
      %v3369 = vunpack.c.h.b16 %v925
      %v3370 = vunpack.c.l.b16 %v926
      %v3371 = vunpack.c.h.b16 %v926
      %v3372 = vunpack.c.l.b16 %v927
      %v3373 = vunpack.c.l.b16 %v928
      %v3374 = vunpack.c.h.b16 %v928
      %v3375 = vunpack.c.l.b16 %v929
      %v3376 = vunpack.c.h.b16 %v929
      %v3377 = vunpack.c.l.b16 %v930
      %v3378 = vunpack.c.h.b16 %v930
      %v3379 = vunpack.c.l.b16 %v931
      %v3380 = vunpack.c.l.b16 %v932
      %v3381 = vunpack.c.h.b16 %v932
      %v3382 = vunpack.c.l.b16 %v933
      %v3383 = vunpack.c.h.b16 %v933
      %v3384 = vunpack.c.l.b16 %v934
      %v3385 = vunpack.c.h.b16 %v934
      %v3386 = vunpack.c.l.b16 %v935
      %v3387 = vunpack.c.l.b16 %v936
      %v3388 = vunpack.c.h.b16 %v936
      %v3389 = vunpack.c.l.b16 %v937
      %v3390 = vunpack.c.h.b16 %v937
      %v3391 = vunpack.c.l.b16 %v938
      %v3392 = vunpack.c.h.b16 %v938
      %v3393 = vunpack.c.l.b16 %v939
      %v3394 = vunpack.c.l.b16 %v940
      %v3395 = vunpack.c.h.b16 %v940
      %v3396 = vunpack.c.l.b16 %v941
      %v3397 = vunpack.c.h.b16 %v941
      %v3398 = vunpack.c.l.b16 %v942
      %v3399 = vunpack.c.h.b16 %v942
      %v3400 = vunpack.c.l.b16 %v943
      %v3401 = vunpack.c.l.b16 %v944
      %v3402 = vunpack.c.h.b16 %v944
      %v3403 = vunpack.c.l.b16 %v945
      %v3404 = vunpack.c.h.b16 %v945
      %v3405 = vunpack.c.l.b16 %v946
      %v3406 = vunpack.c.h.b16 %v946
      %v3407 = vunpack.c.l.b16 %v947
      %v3408 = vunpack.c.l.b16 %v948
      %v3409 = vunpack.c.h.b16 %v948
      %v3410 = vunpack.c.l.b16 %v949
      %v3411 = vunpack.c.h.b16 %v949
      %v3412 = vunpack.c.l.b16 %v950
      %v3413 = vunpack.c.h.b16 %v950
      %v3414 = vunpack.c.l.b16 %v951
      %v3415 = vunpack.c.l.b16 %v952
      %v3416 = vunpack.c.h.b16 %v952
      %v3417 = vunpack.c.l.b16 %v953
      %v3418 = vunpack.c.h.b16 %v953
      %v3419 = vunpack.c.l.b16 %v954
      %v3420 = vunpack.c.h.b16 %v954
      %v3421 = vunpack.c.l.b16 %v955
      %v3422 = vunpack.c.l.b16 %v956
      %v3423 = vunpack.c.h.b16 %v956
      %v3424 = vunpack.c.l.b16 %v957
      %v3425 = vunpack.c.h.b16 %v957
      %v3426 = vunpack.c.l.b16 %v958
      %v3427 = vunpack.c.h.b16 %v958
      %v3428 = vunpack.c.l.b16 %v959
      %v3429 = vunpack.c.l.b16 %v960
      %v3430 = vunpack.c.h.b16 %v960
      %v3431 = vunpack.c.l.b16 %v961
      %v3432 = vunpack.c.h.b16 %v961
      %v3433 = vunpack.c.l.b16 %v962
      %v3434 = vunpack.c.h.b16 %v962
      %v3435 = vunpack.c.l.b16 %v963
      %v3436 = vunpack.c.l.b16 %v964
      %v3437 = vunpack.c.h.b16 %v964
      %v3438 = vunpack.c.l.b16 %v965
      %v3439 = vunpack.c.h.b16 %v965
      %v3440 = vunpack.c.l.b16 %v966
      %v3441 = vunpack.c.h.b16 %v966
      %v3442 = vunpack.c.l.b16 %v967
      %v3443 = vunpack.c.l.b16 %v968
      %v3444 = vunpack.c.h.b16 %v968
      %v3445 = vunpack.c.l.b16 %v969
      %v3446 = vunpack.c.h.b16 %v969
      %v3447 = vunpack.c.l.b16 %v970
      %v3448 = vunpack.c.h.b16 %v970
      %v3449 = vunpack.c.l.b16 %v971
      %v3450 = vunpack.c.l.b16 %v972
      %v3451 = vunpack.c.h.b16 %v972
      %v3452 = vunpack.c.l.b16 %v973
      %v3453 = vunpack.c.h.b16 %v973
      %v3454 = vunpack.c.l.b16 %v974
      %v3455 = vunpack.c.h.b16 %v974
      %v3456 = vunpack.c.l.b16 %v975
      %v3457 = vunpack.c.l.b16 %v976
      %v3458 = vunpack.c.h.b16 %v976
      %v3459 = vunpack.c.l.b16 %v977
      %v3460 = vunpack.c.h.b16 %v977
      %v3461 = vunpack.c.l.b16 %v978
      %v3462 = vunpack.c.h.b16 %v978
      %v3463 = vunpack.c.l.b16 %v979
      %v3464 = vunpack.c.l.b16 %v980
      %v3465 = vunpack.c.h.b16 %v980
      %v3466 = vunpack.c.l.b16 %v981
      %v3467 = vunpack.c.h.b16 %v981
      %v3468 = vunpack.c.l.b16 %v982
      %v3469 = vunpack.c.h.b16 %v982
      %v3470 = vunpack.c.l.b16 %v983
      %v3471 = vunpack.c.l.b16 %v984
      %v3472 = vunpack.c.h.b16 %v984
      %v3473 = vunpack.c.l.b16 %v985
      %v3474 = vunpack.c.h.b16 %v985
      %v3475 = vunpack.c.l.b16 %v986
      %v3476 = vunpack.c.h.b16 %v986
      %v3477 = vunpack.c.l.b16 %v987
      %v3478 = vunpack.c.l.b16 %v988
      %v3479 = vunpack.c.h.b16 %v988
      %v3480 = vunpack.c.l.b16 %v989
      %v3481 = vunpack.c.h.b16 %v989
      %v3482 = vunpack.c.l.b16 %v990
      %v3483 = vunpack.c.h.b16 %v990
      %v3484 = vunpack.c.l.b16 %v991
      %v3485 = vunpack.c.l.b16 %v992
      %v3486 = vunpack.c.h.b16 %v992
      %v3487 = vunpack.c.l.b16 %v993
      %v3488 = vunpack.c.h.b16 %v993
      %v3489 = vunpack.c.l.b16 %v994
      %v3490 = vunpack.c.h.b16 %v994
      %v3491 = vunpack.c.l.b16 %v995
      %v3492 = vunpack.c.l.b16 %v996
      %v3493 = vunpack.c.h.b16 %v996
      %v3494 = vunpack.c.l.b16 %v997
      %v3495 = vunpack.c.h.b16 %v997
      %v3496 = vunpack.c.l.b16 %v998
      %v3497 = vunpack.c.h.b16 %v998
      %v3498 = vunpack.c.l.b16 %v999
      %v3499 = vunpack.c.l.b16 %v1000
      %v3500 = vunpack.c.h.b16 %v1000
      %v3501 = vunpack.c.l.b16 %v1001
      %v3502 = vunpack.c.h.b16 %v1001
      %v3503 = vunpack.c.l.b16 %v1002
      %v3504 = vunpack.c.h.b16 %v1002
      %v3505 = vunpack.c.l.b16 %v1003
      %v3506 = vunpack.c.l.b16 %v1004
      %v3507 = vunpack.c.h.b16 %v1004
      %v3508 = vunpack.c.l.b16 %v1005
      %v3509 = vunpack.c.h.b16 %v1005
      %v3510 = vunpack.c.l.b16 %v1006
      %v3511 = vunpack.c.h.b16 %v1006
      %v3512 = vunpack.c.l.b16 %v1007
      %v3513 = vunpack.c.l.b16 %v1008
      %v3514 = vunpack.c.h.b16 %v1008
      %v3515 = vunpack.c.l.b16 %v1009
      %v3516 = vunpack.c.h.b16 %v1009
      %v3517 = vunpack.c.l.b16 %v1010
      %v3518 = vunpack.c.h.b16 %v1010
      %v3519 = vunpack.c.l.b16 %v1011
      %v3520 = vunpack.c.l.b16 %v1012
      %v3521 = vunpack.c.h.b16 %v1012
      %v3522 = vunpack.c.l.b16 %v1013
      %v3523 = vunpack.c.h.b16 %v1013
      %v3524 = vunpack.c.l.b16 %v1014
      %v3525 = vunpack.c.h.b16 %v1014
      %v3526 = vunpack.c.l.b16 %v1015
      %v3527 = vunpack.c.l.b16 %v1016
      %v3528 = vunpack.c.h.b16 %v1016
      %v3529 = vunpack.c.l.b16 %v1017
      %v3530 = vunpack.c.h.b16 %v1017
      %v3531 = vunpack.c.l.b16 %v1018
      %v3532 = vunpack.c.h.b16 %v1018
      %v3533 = vunpack.c.l.b16 %v1019
      %v3534 = vunpack.c.l.b16 %v1020
      %v3535 = vunpack.c.h.b16 %v1020
      %v3536 = vunpack.c.l.b16 %v1021
      %v3537 = vunpack.c.h.b16 %v1021
      %v3538 = vunpack.c.l.b16 %v1022
      %v3539 = vunpack.c.h.b16 %v1022
      %v3540 = vunpack.c.l.b16 %v1023
      %v3541 = vunpack.c.l.b16 %v1024
      %v3542 = vunpack.c.h.b16 %v1024
      %v3543 = vunpack.c.l.b16 %v1025
      %v3544 = vunpack.c.h.b16 %v1025
      %v3545 = vunpack.c.l.b16 %v1026
      %v3546 = vunpack.c.h.b16 %v1026
      %v3547 = vunpack.c.l.b16 %v1027
      %v3548 = vunpack.c.l.b16 %v1028
      %v3549 = vunpack.c.h.b16 %v1028
      %v3550 = vunpack.c.l.b16 %v1029
      %v3551 = vunpack.c.h.b16 %v1029
      %v3552 = vunpack.c.l.b16 %v1030
      %v3553 = vunpack.c.h.b16 %v1030
      %v3554 = vunpack.c.l.b16 %v1031
      %v3555 = vunpack.c.l.b16 %v1032
      %v3556 = vunpack.c.h.b16 %v1032
      %v3557 = vunpack.c.l.b16 %v1033
      %v3558 = vunpack.c.h.b16 %v1033
      %v3559 = vunpack.c.l.b16 %v1034
      %v3560 = vunpack.c.h.b16 %v1034
      %v3561 = vunpack.c.l.b16 %v1035
      %v3562 = vunpack.c.l.b16 %v1036
      %v3563 = vunpack.c.h.b16 %v1036
      %v3564 = vunpack.c.l.b16 %v1037
      %v3565 = vunpack.c.h.b16 %v1037
      %v3566 = vunpack.c.l.b16 %v1038
      %v3567 = vunpack.c.h.b16 %v1038
      %v3568 = vunpack.c.l.b16 %v1039
      %v3569 = vunpack.c.l.b16 %v1040
      %v3570 = vunpack.c.h.b16 %v1040
      %v3571 = vunpack.c.l.b16 %v1041
      %v3572 = vunpack.c.h.b16 %v1041
      %v3573 = vunpack.c.l.b16 %v1042
      %v3574 = vunpack.c.h.b16 %v1042
      %v3575 = vunpack.c.l.b16 %v1043
      %v3576 = vunpack.c.l.b16 %v1044
      %v3577 = vunpack.c.h.b16 %v1044
      %v3578 = vunpack.c.l.b16 %v1045
      %v3579 = vunpack.c.h.b16 %v1045
      %v3580 = vunpack.c.l.b16 %v1046
      %v3581 = vunpack.c.h.b16 %v1046
      %v3582 = vunpack.c.l.b16 %v1047
      %v3583 = vunpack.c.l.b16 %v1048
      %v3584 = vunpack.c.h.b16 %v1048
      %v3585 = vunpack.c.l.b16 %v1049
      %v3586 = vunpack.c.h.b16 %v1049
      %v3587 = vunpack.c.l.b16 %v1050
      %v3588 = vunpack.c.h.b16 %v1050
      %v3589 = vunpack.c.l.b16 %v1051
      %v3590 = vunpack.c.l.b16 %v1052
      %v3591 = vunpack.c.h.b16 %v1052
      %v3592 = vunpack.c.l.b16 %v1053
      %v3593 = vunpack.c.h.b16 %v1053
      %v3594 = vunpack.c.l.b16 %v1054
      %v3595 = vunpack.c.h.b16 %v1054
      %v3596 = vunpack.c.l.b16 %v1055
      %v3597 = vunpack.c.l.b16 %v1056
      %v3598 = vunpack.c.h.b16 %v1056
      %v3599 = vunpack.c.l.b16 %v1057
      %v3600 = vunpack.c.h.b16 %v1057
      %v3601 = vunpack.c.l.b16 %v1058
      %v3602 = vunpack.c.h.b16 %v1058
      %v3603 = vunpack.c.l.b16 %v1059
      %v3604 = vunpack.c.l.b16 %v1060
      %v3605 = vunpack.c.h.b16 %v1060
      %v3606 = vunpack.c.l.b16 %v1061
      %v3607 = vunpack.c.h.b16 %v1061
      %v3608 = vunpack.c.l.b16 %v1062
      %v3609 = vunpack.c.h.b16 %v1062
      %v3610 = vunpack.c.l.b16 %v1063
      %v3611 = vunpack.c.l.b16 %v1064
      %v3612 = vunpack.c.h.b16 %v1064
      %v3613 = vunpack.c.l.b16 %v1065
      %v3614 = vunpack.c.h.b16 %v1065
      %v3615 = vunpack.c.l.b16 %v1066
      %v3616 = vunpack.c.h.b16 %v1066
      %v3617 = vunpack.c.l.b16 %v1067
      %v3618 = vunpack.c.l.b16 %v1068
      %v3619 = vunpack.c.h.b16 %v1068
      %v3620 = vunpack.c.l.b16 %v1069
      %v3621 = vunpack.c.h.b16 %v1069
      %v3622 = vunpack.c.l.b16 %v1070
      %v3623 = vunpack.c.h.b16 %v1070
      %v3624 = vunpack.c.l.b16 %v1071
      %v3625 = vunpack.c.l.b16 %v1072
      %v3626 = vunpack.c.h.b16 %v1072
      %v3627 = vunpack.c.l.b16 %v1073
      %v3628 = vunpack.c.h.b16 %v1073
      %v3629 = vunpack.c.l.b16 %v1074
      %v3630 = vunpack.c.h.b16 %v1074
      %v3631 = vunpack.c.l.b16 %v1075
      %v3632 = vunpack.c.l.b16 %v1076
      %v3633 = vunpack.c.h.b16 %v1076
      %v3634 = vunpack.c.l.b16 %v1077
      %v3635 = vunpack.c.h.b16 %v1077
      %v3636 = vunpack.c.l.b16 %v1078
      %v3637 = vunpack.c.h.b16 %v1078
      %v3638 = vunpack.c.l.b16 %v1079
      %v3639 = vunpack.c.l.b16 %v1080
      %v3640 = vunpack.c.h.b16 %v1080
      %v3641 = vunpack.c.l.b16 %v1081
      %v3642 = vunpack.c.h.b16 %v1081
      %v3643 = vunpack.c.l.b16 %v1082
      %v3644 = vunpack.c.h.b16 %v1082
      %v3645 = vunpack.c.l.b16 %v1083
      %v3646 = vunpack.c.l.b16 %v1084
      %v3647 = vunpack.c.h.b16 %v1084
      %v3648 = vunpack.c.l.b16 %v1085
      %v3649 = vunpack.c.h.b16 %v1085
      %v3650 = vunpack.c.l.b16 %v1086
      %v3651 = vunpack.c.h.b16 %v1086
      %v3652 = vunpack.c.l.b16 %v1087
      %v3653 = vunpack.c.l.b16 %v1088
      %v3654 = vunpack.c.h.b16 %v1088
      %v3655 = vunpack.c.l.b16 %v1089
      %v3656 = vunpack.c.h.b16 %v1089
      %v3657 = vunpack.c.l.b16 %v1090
      %v3658 = vunpack.c.h.b16 %v1090
      %v3659 = vunpack.c.l.b16 %v1091
      %v3660 = vunpack.c.l.b16 %v1092
      %v3661 = vunpack.c.h.b16 %v1092
      %v3662 = vunpack.c.l.b16 %v1093
      %v3663 = vunpack.c.h.b16 %v1093
      %v3664 = vunpack.c.l.b16 %v1094
      %v3665 = vunpack.c.h.b16 %v1094
      %v3666 = vunpack.c.l.b16 %v1095
      %v3667 = vunpack.c.l.b16 %v1096
      %v3668 = vunpack.c.h.b16 %v1096
      %v3669 = vunpack.c.l.b16 %v1097
      %v3670 = vunpack.c.h.b16 %v1097
      %v3671 = vunpack.c.l.b16 %v1098
      %v3672 = vunpack.c.h.b16 %v1098
      %v3673 = vunpack.c.l.b16 %v1099
      %v3674 = vunpack.c.l.b16 %v1100
      %v3675 = vunpack.c.h.b16 %v1100
      %v3676 = vunpack.c.l.b16 %v1101
      %v3677 = vunpack.c.h.b16 %v1101
      %v3678 = vunpack.c.l.b16 %v1102
      %v3679 = vunpack.c.h.b16 %v1102
      %v3680 = vunpack.c.l.b16 %v1103
      %v3681 = vunpack.c.l.b16 %v1104
      %v3682 = vunpack.c.h.b16 %v1104
      %v3683 = vunpack.c.l.b16 %v1105
      %v3684 = vunpack.c.h.b16 %v1105
      %v3685 = vunpack.c.l.b16 %v1106
      %v3686 = vunpack.c.h.b16 %v1106
      %v3687 = vunpack.c.l.b16 %v1107
      %v3688 = vunpack.c.l.b16 %v1108
      %v3689 = vunpack.c.h.b16 %v1108
      %v3690 = vunpack.c.l.b16 %v1109
      %v3691 = vunpack.c.h.b16 %v1109
      %v3692 = vunpack.c.l.b16 %v1110
      %v3693 = vunpack.c.h.b16 %v1110
      %v3694 = vunpack.c.l.b16 %v1111
      %v3695 = vunpack.c.l.b16 %v1112
      %v3696 = vunpack.c.h.b16 %v1112
      %v3697 = vunpack.c.l.b16 %v1113
      %v3698 = vunpack.c.h.b16 %v1113
      %v3699 = vunpack.c.l.b16 %v1114
      %v3700 = vunpack.c.h.b16 %v1114
      %v3701 = vunpack.c.l.b16 %v1115
      %v3702 = vunpack.c.l.b16 %v1116
      %v3703 = vunpack.c.h.b16 %v1116
      %v3704 = vunpack.c.l.b16 %v1117
      %v3705 = vunpack.c.h.b16 %v1117
      %v3706 = vunpack.c.l.b16 %v1118
      %v3707 = vunpack.c.h.b16 %v1118
      %v3708 = vunpack.c.l.b16 %v1119
      %v3709 = vunpack.c.l.b16 %v1120
      %v3710 = vunpack.c.h.b16 %v1120
      %v3711 = vunpack.c.l.b16 %v1121
      %v3712 = vunpack.c.h.b16 %v1121
      %v3713 = vunpack.c.l.b16 %v1122
      %v3714 = vunpack.c.h.b16 %v1122
      %v3715 = vunpack.c.l.b16 %v1123
      %v3716 = vunpack.c.l.b16 %v1124
      %v3717 = vunpack.c.h.b16 %v1124
      %v3718 = vunpack.c.l.b16 %v1125
      %v3719 = vunpack.c.h.b16 %v1125
      %v3720 = vunpack.c.l.b16 %v1126
      %v3721 = vunpack.c.h.b16 %v1126
      %v3722 = vunpack.c.l.b16 %v1127
      %v3723 = vunpack.c.l.b16 %v1128
      %v3724 = vunpack.c.h.b16 %v1128
      %v3725 = vunpack.c.l.b16 %v1129
      %v3726 = vunpack.c.h.b16 %v1129
      %v3727 = vunpack.c.l.b16 %v1130
      %v3728 = vunpack.c.h.b16 %v1130
      %v3729 = vunpack.c.l.b16 %v1131
      %v3730 = vunpack.c.l.b16 %v1132
      %v3731 = vunpack.c.h.b16 %v1132
      %v3732 = vunpack.c.l.b16 %v1133
      %v3733 = vunpack.c.h.b16 %v1133
      %v3734 = vunpack.c.l.b16 %v1134
      %v3735 = vunpack.c.h.b16 %v1134
      %v3736 = vunpack.c.l.b16 %v1135
      %v3737 = vunpack.c.l.b16 %v1136
      %v3738 = vunpack.c.h.b16 %v1136
      %v3739 = vunpack.c.l.b16 %v1137
      %v3740 = vunpack.c.h.b16 %v1137
      %v3741 = vunpack.c.l.b16 %v1138
      %v3742 = vunpack.c.h.b16 %v1138
      %v3743 = vunpack.c.l.b16 %v1139
      %v3744 = vpack.c.b16 %v2183, %v2176
      %v3745 = vpack.c.b16 %v2184, %v2177
      %v3746 = vpack.c.b16 %v2185, %v2178
      %v3747 = vpack.c.b16 %v2186, %v2179
      %v3748 = vpack.c.b16 %v2187, %v2180
      %v3749 = vpack.c.b16 %v2188, %v2181
      %v3750 = vpack.c.b16 %v2189, %v2182
      %v3751 = vpack.c.b16 %v2197, %v2190
      %v3752 = vpack.c.b16 %v2198, %v2191
      %v3753 = vpack.c.b16 %v2199, %v2192
      %v3754 = vpack.c.b16 %v2200, %v2193
      %v3755 = vpack.c.b16 %v2201, %v2194
      %v3756 = vpack.c.b16 %v2202, %v2195
      %v3757 = vpack.c.b16 %v2203, %v2196
      %v3758 = vpack.c.b16 %v2211, %v2204
      %v3759 = vpack.c.b16 %v2212, %v2205
      %v3760 = vpack.c.b16 %v2213, %v2206
      %v3761 = vpack.c.b16 %v2214, %v2207
      %v3762 = vpack.c.b16 %v2215, %v2208
      %v3763 = vpack.c.b16 %v2216, %v2209
      %v3764 = vpack.c.b16 %v2217, %v2210
      %v3765 = vpack.c.b16 %v2225, %v2218
      %v3766 = vpack.c.b16 %v2226, %v2219
      %v3767 = vpack.c.b16 %v2227, %v2220
      %v3768 = vpack.c.b16 %v2228, %v2221
      %v3769 = vpack.c.b16 %v2229, %v2222
      %v3770 = vpack.c.b16 %v2230, %v2223
      %v3771 = vpack.c.b16 %v2231, %v2224
      %v3772 = vpack.c.b16 %v2239, %v2232
      %v3773 = vpack.c.b16 %v2240, %v2233
      %v3774 = vpack.c.b16 %v2241, %v2234
      %v3775 = vpack.c.b16 %v2242, %v2235
      %v3776 = vpack.c.b16 %v2243, %v2236
      %v3777 = vpack.c.b16 %v2244, %v2237
      %v3778 = vpack.c.b16 %v2245, %v2238
      %v3779 = vpack.c.b16 %v2253, %v2246
      %v3780 = vpack.c.b16 %v2254, %v2247
      %v3781 = vpack.c.b16 %v2255, %v2248
      %v3782 = vpack.c.b16 %v2256, %v2249
      %v3783 = vpack.c.b16 %v2257, %v2250
      %v3784 = vpack.c.b16 %v2258, %v2251
      %v3785 = vpack.c.b16 %v2259, %v2252
      %v3786 = vpack.c.b16 %v2267, %v2260
      %v3787 = vpack.c.b16 %v2268, %v2261
      %v3788 = vpack.c.b16 %v2269, %v2262
      %v3789 = vpack.c.b16 %v2270, %v2263
      %v3790 = vpack.c.b16 %v2271, %v2264
      %v3791 = vpack.c.b16 %v2272, %v2265
      %v3792 = vpack.c.b16 %v2273, %v2266
      %v3793 = vpack.c.b16 %v2281, %v2274
      %v3794 = vpack.c.b16 %v2282, %v2275
      %v3795 = vpack.c.b16 %v2283, %v2276
      %v3796 = vpack.c.b16 %v2284, %v2277
      %v3797 = vpack.c.b16 %v2285, %v2278
      %v3798 = vpack.c.b16 %v2286, %v2279
      %v3799 = vpack.c.b16 %v2287, %v2280
      %v3800 = vpack.c.b16 %v2295, %v2288
      %v3801 = vpack.c.b16 %v2296, %v2289
      %v3802 = vpack.c.b16 %v2297, %v2290
      %v3803 = vpack.c.b16 %v2298, %v2291
      %v3804 = vpack.c.b16 %v2299, %v2292
      %v3805 = vpack.c.b16 %v2300, %v2293
      %v3806 = vpack.c.b16 %v2301, %v2294
      %v3807 = vpack.c.b16 %v2309, %v2302
      %v3808 = vpack.c.b16 %v2310, %v2303
      %v3809 = vpack.c.b16 %v2311, %v2304
      %v3810 = vpack.c.b16 %v2312, %v2305
      %v3811 = vpack.c.b16 %v2313, %v2306
      %v3812 = vpack.c.b16 %v2314, %v2307
      %v3813 = vpack.c.b16 %v2315, %v2308
      %v3814 = vpack.c.b16 %v2323, %v2316
      %v3815 = vpack.c.b16 %v2324, %v2317
      %v3816 = vpack.c.b16 %v2325, %v2318
      %v3817 = vpack.c.b16 %v2326, %v2319
      %v3818 = vpack.c.b16 %v2327, %v2320
      %v3819 = vpack.c.b16 %v2328, %v2321
      %v3820 = vpack.c.b16 %v2329, %v2322
      %v3821 = vpack.c.b16 %v2337, %v2330
      %v3822 = vpack.c.b16 %v2338, %v2331
      %v3823 = vpack.c.b16 %v2339, %v2332
      %v3824 = vpack.c.b16 %v2340, %v2333
      %v3825 = vpack.c.b16 %v2341, %v2334
      %v3826 = vpack.c.b16 %v2342, %v2335
      %v3827 = vpack.c.b16 %v2343, %v2336
      %v3828 = vpack.c.b16 %v2351, %v2344
      %v3829 = vpack.c.b16 %v2352, %v2345
      %v3830 = vpack.c.b16 %v2353, %v2346
      %v3831 = vpack.c.b16 %v2354, %v2347
      %v3832 = vpack.c.b16 %v2355, %v2348
      %v3833 = vpack.c.b16 %v2356, %v2349
      %v3834 = vpack.c.b16 %v2357, %v2350
      %v3835 = vpack.c.b16 %v2365, %v2358
      %v3836 = vpack.c.b16 %v2366, %v2359
      %v3837 = vpack.c.b16 %v2367, %v2360
      %v3838 = vpack.c.b16 %v2368, %v2361
      %v3839 = vpack.c.b16 %v2369, %v2362
      %v3840 = vpack.c.b16 %v2370, %v2363
      %v3841 = vpack.c.b16 %v2371, %v2364
      %v3842 = vpack.c.b16 %v2379, %v2372
      %v3843 = vpack.c.b16 %v2380, %v2373
      %v3844 = vpack.c.b16 %v2381, %v2374
      %v3845 = vpack.c.b16 %v2382, %v2375
      %v3846 = vpack.c.b16 %v2383, %v2376
      %v3847 = vpack.c.b16 %v2384, %v2377
      %v3848 = vpack.c.b16 %v2385, %v2378
      %v3849 = vpack.c.b16 %v2393, %v2386
      %v3850 = vpack.c.b16 %v2394, %v2387
      %v3851 = vpack.c.b16 %v2395, %v2388
      %v3852 = vpack.c.b16 %v2396, %v2389
      %v3853 = vpack.c.b16 %v2397, %v2390
      %v3854 = vpack.c.b16 %v2398, %v2391
      %v3855 = vpack.c.b16 %v2399, %v2392
      %v3856 = vpack.c.b16 %v2407, %v2400
      %v3857 = vpack.c.b16 %v2408, %v2401
      %v3858 = vpack.c.b16 %v2409, %v2402
      %v3859 = vpack.c.b16 %v2410, %v2403
      %v3860 = vpack.c.b16 %v2411, %v2404
      %v3861 = vpack.c.b16 %v2412, %v2405
      %v3862 = vpack.c.b16 %v2413, %v2406
      %v3863 = vpack.c.b16 %v2421, %v2414
      %v3864 = vpack.c.b16 %v2422, %v2415
      %v3865 = vpack.c.b16 %v2423, %v2416
      %v3866 = vpack.c.b16 %v2424, %v2417
      %v3867 = vpack.c.b16 %v2425, %v2418
      %v3868 = vpack.c.b16 %v2426, %v2419
      %v3869 = vpack.c.b16 %v2427, %v2420
      %v3870 = vpack.c.b16 %v2435, %v2428
      %v3871 = vpack.c.b16 %v2436, %v2429
      %v3872 = vpack.c.b16 %v2437, %v2430
      %v3873 = vpack.c.b16 %v2438, %v2431
      %v3874 = vpack.c.b16 %v2439, %v2432
      %v3875 = vpack.c.b16 %v2440, %v2433
      %v3876 = vpack.c.b16 %v2441, %v2434
      %v3877 = vpack.c.b16 %v2449, %v2442
      %v3878 = vpack.c.b16 %v2450, %v2443
      %v3879 = vpack.c.b16 %v2451, %v2444
      %v3880 = vpack.c.b16 %v2452, %v2445
      %v3881 = vpack.c.b16 %v2453, %v2446
      %v3882 = vpack.c.b16 %v2454, %v2447
      %v3883 = vpack.c.b16 %v2455, %v2448
      %v3884 = vpack.c.b16 %v2463, %v2456
      %v3885 = vpack.c.b16 %v2464, %v2457
      %v3886 = vpack.c.b16 %v2465, %v2458
      %v3887 = vpack.c.b16 %v2466, %v2459
      %v3888 = vpack.c.b16 %v2467, %v2460
      %v3889 = vpack.c.b16 %v2468, %v2461
      %v3890 = vpack.c.b16 %v2469, %v2462
      %v3891 = vpack.c.b16 %v2477, %v2470
      %v3892 = vpack.c.b16 %v2478, %v2471
      %v3893 = vpack.c.b16 %v2479, %v2472
      %v3894 = vpack.c.b16 %v2480, %v2473
      %v3895 = vpack.c.b16 %v2481, %v2474
      %v3896 = vpack.c.b16 %v2482, %v2475
      %v3897 = vpack.c.b16 %v2483, %v2476
      %v3898 = vpack.c.b16 %v2491, %v2484
      %v3899 = vpack.c.b16 %v2492, %v2485
      %v3900 = vpack.c.b16 %v2493, %v2486
      %v3901 = vpack.c.b16 %v2494, %v2487
      %v3902 = vpack.c.b16 %v2495, %v2488
      %v3903 = vpack.c.b16 %v2496, %v2489
      %v3904 = vpack.c.b16 %v2497, %v2490
      %v3905 = vpack.c.b16 %v2505, %v2498
      %v3906 = vpack.c.b16 %v2506, %v2499
      %v3907 = vpack.c.b16 %v2507, %v2500
      %v3908 = vpack.c.b16 %v2508, %v2501
      %v3909 = vpack.c.b16 %v2509, %v2502
      %v3910 = vpack.c.b16 %v2510, %v2503
      %v3911 = vpack.c.b16 %v2511, %v2504
      %v3912 = vpack.c.b16 %v2519, %v2512
      %v3913 = vpack.c.b16 %v2520, %v2513
      %v3914 = vpack.c.b16 %v2521, %v2514
      %v3915 = vpack.c.b16 %v2522, %v2515
      %v3916 = vpack.c.b16 %v2523, %v2516
      %v3917 = vpack.c.b16 %v2524, %v2517
      %v3918 = vpack.c.b16 %v2525, %v2518
      %v3919 = vpack.c.b16 %v2533, %v2526
      %v3920 = vpack.c.b16 %v2534, %v2527
      %v3921 = vpack.c.b16 %v2535, %v2528
      %v3922 = vpack.c.b16 %v2536, %v2529
      %v3923 = vpack.c.b16 %v2537, %v2530
      %v3924 = vpack.c.b16 %v2538, %v2531
      %v3925 = vpack.c.b16 %v2539, %v2532
      %v3926 = vpack.c.b16 %v2547, %v2540
      %v3927 = vpack.c.b16 %v2548, %v2541
      %v3928 = vpack.c.b16 %v2549, %v2542
      %v3929 = vpack.c.b16 %v2550, %v2543
      %v3930 = vpack.c.b16 %v2551, %v2544
      %v3931 = vpack.c.b16 %v2552, %v2545
      %v3932 = vpack.c.b16 %v2553, %v2546
      %v3933 = vpack.c.b16 %v2561, %v2554
      %v3934 = vpack.c.b16 %v2562, %v2555
      %v3935 = vpack.c.b16 %v2563, %v2556
      %v3936 = vpack.c.b16 %v2564, %v2557
      %v3937 = vpack.c.b16 %v2565, %v2558
      %v3938 = vpack.c.b16 %v2566, %v2559
      %v3939 = vpack.c.b16 %v2567, %v2560
      %v3940 = vpack.c.b16 %v2575, %v2568
      %v3941 = vpack.c.b16 %v2576, %v2569
      %v3942 = vpack.c.b16 %v2577, %v2570
      %v3943 = vpack.c.b16 %v2578, %v2571
      %v3944 = vpack.c.b16 %v2579, %v2572
      %v3945 = vpack.c.b16 %v2580, %v2573
      %v3946 = vpack.c.b16 %v2581, %v2574
      %v3947 = vpack.c.b16 %v2589, %v2582
      %v3948 = vpack.c.b16 %v2590, %v2583
      %v3949 = vpack.c.b16 %v2591, %v2584
      %v3950 = vpack.c.b16 %v2592, %v2585
      %v3951 = vpack.c.b16 %v2593, %v2586
      %v3952 = vpack.c.b16 %v2594, %v2587
      %v3953 = vpack.c.b16 %v2595, %v2588
      %v3954 = vpack.c.b16 %v2603, %v2596
      %v3955 = vpack.c.b16 %v2604, %v2597
      %v3956 = vpack.c.b16 %v2605, %v2598
      %v3957 = vpack.c.b16 %v2606, %v2599
      %v3958 = vpack.c.b16 %v2607, %v2600
      %v3959 = vpack.c.b16 %v2608, %v2601
      %v3960 = vpack.c.b16 %v2609, %v2602
      %v3961 = vpack.c.b16 %v2617, %v2610
      %v3962 = vpack.c.b16 %v2618, %v2611
      %v3963 = vpack.c.b16 %v2619, %v2612
      %v3964 = vpack.c.b16 %v2620, %v2613
      %v3965 = vpack.c.b16 %v2621, %v2614
      %v3966 = vpack.c.b16 %v2622, %v2615
      %v3967 = vpack.c.b16 %v2623, %v2616
      %v3968 = vpack.c.b16 %v2631, %v2624
      %v3969 = vpack.c.b16 %v2632, %v2625
      %v3970 = vpack.c.b16 %v2633, %v2626
      %v3971 = vpack.c.b16 %v2634, %v2627
      %v3972 = vpack.c.b16 %v2635, %v2628
      %v3973 = vpack.c.b16 %v2636, %v2629
      %v3974 = vpack.c.b16 %v2637, %v2630
      %v3975 = vpack.c.b16 %v2645, %v2638
      %v3976 = vpack.c.b16 %v2646, %v2639
      %v3977 = vpack.c.b16 %v2647, %v2640
      %v3978 = vpack.c.b16 %v2648, %v2641
      %v3979 = vpack.c.b16 %v2649, %v2642
      %v3980 = vpack.c.b16 %v2650, %v2643
      %v3981 = vpack.c.b16 %v2651, %v2644
      %v3982 = vpack.c.b16 %v2659, %v2652
      %v3983 = vpack.c.b16 %v2660, %v2653
      %v3984 = vpack.c.b16 %v2661, %v2654
      %v3985 = vpack.c.b16 %v2662, %v2655
      %v3986 = vpack.c.b16 %v2663, %v2656
      %v3987 = vpack.c.b16 %v2664, %v2657
      %v3988 = vpack.c.b16 %v2665, %v2658
      %v3989 = vpack.c.b16 %v2673, %v2666
      %v3990 = vpack.c.b16 %v2674, %v2667
      %v3991 = vpack.c.b16 %v2675, %v2668
      %v3992 = vpack.c.b16 %v2676, %v2669
      %v3993 = vpack.c.b16 %v2677, %v2670
      %v3994 = vpack.c.b16 %v2678, %v2671
      %v3995 = vpack.c.b16 %v2679, %v2672
      %v3996 = vpack.c.b16 %v2687, %v2680
      %v3997 = vpack.c.b16 %v2688, %v2681
      %v3998 = vpack.c.b16 %v2689, %v2682
      %v3999 = vpack.c.b16 %v2690, %v2683
      %v4000 = vpack.c.b16 %v2691, %v2684
      %v4001 = vpack.c.b16 %v2692, %v2685
      %v4002 = vpack.c.b16 %v2693, %v2686
      %v4003 = vpack.c.b16 %v2701, %v2694
      %v4004 = vpack.c.b16 %v2702, %v2695
      %v4005 = vpack.c.b16 %v2703, %v2696
      %v4006 = vpack.c.b16 %v2704, %v2697
      %v4007 = vpack.c.b16 %v2705, %v2698
      %v4008 = vpack.c.b16 %v2706, %v2699
      %v4009 = vpack.c.b16 %v2707, %v2700
      %v4010 = vpack.c.b16 %v2715, %v2708
      %v4011 = vpack.c.b16 %v2716, %v2709
      %v4012 = vpack.c.b16 %v2717, %v2710
      %v4013 = vpack.c.b16 %v2718, %v2711
      %v4014 = vpack.c.b16 %v2719, %v2712
      %v4015 = vpack.c.b16 %v2720, %v2713
      %v4016 = vpack.c.b16 %v2721, %v2714
      %v4017 = vpack.c.b16 %v2729, %v2722
      %v4018 = vpack.c.b16 %v2730, %v2723
      %v4019 = vpack.c.b16 %v2731, %v2724
      %v4020 = vpack.c.b16 %v2732, %v2725
      %v4021 = vpack.c.b16 %v2733, %v2726
      %v4022 = vpack.c.b16 %v2734, %v2727
      %v4023 = vpack.c.b16 %v2735, %v2728
      %v4024 = vpack.c.b16 %v2743, %v2736
      %v4025 = vpack.c.b16 %v2744, %v2737
      %v4026 = vpack.c.b16 %v2745, %v2738
      %v4027 = vpack.c.b16 %v2746, %v2739
      %v4028 = vpack.c.b16 %v2747, %v2740
      %v4029 = vpack.c.b16 %v2748, %v2741
      %v4030 = vpack.c.b16 %v2749, %v2742
      %v4031 = vpack.c.b16 %v2757, %v2750
      %v4032 = vpack.c.b16 %v2758, %v2751
      %v4033 = vpack.c.b16 %v2759, %v2752
      %v4034 = vpack.c.b16 %v2760, %v2753
      %v4035 = vpack.c.b16 %v2761, %v2754
      %v4036 = vpack.c.b16 %v2762, %v2755
      %v4037 = vpack.c.b16 %v2763, %v2756
      %v4038 = vpack.c.b16 %v2771, %v2764
      %v4039 = vpack.c.b16 %v2772, %v2765
      %v4040 = vpack.c.b16 %v2773, %v2766
      %v4041 = vpack.c.b16 %v2774, %v2767
      %v4042 = vpack.c.b16 %v2775, %v2768
      %v4043 = vpack.c.b16 %v2776, %v2769
      %v4044 = vpack.c.b16 %v2777, %v2770
      %v4045 = vpack.c.b16 %v2785, %v2778
      %v4046 = vpack.c.b16 %v2786, %v2779
      %v4047 = vpack.c.b16 %v2787, %v2780
      %v4048 = vpack.c.b16 %v2788, %v2781
      %v4049 = vpack.c.b16 %v2789, %v2782
      %v4050 = vpack.c.b16 %v2790, %v2783
      %v4051 = vpack.c.b16 %v2791, %v2784
      %v4052 = vpack.c.b16 %v2799, %v2792
      %v4053 = vpack.c.b16 %v2800, %v2793
      %v4054 = vpack.c.b16 %v2801, %v2794
      %v4055 = vpack.c.b16 %v2802, %v2795
      %v4056 = vpack.c.b16 %v2803, %v2796
      %v4057 = vpack.c.b16 %v2804, %v2797
      %v4058 = vpack.c.b16 %v2805, %v2798
      %v4059 = vpack.c.b16 %v2813, %v2806
      %v4060 = vpack.c.b16 %v2814, %v2807
      %v4061 = vpack.c.b16 %v2815, %v2808
      %v4062 = vpack.c.b16 %v2816, %v2809
      %v4063 = vpack.c.b16 %v2817, %v2810
      %v4064 = vpack.c.b16 %v2818, %v2811
      %v4065 = vpack.c.b16 %v2819, %v2812
      %v4066 = vpack.c.b16 %v2827, %v2820
      %v4067 = vpack.c.b16 %v2828, %v2821
      %v4068 = vpack.c.b16 %v2829, %v2822
      %v4069 = vpack.c.b16 %v2830, %v2823
      %v4070 = vpack.c.b16 %v2831, %v2824
      %v4071 = vpack.c.b16 %v2832, %v2825
      %v4072 = vpack.c.b16 %v2833, %v2826
      %v4073 = vpack.c.b16 %v2841, %v2834
      %v4074 = vpack.c.b16 %v2842, %v2835
      %v4075 = vpack.c.b16 %v2843, %v2836
      %v4076 = vpack.c.b16 %v2844, %v2837
      %v4077 = vpack.c.b16 %v2845, %v2838
      %v4078 = vpack.c.b16 %v2846, %v2839
      %v4079 = vpack.c.b16 %v2847, %v2840
      %v4080 = vpack.c.b16 %v2855, %v2848
      %v4081 = vpack.c.b16 %v2856, %v2849
      %v4082 = vpack.c.b16 %v2857, %v2850
      %v4083 = vpack.c.b16 %v2858, %v2851
      %v4084 = vpack.c.b16 %v2859, %v2852
      %v4085 = vpack.c.b16 %v2860, %v2853
      %v4086 = vpack.c.b16 %v2861, %v2854
      %v4087 = vpack.c.b16 %v2869, %v2862
      %v4088 = vpack.c.b16 %v2870, %v2863
      %v4089 = vpack.c.b16 %v2871, %v2864
      %v4090 = vpack.c.b16 %v2872, %v2865
      %v4091 = vpack.c.b16 %v2873, %v2866
      %v4092 = vpack.c.b16 %v2874, %v2867
      %v4093 = vpack.c.b16 %v2875, %v2868
      %v4094 = vpack.c.b16 %v2883, %v2876
      %v4095 = vpack.c.b16 %v2884, %v2877
      %v4096 = vpack.c.b16 %v2885, %v2878
      %v4097 = vpack.c.b16 %v2886, %v2879
      %v4098 = vpack.c.b16 %v2887, %v2880
      %v4099 = vpack.c.b16 %v2888, %v2881
      %v4100 = vpack.c.b16 %v2889, %v2882
      %v4101 = vpack.c.b16 %v2897, %v2890
      %v4102 = vpack.c.b16 %v2898, %v2891
      %v4103 = vpack.c.b16 %v2899, %v2892
      %v4104 = vpack.c.b16 %v2900, %v2893
      %v4105 = vpack.c.b16 %v2901, %v2894
      %v4106 = vpack.c.b16 %v2902, %v2895
      %v4107 = vpack.c.b16 %v2903, %v2896
      %v4108 = vpack.c.b16 %v2911, %v2904
      %v4109 = vpack.c.b16 %v2912, %v2905
      %v4110 = vpack.c.b16 %v2913, %v2906
      %v4111 = vpack.c.b16 %v2914, %v2907
      %v4112 = vpack.c.b16 %v2915, %v2908
      %v4113 = vpack.c.b16 %v2916, %v2909
      %v4114 = vpack.c.b16 %v2917, %v2910
      %v4115 = vpack.c.b16 %v2925, %v2918
      %v4116 = vpack.c.b16 %v2926, %v2919
      %v4117 = vpack.c.b16 %v2927, %v2920
      %v4118 = vpack.c.b16 %v2928, %v2921
      %v4119 = vpack.c.b16 %v2929, %v2922
      %v4120 = vpack.c.b16 %v2930, %v2923
      %v4121 = vpack.c.b16 %v2931, %v2924
      %v4122 = vpack.c.b16 %v2939, %v2932
      %v4123 = vpack.c.b16 %v2940, %v2933
      %v4124 = vpack.c.b16 %v2941, %v2934
      %v4125 = vpack.c.b16 %v2942, %v2935
      %v4126 = vpack.c.b16 %v2943, %v2936
      %v4127 = vpack.c.b16 %v2944, %v2937
      %v4128 = vpack.c.b16 %v2945, %v2938
      %v4129 = vpack.c.b16 %v2953, %v2946
      %v4130 = vpack.c.b16 %v2954, %v2947
      %v4131 = vpack.c.b16 %v2955, %v2948
      %v4132 = vpack.c.b16 %v2956, %v2949
      %v4133 = vpack.c.b16 %v2957, %v2950
      %v4134 = vpack.c.b16 %v2958, %v2951
      %v4135 = vpack.c.b16 %v2959, %v2952
      %v4136 = vpack.c.b16 %v2967, %v2960
      %v4137 = vpack.c.b16 %v2968, %v2961
      %v4138 = vpack.c.b16 %v2969, %v2962
      %v4139 = vpack.c.b16 %v2970, %v2963
      %v4140 = vpack.c.b16 %v2971, %v2964
      %v4141 = vpack.c.b16 %v2972, %v2965
      %v4142 = vpack.c.b16 %v2973, %v2966
      %v4143 = vpack.c.b16 %v2981, %v2974
      %v4144 = vpack.c.b16 %v2982, %v2975
      %v4145 = vpack.c.b16 %v2983, %v2976
      %v4146 = vpack.c.b16 %v2984, %v2977
      %v4147 = vpack.c.b16 %v2985, %v2978
      %v4148 = vpack.c.b16 %v2986, %v2979
      %v4149 = vpack.c.b16 %v2987, %v2980
      %v4150 = vpack.c.b16 %v2995, %v2988
      %v4151 = vpack.c.b16 %v2996, %v2989
      %v4152 = vpack.c.b16 %v2997, %v2990
      %v4153 = vpack.c.b16 %v2998, %v2991
      %v4154 = vpack.c.b16 %v2999, %v2992
      %v4155 = vpack.c.b16 %v3000, %v2993
      %v4156 = vpack.c.b16 %v3001, %v2994
      %v4157 = vpack.c.b16 %v3009, %v3002
      %v4158 = vpack.c.b16 %v3010, %v3003
      %v4159 = vpack.c.b16 %v3011, %v3004
      %v4160 = vpack.c.b16 %v3012, %v3005
      %v4161 = vpack.c.b16 %v3013, %v3006
      %v4162 = vpack.c.b16 %v3014, %v3007
      %v4163 = vpack.c.b16 %v3015, %v3008
      %v4164 = vpack.c.b16 %v3023, %v3016
      %v4165 = vpack.c.b16 %v3024, %v3017
      %v4166 = vpack.c.b16 %v3025, %v3018
      %v4167 = vpack.c.b16 %v3026, %v3019
      %v4168 = vpack.c.b16 %v3027, %v3020
      %v4169 = vpack.c.b16 %v3028, %v3021
      %v4170 = vpack.c.b16 %v3029, %v3022
      %v4171 = vpack.c.b16 %v3037, %v3030
      %v4172 = vpack.c.b16 %v3038, %v3031
      %v4173 = vpack.c.b16 %v3039, %v3032
      %v4174 = vpack.c.b16 %v3040, %v3033
      %v4175 = vpack.c.b16 %v3041, %v3034
      %v4176 = vpack.c.b16 %v3042, %v3035
      %v4177 = vpack.c.b16 %v3043, %v3036
      %v4178 = vpack.c.b16 %v3051, %v3044
      %v4179 = vpack.c.b16 %v3052, %v3045
      %v4180 = vpack.c.b16 %v3053, %v3046
      %v4181 = vpack.c.b16 %v3054, %v3047
      %v4182 = vpack.c.b16 %v3055, %v3048
      %v4183 = vpack.c.b16 %v3056, %v3049
      %v4184 = vpack.c.b16 %v3057, %v3050
      %v4185 = vpack.c.b16 %v3065, %v3058
      %v4186 = vpack.c.b16 %v3066, %v3059
      %v4187 = vpack.c.b16 %v3067, %v3060
      %v4188 = vpack.c.b16 %v3068, %v3061
      %v4189 = vpack.c.b16 %v3069, %v3062
      %v4190 = vpack.c.b16 %v3070, %v3063
      %v4191 = vpack.c.b16 %v3071, %v3064
      %v4192 = vpack.c.b16 %v3079, %v3072
      %v4193 = vpack.c.b16 %v3080, %v3073
      %v4194 = vpack.c.b16 %v3081, %v3074
      %v4195 = vpack.c.b16 %v3082, %v3075
      %v4196 = vpack.c.b16 %v3083, %v3076
      %v4197 = vpack.c.b16 %v3084, %v3077
      %v4198 = vpack.c.b16 %v3085, %v3078
      %v4199 = vpack.c.b16 %v3093, %v3086
      %v4200 = vpack.c.b16 %v3094, %v3087
      %v4201 = vpack.c.b16 %v3095, %v3088
      %v4202 = vpack.c.b16 %v3096, %v3089
      %v4203 = vpack.c.b16 %v3097, %v3090
      %v4204 = vpack.c.b16 %v3098, %v3091
      %v4205 = vpack.c.b16 %v3099, %v3092
      %v4206 = vpack.c.b16 %v3107, %v3100
      %v4207 = vpack.c.b16 %v3108, %v3101
      %v4208 = vpack.c.b16 %v3109, %v3102
      %v4209 = vpack.c.b16 %v3110, %v3103
      %v4210 = vpack.c.b16 %v3111, %v3104
      %v4211 = vpack.c.b16 %v3112, %v3105
      %v4212 = vpack.c.b16 %v3113, %v3106
      %v4213 = vpack.c.b16 %v3121, %v3114
      %v4214 = vpack.c.b16 %v3122, %v3115
      %v4215 = vpack.c.b16 %v3123, %v3116
      %v4216 = vpack.c.b16 %v3124, %v3117
      %v4217 = vpack.c.b16 %v3125, %v3118
      %v4218 = vpack.c.b16 %v3126, %v3119
      %v4219 = vpack.c.b16 %v3127, %v3120
      %v4220 = vpack.c.b16 %v3135, %v3128
      %v4221 = vpack.c.b16 %v3136, %v3129
      %v4222 = vpack.c.b16 %v3137, %v3130
      %v4223 = vpack.c.b16 %v3138, %v3131
      %v4224 = vpack.c.b16 %v3139, %v3132
      %v4225 = vpack.c.b16 %v3140, %v3133
      %v4226 = vpack.c.b16 %v3141, %v3134
      %v4227 = vpack.c.b16 %v3149, %v3142
      %v4228 = vpack.c.b16 %v3150, %v3143
      %v4229 = vpack.c.b16 %v3151, %v3144
      %v4230 = vpack.c.b16 %v3152, %v3145
      %v4231 = vpack.c.b16 %v3153, %v3146
      %v4232 = vpack.c.b16 %v3154, %v3147
      %v4233 = vpack.c.b16 %v3155, %v3148
      %v4234 = vpack.c.b16 %v3163, %v3156
      %v4235 = vpack.c.b16 %v3164, %v3157
      %v4236 = vpack.c.b16 %v3165, %v3158
      %v4237 = vpack.c.b16 %v3166, %v3159
      %v4238 = vpack.c.b16 %v3167, %v3160
      %v4239 = vpack.c.b16 %v3168, %v3161
      %v4240 = vpack.c.b16 %v3169, %v3162
      %v4241 = vpack.c.b16 %v3177, %v3170
      %v4242 = vpack.c.b16 %v3178, %v3171
      %v4243 = vpack.c.b16 %v3179, %v3172
      %v4244 = vpack.c.b16 %v3180, %v3173
      %v4245 = vpack.c.b16 %v3181, %v3174
      %v4246 = vpack.c.b16 %v3182, %v3175
      %v4247 = vpack.c.b16 %v3183, %v3176
      %v4248 = vpack.c.b16 %v3191, %v3184
      %v4249 = vpack.c.b16 %v3192, %v3185
      %v4250 = vpack.c.b16 %v3193, %v3186
      %v4251 = vpack.c.b16 %v3194, %v3187
      %v4252 = vpack.c.b16 %v3195, %v3188
      %v4253 = vpack.c.b16 %v3196, %v3189
      %v4254 = vpack.c.b16 %v3197, %v3190
      %v4255 = vpack.c.b16 %v3205, %v3198
      %v4256 = vpack.c.b16 %v3206, %v3199
      %v4257 = vpack.c.b16 %v3207, %v3200
      %v4258 = vpack.c.b16 %v3208, %v3201
      %v4259 = vpack.c.b16 %v3209, %v3202
      %v4260 = vpack.c.b16 %v3210, %v3203
      %v4261 = vpack.c.b16 %v3211, %v3204
      %v4262 = vpack.c.b16 %v3219, %v3212
      %v4263 = vpack.c.b16 %v3220, %v3213
      %v4264 = vpack.c.b16 %v3221, %v3214
      %v4265 = vpack.c.b16 %v3222, %v3215
      %v4266 = vpack.c.b16 %v3223, %v3216
      %v4267 = vpack.c.b16 %v3224, %v3217
      %v4268 = vpack.c.b16 %v3225, %v3218
      %v4269 = vpack.c.b16 %v3233, %v3226
      %v4270 = vpack.c.b16 %v3234, %v3227
      %v4271 = vpack.c.b16 %v3235, %v3228
      %v4272 = vpack.c.b16 %v3236, %v3229
      %v4273 = vpack.c.b16 %v3237, %v3230
      %v4274 = vpack.c.b16 %v3238, %v3231
      %v4275 = vpack.c.b16 %v3239, %v3232
      %v4276 = vpack.c.b16 %v3247, %v3240
      %v4277 = vpack.c.b16 %v3248, %v3241
      %v4278 = vpack.c.b16 %v3249, %v3242
      %v4279 = vpack.c.b16 %v3250, %v3243
      %v4280 = vpack.c.b16 %v3251, %v3244
      %v4281 = vpack.c.b16 %v3252, %v3245
      %v4282 = vpack.c.b16 %v3253, %v3246
      %v4283 = vpack.c.b16 %v3261, %v3254
      %v4284 = vpack.c.b16 %v3262, %v3255
      %v4285 = vpack.c.b16 %v3263, %v3256
      %v4286 = vpack.c.b16 %v3264, %v3257
      %v4287 = vpack.c.b16 %v3265, %v3258
      %v4288 = vpack.c.b16 %v3266, %v3259
      %v4289 = vpack.c.b16 %v3267, %v3260
      %v4290 = vpack.c.b16 %v3275, %v3268
      %v4291 = vpack.c.b16 %v3276, %v3269
      %v4292 = vpack.c.b16 %v3277, %v3270
      %v4293 = vpack.c.b16 %v3278, %v3271
      %v4294 = vpack.c.b16 %v3279, %v3272
      %v4295 = vpack.c.b16 %v3280, %v3273
      %v4296 = vpack.c.b16 %v3281, %v3274
      %v4297 = vpack.c.b16 %v3289, %v3282
      %v4298 = vpack.c.b16 %v3290, %v3283
      %v4299 = vpack.c.b16 %v3291, %v3284
      %v4300 = vpack.c.b16 %v3292, %v3285
      %v4301 = vpack.c.b16 %v3293, %v3286
      %v4302 = vpack.c.b16 %v3294, %v3287
      %v4303 = vpack.c.b16 %v3295, %v3288
      %v4304 = vpack.c.b16 %v3303, %v3296
      %v4305 = vpack.c.b16 %v3304, %v3297
      %v4306 = vpack.c.b16 %v3305, %v3298
      %v4307 = vpack.c.b16 %v3306, %v3299
      %v4308 = vpack.c.b16 %v3307, %v3300
      %v4309 = vpack.c.b16 %v3308, %v3301
      %v4310 = vpack.c.b16 %v3309, %v3302
      %v4311 = vpack.c.b16 %v3317, %v3310
      %v4312 = vpack.c.b16 %v3318, %v3311
      %v4313 = vpack.c.b16 %v3319, %v3312
      %v4314 = vpack.c.b16 %v3320, %v3313
      %v4315 = vpack.c.b16 %v3321, %v3314
      %v4316 = vpack.c.b16 %v3322, %v3315
      %v4317 = vpack.c.b16 %v3323, %v3316
      %v4318 = vpack.c.b16 %v3331, %v3324
      %v4319 = vpack.c.b16 %v3332, %v3325
      %v4320 = vpack.c.b16 %v3333, %v3326
      %v4321 = vpack.c.b16 %v3334, %v3327
      %v4322 = vpack.c.b16 %v3335, %v3328
      %v4323 = vpack.c.b16 %v3336, %v3329
      %v4324 = vpack.c.b16 %v3337, %v3330
      %v4325 = vpack.c.b16 %v3345, %v3338
      %v4326 = vpack.c.b16 %v3346, %v3339
      %v4327 = vpack.c.b16 %v3347, %v3340
      %v4328 = vpack.c.b16 %v3348, %v3341
      %v4329 = vpack.c.b16 %v3349, %v3342
      %v4330 = vpack.c.b16 %v3350, %v3343
      %v4331 = vpack.c.b16 %v3351, %v3344
      %v4332 = vpack.c.b16 %v3359, %v3352
      %v4333 = vpack.c.b16 %v3360, %v3353
      %v4334 = vpack.c.b16 %v3361, %v3354
      %v4335 = vpack.c.b16 %v3362, %v3355
      %v4336 = vpack.c.b16 %v3363, %v3356
      %v4337 = vpack.c.b16 %v3364, %v3357
      %v4338 = vpack.c.b16 %v3365, %v3358
      %v4339 = vpack.c.b16 %v3373, %v3366
      %v4340 = vpack.c.b16 %v3374, %v3367
      %v4341 = vpack.c.b16 %v3375, %v3368
      %v4342 = vpack.c.b16 %v3376, %v3369
      %v4343 = vpack.c.b16 %v3377, %v3370
      %v4344 = vpack.c.b16 %v3378, %v3371
      %v4345 = vpack.c.b16 %v3379, %v3372
      %v4346 = vpack.c.b16 %v3387, %v3380
      %v4347 = vpack.c.b16 %v3388, %v3381
      %v4348 = vpack.c.b16 %v3389, %v3382
      %v4349 = vpack.c.b16 %v3390, %v3383
      %v4350 = vpack.c.b16 %v3391, %v3384
      %v4351 = vpack.c.b16 %v3392, %v3385
      %v4352 = vpack.c.b16 %v3393, %v3386
      %v4353 = vpack.c.b16 %v3401, %v3394
      %v4354 = vpack.c.b16 %v3402, %v3395
      %v4355 = vpack.c.b16 %v3403, %v3396
      %v4356 = vpack.c.b16 %v3404, %v3397
      %v4357 = vpack.c.b16 %v3405, %v3398
      %v4358 = vpack.c.b16 %v3406, %v3399
      %v4359 = vpack.c.b16 %v3407, %v3400
      %v4360 = vpack.c.b16 %v3415, %v3408
      %v4361 = vpack.c.b16 %v3416, %v3409
      %v4362 = vpack.c.b16 %v3417, %v3410
      %v4363 = vpack.c.b16 %v3418, %v3411
      %v4364 = vpack.c.b16 %v3419, %v3412
      %v4365 = vpack.c.b16 %v3420, %v3413
      %v4366 = vpack.c.b16 %v3421, %v3414
      %v4367 = vpack.c.b16 %v3429, %v3422
      %v4368 = vpack.c.b16 %v3430, %v3423
      %v4369 = vpack.c.b16 %v3431, %v3424
      %v4370 = vpack.c.b16 %v3432, %v3425
      %v4371 = vpack.c.b16 %v3433, %v3426
      %v4372 = vpack.c.b16 %v3434, %v3427
      %v4373 = vpack.c.b16 %v3435, %v3428
      %v4374 = vpack.c.b16 %v3443, %v3436
      %v4375 = vpack.c.b16 %v3444, %v3437
      %v4376 = vpack.c.b16 %v3445, %v3438
      %v4377 = vpack.c.b16 %v3446, %v3439
      %v4378 = vpack.c.b16 %v3447, %v3440
      %v4379 = vpack.c.b16 %v3448, %v3441
      %v4380 = vpack.c.b16 %v3449, %v3442
      %v4381 = vpack.c.b16 %v3457, %v3450
      %v4382 = vpack.c.b16 %v3458, %v3451
      %v4383 = vpack.c.b16 %v3459, %v3452
      %v4384 = vpack.c.b16 %v3460, %v3453
      %v4385 = vpack.c.b16 %v3461, %v3454
      %v4386 = vpack.c.b16 %v3462, %v3455
      %v4387 = vpack.c.b16 %v3463, %v3456
      %v4388 = vpack.c.b16 %v3471, %v3464
      %v4389 = vpack.c.b16 %v3472, %v3465
      %v4390 = vpack.c.b16 %v3473, %v3466
      %v4391 = vpack.c.b16 %v3474, %v3467
      %v4392 = vpack.c.b16 %v3475, %v3468
      %v4393 = vpack.c.b16 %v3476, %v3469
      %v4394 = vpack.c.b16 %v3477, %v3470
      %v4395 = vpack.c.b16 %v3485, %v3478
      %v4396 = vpack.c.b16 %v3486, %v3479
      %v4397 = vpack.c.b16 %v3487, %v3480
      %v4398 = vpack.c.b16 %v3488, %v3481
      %v4399 = vpack.c.b16 %v3489, %v3482
      %v4400 = vpack.c.b16 %v3490, %v3483
      %v4401 = vpack.c.b16 %v3491, %v3484
      %v4402 = vpack.c.b16 %v3499, %v3492
      %v4403 = vpack.c.b16 %v3500, %v3493
      %v4404 = vpack.c.b16 %v3501, %v3494
      %v4405 = vpack.c.b16 %v3502, %v3495
      %v4406 = vpack.c.b16 %v3503, %v3496
      %v4407 = vpack.c.b16 %v3504, %v3497
      %v4408 = vpack.c.b16 %v3505, %v3498
      %v4409 = vpack.c.b16 %v3513, %v3506
      %v4410 = vpack.c.b16 %v3514, %v3507
      %v4411 = vpack.c.b16 %v3515, %v3508
      %v4412 = vpack.c.b16 %v3516, %v3509
      %v4413 = vpack.c.b16 %v3517, %v3510
      %v4414 = vpack.c.b16 %v3518, %v3511
      %v4415 = vpack.c.b16 %v3519, %v3512
      %v4416 = vpack.c.b16 %v3527, %v3520
      %v4417 = vpack.c.b16 %v3528, %v3521
      %v4418 = vpack.c.b16 %v3529, %v3522
      %v4419 = vpack.c.b16 %v3530, %v3523
      %v4420 = vpack.c.b16 %v3531, %v3524
      %v4421 = vpack.c.b16 %v3532, %v3525
      %v4422 = vpack.c.b16 %v3533, %v3526
      %v4423 = vpack.c.b16 %v3541, %v3534
      %v4424 = vpack.c.b16 %v3542, %v3535
      %v4425 = vpack.c.b16 %v3543, %v3536
      %v4426 = vpack.c.b16 %v3544, %v3537
      %v4427 = vpack.c.b16 %v3545, %v3538
      %v4428 = vpack.c.b16 %v3546, %v3539
      %v4429 = vpack.c.b16 %v3547, %v3540
      %v4430 = vpack.c.b16 %v3555, %v3548
      %v4431 = vpack.c.b16 %v3556, %v3549
      %v4432 = vpack.c.b16 %v3557, %v3550
      %v4433 = vpack.c.b16 %v3558, %v3551
      %v4434 = vpack.c.b16 %v3559, %v3552
      %v4435 = vpack.c.b16 %v3560, %v3553
      %v4436 = vpack.c.b16 %v3561, %v3554
      %v4437 = vpack.c.b16 %v3569, %v3562
      %v4438 = vpack.c.b16 %v3570, %v3563
      %v4439 = vpack.c.b16 %v3571, %v3564
      %v4440 = vpack.c.b16 %v3572, %v3565
      %v4441 = vpack.c.b16 %v3573, %v3566
      %v4442 = vpack.c.b16 %v3574, %v3567
      %v4443 = vpack.c.b16 %v3575, %v3568
      %v4444 = vpack.c.b16 %v3583, %v3576
      %v4445 = vpack.c.b16 %v3584, %v3577
      %v4446 = vpack.c.b16 %v3585, %v3578
      %v4447 = vpack.c.b16 %v3586, %v3579
      %v4448 = vpack.c.b16 %v3587, %v3580
      %v4449 = vpack.c.b16 %v3588, %v3581
      %v4450 = vpack.c.b16 %v3589, %v3582
      %v4451 = vpack.c.b16 %v3597, %v3590
      %v4452 = vpack.c.b16 %v3598, %v3591
      %v4453 = vpack.c.b16 %v3599, %v3592
      %v4454 = vpack.c.b16 %v3600, %v3593
      %v4455 = vpack.c.b16 %v3601, %v3594
      %v4456 = vpack.c.b16 %v3602, %v3595
      %v4457 = vpack.c.b16 %v3603, %v3596
      %v4458 = vpack.c.b16 %v3611, %v3604
      %v4459 = vpack.c.b16 %v3612, %v3605
      %v4460 = vpack.c.b16 %v3613, %v3606
      %v4461 = vpack.c.b16 %v3614, %v3607
      %v4462 = vpack.c.b16 %v3615, %v3608
      %v4463 = vpack.c.b16 %v3616, %v3609
      %v4464 = vpack.c.b16 %v3617, %v3610
      %v4465 = vpack.c.b16 %v3625, %v3618
      %v4466 = vpack.c.b16 %v3626, %v3619
      %v4467 = vpack.c.b16 %v3627, %v3620
      %v4468 = vpack.c.b16 %v3628, %v3621
      %v4469 = vpack.c.b16 %v3629, %v3622
      %v4470 = vpack.c.b16 %v3630, %v3623
      %v4471 = vpack.c.b16 %v3631, %v3624
      %v4472 = vpack.c.b16 %v3639, %v3632
      %v4473 = vpack.c.b16 %v3640, %v3633
      %v4474 = vpack.c.b16 %v3641, %v3634
      %v4475 = vpack.c.b16 %v3642, %v3635
      %v4476 = vpack.c.b16 %v3643, %v3636
      %v4477 = vpack.c.b16 %v3644, %v3637
      %v4478 = vpack.c.b16 %v3645, %v3638
      %v4479 = vpack.c.b16 %v3653, %v3646
      %v4480 = vpack.c.b16 %v3654, %v3647
      %v4481 = vpack.c.b16 %v3655, %v3648
      %v4482 = vpack.c.b16 %v3656, %v3649
      %v4483 = vpack.c.b16 %v3657, %v3650
      %v4484 = vpack.c.b16 %v3658, %v3651
      %v4485 = vpack.c.b16 %v3659, %v3652
      %v4486 = vpack.c.b16 %v3667, %v3660
      %v4487 = vpack.c.b16 %v3668, %v3661
      %v4488 = vpack.c.b16 %v3669, %v3662
      %v4489 = vpack.c.b16 %v3670, %v3663
      %v4490 = vpack.c.b16 %v3671, %v3664
      %v4491 = vpack.c.b16 %v3672, %v3665
      %v4492 = vpack.c.b16 %v3673, %v3666
      %v4493 = vpack.c.b16 %v3681, %v3674
      %v4494 = vpack.c.b16 %v3682, %v3675
      %v4495 = vpack.c.b16 %v3683, %v3676
      %v4496 = vpack.c.b16 %v3684, %v3677
      %v4497 = vpack.c.b16 %v3685, %v3678
      %v4498 = vpack.c.b16 %v3686, %v3679
      %v4499 = vpack.c.b16 %v3687, %v3680
      %v4500 = vpack.c.b16 %v3695, %v3688
      %v4501 = vpack.c.b16 %v3696, %v3689
      %v4502 = vpack.c.b16 %v3697, %v3690
      %v4503 = vpack.c.b16 %v3698, %v3691
      %v4504 = vpack.c.b16 %v3699, %v3692
      %v4505 = vpack.c.b16 %v3700, %v3693
      %v4506 = vpack.c.b16 %v3701, %v3694
      %v4507 = vpack.c.b16 %v3709, %v3702
      %v4508 = vpack.c.b16 %v3710, %v3703
      %v4509 = vpack.c.b16 %v3711, %v3704
      %v4510 = vpack.c.b16 %v3712, %v3705
      %v4511 = vpack.c.b16 %v3713, %v3706
      %v4512 = vpack.c.b16 %v3714, %v3707
      %v4513 = vpack.c.b16 %v3715, %v3708
      %v4514 = vpack.c.b16 %v3723, %v3716
      %v4515 = vpack.c.b16 %v3724, %v3717
      %v4516 = vpack.c.b16 %v3725, %v3718
      %v4517 = vpack.c.b16 %v3726, %v3719
      %v4518 = vpack.c.b16 %v3727, %v3720
      %v4519 = vpack.c.b16 %v3728, %v3721
      %v4520 = vpack.c.b16 %v3729, %v3722
      %v4521 = vpack.c.b16 %v3737, %v3730
      %v4522 = vpack.c.b16 %v3738, %v3731
      %v4523 = vpack.c.b16 %v3739, %v3732
      %v4524 = vpack.c.b16 %v3740, %v3733
      %v4525 = vpack.c.b16 %v3741, %v3734
      %v4526 = vpack.c.b16 %v3742, %v3735
      %v4527 = vpack.c.b16 %v3743, %v3736
      %5312 = vmatprep.subr.bf16.mxu0 %v3745
      %5313 = vmatpush1.bf16.msra.mxu0 %v3744
      %5314 = vmatprep.subr.bf16.mxu0 %v3752
      %5315 = vmatpush1.bf16.msra.mxu0 %v3751
      %5316 = vmatprep.subr.bf16.mxu0 %v3759
      %5317 = vmatpush1.bf16.msra.mxu0 %v3758
      %5318 = vmatprep.subr.bf16.mxu0 %v3766
      %5319 = vmatpush1.bf16.msra.mxu0 %v3765
      %5320 = vmatprep.subr.bf16.mxu0 %v3773
      %5321 = vmatpush1.bf16.msra.mxu0 %v3772
      %5322 = vmatprep.subr.bf16.mxu0 %v3780
      %5323 = vmatpush1.bf16.msra.mxu0 %v3779
      %5324 = vmatprep.subr.bf16.mxu0 %v3787
      %5325 = vmatpush1.bf16.msra.mxu0 %v3786
      %5326 = vmatprep.subr.bf16.mxu0 %v3794
      %5327 = vmatpush1.bf16.msra.mxu0 %v3793
      %5328 = vmatprep.subr.bf16.mxu0 %v3801
      %5329 = vmatpush1.bf16.msra.mxu0 %v3800
      %5330 = vmatprep.subr.bf16.mxu0 %v3808
      %5331 = vmatpush1.bf16.msra.mxu0 %v3807
      %5332 = vmatprep.subr.bf16.mxu0 %v3815
      %5333 = vmatpush1.bf16.msra.mxu0 %v3814
      %5334 = vmatprep.subr.bf16.mxu0 %v3822
      %5335 = vmatpush1.bf16.msra.mxu0 %v3821
      %5336 = vmatprep.subr.bf16.mxu0 %v3829
      %5337 = vmatpush1.bf16.msra.mxu0 %v3828
      %5338 = vmatprep.subr.bf16.mxu0 %v3836
      %5339 = vmatpush1.bf16.msra.mxu0 %v3835
      %5340 = vmatprep.subr.bf16.mxu0 %v3843
      %5341 = vmatpush1.bf16.msra.mxu0 %v3842
      %5342 = vmatprep.subr.bf16.mxu0 %v3850
      %5343 = vmatpush1.bf16.msra.mxu0 %v3849
      %5344 = vmatprep.mubr.bf16.mxu0 %v1225
      %5345 = vmatmul.mubr.bf16.gmra.mrb[0].mxu0 %v1224
      %v5346 = vpop.f32.mrb[0].mxu0
      %v5347 = vadd.f32 0.0, %v5346
      %v5348 = vpop.f32.mrb[0].mxu0
      %v5349 = vadd.f32 0.0, %v5348
      %v5350 = vpop.f32.mrb[0].mxu0
      %v5351 = vadd.f32 0.0, %v5350
      %v5352 = vpop.f32.mrb[0].mxu0
      %v5353 = vadd.f32 0.0, %v5352
      %5354 = vmatprep.mubr.bf16.mxu0 %v1239
      %5355 = vmatmul.mubr.bf16.gmra.mrb[0].mxu0 %v1238
      %v5356 = vpop.f32.mrb[0].mxu0
      %v5357 = vadd.f32 0.0, %v5356
      %v5358 = vpop.f32.mrb[0].mxu0
      %v5359 = vadd.f32 0.0, %v5358
      %v5360 = vpop.f32.mrb[0].mxu0
      %v5361 = vadd.f32 0.0, %v5360
      %v5362 = vpop.f32.mrb[0].mxu0
      %v5363 = vadd.f32 0.0, %v5362
      %5364 = vdwg.mxu0
      %5365 = vmatprep.subr.bf16.mxu0 %v3857
      %5366 = vmatpush1.bf16.msra.mxu0 %v3856
      %5367 = vmatprep.subr.bf16.mxu0 %v3864
      %5368 = vmatpush1.bf16.msra.mxu0 %v3863
      %5369 = vmatprep.subr.bf16.mxu0 %v3871
      %5370 = vmatpush1.bf16.msra.mxu0 %v3870
      %5371 = vmatprep.subr.bf16.mxu0 %v3878
      %5372 = vmatpush1.bf16.msra.mxu0 %v3877
      %5373 = vmatprep.subr.bf16.mxu0 %v3885
      %5374 = vmatpush1.bf16.msra.mxu0 %v3884
      %5375 = vmatprep.subr.bf16.mxu0 %v3892
      %5376 = vmatpush1.bf16.msra.mxu0 %v3891
      %5377 = vmatprep.subr.bf16.mxu0 %v3899
      %5378 = vmatpush1.bf16.msra.mxu0 %v3898
      %5379 = vmatprep.subr.bf16.mxu0 %v3906
      %5380 = vmatpush1.bf16.msra.mxu0 %v3905
      %5381 = vmatprep.subr.bf16.mxu0 %v3913
      %5382 = vmatpush1.bf16.msra.mxu0 %v3912
      %5383 = vmatprep.subr.bf16.mxu0 %v3920
      %5384 = vmatpush1.bf16.msra.mxu0 %v3919
      %5385 = vmatprep.subr.bf16.mxu0 %v3927
      %5386 = vmatpush1.bf16.msra.mxu0 %v3926
      %5387 = vmatprep.subr.bf16.mxu0 %v3934
      %5388 = vmatpush1.bf16.msra.mxu0 %v3933
      %5389 = vmatprep.subr.bf16.mxu0 %v3941
      %5390 = vmatpush1.bf16.msra.mxu0 %v3940
      %5391 = vmatprep.subr.bf16.mxu0 %v3948
      %5392 = vmatpush1.bf16.msra.mxu0 %v3947
      %5393 = vmatprep.subr.bf16.mxu0 %v3955
      %5394 = vmatpush1.bf16.msra.mxu0 %v3954
      %5395 = vmatprep.subr.bf16.mxu0 %v3962
      %5396 = vmatpush1.bf16.msra.mxu0 %v3961
      %5397 = vmatprep.mubr.bf16.mxu0 %v1227
      %5398 = vmatmul.mubr.bf16.gmra.mrb[0].mxu0 %v1226
      %v5399 = vpop.f32.mrb[0].mxu0
      %v5400 = vadd.f32 %v5347, %v5399
      %v5401 = vpop.f32.mrb[0].mxu0
      %v5402 = vadd.f32 %v5349, %v5401
      %v5403 = vpop.f32.mrb[0].mxu0
      %v5404 = vadd.f32 %v5351, %v5403
      %v5405 = vpop.f32.mrb[0].mxu0
      %v5406 = vadd.f32 %v5353, %v5405
      %5407 = vmatprep.mubr.bf16.mxu0 %v1241
      %5408 = vmatmul.mubr.bf16.gmra.mrb[0].mxu0 %v1240
      %v5409 = vpop.f32.mrb[0].mxu0
      %v5410 = vadd.f32 %v5357, %v5409
      %v5411 = vpop.f32.mrb[0].mxu0
      %v5412 = vadd.f32 %v5359, %v5411
      %v5413 = vpop.f32.mrb[0].mxu0
      %v5414 = vadd.f32 %v5361, %v5413
      %v5415 = vpop.f32.mrb[0].mxu0
      %v5416 = vadd.f32 %v5363, %v5415
      %5417 = vdwg.mxu0
      %5418 = vmatprep.subr.bf16.mxu0 %v3969
      %5419 = vmatpush1.bf16.msra.mxu0 %v3968
      %5420 = vmatprep.subr.bf16.mxu0 %v3976
      %5421 = vmatpush1.bf16.msra.mxu0 %v3975
      %5422 = vmatprep.subr.bf16.mxu0 %v3983
      %5423 = vmatpush1.bf16.msra.mxu0 %v3982
      %5424 = vmatprep.subr.bf16.mxu0 %v3990
      %5425 = vmatpush1.bf16.msra.mxu0 %v3989
      %5426 = vmatprep.subr.bf16.mxu0 %v3997
      %5427 = vmatpush1.bf16.msra.mxu0 %v3996
      %5428 = vmatprep.subr.bf16.mxu0 %v4004
      %5429 = vmatpush1.bf16.msra.mxu0 %v4003
      %5430 = vmatprep.subr.bf16.mxu0 %v4011
      %5431 = vmatpush1.bf16.msra.mxu0 %v4010
      %5432 = vmatprep.subr.bf16.mxu0 %v4018
      %5433 = vmatpush1.bf16.msra.mxu0 %v4017
      %5434 = vmatprep.subr.bf16.mxu0 %v4025
      %5435 = vmatpush1.bf16.msra.mxu0 %v4024
      %5436 = vmatprep.subr.bf16.mxu0 %v4032
      %5437 = vmatpush1.bf16.msra.mxu0 %v4031
      %5438 = vmatprep.subr.bf16.mxu0 %v4039
      %5439 = vmatpush1.bf16.msra.mxu0 %v4038
      %5440 = vmatprep.subr.bf16.mxu0 %v4046
      %5441 = vmatpush1.bf16.msra.mxu0 %v4045
      %5442 = vmatprep.subr.bf16.mxu0 %v4053
      %5443 = vmatpush1.bf16.msra.mxu0 %v4052
      %5444 = vmatprep.subr.bf16.mxu0 %v4060
      %5445 = vmatpush1.bf16.msra.mxu0 %v4059
      %5446 = vmatprep.subr.bf16.mxu0 %v4067
      %5447 = vmatpush1.bf16.msra.mxu0 %v4066
      %5448 = vmatprep.subr.bf16.mxu0 %v4074
      %5449 = vmatpush1.bf16.msra.mxu0 %v4073
      %5450 = vmatprep.mubr.bf16.mxu0 %v1229
      %5451 = vmatmul.mubr.bf16.gmra.mrb[0].mxu0 %v1228
      %v5452 = vpop.f32.mrb[0].mxu0
      %v5453 = vadd.f32 %v5400, %v5452
      %v5454 = vpop.f32.mrb[0].mxu0
      %v5455 = vadd.f32 %v5402, %v5454
      %v5456 = vpop.f32.mrb[0].mxu0
      %v5457 = vadd.f32 %v5404, %v5456
      %v5458 = vpop.f32.mrb[0].mxu0
      %v5459 = vadd.f32 %v5406, %v5458
      %5460 = vmatprep.mubr.bf16.mxu0 %v1243
      %5461 = vmatmul.mubr.bf16.gmra.mrb[0].mxu0 %v1242
      %v5462 = vpop.f32.mrb[0].mxu0
      %v5463 = vadd.f32 %v5410, %v5462
      %v5464 = vpop.f32.mrb[0].mxu0
      %v5465 = vadd.f32 %v5412, %v5464
      %v5466 = vpop.f32.mrb[0].mxu0
      %v5467 = vadd.f32 %v5414, %v5466
      %v5468 = vpop.f32.mrb[0].mxu0
      %v5469 = vadd.f32 %v5416, %v5468
      %5470 = vdwg.mxu0
      %5471 = vmatprep.subr.bf16.mxu0 %v4081
      %5472 = vmatpush1.bf16.msra.mxu0 %v4080
      %5473 = vmatprep.subr.bf16.mxu0 %v4088
      %5474 = vmatpush1.bf16.msra.mxu0 %v4087
      %5475 = vmatprep.subr.bf16.mxu0 %v4095
      %5476 = vmatpush1.bf16.msra.mxu0 %v4094
      %5477 = vmatprep.subr.bf16.mxu0 %v4102
      %5478 = vmatpush1.bf16.msra.mxu0 %v4101
      %5479 = vmatprep.subr.bf16.mxu0 %v4109
      %5480 = vmatpush1.bf16.msra.mxu0 %v4108
      %5481 = vmatprep.subr.bf16.mxu0 %v4116
      %5482 = vmatpush1.bf16.msra.mxu0 %v4115
      %5483 = vmatprep.subr.bf16.mxu0 %v4123
      %5484 = vmatpush1.bf16.msra.mxu0 %v4122
      %5485 = vmatprep.subr.bf16.mxu0 %v4130
      %5486 = vmatpush1.bf16.msra.mxu0 %v4129
      %5487 = vmatprep.subr.bf16.mxu0 %v4137
      %5488 = vmatpush1.bf16.msra.mxu0 %v4136
      %5489 = vmatprep.subr.bf16.mxu0 %v4144
      %5490 = vmatpush1.bf16.msra.mxu0 %v4143
      %5491 = vmatprep.subr.bf16.mxu0 %v4151
      %5492 = vmatpush1.bf16.msra.mxu0 %v4150
      %5493 = vmatprep.subr.bf16.mxu0 %v4158
      %5494 = vmatpush1.bf16.msra.mxu0 %v4157
      %5495 = vmatprep.subr.bf16.mxu0 %v4165
      %5496 = vmatpush1.bf16.msra.mxu0 %v4164
      %5497 = vmatprep.subr.bf16.mxu0 %v4172
      %5498 = vmatpush1.bf16.msra.mxu0 %v4171
      %5499 = vmatprep.subr.bf16.mxu0 %v4179
      %5500 = vmatpush1.bf16.msra.mxu0 %v4178
      %5501 = vmatprep.subr.bf16.mxu0 %v4186
      %5502 = vmatpush1.bf16.msra.mxu0 %v4185
      %5503 = vmatprep.mubr.bf16.mxu0 %v1231
      %5504 = vmatmul.mubr.bf16.gmra.mrb[0].mxu0 %v1230
      %v5505 = vpop.f32.mrb[0].mxu0
      %v5506 = vadd.f32 %v5453, %v5505
      %v5507 = vpop.f32.mrb[0].mxu0
      %v5508 = vadd.f32 %v5455, %v5507
      %v5509 = vpop.f32.mrb[0].mxu0
      %v5510 = vadd.f32 %v5457, %v5509
      %v5511 = vpop.f32.mrb[0].mxu0
      %v5512 = vadd.f32 %v5459, %v5511
      %5513 = vmatprep.mubr.bf16.mxu0 %v1245
      %5514 = vmatmul.mubr.bf16.gmra.mrb[0].mxu0 %v1244
      %v5515 = vpop.f32.mrb[0].mxu0
      %v5516 = vadd.f32 %v5463, %v5515
      %v5517 = vpop.f32.mrb[0].mxu0
      %v5518 = vadd.f32 %v5465, %v5517
      %v5519 = vpop.f32.mrb[0].mxu0
      %v5520 = vadd.f32 %v5467, %v5519
      %v5521 = vpop.f32.mrb[0].mxu0
      %v5522 = vadd.f32 %v5469, %v5521
      %5523 = vdwg.mxu0
      %5524 = vmatprep.subr.bf16.mxu0 %v4193
      %5525 = vmatpush1.bf16.msra.mxu0 %v4192
      %5526 = vmatprep.subr.bf16.mxu0 %v4200
      %5527 = vmatpush1.bf16.msra.mxu0 %v4199
      %5528 = vmatprep.subr.bf16.mxu0 %v4207
      %5529 = vmatpush1.bf16.msra.mxu0 %v4206
      %5530 = vmatprep.subr.bf16.mxu0 %v4214
      %5531 = vmatpush1.bf16.msra.mxu0 %v4213
      %5532 = vmatprep.subr.bf16.mxu0 %v4221
      %5533 = vmatpush1.bf16.msra.mxu0 %v4220
      %5534 = vmatprep.subr.bf16.mxu0 %v4228
      %5535 = vmatpush1.bf16.msra.mxu0 %v4227
      %5536 = vmatprep.subr.bf16.mxu0 %v4235
      %5537 = vmatpush1.bf16.msra.mxu0 %v4234
      %5538 = vmatprep.subr.bf16.mxu0 %v4242
      %5539 = vmatpush1.bf16.msra.mxu0 %v4241
      %5540 = vmatprep.subr.bf16.mxu0 %v4249
      %5541 = vmatpush1.bf16.msra.mxu0 %v4248
      %5542 = vmatprep.subr.bf16.mxu0 %v4256
      %5543 = vmatpush1.bf16.msra.mxu0 %v4255
      %5544 = vmatprep.subr.bf16.mxu0 %v4263
      %5545 = vmatpush1.bf16.msra.mxu0 %v4262
      %5546 = vmatprep.subr.bf16.mxu0 %v4270
      %5547 = vmatpush1.bf16.msra.mxu0 %v4269
      %5548 = vmatprep.subr.bf16.mxu0 %v4277
      %5549 = vmatpush1.bf16.msra.mxu0 %v4276
      %5550 = vmatprep.subr.bf16.mxu0 %v4284
      %5551 = vmatpush1.bf16.msra.mxu0 %v4283
      %5552 = vmatprep.subr.bf16.mxu0 %v4291
      %5553 = vmatpush1.bf16.msra.mxu0 %v4290
      %5554 = vmatprep.subr.bf16.mxu0 %v4298
      %5555 = vmatpush1.bf16.msra.mxu0 %v4297
      %5556 = vmatprep.mubr.bf16.mxu0 %v1233
      %5557 = vmatmul.mubr.bf16.gmra.mrb[0].mxu0 %v1232
      %v5558 = vpop.f32.mrb[0].mxu0
      %v5559 = vadd.f32 %v5506, %v5558
      %v5560 = vpop.f32.mrb[0].mxu0
      %v5561 = vadd.f32 %v5508, %v5560
      %v5562 = vpop.f32.mrb[0].mxu0
      %v5563 = vadd.f32 %v5510, %v5562
      %v5564 = vpop.f32.mrb[0].mxu0
      %v5565 = vadd.f32 %v5512, %v5564
      %5566 = vmatprep.mubr.bf16.mxu0 %v1247
      %5567 = vmatmul.mubr.bf16.gmra.mrb[0].mxu0 %v1246
      %v5568 = vpop.f32.mrb[0].mxu0
      %v5569 = vadd.f32 %v5516, %v5568
      %v5570 = vpop.f32.mrb[0].mxu0
      %v5571 = vadd.f32 %v5518, %v5570
      %v5572 = vpop.f32.mrb[0].mxu0
      %v5573 = vadd.f32 %v5520, %v5572
      %v5574 = vpop.f32.mrb[0].mxu0
      %v5575 = vadd.f32 %v5522, %v5574
      %5576 = vdwg.mxu0
      %5577 = vmatprep.subr.bf16.mxu0 %v4305
      %5578 = vmatpush1.bf16.msra.mxu0 %v4304
      %5579 = vmatprep.subr.bf16.mxu0 %v4312
      %5580 = vmatpush1.bf16.msra.mxu0 %v4311
      %5581 = vmatprep.subr.bf16.mxu0 %v4319
      %5582 = vmatpush1.bf16.msra.mxu0 %v4318
      %5583 = vmatprep.subr.bf16.mxu0 %v4326
      %5584 = vmatpush1.bf16.msra.mxu0 %v4325
      %5585 = vmatprep.subr.bf16.mxu0 %v4333
      %5586 = vmatpush1.bf16.msra.mxu0 %v4332
      %5587 = vmatprep.subr.bf16.mxu0 %v4340
      %5588 = vmatpush1.bf16.msra.mxu0 %v4339
      %5589 = vmatprep.subr.bf16.mxu0 %v4347
      %5590 = vmatpush1.bf16.msra.mxu0 %v4346
      %5591 = vmatprep.subr.bf16.mxu0 %v4354
      %5592 = vmatpush1.bf16.msra.mxu0 %v4353
      %5593 = vmatprep.subr.bf16.mxu0 %v4361
      %5594 = vmatpush1.bf16.msra.mxu0 %v4360
      %5595 = vmatprep.subr.bf16.mxu0 %v4368
      %5596 = vmatpush1.bf16.msra.mxu0 %v4367
      %5597 = vmatprep.subr.bf16.mxu0 %v4375
      %5598 = vmatpush1.bf16.msra.mxu0 %v4374
      %5599 = vmatprep.subr.bf16.mxu0 %v4382
      %5600 = vmatpush1.bf16.msra.mxu0 %v4381
      %5601 = vmatprep.subr.bf16.mxu0 %v4389
      %5602 = vmatpush1.bf16.msra.mxu0 %v4388
      %5603 = vmatprep.subr.bf16.mxu0 %v4396
      %5604 = vmatpush1.bf16.msra.mxu0 %v4395
      %5605 = vmatprep.subr.bf16.mxu0 %v4403
      %5606 = vmatpush1.bf16.msra.mxu0 %v4402
      %5607 = vmatprep.subr.bf16.mxu0 %v4410
      %5608 = vmatpush1.bf16.msra.mxu0 %v4409
      %5609 = vmatprep.mubr.bf16.mxu0 %v1235
      %5610 = vmatmul.mubr.bf16.gmra.mrb[0].mxu0 %v1234
      %v5611 = vpop.f32.mrb[0].mxu0
      %v5612 = vadd.f32 %v5559, %v5611
      %v5613 = vpop.f32.mrb[0].mxu0
      %v5614 = vadd.f32 %v5561, %v5613
      %v5615 = vpop.f32.mrb[0].mxu0
      %v5616 = vadd.f32 %v5563, %v5615
      %v5617 = vpop.f32.mrb[0].mxu0
      %v5618 = vadd.f32 %v5565, %v5617
      %5619 = vmatprep.mubr.bf16.mxu0 %v1249
      %5620 = vmatmul.mubr.bf16.gmra.mrb[0].mxu0 %v1248
      %v5621 = vpop.f32.mrb[0].mxu0
      %v5622 = vadd.f32 %v5569, %v5621
      %v5623 = vpop.f32.mrb[0].mxu0
      %v5624 = vadd.f32 %v5571, %v5623
      %v5625 = vpop.f32.mrb[0].mxu0
      %v5626 = vadd.f32 %v5573, %v5625
      %v5627 = vpop.f32.mrb[0].mxu0
      %v5628 = vadd.f32 %v5575, %v5627
      %5629 = vdwg.mxu0
      %5630 = vmatprep.subr.bf16.mxu0 %v4417
      %5631 = vmatpush1.bf16.msra.mxu0 %v4416
      %5632 = vmatprep.subr.bf16.mxu0 %v4424
      %5633 = vmatpush1.bf16.msra.mxu0 %v4423
      %5634 = vmatprep.subr.bf16.mxu0 %v4431
      %5635 = vmatpush1.bf16.msra.mxu0 %v4430
      %5636 = vmatprep.subr.bf16.mxu0 %v4438
      %5637 = vmatpush1.bf16.msra.mxu0 %v4437
      %5638 = vmatprep.subr.bf16.mxu0 %v4445
      %5639 = vmatpush1.bf16.msra.mxu0 %v4444
      %5640 = vmatprep.subr.bf16.mxu0 %v4452
      %5641 = vmatpush1.bf16.msra.mxu0 %v4451
      %5642 = vmatprep.subr.bf16.mxu0 %v4459
      %5643 = vmatpush1.bf16.msra.mxu0 %v4458
      %5644 = vmatprep.subr.bf16.mxu0 %v4466
      %5645 = vmatpush1.bf16.msra.mxu0 %v4465
      %5646 = vmatprep.subr.bf16.mxu0 %v4473
      %5647 = vmatpush1.bf16.msra.mxu0 %v4472
      %5648 = vmatprep.subr.bf16.mxu0 %v4480
      %5649 = vmatpush1.bf16.msra.mxu0 %v4479
      %5650 = vmatprep.subr.bf16.mxu0 %v4487
      %5651 = vmatpush1.bf16.msra.mxu0 %v4486
      %5652 = vmatprep.subr.bf16.mxu0 %v4494
      %5653 = vmatpush1.bf16.msra.mxu0 %v4493
      %5654 = vmatprep.subr.bf16.mxu0 %v4501
      %5655 = vmatpush1.bf16.msra.mxu0 %v4500
      %5656 = vmatprep.subr.bf16.mxu0 %v4508
      %5657 = vmatpush1.bf16.msra.mxu0 %v4507
      %5658 = vmatprep.subr.bf16.mxu0 %v4515
      %5659 = vmatpush1.bf16.msra.mxu0 %v4514
      %5660 = vmatprep.subr.bf16.mxu0 %v4522
      %5661 = vmatpush1.bf16.msra.mxu0 %v4521
      %5662 = vmatprep.mubr.bf16.mxu0 %v1237
      %5663 = vmatmul.mubr.bf16.gmra.mrb[0].mxu0 %v1236
      %v5664 = vpop.f32.mrb[0].mxu0
      %v5665 = vadd.f32 %v5612, %v5664
      %v5666 = vpop.f32.mrb[0].mxu0
      %v5667 = vadd.f32 %v5614, %v5666
      %v5668 = vpop.f32.mrb[0].mxu0
      %v5669 = vadd.f32 %v5616, %v5668
      %v5670 = vpop.f32.mrb[0].mxu0
      %v5671 = vadd.f32 %v5618, %v5670
      %5672 = vmatprep.mubr.bf16.mxu0 %v1251
      %5673 = vmatmul.mubr.bf16.gmra.mrb[0].mxu0 %v1250
      %v5674 = vpop.f32.mrb[0].mxu0
      %v5675 = vadd.f32 %v5622, %v5674
      %v5676 = vpop.f32.mrb[0].mxu0
      %v5677 = vadd.f32 %v5624, %v5676
      %v5678 = vpop.f32.mrb[0].mxu0
      %v5679 = vadd.f32 %v5626, %v5678
      %v5680 = vpop.f32.mrb[0].mxu0
      %v5681 = vadd.f32 %v5628, %v5680
      %5682 = vdwg.mxu0
      %5683 = vmatprep.subr.bf16.mxu0 %v3747
      %5684 = vmatpush1.bf16.msra.mxu0 %v3746
      %5685 = vmatprep.subr.bf16.mxu0 %v3754
      %5686 = vmatpush1.bf16.msra.mxu0 %v3753
      %5687 = vmatprep.subr.bf16.mxu0 %v3761
      %5688 = vmatpush1.bf16.msra.mxu0 %v3760
      %5689 = vmatprep.subr.bf16.mxu0 %v3768
      %5690 = vmatpush1.bf16.msra.mxu0 %v3767
      %5691 = vmatprep.subr.bf16.mxu0 %v3775
      %5692 = vmatpush1.bf16.msra.mxu0 %v3774
      %5693 = vmatprep.subr.bf16.mxu0 %v3782
      %5694 = vmatpush1.bf16.msra.mxu0 %v3781
      %5695 = vmatprep.subr.bf16.mxu0 %v3789
      %5696 = vmatpush1.bf16.msra.mxu0 %v3788
      %5697 = vmatprep.subr.bf16.mxu0 %v3796
      %5698 = vmatpush1.bf16.msra.mxu0 %v3795
      %5699 = vmatprep.subr.bf16.mxu0 %v3803
      %5700 = vmatpush1.bf16.msra.mxu0 %v3802
      %5701 = vmatprep.subr.bf16.mxu0 %v3810
      %5702 = vmatpush1.bf16.msra.mxu0 %v3809
      %5703 = vmatprep.subr.bf16.mxu0 %v3817
      %5704 = vmatpush1.bf16.msra.mxu0 %v3816
      %5705 = vmatprep.subr.bf16.mxu0 %v3824
      %5706 = vmatpush1.bf16.msra.mxu0 %v3823
      %5707 = vmatprep.subr.bf16.mxu0 %v3831
      %5708 = vmatpush1.bf16.msra.mxu0 %v3830
      %5709 = vmatprep.subr.bf16.mxu0 %v3838
      %5710 = vmatpush1.bf16.msra.mxu0 %v3837
      %5711 = vmatprep.subr.bf16.mxu0 %v3845
      %5712 = vmatpush1.bf16.msra.mxu0 %v3844
      %5713 = vmatprep.subr.bf16.mxu0 %v3852
      %5714 = vmatpush1.bf16.msra.mxu0 %v3851
      %5715 = vmatprep.mubr.bf16.mxu0 %v1225
      %5716 = vmatmul.mubr.bf16.gmra.mrb[0].mxu0 %v1224
      %v5717 = vpop.f32.mrb[0].mxu0
      %v5718 = vadd.f32 0.0, %v5717
      %v5719 = vpop.f32.mrb[0].mxu0
      %v5720 = vadd.f32 0.0, %v5719
      %v5721 = vpop.f32.mrb[0].mxu0
      %v5722 = vadd.f32 0.0, %v5721
      %v5723 = vpop.f32.mrb[0].mxu0
      %v5724 = vadd.f32 0.0, %v5723
      %5725 = vmatprep.mubr.bf16.mxu0 %v1239
      %5726 = vmatmul.mubr.bf16.gmra.mrb[0].mxu0 %v1238
      %v5727 = vpop.f32.mrb[0].mxu0
      %v5728 = vadd.f32 0.0, %v5727
      %v5729 = vpop.f32.mrb[0].mxu0
      %v5730 = vadd.f32 0.0, %v5729
      %v5731 = vpop.f32.mrb[0].mxu0
      %v5732 = vadd.f32 0.0, %v5731
      %v5733 = vpop.f32.mrb[0].mxu0
      %v5734 = vadd.f32 0.0, %v5733
      %5735 = vdwg.mxu0
      %5736 = vmatprep.subr.bf16.mxu0 %v3859
      %5737 = vmatpush1.bf16.msra.mxu0 %v3858
      %5738 = vmatprep.subr.bf16.mxu0 %v3866
      %5739 = vmatpush1.bf16.msra.mxu0 %v3865
      %5740 = vmatprep.subr.bf16.mxu0 %v3873
      %5741 = vmatpush1.bf16.msra.mxu0 %v3872
      %5742 = vmatprep.subr.bf16.mxu0 %v3880
      %5743 = vmatpush1.bf16.msra.mxu0 %v3879
      %5744 = vmatprep.subr.bf16.mxu0 %v3887
      %5745 = vmatpush1.bf16.msra.mxu0 %v3886
      %5746 = vmatprep.subr.bf16.mxu0 %v3894
      %5747 = vmatpush1.bf16.msra.mxu0 %v3893
      %5748 = vmatprep.subr.bf16.mxu0 %v3901
      %5749 = vmatpush1.bf16.msra.mxu0 %v3900
      %5750 = vmatprep.subr.bf16.mxu0 %v3908
      %5751 = vmatpush1.bf16.msra.mxu0 %v3907
      %5752 = vmatprep.subr.bf16.mxu0 %v3915
      %5753 = vmatpush1.bf16.msra.mxu0 %v3914
      %5754 = vmatprep.subr.bf16.mxu0 %v3922
      %5755 = vmatpush1.bf16.msra.mxu0 %v3921
      %5756 = vmatprep.subr.bf16.mxu0 %v3929
      %5757 = vmatpush1.bf16.msra.mxu0 %v3928
      %5758 = vmatprep.subr.bf16.mxu0 %v3936
      %5759 = vmatpush1.bf16.msra.mxu0 %v3935
      %5760 = vmatprep.subr.bf16.mxu0 %v3943
      %5761 = vmatpush1.bf16.msra.mxu0 %v3942
      %5762 = vmatprep.subr.bf16.mxu0 %v3950
      %5763 = vmatpush1.bf16.msra.mxu0 %v3949
      %5764 = vmatprep.subr.bf16.mxu0 %v3957
      %5765 = vmatpush1.bf16.msra.mxu0 %v3956
      %5766 = vmatprep.subr.bf16.mxu0 %v3964
      %5767 = vmatpush1.bf16.msra.mxu0 %v3963
      %5768 = vmatprep.mubr.bf16.mxu0 %v1227
      %5769 = vmatmul.mubr.bf16.gmra.mrb[0].mxu0 %v1226
      %v5770 = vpop.f32.mrb[0].mxu0
      %v5771 = vadd.f32 %v5718, %v5770
      %v5772 = vpop.f32.mrb[0].mxu0
      %v5773 = vadd.f32 %v5720, %v5772
      %v5774 = vpop.f32.mrb[0].mxu0
      %v5775 = vadd.f32 %v5722, %v5774
      %v5776 = vpop.f32.mrb[0].mxu0
      %v5777 = vadd.f32 %v5724, %v5776
      %5778 = vmatprep.mubr.bf16.mxu0 %v1241
      %5779 = vmatmul.mubr.bf16.gmra.mrb[0].mxu0 %v1240
      %v5780 = vpop.f32.mrb[0].mxu0
      %v5781 = vadd.f32 %v5728, %v5780
      %v5782 = vpop.f32.mrb[0].mxu0
      %v5783 = vadd.f32 %v5730, %v5782
      %v5784 = vpop.f32.mrb[0].mxu0
      %v5785 = vadd.f32 %v5732, %v5784
      %v5786 = vpop.f32.mrb[0].mxu0
      %v5787 = vadd.f32 %v5734, %v5786
      %5788 = vdwg.mxu0
      %5789 = vmatprep.subr.bf16.mxu0 %v3971
      %5790 = vmatpush1.bf16.msra.mxu0 %v3970
      %5791 = vmatprep.subr.bf16.mxu0 %v3978
      %5792 = vmatpush1.bf16.msra.mxu0 %v3977
      %5793 = vmatprep.subr.bf16.mxu0 %v3985
      %5794 = vmatpush1.bf16.msra.mxu0 %v3984
      %5795 = vmatprep.subr.bf16.mxu0 %v3992
      %5796 = vmatpush1.bf16.msra.mxu0 %v3991
      %5797 = vmatprep.subr.bf16.mxu0 %v3999
      %5798 = vmatpush1.bf16.msra.mxu0 %v3998
      %5799 = vmatprep.subr.bf16.mxu0 %v4006
      %5800 = vmatpush1.bf16.msra.mxu0 %v4005
      %5801 = vmatprep.subr.bf16.mxu0 %v4013
      %5802 = vmatpush1.bf16.msra.mxu0 %v4012
      %5803 = vmatprep.subr.bf16.mxu0 %v4020
      %5804 = vmatpush1.bf16.msra.mxu0 %v4019
      %5805 = vmatprep.subr.bf16.mxu0 %v4027
      %5806 = vmatpush1.bf16.msra.mxu0 %v4026
      %5807 = vmatprep.subr.bf16.mxu0 %v4034
      %5808 = vmatpush1.bf16.msra.mxu0 %v4033
      %5809 = vmatprep.subr.bf16.mxu0 %v4041
      %5810 = vmatpush1.bf16.msra.mxu0 %v4040
      %5811 = vmatprep.subr.bf16.mxu0 %v4048
      %5812 = vmatpush1.bf16.msra.mxu0 %v4047
      %5813 = vmatprep.subr.bf16.mxu0 %v4055
      %5814 = vmatpush1.bf16.msra.mxu0 %v4054
      %5815 = vmatprep.subr.bf16.mxu0 %v4062
      %5816 = vmatpush1.bf16.msra.mxu0 %v4061
      %5817 = vmatprep.subr.bf16.mxu0 %v4069
      %5818 = vmatpush1.bf16.msra.mxu0 %v4068
      %5819 = vmatprep.subr.bf16.mxu0 %v4076
      %5820 = vmatpush1.bf16.msra.mxu0 %v4075
      %5821 = vmatprep.mubr.bf16.mxu0 %v1229
      %5822 = vmatmul.mubr.bf16.gmra.mrb[0].mxu0 %v1228
      %v5823 = vpop.f32.mrb[0].mxu0
      %v5824 = vadd.f32 %v5771, %v5823
      %v5825 = vpop.f32.mrb[0].mxu0
      %v5826 = vadd.f32 %v5773, %v5825
      %v5827 = vpop.f32.mrb[0].mxu0
      %v5828 = vadd.f32 %v5775, %v5827
      %v5829 = vpop.f32.mrb[0].mxu0
      %v5830 = vadd.f32 %v5777, %v5829
      %5831 = vmatprep.mubr.bf16.mxu0 %v1243
      %5832 = vmatmul.mubr.bf16.gmra.mrb[0].mxu0 %v1242
      %v5833 = vpop.f32.mrb[0].mxu0
      %v5834 = vadd.f32 %v5781, %v5833
      %v5835 = vpop.f32.mrb[0].mxu0
      %v5836 = vadd.f32 %v5783, %v5835
      %v5837 = vpop.f32.mrb[0].mxu0
      %v5838 = vadd.f32 %v5785, %v5837
      %v5839 = vpop.f32.mrb[0].mxu0
      %v5840 = vadd.f32 %v5787, %v5839
      %5841 = vdwg.mxu0
      %5842 = vmatprep.subr.bf16.mxu0 %v4083
      %5843 = vmatpush1.bf16.msra.mxu0 %v4082
      %5844 = vmatprep.subr.bf16.mxu0 %v4090
      %5845 = vmatpush1.bf16.msra.mxu0 %v4089
      %5846 = vmatprep.subr.bf16.mxu0 %v4097
      %5847 = vmatpush1.bf16.msra.mxu0 %v4096
      %5848 = vmatprep.subr.bf16.mxu0 %v4104
      %5849 = vmatpush1.bf16.msra.mxu0 %v4103
      %5850 = vmatprep.subr.bf16.mxu0 %v4111
      %5851 = vmatpush1.bf16.msra.mxu0 %v4110
      %5852 = vmatprep.subr.bf16.mxu0 %v4118
      %5853 = vmatpush1.bf16.msra.mxu0 %v4117
      %5854 = vmatprep.subr.bf16.mxu0 %v4125
      %5855 = vmatpush1.bf16.msra.mxu0 %v4124
      %5856 = vmatprep.subr.bf16.mxu0 %v4132
      %5857 = vmatpush1.bf16.msra.mxu0 %v4131
      %5858 = vmatprep.subr.bf16.mxu0 %v4139
      %5859 = vmatpush1.bf16.msra.mxu0 %v4138
      %5860 = vmatprep.subr.bf16.mxu0 %v4146
      %5861 = vmatpush1.bf16.msra.mxu0 %v4145
      %5862 = vmatprep.subr.bf16.mxu0 %v4153
      %5863 = vmatpush1.bf16.msra.mxu0 %v4152
      %5864 = vmatprep.subr.bf16.mxu0 %v4160
      %5865 = vmatpush1.bf16.msra.mxu0 %v4159
      %5866 = vmatprep.subr.bf16.mxu0 %v4167
      %5867 = vmatpush1.bf16.msra.mxu0 %v4166
      %5868 = vmatprep.subr.bf16.mxu0 %v4174
      %5869 = vmatpush1.bf16.msra.mxu0 %v4173
      %5870 = vmatprep.subr.bf16.mxu0 %v4181
      %5871 = vmatpush1.bf16.msra.mxu0 %v4180
      %5872 = vmatprep.subr.bf16.mxu0 %v4188
      %5873 = vmatpush1.bf16.msra.mxu0 %v4187
      %5874 = vmatprep.mubr.bf16.mxu0 %v1231
      %5875 = vmatmul.mubr.bf16.gmra.mrb[0].mxu0 %v1230
      %v5876 = vpop.f32.mrb[0].mxu0
      %v5877 = vadd.f32 %v5824, %v5876
      %v5878 = vpop.f32.mrb[0].mxu0
      %v5879 = vadd.f32 %v5826, %v5878
      %v5880 = vpop.f32.mrb[0].mxu0
      %v5881 = vadd.f32 %v5828, %v5880
      %v5882 = vpop.f32.mrb[0].mxu0
      %v5883 = vadd.f32 %v5830, %v5882
      %5884 = vmatprep.mubr.bf16.mxu0 %v1245
      %5885 = vmatmul.mubr.bf16.gmra.mrb[0].mxu0 %v1244
      %v5886 = vpop.f32.mrb[0].mxu0
      %v5887 = vadd.f32 %v5834, %v5886
      %v5888 = vpop.f32.mrb[0].mxu0
      %v5889 = vadd.f32 %v5836, %v5888
      %v5890 = vpop.f32.mrb[0].mxu0
      %v5891 = vadd.f32 %v5838, %v5890
      %v5892 = vpop.f32.mrb[0].mxu0
      %v5893 = vadd.f32 %v5840, %v5892
      %5894 = vdwg.mxu0
      %5895 = vmatprep.subr.bf16.mxu0 %v4195
      %5896 = vmatpush1.bf16.msra.mxu0 %v4194
      %5897 = vmatprep.subr.bf16.mxu0 %v4202
      %5898 = vmatpush1.bf16.msra.mxu0 %v4201
      %5899 = vmatprep.subr.bf16.mxu0 %v4209
      %5900 = vmatpush1.bf16.msra.mxu0 %v4208
      %5901 = vmatprep.subr.bf16.mxu0 %v4216
      %5902 = vmatpush1.bf16.msra.mxu0 %v4215
      %5903 = vmatprep.subr.bf16.mxu0 %v4223
      %5904 = vmatpush1.bf16.msra.mxu0 %v4222
      %5905 = vmatprep.subr.bf16.mxu0 %v4230
      %5906 = vmatpush1.bf16.msra.mxu0 %v4229
      %5907 = vmatprep.subr.bf16.mxu0 %v4237
      %5908 = vmatpush1.bf16.msra.mxu0 %v4236
      %5909 = vmatprep.subr.bf16.mxu0 %v4244
      %5910 = vmatpush1.bf16.msra.mxu0 %v4243
      %5911 = vmatprep.subr.bf16.mxu0 %v4251
      %5912 = vmatpush1.bf16.msra.mxu0 %v4250
      %5913 = vmatprep.subr.bf16.mxu0 %v4258
      %5914 = vmatpush1.bf16.msra.mxu0 %v4257
      %5915 = vmatprep.subr.bf16.mxu0 %v4265
      %5916 = vmatpush1.bf16.msra.mxu0 %v4264
      %5917 = vmatprep.subr.bf16.mxu0 %v4272
      %5918 = vmatpush1.bf16.msra.mxu0 %v4271
      %5919 = vmatprep.subr.bf16.mxu0 %v4279
      %5920 = vmatpush1.bf16.msra.mxu0 %v4278
      %5921 = vmatprep.subr.bf16.mxu0 %v4286
      %5922 = vmatpush1.bf16.msra.mxu0 %v4285
      %5923 = vmatprep.subr.bf16.mxu0 %v4293
      %5924 = vmatpush1.bf16.msra.mxu0 %v4292
      %5925 = vmatprep.subr.bf16.mxu0 %v4300
      %5926 = vmatpush1.bf16.msra.mxu0 %v4299
      %5927 = vmatprep.mubr.bf16.mxu0 %v1233
      %5928 = vmatmul.mubr.bf16.gmra.mrb[0].mxu0 %v1232
      %v5929 = vpop.f32.mrb[0].mxu0
      %v5930 = vadd.f32 %v5877, %v5929
      %v5931 = vpop.f32.mrb[0].mxu0
      %v5932 = vadd.f32 %v5879, %v5931
      %v5933 = vpop.f32.mrb[0].mxu0
      %v5934 = vadd.f32 %v5881, %v5933
      %v5935 = vpop.f32.mrb[0].mxu0
      %v5936 = vadd.f32 %v5883, %v5935
      %5937 = vmatprep.mubr.bf16.mxu0 %v1247
      %5938 = vmatmul.mubr.bf16.gmra.mrb[0].mxu0 %v1246
      %v5939 = vpop.f32.mrb[0].mxu0
      %v5940 = vadd.f32 %v5887, %v5939
      %v5941 = vpop.f32.mrb[0].mxu0
      %v5942 = vadd.f32 %v5889, %v5941
      %v5943 = vpop.f32.mrb[0].mxu0
      %v5944 = vadd.f32 %v5891, %v5943
      %v5945 = vpop.f32.mrb[0].mxu0
      %v5946 = vadd.f32 %v5893, %v5945
      %5947 = vdwg.mxu0
      %5948 = vmatprep.subr.bf16.mxu0 %v4307
      %5949 = vmatpush1.bf16.msra.mxu0 %v4306
      %5950 = vmatprep.subr.bf16.mxu0 %v4314
      %5951 = vmatpush1.bf16.msra.mxu0 %v4313
      %5952 = vmatprep.subr.bf16.mxu0 %v4321
      %5953 = vmatpush1.bf16.msra.mxu0 %v4320
      %5954 = vmatprep.subr.bf16.mxu0 %v4328
      %5955 = vmatpush1.bf16.msra.mxu0 %v4327
      %5956 = vmatprep.subr.bf16.mxu0 %v4335
      %5957 = vmatpush1.bf16.msra.mxu0 %v4334
      %5958 = vmatprep.subr.bf16.mxu0 %v4342
      %5959 = vmatpush1.bf16.msra.mxu0 %v4341
      %5960 = vmatprep.subr.bf16.mxu0 %v4349
      %5961 = vmatpush1.bf16.msra.mxu0 %v4348
      %5962 = vmatprep.subr.bf16.mxu0 %v4356
      %5963 = vmatpush1.bf16.msra.mxu0 %v4355
      %5964 = vmatprep.subr.bf16.mxu0 %v4363
      %5965 = vmatpush1.bf16.msra.mxu0 %v4362
      %5966 = vmatprep.subr.bf16.mxu0 %v4370
      %5967 = vmatpush1.bf16.msra.mxu0 %v4369
      %5968 = vmatprep.subr.bf16.mxu0 %v4377
      %5969 = vmatpush1.bf16.msra.mxu0 %v4376
      %5970 = vmatprep.subr.bf16.mxu0 %v4384
      %5971 = vmatpush1.bf16.msra.mxu0 %v4383
      %5972 = vmatprep.subr.bf16.mxu0 %v4391
      %5973 = vmatpush1.bf16.msra.mxu0 %v4390
      %5974 = vmatprep.subr.bf16.mxu0 %v4398
      %5975 = vmatpush1.bf16.msra.mxu0 %v4397
      %5976 = vmatprep.subr.bf16.mxu0 %v4405
      %5977 = vmatpush1.bf16.msra.mxu0 %v4404
      %5978 = vmatprep.subr.bf16.mxu0 %v4412
      %5979 = vmatpush1.bf16.msra.mxu0 %v4411
      %5980 = vmatprep.mubr.bf16.mxu0 %v1235
      %5981 = vmatmul.mubr.bf16.gmra.mrb[0].mxu0 %v1234
      %v5982 = vpop.f32.mrb[0].mxu0
      %v5983 = vadd.f32 %v5930, %v5982
      %v5984 = vpop.f32.mrb[0].mxu0
      %v5985 = vadd.f32 %v5932, %v5984
      %v5986 = vpop.f32.mrb[0].mxu0
      %v5987 = vadd.f32 %v5934, %v5986
      %v5988 = vpop.f32.mrb[0].mxu0
      %v5989 = vadd.f32 %v5936, %v5988
      %5990 = vmatprep.mubr.bf16.mxu0 %v1249
      %5991 = vmatmul.mubr.bf16.gmra.mrb[0].mxu0 %v1248
      %v5992 = vpop.f32.mrb[0].mxu0
      %v5993 = vadd.f32 %v5940, %v5992
      %v5994 = vpop.f32.mrb[0].mxu0
      %v5995 = vadd.f32 %v5942, %v5994
      %v5996 = vpop.f32.mrb[0].mxu0
      %v5997 = vadd.f32 %v5944, %v5996
      %v5998 = vpop.f32.mrb[0].mxu0
      %v5999 = vadd.f32 %v5946, %v5998
      %6000 = vdwg.mxu0
      %6001 = vmatprep.subr.bf16.mxu0 %v4419
      %6002 = vmatpush1.bf16.msra.mxu0 %v4418
      %6003 = vmatprep.subr.bf16.mxu0 %v4426
      %6004 = vmatpush1.bf16.msra.mxu0 %v4425
      %6005 = vmatprep.subr.bf16.mxu0 %v4433
      %6006 = vmatpush1.bf16.msra.mxu0 %v4432
      %6007 = vmatprep.subr.bf16.mxu0 %v4440
      %6008 = vmatpush1.bf16.msra.mxu0 %v4439
      %6009 = vmatprep.subr.bf16.mxu0 %v4447
      %6010 = vmatpush1.bf16.msra.mxu0 %v4446
      %6011 = vmatprep.subr.bf16.mxu0 %v4454
      %6012 = vmatpush1.bf16.msra.mxu0 %v4453
      %6013 = vmatprep.subr.bf16.mxu0 %v4461
      %6014 = vmatpush1.bf16.msra.mxu0 %v4460
      %6015 = vmatprep.subr.bf16.mxu0 %v4468
      %6016 = vmatpush1.bf16.msra.mxu0 %v4467
      %6017 = vmatprep.subr.bf16.mxu0 %v4475
      %6018 = vmatpush1.bf16.msra.mxu0 %v4474
      %6019 = vmatprep.subr.bf16.mxu0 %v4482
      %6020 = vmatpush1.bf16.msra.mxu0 %v4481
      %6021 = vmatprep.subr.bf16.mxu0 %v4489
      %6022 = vmatpush1.bf16.msra.mxu0 %v4488
      %6023 = vmatprep.subr.bf16.mxu0 %v4496
      %6024 = vmatpush1.bf16.msra.mxu0 %v4495
      %6025 = vmatprep.subr.bf16.mxu0 %v4503
      %6026 = vmatpush1.bf16.msra.mxu0 %v4502
      %6027 = vmatprep.subr.bf16.mxu0 %v4510
      %6028 = vmatpush1.bf16.msra.mxu0 %v4509
      %6029 = vmatprep.subr.bf16.mxu0 %v4517
      %6030 = vmatpush1.bf16.msra.mxu0 %v4516
      %6031 = vmatprep.subr.bf16.mxu0 %v4524
      %6032 = vmatpush1.bf16.msra.mxu0 %v4523
      %6033 = vmatprep.mubr.bf16.mxu0 %v1237
      %6034 = vmatmul.mubr.bf16.gmra.mrb[0].mxu0 %v1236
      %v6035 = vpop.f32.mrb[0].mxu0
      %v6036 = vadd.f32 %v5983, %v6035
      %v6037 = vpop.f32.mrb[0].mxu0
      %v6038 = vadd.f32 %v5985, %v6037
      %v6039 = vpop.f32.mrb[0].mxu0
      %v6040 = vadd.f32 %v5987, %v6039
      %v6041 = vpop.f32.mrb[0].mxu0
      %v6042 = vadd.f32 %v5989, %v6041
      %6043 = vmatprep.mubr.bf16.mxu0 %v1251
      %6044 = vmatmul.mubr.bf16.gmra.mrb[0].mxu0 %v1250
      %v6045 = vpop.f32.mrb[0].mxu0
      %v6046 = vadd.f32 %v5993, %v6045
      %v6047 = vpop.f32.mrb[0].mxu0
      %v6048 = vadd.f32 %v5995, %v6047
      %v6049 = vpop.f32.mrb[0].mxu0
      %v6050 = vadd.f32 %v5997, %v6049
      %v6051 = vpop.f32.mrb[0].mxu0
      %v6052 = vadd.f32 %v5999, %v6051
      %6053 = vdwg.mxu0
      %6054 = vmatprep.subr.bf16.mxu0 %v3749
      %6055 = vmatpush1.bf16.msra.mxu0 %v3748
      %6056 = vmatprep.subr.bf16.mxu0 %v3756
      %6057 = vmatpush1.bf16.msra.mxu0 %v3755
      %6058 = vmatprep.subr.bf16.mxu0 %v3763
      %6059 = vmatpush1.bf16.msra.mxu0 %v3762
      %6060 = vmatprep.subr.bf16.mxu0 %v3770
      %6061 = vmatpush1.bf16.msra.mxu0 %v3769
      %6062 = vmatprep.subr.bf16.mxu0 %v3777
      %6063 = vmatpush1.bf16.msra.mxu0 %v3776
      %6064 = vmatprep.subr.bf16.mxu0 %v3784
      %6065 = vmatpush1.bf16.msra.mxu0 %v3783
      %6066 = vmatprep.subr.bf16.mxu0 %v3791
      %6067 = vmatpush1.bf16.msra.mxu0 %v3790
      %6068 = vmatprep.subr.bf16.mxu0 %v3798
      %6069 = vmatpush1.bf16.msra.mxu0 %v3797
      %6070 = vmatprep.subr.bf16.mxu0 %v3805
      %6071 = vmatpush1.bf16.msra.mxu0 %v3804
      %6072 = vmatprep.subr.bf16.mxu0 %v3812
      %6073 = vmatpush1.bf16.msra.mxu0 %v3811
      %6074 = vmatprep.subr.bf16.mxu0 %v3819
      %6075 = vmatpush1.bf16.msra.mxu0 %v3818
      %6076 = vmatprep.subr.bf16.mxu0 %v3826
      %6077 = vmatpush1.bf16.msra.mxu0 %v3825
      %6078 = vmatprep.subr.bf16.mxu0 %v3833
      %6079 = vmatpush1.bf16.msra.mxu0 %v3832
      %6080 = vmatprep.subr.bf16.mxu0 %v3840
      %6081 = vmatpush1.bf16.msra.mxu0 %v3839
      %6082 = vmatprep.subr.bf16.mxu0 %v3847
      %6083 = vmatpush1.bf16.msra.mxu0 %v3846
      %6084 = vmatprep.subr.bf16.mxu0 %v3854
      %6085 = vmatpush1.bf16.msra.mxu0 %v3853
      %6086 = vmatprep.mubr.bf16.mxu0 %v1225
      %6087 = vmatmul.mubr.bf16.gmra.mrb[0].mxu0 %v1224
      %v6088 = vpop.f32.mrb[0].mxu0
      %v6089 = vadd.f32 0.0, %v6088
      %v6090 = vpop.f32.mrb[0].mxu0
      %v6091 = vadd.f32 0.0, %v6090
      %v6092 = vpop.f32.mrb[0].mxu0
      %v6093 = vadd.f32 0.0, %v6092
      %v6094 = vpop.f32.mrb[0].mxu0
      %v6095 = vadd.f32 0.0, %v6094
      %6096 = vmatprep.mubr.bf16.mxu0 %v1239
      %6097 = vmatmul.mubr.bf16.gmra.mrb[0].mxu0 %v1238
      %v6098 = vpop.f32.mrb[0].mxu0
      %v6099 = vadd.f32 0.0, %v6098
      %v6100 = vpop.f32.mrb[0].mxu0
      %v6101 = vadd.f32 0.0, %v6100
      %v6102 = vpop.f32.mrb[0].mxu0
      %v6103 = vadd.f32 0.0, %v6102
      %v6104 = vpop.f32.mrb[0].mxu0
      %v6105 = vadd.f32 0.0, %v6104
      %6106 = vdwg.mxu0
      %6107 = vmatprep.subr.bf16.mxu0 %v3861
      %6108 = vmatpush1.bf16.msra.mxu0 %v3860
      %6109 = vmatprep.subr.bf16.mxu0 %v3868
      %6110 = vmatpush1.bf16.msra.mxu0 %v3867
      %6111 = vmatprep.subr.bf16.mxu0 %v3875
      %6112 = vmatpush1.bf16.msra.mxu0 %v3874
      %6113 = vmatprep.subr.bf16.mxu0 %v3882
      %6114 = vmatpush1.bf16.msra.mxu0 %v3881
      %6115 = vmatprep.subr.bf16.mxu0 %v3889
      %6116 = vmatpush1.bf16.msra.mxu0 %v3888
      %6117 = vmatprep.subr.bf16.mxu0 %v3896
      %6118 = vmatpush1.bf16.msra.mxu0 %v3895
      %6119 = vmatprep.subr.bf16.mxu0 %v3903
      %6120 = vmatpush1.bf16.msra.mxu0 %v3902
      %6121 = vmatprep.subr.bf16.mxu0 %v3910
      %6122 = vmatpush1.bf16.msra.mxu0 %v3909
      %6123 = vmatprep.subr.bf16.mxu0 %v3917
      %6124 = vmatpush1.bf16.msra.mxu0 %v3916
      %6125 = vmatprep.subr.bf16.mxu0 %v3924
      %6126 = vmatpush1.bf16.msra.mxu0 %v3923
      %6127 = vmatprep.subr.bf16.mxu0 %v3931
      %6128 = vmatpush1.bf16.msra.mxu0 %v3930
      %6129 = vmatprep.subr.bf16.mxu0 %v3938
      %6130 = vmatpush1.bf16.msra.mxu0 %v3937
      %6131 = vmatprep.subr.bf16.mxu0 %v3945
      %6132 = vmatpush1.bf16.msra.mxu0 %v3944
      %6133 = vmatprep.subr.bf16.mxu0 %v3952
      %6134 = vmatpush1.bf16.msra.mxu0 %v3951
      %6135 = vmatprep.subr.bf16.mxu0 %v3959
      %6136 = vmatpush1.bf16.msra.mxu0 %v3958
      %6137 = vmatprep.subr.bf16.mxu0 %v3966
      %6138 = vmatpush1.bf16.msra.mxu0 %v3965
      %6139 = vmatprep.mubr.bf16.mxu0 %v1227
      %6140 = vmatmul.mubr.bf16.gmra.mrb[0].mxu0 %v1226
      %v6141 = vpop.f32.mrb[0].mxu0
      %v6142 = vadd.f32 %v6089, %v6141
      %v6143 = vpop.f32.mrb[0].mxu0
      %v6144 = vadd.f32 %v6091, %v6143
      %v6145 = vpop.f32.mrb[0].mxu0
      %v6146 = vadd.f32 %v6093, %v6145
      %v6147 = vpop.f32.mrb[0].mxu0
      %v6148 = vadd.f32 %v6095, %v6147
      %6149 = vmatprep.mubr.bf16.mxu0 %v1241
      %6150 = vmatmul.mubr.bf16.gmra.mrb[0].mxu0 %v1240
      %v6151 = vpop.f32.mrb[0].mxu0
      %v6152 = vadd.f32 %v6099, %v6151
      %v6153 = vpop.f32.mrb[0].mxu0
      %v6154 = vadd.f32 %v6101, %v6153
      %v6155 = vpop.f32.mrb[0].mxu0
      %v6156 = vadd.f32 %v6103, %v6155
      %v6157 = vpop.f32.mrb[0].mxu0
      %v6158 = vadd.f32 %v6105, %v6157
      %6159 = vdwg.mxu0
      %6160 = vmatprep.subr.bf16.mxu0 %v3973
      %6161 = vmatpush1.bf16.msra.mxu0 %v3972
      %6162 = vmatprep.subr.bf16.mxu0 %v3980
      %6163 = vmatpush1.bf16.msra.mxu0 %v3979
      %6164 = vmatprep.subr.bf16.mxu0 %v3987
      %6165 = vmatpush1.bf16.msra.mxu0 %v3986
      %6166 = vmatprep.subr.bf16.mxu0 %v3994
      %6167 = vmatpush1.bf16.msra.mxu0 %v3993
      %6168 = vmatprep.subr.bf16.mxu0 %v4001
      %6169 = vmatpush1.bf16.msra.mxu0 %v4000
      %6170 = vmatprep.subr.bf16.mxu0 %v4008
      %6171 = vmatpush1.bf16.msra.mxu0 %v4007
      %6172 = vmatprep.subr.bf16.mxu0 %v4015
      %6173 = vmatpush1.bf16.msra.mxu0 %v4014
      %6174 = vmatprep.subr.bf16.mxu0 %v4022
      %6175 = vmatpush1.bf16.msra.mxu0 %v4021
      %6176 = vmatprep.subr.bf16.mxu0 %v4029
      %6177 = vmatpush1.bf16.msra.mxu0 %v4028
      %6178 = vmatprep.subr.bf16.mxu0 %v4036
      %6179 = vmatpush1.bf16.msra.mxu0 %v4035
      %6180 = vmatprep.subr.bf16.mxu0 %v4043
      %6181 = vmatpush1.bf16.msra.mxu0 %v4042
      %6182 = vmatprep.subr.bf16.mxu0 %v4050
      %6183 = vmatpush1.bf16.msra.mxu0 %v4049
      %6184 = vmatprep.subr.bf16.mxu0 %v4057
      %6185 = vmatpush1.bf16.msra.mxu0 %v4056
      %6186 = vmatprep.subr.bf16.mxu0 %v4064
      %6187 = vmatpush1.bf16.msra.mxu0 %v4063
      %6188 = vmatprep.subr.bf16.mxu0 %v4071
      %6189 = vmatpush1.bf16.msra.mxu0 %v4070
      %6190 = vmatprep.subr.bf16.mxu0 %v4078
      %6191 = vmatpush1.bf16.msra.mxu0 %v4077
      %6192 = vmatprep.mubr.bf16.mxu0 %v1229
      %6193 = vmatmul.mubr.bf16.gmra.mrb[0].mxu0 %v1228
      %v6194 = vpop.f32.mrb[0].mxu0
      %v6195 = vadd.f32 %v6142, %v6194
      %v6196 = vpop.f32.mrb[0].mxu0
      %v6197 = vadd.f32 %v6144, %v6196
      %v6198 = vpop.f32.mrb[0].mxu0
      %v6199 = vadd.f32 %v6146, %v6198
      %v6200 = vpop.f32.mrb[0].mxu0
      %v6201 = vadd.f32 %v6148, %v6200
      %6202 = vmatprep.mubr.bf16.mxu0 %v1243
      %6203 = vmatmul.mubr.bf16.gmra.mrb[0].mxu0 %v1242
      %v6204 = vpop.f32.mrb[0].mxu0
      %v6205 = vadd.f32 %v6152, %v6204
      %v6206 = vpop.f32.mrb[0].mxu0
      %v6207 = vadd.f32 %v6154, %v6206
      %v6208 = vpop.f32.mrb[0].mxu0
      %v6209 = vadd.f32 %v6156, %v6208
      %v6210 = vpop.f32.mrb[0].mxu0
      %v6211 = vadd.f32 %v6158, %v6210
      %6212 = vdwg.mxu0
      %6213 = vmatprep.subr.bf16.mxu0 %v4085
      %6214 = vmatpush1.bf16.msra.mxu0 %v4084
      %6215 = vmatprep.subr.bf16.mxu0 %v4092
      %6216 = vmatpush1.bf16.msra.mxu0 %v4091
      %6217 = vmatprep.subr.bf16.mxu0 %v4099
      %6218 = vmatpush1.bf16.msra.mxu0 %v4098
      %6219 = vmatprep.subr.bf16.mxu0 %v4106
      %6220 = vmatpush1.bf16.msra.mxu0 %v4105
      %6221 = vmatprep.subr.bf16.mxu0 %v4113
      %6222 = vmatpush1.bf16.msra.mxu0 %v4112
      %6223 = vmatprep.subr.bf16.mxu0 %v4120
      %6224 = vmatpush1.bf16.msra.mxu0 %v4119
      %6225 = vmatprep.subr.bf16.mxu0 %v4127
      %6226 = vmatpush1.bf16.msra.mxu0 %v4126
      %6227 = vmatprep.subr.bf16.mxu0 %v4134
      %6228 = vmatpush1.bf16.msra.mxu0 %v4133
      %6229 = vmatprep.subr.bf16.mxu0 %v4141
      %6230 = vmatpush1.bf16.msra.mxu0 %v4140
      %6231 = vmatprep.subr.bf16.mxu0 %v4148
      %6232 = vmatpush1.bf16.msra.mxu0 %v4147
      %6233 = vmatprep.subr.bf16.mxu0 %v4155
      %6234 = vmatpush1.bf16.msra.mxu0 %v4154
      %6235 = vmatprep.subr.bf16.mxu0 %v4162
      %6236 = vmatpush1.bf16.msra.mxu0 %v4161
      %6237 = vmatprep.subr.bf16.mxu0 %v4169
      %6238 = vmatpush1.bf16.msra.mxu0 %v4168
      %6239 = vmatprep.subr.bf16.mxu0 %v4176
      %6240 = vmatpush1.bf16.msra.mxu0 %v4175
      %6241 = vmatprep.subr.bf16.mxu0 %v4183
      %6242 = vmatpush1.bf16.msra.mxu0 %v4182
      %6243 = vmatprep.subr.bf16.mxu0 %v4190
      %6244 = vmatpush1.bf16.msra.mxu0 %v4189
      %6245 = vmatprep.mubr.bf16.mxu0 %v1231
      %6246 = vmatmul.mubr.bf16.gmra.mrb[0].mxu0 %v1230
      %v6247 = vpop.f32.mrb[0].mxu0
      %v6248 = vadd.f32 %v6195, %v6247
      %v6249 = vpop.f32.mrb[0].mxu0
      %v6250 = vadd.f32 %v6197, %v6249
      %v6251 = vpop.f32.mrb[0].mxu0
      %v6252 = vadd.f32 %v6199, %v6251
      %v6253 = vpop.f32.mrb[0].mxu0
      %v6254 = vadd.f32 %v6201, %v6253
      %6255 = vmatprep.mubr.bf16.mxu0 %v1245
      %6256 = vmatmul.mubr.bf16.gmra.mrb[0].mxu0 %v1244
      %v6257 = vpop.f32.mrb[0].mxu0
      %v6258 = vadd.f32 %v6205, %v6257
      %v6259 = vpop.f32.mrb[0].mxu0
      %v6260 = vadd.f32 %v6207, %v6259
      %v6261 = vpop.f32.mrb[0].mxu0
      %v6262 = vadd.f32 %v6209, %v6261
      %v6263 = vpop.f32.mrb[0].mxu0
      %v6264 = vadd.f32 %v6211, %v6263
      %6265 = vdwg.mxu0
      %6266 = vmatprep.subr.bf16.mxu0 %v4197
      %6267 = vmatpush1.bf16.msra.mxu0 %v4196
      %6268 = vmatprep.subr.bf16.mxu0 %v4204
      %6269 = vmatpush1.bf16.msra.mxu0 %v4203
      %6270 = vmatprep.subr.bf16.mxu0 %v4211
      %6271 = vmatpush1.bf16.msra.mxu0 %v4210
      %6272 = vmatprep.subr.bf16.mxu0 %v4218
      %6273 = vmatpush1.bf16.msra.mxu0 %v4217
      %6274 = vmatprep.subr.bf16.mxu0 %v4225
      %6275 = vmatpush1.bf16.msra.mxu0 %v4224
      %6276 = vmatprep.subr.bf16.mxu0 %v4232
      %6277 = vmatpush1.bf16.msra.mxu0 %v4231
      %6278 = vmatprep.subr.bf16.mxu0 %v4239
      %6279 = vmatpush1.bf16.msra.mxu0 %v4238
      %6280 = vmatprep.subr.bf16.mxu0 %v4246
      %6281 = vmatpush1.bf16.msra.mxu0 %v4245
      %6282 = vmatprep.subr.bf16.mxu0 %v4253
      %6283 = vmatpush1.bf16.msra.mxu0 %v4252
      %6284 = vmatprep.subr.bf16.mxu0 %v4260
      %6285 = vmatpush1.bf16.msra.mxu0 %v4259
      %6286 = vmatprep.subr.bf16.mxu0 %v4267
      %6287 = vmatpush1.bf16.msra.mxu0 %v4266
      %6288 = vmatprep.subr.bf16.mxu0 %v4274
      %6289 = vmatpush1.bf16.msra.mxu0 %v4273
      %6290 = vmatprep.subr.bf16.mxu0 %v4281
      %6291 = vmatpush1.bf16.msra.mxu0 %v4280
      %6292 = vmatprep.subr.bf16.mxu0 %v4288
      %6293 = vmatpush1.bf16.msra.mxu0 %v4287
      %6294 = vmatprep.subr.bf16.mxu0 %v4295
      %6295 = vmatpush1.bf16.msra.mxu0 %v4294
      %6296 = vmatprep.subr.bf16.mxu0 %v4302
      %6297 = vmatpush1.bf16.msra.mxu0 %v4301
      %6298 = vmatprep.mubr.bf16.mxu0 %v1233
      %6299 = vmatmul.mubr.bf16.gmra.mrb[0].mxu0 %v1232
      %v6300 = vpop.f32.mrb[0].mxu0
      %v6301 = vadd.f32 %v6248, %v6300
      %v6302 = vpop.f32.mrb[0].mxu0
      %v6303 = vadd.f32 %v6250, %v6302
      %v6304 = vpop.f32.mrb[0].mxu0
      %v6305 = vadd.f32 %v6252, %v6304
      %v6306 = vpop.f32.mrb[0].mxu0
      %v6307 = vadd.f32 %v6254, %v6306
      %6308 = vmatprep.mubr.bf16.mxu0 %v1247
      %6309 = vmatmul.mubr.bf16.gmra.mrb[0].mxu0 %v1246
      %v6310 = vpop.f32.mrb[0].mxu0
      %v6311 = vadd.f32 %v6258, %v6310
      %v6312 = vpop.f32.mrb[0].mxu0
      %v6313 = vadd.f32 %v6260, %v6312
      %v6314 = vpop.f32.mrb[0].mxu0
      %v6315 = vadd.f32 %v6262, %v6314
      %v6316 = vpop.f32.mrb[0].mxu0
      %v6317 = vadd.f32 %v6264, %v6316
      %6318 = vdwg.mxu0
      %6319 = vmatprep.subr.bf16.mxu0 %v4309
      %6320 = vmatpush1.bf16.msra.mxu0 %v4308
      %6321 = vmatprep.subr.bf16.mxu0 %v4316
      %6322 = vmatpush1.bf16.msra.mxu0 %v4315
      %6323 = vmatprep.subr.bf16.mxu0 %v4323
      %6324 = vmatpush1.bf16.msra.mxu0 %v4322
      %6325 = vmatprep.subr.bf16.mxu0 %v4330
      %6326 = vmatpush1.bf16.msra.mxu0 %v4329
      %6327 = vmatprep.subr.bf16.mxu0 %v4337
      %6328 = vmatpush1.bf16.msra.mxu0 %v4336
      %6329 = vmatprep.subr.bf16.mxu0 %v4344
      %6330 = vmatpush1.bf16.msra.mxu0 %v4343
      %6331 = vmatprep.subr.bf16.mxu0 %v4351
      %6332 = vmatpush1.bf16.msra.mxu0 %v4350
      %6333 = vmatprep.subr.bf16.mxu0 %v4358
      %6334 = vmatpush1.bf16.msra.mxu0 %v4357
      %6335 = vmatprep.subr.bf16.mxu0 %v4365
      %6336 = vmatpush1.bf16.msra.mxu0 %v4364
      %6337 = vmatprep.subr.bf16.mxu0 %v4372
      %6338 = vmatpush1.bf16.msra.mxu0 %v4371
      %6339 = vmatprep.subr.bf16.mxu0 %v4379
      %6340 = vmatpush1.bf16.msra.mxu0 %v4378
      %6341 = vmatprep.subr.bf16.mxu0 %v4386
      %6342 = vmatpush1.bf16.msra.mxu0 %v4385
      %6343 = vmatprep.subr.bf16.mxu0 %v4393
      %6344 = vmatpush1.bf16.msra.mxu0 %v4392
      %6345 = vmatprep.subr.bf16.mxu0 %v4400
      %6346 = vmatpush1.bf16.msra.mxu0 %v4399
      %6347 = vmatprep.subr.bf16.mxu0 %v4407
      %6348 = vmatpush1.bf16.msra.mxu0 %v4406
      %6349 = vmatprep.subr.bf16.mxu0 %v4414
      %6350 = vmatpush1.bf16.msra.mxu0 %v4413
      %6351 = vmatprep.mubr.bf16.mxu0 %v1235
      %6352 = vmatmul.mubr.bf16.gmra.mrb[0].mxu0 %v1234
      %v6353 = vpop.f32.mrb[0].mxu0
      %v6354 = vadd.f32 %v6301, %v6353
      %v6355 = vpop.f32.mrb[0].mxu0
      %v6356 = vadd.f32 %v6303, %v6355
      %v6357 = vpop.f32.mrb[0].mxu0
      %v6358 = vadd.f32 %v6305, %v6357
      %v6359 = vpop.f32.mrb[0].mxu0
      %v6360 = vadd.f32 %v6307, %v6359
      %6361 = vmatprep.mubr.bf16.mxu0 %v1249
      %6362 = vmatmul.mubr.bf16.gmra.mrb[0].mxu0 %v1248
      %v6363 = vpop.f32.mrb[0].mxu0
      %v6364 = vadd.f32 %v6311, %v6363
      %v6365 = vpop.f32.mrb[0].mxu0
      %v6366 = vadd.f32 %v6313, %v6365
      %v6367 = vpop.f32.mrb[0].mxu0
      %v6368 = vadd.f32 %v6315, %v6367
      %v6369 = vpop.f32.mrb[0].mxu0
      %v6370 = vadd.f32 %v6317, %v6369
      %6371 = vdwg.mxu0
      %6372 = vmatprep.subr.bf16.mxu0 %v4421
      %6373 = vmatpush1.bf16.msra.mxu0 %v4420
      %6374 = vmatprep.subr.bf16.mxu0 %v4428
      %6375 = vmatpush1.bf16.msra.mxu0 %v4427
      %6376 = vmatprep.subr.bf16.mxu0 %v4435
      %6377 = vmatpush1.bf16.msra.mxu0 %v4434
      %6378 = vmatprep.subr.bf16.mxu0 %v4442
      %6379 = vmatpush1.bf16.msra.mxu0 %v4441
      %6380 = vmatprep.subr.bf16.mxu0 %v4449
      %6381 = vmatpush1.bf16.msra.mxu0 %v4448
      %6382 = vmatprep.subr.bf16.mxu0 %v4456
      %6383 = vmatpush1.bf16.msra.mxu0 %v4455
      %6384 = vmatprep.subr.bf16.mxu0 %v4463
      %6385 = vmatpush1.bf16.msra.mxu0 %v4462
      %6386 = vmatprep.subr.bf16.mxu0 %v4470
      %6387 = vmatpush1.bf16.msra.mxu0 %v4469
      %6388 = vmatprep.subr.bf16.mxu0 %v4477
      %6389 = vmatpush1.bf16.msra.mxu0 %v4476
      %6390 = vmatprep.subr.bf16.mxu0 %v4484
      %6391 = vmatpush1.bf16.msra.mxu0 %v4483
      %6392 = vmatprep.subr.bf16.mxu0 %v4491
      %6393 = vmatpush1.bf16.msra.mxu0 %v4490
      %6394 = vmatprep.subr.bf16.mxu0 %v4498
      %6395 = vmatpush1.bf16.msra.mxu0 %v4497
      %6396 = vmatprep.subr.bf16.mxu0 %v4505
      %6397 = vmatpush1.bf16.msra.mxu0 %v4504
      %6398 = vmatprep.subr.bf16.mxu0 %v4512
      %6399 = vmatpush1.bf16.msra.mxu0 %v4511
      %6400 = vmatprep.subr.bf16.mxu0 %v4519
      %6401 = vmatpush1.bf16.msra.mxu0 %v4518
      %6402 = vmatprep.subr.bf16.mxu0 %v4526
      %6403 = vmatpush1.bf16.msra.mxu0 %v4525
      %6404 = vmatprep.mubr.bf16.mxu0 %v1237
      %6405 = vmatmul.mubr.bf16.gmra.mrb[0].mxu0 %v1236
      %v6406 = vpop.f32.mrb[0].mxu0
      %v6407 = vadd.f32 %v6354, %v6406
      %v6408 = vpop.f32.mrb[0].mxu0
      %v6409 = vadd.f32 %v6356, %v6408
      %v6410 = vpop.f32.mrb[0].mxu0
      %v6411 = vadd.f32 %v6358, %v6410
      %v6412 = vpop.f32.mrb[0].mxu0
      %v6413 = vadd.f32 %v6360, %v6412
      %6414 = vmatprep.mubr.bf16.mxu0 %v1251
      %6415 = vmatmul.mubr.bf16.gmra.mrb[0].mxu0 %v1250
      %v6416 = vpop.f32.mrb[0].mxu0
      %v6417 = vadd.f32 %v6364, %v6416
      %v6418 = vpop.f32.mrb[0].mxu0
      %v6419 = vadd.f32 %v6366, %v6418
      %v6420 = vpop.f32.mrb[0].mxu0
      %v6421 = vadd.f32 %v6368, %v6420
      %v6422 = vpop.f32.mrb[0].mxu0
      %v6423 = vadd.f32 %v6370, %v6422
      %6424 = vdwg.mxu0
      %6425 = vmatprep.subr.bf16.mxu0 0
      %6426 = vmatpush1.bf16.msra.mxu0 %v3750
      %6427 = vmatprep.subr.bf16.mxu0 0
      %6428 = vmatpush1.bf16.msra.mxu0 %v3757
      %6429 = vmatprep.subr.bf16.mxu0 0
      %6430 = vmatpush1.bf16.msra.mxu0 %v3764
      %6431 = vmatprep.subr.bf16.mxu0 0
      %6432 = vmatpush1.bf16.msra.mxu0 %v3771
      %6433 = vmatprep.subr.bf16.mxu0 0
      %6434 = vmatpush1.bf16.msra.mxu0 %v3778
      %6435 = vmatprep.subr.bf16.mxu0 0
      %6436 = vmatpush1.bf16.msra.mxu0 %v3785
      %6437 = vmatprep.subr.bf16.mxu0 0
      %6438 = vmatpush1.bf16.msra.mxu0 %v3792
      %6439 = vmatprep.subr.bf16.mxu0 0
      %6440 = vmatpush1.bf16.msra.mxu0 %v3799
      %6441 = vmatprep.subr.bf16.mxu0 0
      %6442 = vmatpush1.bf16.msra.mxu0 %v3806
      %6443 = vmatprep.subr.bf16.mxu0 0
      %6444 = vmatpush1.bf16.msra.mxu0 %v3813
      %6445 = vmatprep.subr.bf16.mxu0 0
      %6446 = vmatpush1.bf16.msra.mxu0 %v3820
      %6447 = vmatprep.subr.bf16.mxu0 0
      %6448 = vmatpush1.bf16.msra.mxu0 %v3827
      %6449 = vmatprep.subr.bf16.mxu0 0
      %6450 = vmatpush1.bf16.msra.mxu0 %v3834
      %6451 = vmatprep.subr.bf16.mxu0 0
      %6452 = vmatpush1.bf16.msra.mxu0 %v3841
      %6453 = vmatprep.subr.bf16.mxu0 0
      %6454 = vmatpush1.bf16.msra.mxu0 %v3848
      %6455 = vmatprep.subr.bf16.mxu0 0
      %6456 = vmatpush1.bf16.msra.mxu0 %v3855
      %6457 = vmatprep.mubr.bf16.mxu0 %v1225
      %6458 = vmatmul.mubr.bf16.gmra.mrb[0].mxu0 %v1224
      %v6459 = vpop.f32.mrb[0].mxu0
      %v6460 = vadd.f32 0.0, %v6459
      %v6461 = vpop.f32.mrb[0].mxu0
      %v6462 = vpop.f32.mrb[0].mxu0
      %v6463 = vadd.f32 0.0, %v6462
      %v6464 = vpop.f32.mrb[0].mxu0
      %6465 = vmatprep.mubr.bf16.mxu0 %v1239
      %6466 = vmatmul.mubr.bf16.gmra.mrb[0].mxu0 %v1238
      %v6467 = vpop.f32.mrb[0].mxu0
      %v6468 = vadd.f32 0.0, %v6467
      %v6469 = vpop.f32.mrb[0].mxu0
      %v6470 = vpop.f32.mrb[0].mxu0
      %v6471 = vadd.f32 0.0, %v6470
      %v6472 = vpop.f32.mrb[0].mxu0
      %6473 = vdwg.mxu0
      %6474 = vmatprep.subr.bf16.mxu0 0
      %6475 = vmatpush1.bf16.msra.mxu0 %v3862
      %6476 = vmatprep.subr.bf16.mxu0 0
      %6477 = vmatpush1.bf16.msra.mxu0 %v3869
      %6478 = vmatprep.subr.bf16.mxu0 0
      %6479 = vmatpush1.bf16.msra.mxu0 %v3876
      %6480 = vmatprep.subr.bf16.mxu0 0
      %6481 = vmatpush1.bf16.msra.mxu0 %v3883
      %6482 = vmatprep.subr.bf16.mxu0 0
      %6483 = vmatpush1.bf16.msra.mxu0 %v3890
      %6484 = vmatprep.subr.bf16.mxu0 0
      %6485 = vmatpush1.bf16.msra.mxu0 %v3897
      %6486 = vmatprep.subr.bf16.mxu0 0
      %6487 = vmatpush1.bf16.msra.mxu0 %v3904
      %6488 = vmatprep.subr.bf16.mxu0 0
      %6489 = vmatpush1.bf16.msra.mxu0 %v3911
      %6490 = vmatprep.subr.bf16.mxu0 0
      %6491 = vmatpush1.bf16.msra.mxu0 %v3918
      %6492 = vmatprep.subr.bf16.mxu0 0
      %6493 = vmatpush1.bf16.msra.mxu0 %v3925
      %6494 = vmatprep.subr.bf16.mxu0 0
      %6495 = vmatpush1.bf16.msra.mxu0 %v3932
      %6496 = vmatprep.subr.bf16.mxu0 0
      %6497 = vmatpush1.bf16.msra.mxu0 %v3939
      %6498 = vmatprep.subr.bf16.mxu0 0
      %6499 = vmatpush1.bf16.msra.mxu0 %v3946
      %6500 = vmatprep.subr.bf16.mxu0 0
      %6501 = vmatpush1.bf16.msra.mxu0 %v3953
      %6502 = vmatprep.subr.bf16.mxu0 0
      %6503 = vmatpush1.bf16.msra.mxu0 %v3960
      %6504 = vmatprep.subr.bf16.mxu0 0
      %6505 = vmatpush1.bf16.msra.mxu0 %v3967
      %6506 = vmatprep.mubr.bf16.mxu0 %v1227
      %6507 = vmatmul.mubr.bf16.gmra.mrb[0].mxu0 %v1226
      %v6508 = vpop.f32.mrb[0].mxu0
      %v6509 = vadd.f32 %v6460, %v6508
      %v6510 = vpop.f32.mrb[0].mxu0
      %v6511 = vpop.f32.mrb[0].mxu0
      %v6512 = vadd.f32 %v6463, %v6511
      %v6513 = vpop.f32.mrb[0].mxu0
      %6514 = vmatprep.mubr.bf16.mxu0 %v1241
      %6515 = vmatmul.mubr.bf16.gmra.mrb[0].mxu0 %v1240
      %v6516 = vpop.f32.mrb[0].mxu0
      %v6517 = vadd.f32 %v6468, %v6516
      %v6518 = vpop.f32.mrb[0].mxu0
      %v6519 = vpop.f32.mrb[0].mxu0
      %v6520 = vadd.f32 %v6471, %v6519
      %v6521 = vpop.f32.mrb[0].mxu0
      %6522 = vdwg.mxu0
      %6523 = vmatprep.subr.bf16.mxu0 0
      %6524 = vmatpush1.bf16.msra.mxu0 %v3974
      %6525 = vmatprep.subr.bf16.mxu0 0
      %6526 = vmatpush1.bf16.msra.mxu0 %v3981
      %6527 = vmatprep.subr.bf16.mxu0 0
      %6528 = vmatpush1.bf16.msra.mxu0 %v3988
      %6529 = vmatprep.subr.bf16.mxu0 0
      %6530 = vmatpush1.bf16.msra.mxu0 %v3995
      %6531 = vmatprep.subr.bf16.mxu0 0
      %6532 = vmatpush1.bf16.msra.mxu0 %v4002
      %6533 = vmatprep.subr.bf16.mxu0 0
      %6534 = vmatpush1.bf16.msra.mxu0 %v4009
      %6535 = vmatprep.subr.bf16.mxu0 0
      %6536 = vmatpush1.bf16.msra.mxu0 %v4016
      %6537 = vmatprep.subr.bf16.mxu0 0
      %6538 = vmatpush1.bf16.msra.mxu0 %v4023
      %6539 = vmatprep.subr.bf16.mxu0 0
      %6540 = vmatpush1.bf16.msra.mxu0 %v4030
      %6541 = vmatprep.subr.bf16.mxu0 0
      %6542 = vmatpush1.bf16.msra.mxu0 %v4037
      %6543 = vmatprep.subr.bf16.mxu0 0
      %6544 = vmatpush1.bf16.msra.mxu0 %v4044
      %6545 = vmatprep.subr.bf16.mxu0 0
      %6546 = vmatpush1.bf16.msra.mxu0 %v4051
      %6547 = vmatprep.subr.bf16.mxu0 0
      %6548 = vmatpush1.bf16.msra.mxu0 %v4058
      %6549 = vmatprep.subr.bf16.mxu0 0
      %6550 = vmatpush1.bf16.msra.mxu0 %v4065
      %6551 = vmatprep.subr.bf16.mxu0 0
      %6552 = vmatpush1.bf16.msra.mxu0 %v4072
      %6553 = vmatprep.subr.bf16.mxu0 0
      %6554 = vmatpush1.bf16.msra.mxu0 %v4079
      %6555 = vmatprep.mubr.bf16.mxu0 %v1229
      %6556 = vmatmul.mubr.bf16.gmra.mrb[0].mxu0 %v1228
      %v6557 = vpop.f32.mrb[0].mxu0
      %v6558 = vadd.f32 %v6509, %v6557
      %v6559 = vpop.f32.mrb[0].mxu0
      %v6560 = vpop.f32.mrb[0].mxu0
      %v6561 = vadd.f32 %v6512, %v6560
      %v6562 = vpop.f32.mrb[0].mxu0
      %6563 = vmatprep.mubr.bf16.mxu0 %v1243
      %6564 = vmatmul.mubr.bf16.gmra.mrb[0].mxu0 %v1242
      %v6565 = vpop.f32.mrb[0].mxu0
      %v6566 = vadd.f32 %v6517, %v6565
      %v6567 = vpop.f32.mrb[0].mxu0
      %v6568 = vpop.f32.mrb[0].mxu0
      %v6569 = vadd.f32 %v6520, %v6568
      %v6570 = vpop.f32.mrb[0].mxu0
      %6571 = vdwg.mxu0
      %6572 = vmatprep.subr.bf16.mxu0 0
      %6573 = vmatpush1.bf16.msra.mxu0 %v4086
      %6574 = vmatprep.subr.bf16.mxu0 0
      %6575 = vmatpush1.bf16.msra.mxu0 %v4093
      %6576 = vmatprep.subr.bf16.mxu0 0
      %6577 = vmatpush1.bf16.msra.mxu0 %v4100
      %6578 = vmatprep.subr.bf16.mxu0 0
      %6579 = vmatpush1.bf16.msra.mxu0 %v4107
      %6580 = vmatprep.subr.bf16.mxu0 0
      %6581 = vmatpush1.bf16.msra.mxu0 %v4114
      %6582 = vmatprep.subr.bf16.mxu0 0
      %6583 = vmatpush1.bf16.msra.mxu0 %v4121
      %6584 = vmatprep.subr.bf16.mxu0 0
      %6585 = vmatpush1.bf16.msra.mxu0 %v4128
      %6586 = vmatprep.subr.bf16.mxu0 0
      %6587 = vmatpush1.bf16.msra.mxu0 %v4135
      %6588 = vmatprep.subr.bf16.mxu0 0
      %6589 = vmatpush1.bf16.msra.mxu0 %v4142
      %6590 = vmatprep.subr.bf16.mxu0 0
      %6591 = vmatpush1.bf16.msra.mxu0 %v4149
      %6592 = vmatprep.subr.bf16.mxu0 0
      %6593 = vmatpush1.bf16.msra.mxu0 %v4156
      %6594 = vmatprep.subr.bf16.mxu0 0
      %6595 = vmatpush1.bf16.msra.mxu0 %v4163
      %6596 = vmatprep.subr.bf16.mxu0 0
      %6597 = vmatpush1.bf16.msra.mxu0 %v4170
      %6598 = vmatprep.subr.bf16.mxu0 0
      %6599 = vmatpush1.bf16.msra.mxu0 %v4177
      %6600 = vmatprep.subr.bf16.mxu0 0
      %6601 = vmatpush1.bf16.msra.mxu0 %v4184
      %6602 = vmatprep.subr.bf16.mxu0 0
      %6603 = vmatpush1.bf16.msra.mxu0 %v4191
      %6604 = vmatprep.mubr.bf16.mxu0 %v1231
      %6605 = vmatmul.mubr.bf16.gmra.mrb[0].mxu0 %v1230
      %v6606 = vpop.f32.mrb[0].mxu0
      %v6607 = vadd.f32 %v6558, %v6606
      %v6608 = vpop.f32.mrb[0].mxu0
      %v6609 = vpop.f32.mrb[0].mxu0
      %v6610 = vadd.f32 %v6561, %v6609
      %v6611 = vpop.f32.mrb[0].mxu0
      %6612 = vmatprep.mubr.bf16.mxu0 %v1245
      %6613 = vmatmul.mubr.bf16.gmra.mrb[0].mxu0 %v1244
      %v6614 = vpop.f32.mrb[0].mxu0
      %v6615 = vadd.f32 %v6566, %v6614
      %v6616 = vpop.f32.mrb[0].mxu0
      %v6617 = vpop.f32.mrb[0].mxu0
      %v6618 = vadd.f32 %v6569, %v6617
      %v6619 = vpop.f32.mrb[0].mxu0
      %6620 = vdwg.mxu0
      %6621 = vmatprep.subr.bf16.mxu0 0
      %6622 = vmatpush1.bf16.msra.mxu0 %v4198
      %6623 = vmatprep.subr.bf16.mxu0 0
      %6624 = vmatpush1.bf16.msra.mxu0 %v4205
      %6625 = vmatprep.subr.bf16.mxu0 0
      %6626 = vmatpush1.bf16.msra.mxu0 %v4212
      %6627 = vmatprep.subr.bf16.mxu0 0
      %6628 = vmatpush1.bf16.msra.mxu0 %v4219
      %6629 = vmatprep.subr.bf16.mxu0 0
      %6630 = vmatpush1.bf16.msra.mxu0 %v4226
      %6631 = vmatprep.subr.bf16.mxu0 0
      %6632 = vmatpush1.bf16.msra.mxu0 %v4233
      %6633 = vmatprep.subr.bf16.mxu0 0
      %6634 = vmatpush1.bf16.msra.mxu0 %v4240
      %6635 = vmatprep.subr.bf16.mxu0 0
      %6636 = vmatpush1.bf16.msra.mxu0 %v4247
      %6637 = vmatprep.subr.bf16.mxu0 0
      %6638 = vmatpush1.bf16.msra.mxu0 %v4254
      %6639 = vmatprep.subr.bf16.mxu0 0
      %6640 = vmatpush1.bf16.msra.mxu0 %v4261
      %6641 = vmatprep.subr.bf16.mxu0 0
      %6642 = vmatpush1.bf16.msra.mxu0 %v4268
      %6643 = vmatprep.subr.bf16.mxu0 0
      %6644 = vmatpush1.bf16.msra.mxu0 %v4275
      %6645 = vmatprep.subr.bf16.mxu0 0
      %6646 = vmatpush1.bf16.msra.mxu0 %v4282
      %6647 = vmatprep.subr.bf16.mxu0 0
      %6648 = vmatpush1.bf16.msra.mxu0 %v4289
      %6649 = vmatprep.subr.bf16.mxu0 0
      %6650 = vmatpush1.bf16.msra.mxu0 %v4296
      %6651 = vmatprep.subr.bf16.mxu0 0
      %6652 = vmatpush1.bf16.msra.mxu0 %v4303
      %6653 = vmatprep.mubr.bf16.mxu0 %v1233
      %6654 = vmatmul.mubr.bf16.gmra.mrb[0].mxu0 %v1232
      %v6655 = vpop.f32.mrb[0].mxu0
      %v6656 = vadd.f32 %v6607, %v6655
      %v6657 = vpop.f32.mrb[0].mxu0
      %v6658 = vpop.f32.mrb[0].mxu0
      %v6659 = vadd.f32 %v6610, %v6658
      %v6660 = vpop.f32.mrb[0].mxu0
      %6661 = vmatprep.mubr.bf16.mxu0 %v1247
      %6662 = vmatmul.mubr.bf16.gmra.mrb[0].mxu0 %v1246
      %v6663 = vpop.f32.mrb[0].mxu0
      %v6664 = vadd.f32 %v6615, %v6663
      %v6665 = vpop.f32.mrb[0].mxu0
      %v6666 = vpop.f32.mrb[0].mxu0
      %v6667 = vadd.f32 %v6618, %v6666
      %v6668 = vpop.f32.mrb[0].mxu0
      %6669 = vdwg.mxu0
      %6670 = vmatprep.subr.bf16.mxu0 0
      %6671 = vmatpush1.bf16.msra.mxu0 %v4310
      %6672 = vmatprep.subr.bf16.mxu0 0
      %6673 = vmatpush1.bf16.msra.mxu0 %v4317
      %6674 = vmatprep.subr.bf16.mxu0 0
      %6675 = vmatpush1.bf16.msra.mxu0 %v4324
      %6676 = vmatprep.subr.bf16.mxu0 0
      %6677 = vmatpush1.bf16.msra.mxu0 %v4331
      %6678 = vmatprep.subr.bf16.mxu0 0
      %6679 = vmatpush1.bf16.msra.mxu0 %v4338
      %6680 = vmatprep.subr.bf16.mxu0 0
      %6681 = vmatpush1.bf16.msra.mxu0 %v4345
      %6682 = vmatprep.subr.bf16.mxu0 0
      %6683 = vmatpush1.bf16.msra.mxu0 %v4352
      %6684 = vmatprep.subr.bf16.mxu0 0
      %6685 = vmatpush1.bf16.msra.mxu0 %v4359
      %6686 = vmatprep.subr.bf16.mxu0 0
      %6687 = vmatpush1.bf16.msra.mxu0 %v4366
      %6688 = vmatprep.subr.bf16.mxu0 0
      %6689 = vmatpush1.bf16.msra.mxu0 %v4373
      %6690 = vmatprep.subr.bf16.mxu0 0
      %6691 = vmatpush1.bf16.msra.mxu0 %v4380
      %6692 = vmatprep.subr.bf16.mxu0 0
      %6693 = vmatpush1.bf16.msra.mxu0 %v4387
      %6694 = vmatprep.subr.bf16.mxu0 0
      %6695 = vmatpush1.bf16.msra.mxu0 %v4394
      %6696 = vmatprep.subr.bf16.mxu0 0
      %6697 = vmatpush1.bf16.msra.mxu0 %v4401
      %6698 = vmatprep.subr.bf16.mxu0 0
      %6699 = vmatpush1.bf16.msra.mxu0 %v4408
      %6700 = vmatprep.subr.bf16.mxu0 0
      %6701 = vmatpush1.bf16.msra.mxu0 %v4415
      %6702 = vmatprep.mubr.bf16.mxu0 %v1235
      %6703 = vmatmul.mubr.bf16.gmra.mrb[0].mxu0 %v1234
      %v6704 = vpop.f32.mrb[0].mxu0
      %v6705 = vadd.f32 %v6656, %v6704
      %v6706 = vpop.f32.mrb[0].mxu0
      %v6707 = vpop.f32.mrb[0].mxu0
      %v6708 = vadd.f32 %v6659, %v6707
      %v6709 = vpop.f32.mrb[0].mxu0
      %6710 = vmatprep.mubr.bf16.mxu0 %v1249
      %6711 = vmatmul.mubr.bf16.gmra.mrb[0].mxu0 %v1248
      %v6712 = vpop.f32.mrb[0].mxu0
      %v6713 = vadd.f32 %v6664, %v6712
      %v6714 = vpop.f32.mrb[0].mxu0
      %v6715 = vpop.f32.mrb[0].mxu0
      %v6716 = vadd.f32 %v6667, %v6715
      %v6717 = vpop.f32.mrb[0].mxu0
      %6718 = vdwg.mxu0
      %6719 = vmatprep.subr.bf16.mxu0 0
      %6720 = vmatpush1.bf16.msra.mxu0 %v4422
      %6721 = vmatprep.subr.bf16.mxu0 0
      %6722 = vmatpush1.bf16.msra.mxu0 %v4429
      %6723 = vmatprep.subr.bf16.mxu0 0
      %6724 = vmatpush1.bf16.msra.mxu0 %v4436
      %6725 = vmatprep.subr.bf16.mxu0 0
      %6726 = vmatpush1.bf16.msra.mxu0 %v4443
      %6727 = vmatprep.subr.bf16.mxu0 0
      %6728 = vmatpush1.bf16.msra.mxu0 %v4450
      %6729 = vmatprep.subr.bf16.mxu0 0
      %6730 = vmatpush1.bf16.msra.mxu0 %v4457
      %6731 = vmatprep.subr.bf16.mxu0 0
      %6732 = vmatpush1.bf16.msra.mxu0 %v4464
      %6733 = vmatprep.subr.bf16.mxu0 0
      %6734 = vmatpush1.bf16.msra.mxu0 %v4471
      %6735 = vmatprep.subr.bf16.mxu0 0
      %6736 = vmatpush1.bf16.msra.mxu0 %v4478
      %6737 = vmatprep.subr.bf16.mxu0 0
      %6738 = vmatpush1.bf16.msra.mxu0 %v4485
      %6739 = vmatprep.subr.bf16.mxu0 0
      %6740 = vmatpush1.bf16.msra.mxu0 %v4492
      %6741 = vmatprep.subr.bf16.mxu0 0
      %6742 = vmatpush1.bf16.msra.mxu0 %v4499
      %6743 = vmatprep.subr.bf16.mxu0 0
      %6744 = vmatpush1.bf16.msra.mxu0 %v4506
      %6745 = vmatprep.subr.bf16.mxu0 0
      %6746 = vmatpush1.bf16.msra.mxu0 %v4513
      %6747 = vmatprep.subr.bf16.mxu0 0
      %6748 = vmatpush1.bf16.msra.mxu0 %v4520
      %6749 = vmatprep.subr.bf16.mxu0 0
      %6750 = vmatpush1.bf16.msra.mxu0 %v4527
      %6751 = vmatprep.mubr.bf16.mxu0 %v1237
      %6752 = vmatmul.mubr.bf16.gmra.mrb[0].mxu0 %v1236
      %v6753 = vpop.f32.mrb[0].mxu0
      %v6754 = vadd.f32 %v6705, %v6753
      %v6755 = vpop.f32.mrb[0].mxu0
      %v6756 = vpop.f32.mrb[0].mxu0
      %v6757 = vadd.f32 %v6708, %v6756
      %v6758 = vpop.f32.mrb[0].mxu0
      %6759 = vmatprep.mubr.bf16.mxu0 %v1251
      %6760 = vmatmul.mubr.bf16.gmra.mrb[0].mxu0 %v1250
      %v6761 = vpop.f32.mrb[0].mxu0
      %v6762 = vadd.f32 %v6713, %v6761
      %v6763 = vpop.f32.mrb[0].mxu0
      %v6764 = vpop.f32.mrb[0].mxu0
      %v6765 = vadd.f32 %v6716, %v6764
      %v6766 = vpop.f32.mrb[0].mxu0
      %6767 = vdwg.mxu0
      %v6768 = vmul.f32 %v5665, %v5665
      %v6769 = vmul.f32 %v5667, %v5667
      %v6770 = vmul.f32 %v6036, %v6036
      %v6771 = vmul.f32 %v6038, %v6038
      %v6772 = vmul.f32 %v6407, %v6407
      %v6773 = vmul.f32 %v6409, %v6409
      %v6774 = vmul.f32 %v6754, %v6754
      %v6775 = vmul.f32 %v5669, %v5669
      %v6776 = vmul.f32 %v5671, %v5671
      %v6777 = vmul.f32 %v6040, %v6040
      %v6778 = vmul.f32 %v6042, %v6042
      %v6779 = vmul.f32 %v6411, %v6411
      %v6780 = vmul.f32 %v6413, %v6413
      %v6781 = vmul.f32 %v6757, %v6757
      %v6782 = vmul.f32 %v5675, %v5675
      %v6783 = vmul.f32 %v5677, %v5677
      %v6784 = vmul.f32 %v6046, %v6046
      %v6785 = vmul.f32 %v6048, %v6048
      %v6786 = vmul.f32 %v6417, %v6417
      %v6787 = vmul.f32 %v6419, %v6419
      %v6788 = vmul.f32 %v6762, %v6762
      %v6789 = vmul.f32 %v5679, %v5679
      %v6790 = vmul.f32 %v5681, %v5681
      %v6791 = vmul.f32 %v6050, %v6050
      %v6792 = vmul.f32 %v6052, %v6052
      %v6793 = vmul.f32 %v6421, %v6421
      %v6794 = vmul.f32 %v6423, %v6423
      %v6795 = vmul.f32 %v6765, %v6765
      %v6796 = vld [vmem:[%s2] sm:$0xff]
      %v6797 = vld [vmem:[%s2 + $0x8] sm:$0xff]
      %v6798 = vld [vmem:[%s2 + $0x10] sm:$0xff]
      %v6799 = vld [vmem:[%s2 + $0x18] sm:$0xf]
      %v6800 = vld [vmem:[%s2 + $0x1c] sm:$0xff]
      %v6801 = vld [vmem:[%s2 + $0x24] sm:$0xff]
      %v6802 = vld [vmem:[%s2 + $0x2c] sm:$0xff]
      %v6803 = vld [vmem:[%s2 + $0x34] sm:$0xf]
      %v6804 = vld [vmem:[%s2 + $0x38] sm:$0xff]
      %v6805 = vld [vmem:[%s2 + $0x40] sm:$0xff]
      %v6806 = vld [vmem:[%s2 + $0x48] sm:$0xff]
      %v6807 = vld [vmem:[%s2 + $0x50] sm:$0xf]
      %v6808 = vld [vmem:[%s2 + $0x54] sm:$0xff]
      %v6809 = vld [vmem:[%s2 + $0x5c] sm:$0xff]
      %v6810 = vld [vmem:[%s2 + $0x64] sm:$0xff]
      %v6811 = vld [vmem:[%s2 + $0x6c] sm:$0xf]
      %v6812 = vld [vmem:[%s2 + $0x70] sm:$0xff]
      %v6813 = vld [vmem:[%s2 + $0x78] sm:$0xff]
      %v6814 = vld [vmem:[%s2 + $0x80] sm:$0xff]
      %v6815 = vld [vmem:[%s2 + $0x88] sm:$0xf]
      %v6816 = vld [vmem:[%s2 + $0x8c] sm:$0xff]
      %v6817 = vld [vmem:[%s2 + $0x94] sm:$0xff]
      %v6818 = vld [vmem:[%s2 + $0x9c] sm:$0xff]
      %v6819 = vld [vmem:[%s2 + $0xa4] sm:$0xf]
      %v6820 = vld [vmem:[%s2 + $0xa8] sm:$0xff]
      %v6821 = vld [vmem:[%s2 + $0xb0] sm:$0xff]
      %v6822 = vld [vmem:[%s2 + $0xb8] sm:$0xff]
      %v6823 = vld [vmem:[%s2 + $0xc0] sm:$0xf]
      %v6824 = vld [vmem:[%s2 + $0xc4] sm:$0xff]
      %v6825 = vld [vmem:[%s2 + $0xcc] sm:$0xff]
      %v6826 = vld [vmem:[%s2 + $0xd4] sm:$0xff]
      %v6827 = vld [vmem:[%s2 + $0xdc] sm:$0xf]
      %v6828 = vld [vmem:[%s2 + $0xe0] sm:$0xff]
      %v6829 = vld [vmem:[%s2 + $0xe8] sm:$0xff]
      %v6830 = vld [vmem:[%s2 + $0xf0] sm:$0xff]
      %v6831 = vld [vmem:[%s2 + $0xf8] sm:$0xf]
      %v6832 = vld [vmem:[%s2 + $0xfc] sm:$0xff]
      %v6833 = vld [vmem:[%s2 + $0x104] sm:$0xff]
      %v6834 = vld [vmem:[%s2 + $0x10c] sm:$0xff]
      %v6835 = vld [vmem:[%s2 + $0x114] sm:$0xf]
      %v6836 = vld [vmem:[%s2 + $0x118] sm:$0xff]
      %v6837 = vld [vmem:[%s2 + $0x120] sm:$0xff]
      %v6838 = vld [vmem:[%s2 + $0x128] sm:$0xff]
      %v6839 = vld [vmem:[%s2 + $0x130] sm:$0xf]
      %v6840 = vld [vmem:[%s2 + $0x134] sm:$0xff]
      %v6841 = vld [vmem:[%s2 + $0x13c] sm:$0xff]
      %v6842 = vld [vmem:[%s2 + $0x144] sm:$0xff]
      %v6843 = vld [vmem:[%s2 + $0x14c] sm:$0xf]
      %v6844 = vld [vmem:[%s2 + $0x150] sm:$0xff]
      %v6845 = vld [vmem:[%s2 + $0x158] sm:$0xff]
      %v6846 = vld [vmem:[%s2 + $0x160] sm:$0xff]
      %v6847 = vld [vmem:[%s2 + $0x168] sm:$0xf]
      %v6848 = vld [vmem:[%s2 + $0x16c] sm:$0xff]
      %v6849 = vld [vmem:[%s2 + $0x174] sm:$0xff]
      %v6850 = vld [vmem:[%s2 + $0x17c] sm:$0xff]
      %v6851 = vld [vmem:[%s2 + $0x184] sm:$0xf]
      %v6852 = vld [vmem:[%s2 + $0x188] sm:$0xff]
      %v6853 = vld [vmem:[%s2 + $0x190] sm:$0xff]
      %v6854 = vld [vmem:[%s2 + $0x198] sm:$0xff]
      %v6855 = vld [vmem:[%s2 + $0x1a0] sm:$0xf]
      %v6856 = vld [vmem:[%s2 + $0x1a4] sm:$0xff]
      %v6857 = vld [vmem:[%s2 + $0x1ac] sm:$0xff]
      %v6858 = vld [vmem:[%s2 + $0x1b4] sm:$0xff]
      %v6859 = vld [vmem:[%s2 + $0x1bc] sm:$0xf]
      %v6860 = vld [vmem:[%s2 + $0x1c0] sm:$0xff]
      %v6861 = vld [vmem:[%s2 + $0x1c8] sm:$0xff]
      %v6862 = vld [vmem:[%s2 + $0x1d0] sm:$0xff]
      %v6863 = vld [vmem:[%s2 + $0x1d8] sm:$0xf]
      %v6864 = vld [vmem:[%s2 + $0x1dc] sm:$0xff]
      %v6865 = vld [vmem:[%s2 + $0x1e4] sm:$0xff]
      %v6866 = vld [vmem:[%s2 + $0x1ec] sm:$0xff]
      %v6867 = vld [vmem:[%s2 + $0x1f4] sm:$0xf]
      %v6868 = vld [vmem:[%s2 + $0x1f8] sm:$0xff]
      %v6869 = vld [vmem:[%s2 + $0x200] sm:$0xff]
      %v6870 = vld [vmem:[%s2 + $0x208] sm:$0xff]
      %v6871 = vld [vmem:[%s2 + $0x210] sm:$0xf]
      %v6872 = vld [vmem:[%s2 + $0x214] sm:$0xff]
      %v6873 = vld [vmem:[%s2 + $0x21c] sm:$0xff]
      %v6874 = vld [vmem:[%s2 + $0x224] sm:$0xff]
      %v6875 = vld [vmem:[%s2 + $0x22c] sm:$0xf]
      %v6876 = vld [vmem:[%s2 + $0x230] sm:$0xff]
      %v6877 = vld [vmem:[%s2 + $0x238] sm:$0xff]
      %v6878 = vld [vmem:[%s2 + $0x240] sm:$0xff]
      %v6879 = vld [vmem:[%s2 + $0x248] sm:$0xf]
      %v6880 = vld [vmem:[%s2 + $0x24c] sm:$0xff]
      %v6881 = vld [vmem:[%s2 + $0x254] sm:$0xff]
      %v6882 = vld [vmem:[%s2 + $0x25c] sm:$0xff]
      %v6883 = vld [vmem:[%s2 + $0x264] sm:$0xf]
      %v6884 = vld [vmem:[%s2 + $0x268] sm:$0xff]
      %v6885 = vld [vmem:[%s2 + $0x270] sm:$0xff]
      %v6886 = vld [vmem:[%s2 + $0x278] sm:$0xff]
      %v6887 = vld [vmem:[%s2 + $0x280] sm:$0xf]
      %v6888 = vld [vmem:[%s2 + $0x284] sm:$0xff]
      %v6889 = vld [vmem:[%s2 + $0x28c] sm:$0xff]
      %v6890 = vld [vmem:[%s2 + $0x294] sm:$0xff]
      %v6891 = vld [vmem:[%s2 + $0x29c] sm:$0xf]
      %v6892 = vld [vmem:[%s2 + $0x2a0] sm:$0xff]
      %v6893 = vld [vmem:[%s2 + $0x2a8] sm:$0xff]
      %v6894 = vld [vmem:[%s2 + $0x2b0] sm:$0xff]
      %v6895 = vld [vmem:[%s2 + $0x2b8] sm:$0xf]
      %v6896 = vld [vmem:[%s2 + $0x2bc] sm:$0xff]
      %v6897 = vld [vmem:[%s2 + $0x2c4] sm:$0xff]
      %v6898 = vld [vmem:[%s2 + $0x2cc] sm:$0xff]
      %v6899 = vld [vmem:[%s2 + $0x2d4] sm:$0xf]
      %v6900 = vld [vmem:[%s2 + $0x2d8] sm:$0xff]
      %v6901 = vld [vmem:[%s2 + $0x2e0] sm:$0xff]
      %v6902 = vld [vmem:[%s2 + $0x2e8] sm:$0xff]
      %v6903 = vld [vmem:[%s2 + $0x2f0] sm:$0xf]
      %v6904 = vld [vmem:[%s2 + $0x2f4] sm:$0xff]
      %v6905 = vld [vmem:[%s2 + $0x2fc] sm:$0xff]
      %v6906 = vld [vmem:[%s2 + $0x304] sm:$0xff]
      %v6907 = vld [vmem:[%s2 + $0x30c] sm:$0xf]
      %v6908 = vld [vmem:[%s2 + $0x310] sm:$0xff]
      %v6909 = vld [vmem:[%s2 + $0x318] sm:$0xff]
      %v6910 = vld [vmem:[%s2 + $0x320] sm:$0xff]
      %v6911 = vld [vmem:[%s2 + $0x328] sm:$0xf]
      %v6912 = vld [vmem:[%s2 + $0x32c] sm:$0xff]
      %v6913 = vld [vmem:[%s2 + $0x334] sm:$0xff]
      %v6914 = vld [vmem:[%s2 + $0x33c] sm:$0xff]
      %v6915 = vld [vmem:[%s2 + $0x344] sm:$0xf]
      %v6916 = vld [vmem:[%s2 + $0x348] sm:$0xff]
      %v6917 = vld [vmem:[%s2 + $0x350] sm:$0xff]
      %v6918 = vld [vmem:[%s2 + $0x358] sm:$0xff]
      %v6919 = vld [vmem:[%s2 + $0x360] sm:$0xf]
      %v6920 = vld [vmem:[%s2 + $0x364] sm:$0xff]
      %v6921 = vld [vmem:[%s2 + $0x36c] sm:$0xff]
      %v6922 = vld [vmem:[%s2 + $0x374] sm:$0xff]
      %v6923 = vld [vmem:[%s2 + $0x37c] sm:$0xf]
      %v6924 = vld [vmem:[%s2 + $0x380] sm:$0xff]
      %v6925 = vld [vmem:[%s2 + $0x388] sm:$0xff]
      %v6926 = vld [vmem:[%s2 + $0x390] sm:$0xff]
      %v6927 = vld [vmem:[%s2 + $0x398] sm:$0xf]
      %v6928 = vld [vmem:[%s2 + $0x39c] sm:$0xff]
      %v6929 = vld [vmem:[%s2 + $0x3a4] sm:$0xff]
      %v6930 = vld [vmem:[%s2 + $0x3ac] sm:$0xff]
      %v6931 = vld [vmem:[%s2 + $0x3b4] sm:$0xf]
      %v6932 = vld [vmem:[%s2 + $0x3b8] sm:$0xff]
      %v6933 = vld [vmem:[%s2 + $0x3c0] sm:$0xff]
      %v6934 = vld [vmem:[%s2 + $0x3c8] sm:$0xff]
      %v6935 = vld [vmem:[%s2 + $0x3d0] sm:$0xf]
      %v6936 = vld [vmem:[%s2 + $0x3d4] sm:$0xff]
      %v6937 = vld [vmem:[%s2 + $0x3dc] sm:$0xff]
      %v6938 = vld [vmem:[%s2 + $0x3e4] sm:$0xff]
      %v6939 = vld [vmem:[%s2 + $0x3ec] sm:$0xf]
      %v6940 = vld [vmem:[%s2 + $0x3f0] sm:$0xff]
      %v6941 = vld [vmem:[%s2 + $0x3f8] sm:$0xff]
      %v6942 = vld [vmem:[%s2 + $0x400] sm:$0xff]
      %v6943 = vld [vmem:[%s2 + $0x408] sm:$0xf]
      %v6944 = vld [vmem:[%s2 + $0x40c] sm:$0xff]
      %v6945 = vld [vmem:[%s2 + $0x414] sm:$0xff]
      %v6946 = vld [vmem:[%s2 + $0x41c] sm:$0xff]
      %v6947 = vld [vmem:[%s2 + $0x424] sm:$0xf]
      %v6948 = vld [vmem:[%s2 + $0x428] sm:$0xff]
      %v6949 = vld [vmem:[%s2 + $0x430] sm:$0xff]
      %v6950 = vld [vmem:[%s2 + $0x438] sm:$0xff]
      %v6951 = vld [vmem:[%s2 + $0x440] sm:$0xf]
      %v6952 = vld [vmem:[%s2 + $0x444] sm:$0xff]
      %v6953 = vld [vmem:[%s2 + $0x44c] sm:$0xff]
      %v6954 = vld [vmem:[%s2 + $0x454] sm:$0xff]
      %v6955 = vld [vmem:[%s2 + $0x45c] sm:$0xf]
      %v6956 = vld [vmem:[%s2 + $0x460] sm:$0xff]
      %v6957 = vld [vmem:[%s2 + $0x468] sm:$0xff]
      %v6958 = vld [vmem:[%s2 + $0x470] sm:$0xff]
      %v6959 = vld [vmem:[%s2 + $0x478] sm:$0xf]
      %v6960 = vld [vmem:[%s2 + $0x47c] sm:$0xff]
      %v6961 = vld [vmem:[%s2 + $0x484] sm:$0xff]
      %v6962 = vld [vmem:[%s2 + $0x48c] sm:$0xff]
      %v6963 = vld [vmem:[%s2 + $0x494] sm:$0xf]
      %v6964 = vld [vmem:[%s2 + $0x498] sm:$0xff]
      %v6965 = vld [vmem:[%s2 + $0x4a0] sm:$0xff]
      %v6966 = vld [vmem:[%s2 + $0x4a8] sm:$0xff]
      %v6967 = vld [vmem:[%s2 + $0x4b0] sm:$0xf]
      %v6968 = vld [vmem:[%s2 + $0x4b4] sm:$0xff]
      %v6969 = vld [vmem:[%s2 + $0x4bc] sm:$0xff]
      %v6970 = vld [vmem:[%s2 + $0x4c4] sm:$0xff]
      %v6971 = vld [vmem:[%s2 + $0x4cc] sm:$0xf]
      %v6972 = vld [vmem:[%s2 + $0x4d0] sm:$0xff]
      %v6973 = vld [vmem:[%s2 + $0x4d8] sm:$0xff]
      %v6974 = vld [vmem:[%s2 + $0x4e0] sm:$0xff]
      %v6975 = vld [vmem:[%s2 + $0x4e8] sm:$0xf]
      %v6976 = vld [vmem:[%s2 + $0x4ec] sm:$0xff]
      %v6977 = vld [vmem:[%s2 + $0x4f4] sm:$0xff]
      %v6978 = vld [vmem:[%s2 + $0x4fc] sm:$0xff]
      %v6979 = vld [vmem:[%s2 + $0x504] sm:$0xf]
      %v6980 = vld [vmem:[%s2 + $0x508] sm:$0xff]
      %v6981 = vld [vmem:[%s2 + $0x510] sm:$0xff]
      %v6982 = vld [vmem:[%s2 + $0x518] sm:$0xff]
      %v6983 = vld [vmem:[%s2 + $0x520] sm:$0xf]
      %v6984 = vld [vmem:[%s2 + $0x524] sm:$0xff]
      %v6985 = vld [vmem:[%s2 + $0x52c] sm:$0xff]
      %v6986 = vld [vmem:[%s2 + $0x534] sm:$0xff]
      %v6987 = vld [vmem:[%s2 + $0x53c] sm:$0xf]
      %v6988 = vld [vmem:[%s2 + $0x540] sm:$0xff]
      %v6989 = vld [vmem:[%s2 + $0x548] sm:$0xff]
      %v6990 = vld [vmem:[%s2 + $0x550] sm:$0xff]
      %v6991 = vld [vmem:[%s2 + $0x558] sm:$0xf]
      %v6992 = vld [vmem:[%s2 + $0x55c] sm:$0xff]
      %v6993 = vld [vmem:[%s2 + $0x564] sm:$0xff]
      %v6994 = vld [vmem:[%s2 + $0x56c] sm:$0xff]
      %v6995 = vld [vmem:[%s2 + $0x574] sm:$0xf]
      %v6996 = vld [vmem:[%s2 + $0x578] sm:$0xff]
      %v6997 = vld [vmem:[%s2 + $0x580] sm:$0xff]
      %v6998 = vld [vmem:[%s2 + $0x588] sm:$0xff]
      %v6999 = vld [vmem:[%s2 + $0x590] sm:$0xf]
      %v7000 = vld [vmem:[%s2 + $0x594] sm:$0xff]
      %v7001 = vld [vmem:[%s2 + $0x59c] sm:$0xff]
      %v7002 = vld [vmem:[%s2 + $0x5a4] sm:$0xff]
      %v7003 = vld [vmem:[%s2 + $0x5ac] sm:$0xf]
      %v7004 = vld [vmem:[%s2 + $0x5b0] sm:$0xff]
      %v7005 = vld [vmem:[%s2 + $0x5b8] sm:$0xff]
      %v7006 = vld [vmem:[%s2 + $0x5c0] sm:$0xff]
      %v7007 = vld [vmem:[%s2 + $0x5c8] sm:$0xf]
      %v7008 = vld [vmem:[%s2 + $0x5cc] sm:$0xff]
      %v7009 = vld [vmem:[%s2 + $0x5d4] sm:$0xff]
      %v7010 = vld [vmem:[%s2 + $0x5dc] sm:$0xff]
      %v7011 = vld [vmem:[%s2 + $0x5e4] sm:$0xf]
      %v7012 = vld [vmem:[%s2 + $0x5e8] sm:$0xff]
      %v7013 = vld [vmem:[%s2 + $0x5f0] sm:$0xff]
      %v7014 = vld [vmem:[%s2 + $0x5f8] sm:$0xff]
      %v7015 = vld [vmem:[%s2 + $0x600] sm:$0xf]
      %v7016 = vld [vmem:[%s2 + $0x604] sm:$0xff]
      %v7017 = vld [vmem:[%s2 + $0x60c] sm:$0xff]
      %v7018 = vld [vmem:[%s2 + $0x614] sm:$0xff]
      %v7019 = vld [vmem:[%s2 + $0x61c] sm:$0xf]
      %v7020 = vld [vmem:[%s2 + $0x620] sm:$0xff]
      %v7021 = vld [vmem:[%s2 + $0x628] sm:$0xff]
      %v7022 = vld [vmem:[%s2 + $0x630] sm:$0xff]
      %v7023 = vld [vmem:[%s2 + $0x638] sm:$0xf]
      %v7024 = vld [vmem:[%s2 + $0x63c] sm:$0xff]
      %v7025 = vld [vmem:[%s2 + $0x644] sm:$0xff]
      %v7026 = vld [vmem:[%s2 + $0x64c] sm:$0xff]
      %v7027 = vld [vmem:[%s2 + $0x654] sm:$0xf]
      %v7028 = vld [vmem:[%s2 + $0x658] sm:$0xff]
      %v7029 = vld [vmem:[%s2 + $0x660] sm:$0xff]
      %v7030 = vld [vmem:[%s2 + $0x668] sm:$0xff]
      %v7031 = vld [vmem:[%s2 + $0x670] sm:$0xf]
      %v7032 = vld [vmem:[%s2 + $0x674] sm:$0xff]
      %v7033 = vld [vmem:[%s2 + $0x67c] sm:$0xff]
      %v7034 = vld [vmem:[%s2 + $0x684] sm:$0xff]
      %v7035 = vld [vmem:[%s2 + $0x68c] sm:$0xf]
      %v7036 = vld [vmem:[%s2 + $0x690] sm:$0xff]
      %v7037 = vld [vmem:[%s2 + $0x698] sm:$0xff]
      %v7038 = vld [vmem:[%s2 + $0x6a0] sm:$0xff]
      %v7039 = vld [vmem:[%s2 + $0x6a8] sm:$0xf]
      %v7040 = vld [vmem:[%s2 + $0x6ac] sm:$0xff]
      %v7041 = vld [vmem:[%s2 + $0x6b4] sm:$0xff]
      %v7042 = vld [vmem:[%s2 + $0x6bc] sm:$0xff]
      %v7043 = vld [vmem:[%s2 + $0x6c4] sm:$0xf]
      %v7044 = vld [vmem:[%s2 + $0x6c8] sm:$0xff]
      %v7045 = vld [vmem:[%s2 + $0x6d0] sm:$0xff]
      %v7046 = vld [vmem:[%s2 + $0x6d8] sm:$0xff]
      %v7047 = vld [vmem:[%s2 + $0x6e0] sm:$0xf]
      %v7048 = vld [vmem:[%s2 + $0x6e4] sm:$0xff]
      %v7049 = vld [vmem:[%s2 + $0x6ec] sm:$0xff]
      %v7050 = vld [vmem:[%s2 + $0x6f4] sm:$0xff]
      %v7051 = vld [vmem:[%s2 + $0x6fc] sm:$0xf]
      %v7052 = vld [vmem:[%s2 + $0x700] sm:$0xff]
      %v7053 = vld [vmem:[%s2 + $0x708] sm:$0xff]
      %v7054 = vld [vmem:[%s2 + $0x710] sm:$0xff]
      %v7055 = vld [vmem:[%s2 + $0x718] sm:$0xf]
      %v7056 = vld [vmem:[%s2 + $0x71c] sm:$0xff]
      %v7057 = vld [vmem:[%s2 + $0x724] sm:$0xff]
      %v7058 = vld [vmem:[%s2 + $0x72c] sm:$0xff]
      %v7059 = vld [vmem:[%s2 + $0x734] sm:$0xf]
      %v7060 = vld [vmem:[%s2 + $0x738] sm:$0xff]
      %v7061 = vld [vmem:[%s2 + $0x740] sm:$0xff]
      %v7062 = vld [vmem:[%s2 + $0x748] sm:$0xff]
      %v7063 = vld [vmem:[%s2 + $0x750] sm:$0xf]
      %v7064 = vld [vmem:[%s2 + $0x754] sm:$0xff]
      %v7065 = vld [vmem:[%s2 + $0x75c] sm:$0xff]
      %v7066 = vld [vmem:[%s2 + $0x764] sm:$0xff]
      %v7067 = vld [vmem:[%s2 + $0x76c] sm:$0xf]
      %v7068 = vld [vmem:[%s2 + $0x770] sm:$0xff]
      %v7069 = vld [vmem:[%s2 + $0x778] sm:$0xff]
      %v7070 = vld [vmem:[%s2 + $0x780] sm:$0xff]
      %v7071 = vld [vmem:[%s2 + $0x788] sm:$0xf]
      %v7072 = vld [vmem:[%s2 + $0x78c] sm:$0xff]
      %v7073 = vld [vmem:[%s2 + $0x794] sm:$0xff]
      %v7074 = vld [vmem:[%s2 + $0x79c] sm:$0xff]
      %v7075 = vld [vmem:[%s2 + $0x7a4] sm:$0xf]
      %v7076 = vld [vmem:[%s2 + $0x7a8] sm:$0xff]
      %v7077 = vld [vmem:[%s2 + $0x7b0] sm:$0xff]
      %v7078 = vld [vmem:[%s2 + $0x7b8] sm:$0xff]
      %v7079 = vld [vmem:[%s2 + $0x7c0] sm:$0xf]
      %v7080 = vld [vmem:[%s2 + $0x7c4] sm:$0xff]
      %v7081 = vld [vmem:[%s2 + $0x7cc] sm:$0xff]
      %v7082 = vld [vmem:[%s2 + $0x7d4] sm:$0xff]
      %v7083 = vld [vmem:[%s2 + $0x7dc] sm:$0xf]
      %v7084 = vld [vmem:[%s2 + $0x7e0] sm:$0xff]
      %v7085 = vld [vmem:[%s2 + $0x7e8] sm:$0xff]
      %v7086 = vld [vmem:[%s2 + $0x7f0] sm:$0xff]
      %v7087 = vld [vmem:[%s2 + $0x7f8] sm:$0xf]
      %v7088 = vld [vmem:[%s2 + $0x7fc] sm:$0xff]
      %v7089 = vld [vmem:[%s2 + $0x804] sm:$0xff]
      %v7090 = vld [vmem:[%s2 + $0x80c] sm:$0xff]
      %v7091 = vld [vmem:[%s2 + $0x814] sm:$0xf]
      %v7092 = vld [vmem:[%s2 + $0x818] sm:$0xff]
      %v7093 = vld [vmem:[%s2 + $0x820] sm:$0xff]
      %v7094 = vld [vmem:[%s2 + $0x828] sm:$0xff]
      %v7095 = vld [vmem:[%s2 + $0x830] sm:$0xf]
      %v7096 = vld [vmem:[%s2 + $0x834] sm:$0xff]
      %v7097 = vld [vmem:[%s2 + $0x83c] sm:$0xff]
      %v7098 = vld [vmem:[%s2 + $0x844] sm:$0xff]
      %v7099 = vld [vmem:[%s2 + $0x84c] sm:$0xf]
      %v7100 = vld [vmem:[%s2 + $0x850] sm:$0xff]
      %v7101 = vld [vmem:[%s2 + $0x858] sm:$0xff]
      %v7102 = vld [vmem:[%s2 + $0x860] sm:$0xff]
      %v7103 = vld [vmem:[%s2 + $0x868] sm:$0xf]
      %v7104 = vld [vmem:[%s2 + $0x86c] sm:$0xff]
      %v7105 = vld [vmem:[%s2 + $0x874] sm:$0xff]
      %v7106 = vld [vmem:[%s2 + $0x87c] sm:$0xff]
      %v7107 = vld [vmem:[%s2 + $0x884] sm:$0xf]
      %v7108 = vld [vmem:[%s2 + $0x888] sm:$0xff]
      %v7109 = vld [vmem:[%s2 + $0x890] sm:$0xff]
      %v7110 = vld [vmem:[%s2 + $0x898] sm:$0xff]
      %v7111 = vld [vmem:[%s2 + $0x8a0] sm:$0xf]
      %v7112 = vld [vmem:[%s2 + $0x8a4] sm:$0xff]
      %v7113 = vld [vmem:[%s2 + $0x8ac] sm:$0xff]
      %v7114 = vld [vmem:[%s2 + $0x8b4] sm:$0xff]
      %v7115 = vld [vmem:[%s2 + $0x8bc] sm:$0xf]
      %v7116 = vld [vmem:[%s2 + $0x8c0] sm:$0xff]
      %v7117 = vld [vmem:[%s2 + $0x8c8] sm:$0xff]
      %v7118 = vld [vmem:[%s2 + $0x8d0] sm:$0xff]
      %v7119 = vld [vmem:[%s2 + $0x8d8] sm:$0xf]
      %v7120 = vld [vmem:[%s2 + $0x8dc] sm:$0xff]
      %v7121 = vld [vmem:[%s2 + $0x8e4] sm:$0xff]
      %v7122 = vld [vmem:[%s2 + $0x8ec] sm:$0xff]
      %v7123 = vld [vmem:[%s2 + $0x8f4] sm:$0xf]
      %v7124 = vld [vmem:[%s2 + $0x8f8] sm:$0xff]
      %v7125 = vld [vmem:[%s2 + $0x900] sm:$0xff]
      %v7126 = vld [vmem:[%s2 + $0x908] sm:$0xff]
      %v7127 = vld [vmem:[%s2 + $0x910] sm:$0xf]
      %v7128 = vld [vmem:[%s2 + $0x914] sm:$0xff]
      %v7129 = vld [vmem:[%s2 + $0x91c] sm:$0xff]
      %v7130 = vld [vmem:[%s2 + $0x924] sm:$0xff]
      %v7131 = vld [vmem:[%s2 + $0x92c] sm:$0xf]
      %v7132 = vld [vmem:[%s2 + $0x930] sm:$0xff]
      %v7133 = vld [vmem:[%s2 + $0x938] sm:$0xff]
      %v7134 = vld [vmem:[%s2 + $0x940] sm:$0xff]
      %v7135 = vld [vmem:[%s2 + $0x948] sm:$0xf]
      %v7136 = vld [vmem:[%s2 + $0x94c] sm:$0xff]
      %v7137 = vld [vmem:[%s2 + $0x954] sm:$0xff]
      %v7138 = vld [vmem:[%s2 + $0x95c] sm:$0xff]
      %v7139 = vld [vmem:[%s2 + $0x964] sm:$0xf]
      %v7140 = vld [vmem:[%s2 + $0x968] sm:$0xff]
      %v7141 = vld [vmem:[%s2 + $0x970] sm:$0xff]
      %v7142 = vld [vmem:[%s2 + $0x978] sm:$0xff]
      %v7143 = vld [vmem:[%s2 + $0x980] sm:$0xf]
      %v7144 = vld [vmem:[%s2 + $0x984] sm:$0xff]
      %v7145 = vld [vmem:[%s2 + $0x98c] sm:$0xff]
      %v7146 = vld [vmem:[%s2 + $0x994] sm:$0xff]
      %v7147 = vld [vmem:[%s2 + $0x99c] sm:$0xf]
      %v7148 = vld [vmem:[%s2 + $0x9a0] sm:$0xff]
      %v7149 = vld [vmem:[%s2 + $0x9a8] sm:$0xff]
      %v7150 = vld [vmem:[%s2 + $0x9b0] sm:$0xff]
      %v7151 = vld [vmem:[%s2 + $0x9b8] sm:$0xf]
      %v7152 = vld [vmem:[%s2 + $0x9bc] sm:$0xff]
      %v7153 = vld [vmem:[%s2 + $0x9c4] sm:$0xff]
      %v7154 = vld [vmem:[%s2 + $0x9cc] sm:$0xff]
      %v7155 = vld [vmem:[%s2 + $0x9d4] sm:$0xf]
      %v7156 = vld [vmem:[%s2 + $0x9d8] sm:$0xff]
      %v7157 = vld [vmem:[%s2 + $0x9e0] sm:$0xff]
      %v7158 = vld [vmem:[%s2 + $0x9e8] sm:$0xff]
      %v7159 = vld [vmem:[%s2 + $0x9f0] sm:$0xf]
      %v7160 = vld [vmem:[%s2 + $0x9f4] sm:$0xff]
      %v7161 = vld [vmem:[%s2 + $0x9fc] sm:$0xff]
      %v7162 = vld [vmem:[%s2 + $0xa04] sm:$0xff]
      %v7163 = vld [vmem:[%s2 + $0xa0c] sm:$0xf]
      %v7164 = vld [vmem:[%s2 + $0xa10] sm:$0xff]
      %v7165 = vld [vmem:[%s2 + $0xa18] sm:$0xff]
      %v7166 = vld [vmem:[%s2 + $0xa20] sm:$0xff]
      %v7167 = vld [vmem:[%s2 + $0xa28] sm:$0xf]
      %v7168 = vld [vmem:[%s2 + $0xa2c] sm:$0xff]
      %v7169 = vld [vmem:[%s2 + $0xa34] sm:$0xff]
      %v7170 = vld [vmem:[%s2 + $0xa3c] sm:$0xff]
      %v7171 = vld [vmem:[%s2 + $0xa44] sm:$0xf]
      %v7172 = vld [vmem:[%s2 + $0xa48] sm:$0xff]
      %v7173 = vld [vmem:[%s2 + $0xa50] sm:$0xff]
      %v7174 = vld [vmem:[%s2 + $0xa58] sm:$0xff]
      %v7175 = vld [vmem:[%s2 + $0xa60] sm:$0xf]
      %v7176 = vld [vmem:[%s2 + $0xa64] sm:$0xff]
      %v7177 = vld [vmem:[%s2 + $0xa6c] sm:$0xff]
      %v7178 = vld [vmem:[%s2 + $0xa74] sm:$0xff]
      %v7179 = vld [vmem:[%s2 + $0xa7c] sm:$0xf]
      %v7180 = vld [vmem:[%s2 + $0xa80] sm:$0xff]
      %v7181 = vld [vmem:[%s2 + $0xa88] sm:$0xff]
      %v7182 = vld [vmem:[%s2 + $0xa90] sm:$0xff]
      %v7183 = vld [vmem:[%s2 + $0xa98] sm:$0xf]
      %v7184 = vld [vmem:[%s2 + $0xa9c] sm:$0xff]
      %v7185 = vld [vmem:[%s2 + $0xaa4] sm:$0xff]
      %v7186 = vld [vmem:[%s2 + $0xaac] sm:$0xff]
      %v7187 = vld [vmem:[%s2 + $0xab4] sm:$0xf]
      %v7188 = vld [vmem:[%s2 + $0xab8] sm:$0xff]
      %v7189 = vld [vmem:[%s2 + $0xac0] sm:$0xff]
      %v7190 = vld [vmem:[%s2 + $0xac8] sm:$0xff]
      %v7191 = vld [vmem:[%s2 + $0xad0] sm:$0xf]
      %v7192 = vld [vmem:[%s2 + $0xad4] sm:$0xff]
      %v7193 = vld [vmem:[%s2 + $0xadc] sm:$0xff]
      %v7194 = vld [vmem:[%s2 + $0xae4] sm:$0xff]
      %v7195 = vld [vmem:[%s2 + $0xaec] sm:$0xf]
      %v7196 = vld [vmem:[%s2 + $0xaf0] sm:$0xff]
      %v7197 = vld [vmem:[%s2 + $0xaf8] sm:$0xff]
      %v7198 = vld [vmem:[%s2 + $0xb00] sm:$0xff]
      %v7199 = vld [vmem:[%s2 + $0xb08] sm:$0xf]
      %v7200 = vld [vmem:[%s2 + $0xb0c] sm:$0xff]
      %v7201 = vld [vmem:[%s2 + $0xb14] sm:$0xff]
      %v7202 = vld [vmem:[%s2 + $0xb1c] sm:$0xff]
      %v7203 = vld [vmem:[%s2 + $0xb24] sm:$0xf]
      %v7204 = vld [vmem:[%s2 + $0xb28] sm:$0xff]
      %v7205 = vld [vmem:[%s2 + $0xb30] sm:$0xff]
      %v7206 = vld [vmem:[%s2 + $0xb38] sm:$0xff]
      %v7207 = vld [vmem:[%s2 + $0xb40] sm:$0xf]
      %v7208 = vld [vmem:[%s2 + $0xb44] sm:$0xff]
      %v7209 = vld [vmem:[%s2 + $0xb4c] sm:$0xff]
      %v7210 = vld [vmem:[%s2 + $0xb54] sm:$0xff]
      %v7211 = vld [vmem:[%s2 + $0xb5c] sm:$0xf]
      %v7212 = vld [vmem:[%s2 + $0xb60] sm:$0xff]
      %v7213 = vld [vmem:[%s2 + $0xb68] sm:$0xff]
      %v7214 = vld [vmem:[%s2 + $0xb70] sm:$0xff]
      %v7215 = vld [vmem:[%s2 + $0xb78] sm:$0xf]
      %v7216 = vld [vmem:[%s2 + $0xb7c] sm:$0xff]
      %v7217 = vld [vmem:[%s2 + $0xb84] sm:$0xff]
      %v7218 = vld [vmem:[%s2 + $0xb8c] sm:$0xff]
      %v7219 = vld [vmem:[%s2 + $0xb94] sm:$0xf]
      %v7220 = vld [vmem:[%s2 + $0xb98] sm:$0xff]
      %v7221 = vld [vmem:[%s2 + $0xba0] sm:$0xff]
      %v7222 = vld [vmem:[%s2 + $0xba8] sm:$0xff]
      %v7223 = vld [vmem:[%s2 + $0xbb0] sm:$0xf]
      %v7224 = vld [vmem:[%s2 + $0xbb4] sm:$0xff]
      %v7225 = vld [vmem:[%s2 + $0xbbc] sm:$0xff]
      %v7226 = vld [vmem:[%s2 + $0xbc4] sm:$0xff]
      %v7227 = vld [vmem:[%s2 + $0xbcc] sm:$0xf]
      %v7228 = vld [vmem:[%s2 + $0xbd0] sm:$0xff]
      %v7229 = vld [vmem:[%s2 + $0xbd8] sm:$0xff]
      %v7230 = vld [vmem:[%s2 + $0xbe0] sm:$0xff]
      %v7231 = vld [vmem:[%s2 + $0xbe8] sm:$0xf]
      %v7232 = vld [vmem:[%s2 + $0xbec] sm:$0xff]
      %v7233 = vld [vmem:[%s2 + $0xbf4] sm:$0xff]
      %v7234 = vld [vmem:[%s2 + $0xbfc] sm:$0xff]
      %v7235 = vld [vmem:[%s2 + $0xc04] sm:$0xf]
      %v7236 = vld [vmem:[%s2 + $0xc08] sm:$0xff]
      %v7237 = vld [vmem:[%s2 + $0xc10] sm:$0xff]
      %v7238 = vld [vmem:[%s2 + $0xc18] sm:$0xff]
      %v7239 = vld [vmem:[%s2 + $0xc20] sm:$0xf]
      %v7240 = vld [vmem:[%s2 + $0xc24] sm:$0xff]
      %v7241 = vld [vmem:[%s2 + $0xc2c] sm:$0xff]
      %v7242 = vld [vmem:[%s2 + $0xc34] sm:$0xff]
      %v7243 = vld [vmem:[%s2 + $0xc3c] sm:$0xf]
      %v7244 = vld [vmem:[%s2 + $0xc40] sm:$0xff]
      %v7245 = vld [vmem:[%s2 + $0xc48] sm:$0xff]
      %v7246 = vld [vmem:[%s2 + $0xc50] sm:$0xff]
      %v7247 = vld [vmem:[%s2 + $0xc58] sm:$0xf]
      %v7248 = vld [vmem:[%s2 + $0xc5c] sm:$0xff]
      %v7249 = vld [vmem:[%s2 + $0xc64] sm:$0xff]
      %v7250 = vld [vmem:[%s2 + $0xc6c] sm:$0xff]
      %v7251 = vld [vmem:[%s2 + $0xc74] sm:$0xf]
      %v7252 = vld [vmem:[%s2 + $0xc78] sm:$0xff]
      %v7253 = vld [vmem:[%s2 + $0xc80] sm:$0xff]
      %v7254 = vld [vmem:[%s2 + $0xc88] sm:$0xff]
      %v7255 = vld [vmem:[%s2 + $0xc90] sm:$0xf]
      %v7256 = vld [vmem:[%s2 + $0xc94] sm:$0xff]
      %v7257 = vld [vmem:[%s2 + $0xc9c] sm:$0xff]
      %v7258 = vld [vmem:[%s2 + $0xca4] sm:$0xff]
      %v7259 = vld [vmem:[%s2 + $0xcac] sm:$0xf]
      %v7260 = vld [vmem:[%s2 + $0xcb0] sm:$0xff]
      %v7261 = vld [vmem:[%s2 + $0xcb8] sm:$0xff]
      %v7262 = vld [vmem:[%s2 + $0xcc0] sm:$0xff]
      %v7263 = vld [vmem:[%s2 + $0xcc8] sm:$0xf]
      %v7264 = vld [vmem:[%s2 + $0xccc] sm:$0xff]
      %v7265 = vld [vmem:[%s2 + $0xcd4] sm:$0xff]
      %v7266 = vld [vmem:[%s2 + $0xcdc] sm:$0xff]
      %v7267 = vld [vmem:[%s2 + $0xce4] sm:$0xf]
      %v7268 = vld [vmem:[%s2 + $0xce8] sm:$0xff]
      %v7269 = vld [vmem:[%s2 + $0xcf0] sm:$0xff]
      %v7270 = vld [vmem:[%s2 + $0xcf8] sm:$0xff]
      %v7271 = vld [vmem:[%s2 + $0xd00] sm:$0xf]
      %v7272 = vld [vmem:[%s2 + $0xd04] sm:$0xff]
      %v7273 = vld [vmem:[%s2 + $0xd0c] sm:$0xff]
      %v7274 = vld [vmem:[%s2 + $0xd14] sm:$0xff]
      %v7275 = vld [vmem:[%s2 + $0xd1c] sm:$0xf]
      %v7276 = vld [vmem:[%s2 + $0xd20] sm:$0xff]
      %v7277 = vld [vmem:[%s2 + $0xd28] sm:$0xff]
      %v7278 = vld [vmem:[%s2 + $0xd30] sm:$0xff]
      %v7279 = vld [vmem:[%s2 + $0xd38] sm:$0xf]
      %v7280 = vld [vmem:[%s2 + $0xd3c] sm:$0xff]
      %v7281 = vld [vmem:[%s2 + $0xd44] sm:$0xff]
      %v7282 = vld [vmem:[%s2 + $0xd4c] sm:$0xff]
      %v7283 = vld [vmem:[%s2 + $0xd54] sm:$0xf]
      %v7284 = vld [vmem:[%s2 + $0xd58] sm:$0xff]
      %v7285 = vld [vmem:[%s2 + $0xd60] sm:$0xff]
      %v7286 = vld [vmem:[%s2 + $0xd68] sm:$0xff]
      %v7287 = vld [vmem:[%s2 + $0xd70] sm:$0xf]
      %v7288 = vld [vmem:[%s2 + $0xd74] sm:$0xff]
      %v7289 = vld [vmem:[%s2 + $0xd7c] sm:$0xff]
      %v7290 = vld [vmem:[%s2 + $0xd84] sm:$0xff]
      %v7291 = vld [vmem:[%s2 + $0xd8c] sm:$0xf]
      %v7292 = vld [vmem:[%s2 + $0xd90] sm:$0xff]
      %v7293 = vld [vmem:[%s2 + $0xd98] sm:$0xff]
      %v7294 = vld [vmem:[%s2 + $0xda0] sm:$0xff]
      %v7295 = vld [vmem:[%s2 + $0xda8] sm:$0xf]
      %v7296 = vld [vmem:[%s2 + $0xdac] sm:$0xff]
      %v7297 = vld [vmem:[%s2 + $0xdb4] sm:$0xff]
      %v7298 = vld [vmem:[%s2 + $0xdbc] sm:$0xff]
      %v7299 = vld [vmem:[%s2 + $0xdc4] sm:$0xf]
      %v7300 = vld [vmem:[%s2 + $0xdc8] sm:$0xff]
      %v7301 = vld [vmem:[%s2 + $0xdd0] sm:$0xff]
      %v7302 = vld [vmem:[%s2 + $0xdd8] sm:$0xff]
      %v7303 = vld [vmem:[%s2 + $0xde0] sm:$0xf]
      %v7304 = vld [vmem:[%s2 + $0xde4] sm:$0xff]
      %v7305 = vld [vmem:[%s2 + $0xdec] sm:$0xff]
      %v7306 = vld [vmem:[%s2 + $0xdf4] sm:$0xff]
      %v7307 = vld [vmem:[%s2 + $0xdfc] sm:$0xf]
      %v7308 = vld [vmem:[%s2 + $0xe00] sm:$0xff]
      %v7309 = vld [vmem:[%s2 + $0xe08] sm:$0xff]
      %v7310 = vld [vmem:[%s2 + $0xe10] sm:$0xff]
      %v7311 = vld [vmem:[%s2 + $0xe18] sm:$0xf]
      %v7312 = vld [vmem:[%s2 + $0xe1c] sm:$0xff]
      %v7313 = vld [vmem:[%s2 + $0xe24] sm:$0xff]
      %v7314 = vld [vmem:[%s2 + $0xe2c] sm:$0xff]
      %v7315 = vld [vmem:[%s2 + $0xe34] sm:$0xf]
      %v7316 = vld [vmem:[%s2 + $0xe38] sm:$0xff]
      %v7317 = vld [vmem:[%s2 + $0xe40] sm:$0xff]
      %v7318 = vld [vmem:[%s2 + $0xe48] sm:$0xff]
      %v7319 = vld [vmem:[%s2 + $0xe50] sm:$0xf]
      %v7320 = vld [vmem:[%s2 + $0xe54] sm:$0xff]
      %v7321 = vld [vmem:[%s2 + $0xe5c] sm:$0xff]
      %v7322 = vld [vmem:[%s2 + $0xe64] sm:$0xff]
      %v7323 = vld [vmem:[%s2 + $0xe6c] sm:$0xf]
      %v7324 = vld [vmem:[%s2 + $0xe70] sm:$0xff]
      %v7325 = vld [vmem:[%s2 + $0xe78] sm:$0xff]
      %v7326 = vld [vmem:[%s2 + $0xe80] sm:$0xff]
      %v7327 = vld [vmem:[%s2 + $0xe88] sm:$0xf]
      %v7328 = vld [vmem:[%s2 + $0xe8c] sm:$0xff]
      %v7329 = vld [vmem:[%s2 + $0xe94] sm:$0xff]
      %v7330 = vld [vmem:[%s2 + $0xe9c] sm:$0xff]
      %v7331 = vld [vmem:[%s2 + $0xea4] sm:$0xf]
      %v7332 = vld [vmem:[%s2 + $0xea8] sm:$0xff]
      %v7333 = vld [vmem:[%s2 + $0xeb0] sm:$0xff]
      %v7334 = vld [vmem:[%s2 + $0xeb8] sm:$0xff]
      %v7335 = vld [vmem:[%s2 + $0xec0] sm:$0xf]
      %v7336 = vld [vmem:[%s2 + $0xec4] sm:$0xff]
      %v7337 = vld [vmem:[%s2 + $0xecc] sm:$0xff]
      %v7338 = vld [vmem:[%s2 + $0xed4] sm:$0xff]
      %v7339 = vld [vmem:[%s2 + $0xedc] sm:$0xf]
      %v7340 = vld [vmem:[%s2 + $0xee0] sm:$0xff]
      %v7341 = vld [vmem:[%s2 + $0xee8] sm:$0xff]
      %v7342 = vld [vmem:[%s2 + $0xef0] sm:$0xff]
      %v7343 = vld [vmem:[%s2 + $0xef8] sm:$0xf]
      %v7344 = vld [vmem:[%s2 + $0xefc] sm:$0xff]
      %v7345 = vld [vmem:[%s2 + $0xf04] sm:$0xff]
      %v7346 = vld [vmem:[%s2 + $0xf0c] sm:$0xff]
      %v7347 = vld [vmem:[%s2 + $0xf14] sm:$0xf]
      %v7348 = vld [vmem:[%s2 + $0xf18] sm:$0xff]
      %v7349 = vld [vmem:[%s2 + $0xf20] sm:$0xff]
      %v7350 = vld [vmem:[%s2 + $0xf28] sm:$0xff]
      %v7351 = vld [vmem:[%s2 + $0xf30] sm:$0xf]
      %v7352 = vld [vmem:[%s2 + $0xf34] sm:$0xff]
      %v7353 = vld [vmem:[%s2 + $0xf3c] sm:$0xff]
      %v7354 = vld [vmem:[%s2 + $0xf44] sm:$0xff]
      %v7355 = vld [vmem:[%s2 + $0xf4c] sm:$0xf]
      %v7356 = vld [vmem:[%s2 + $0xf50] sm:$0xff]
      %v7357 = vld [vmem:[%s2 + $0xf58] sm:$0xff]
      %v7358 = vld [vmem:[%s2 + $0xf60] sm:$0xff]
      %v7359 = vld [vmem:[%s2 + $0xf68] sm:$0xf]
      %v7360 = vld [vmem:[%s2 + $0xf6c] sm:$0xff]
      %v7361 = vld [vmem:[%s2 + $0xf74] sm:$0xff]
      %v7362 = vld [vmem:[%s2 + $0xf7c] sm:$0xff]
      %v7363 = vld [vmem:[%s2 + $0xf84] sm:$0xf]
      %v7364 = vld [vmem:[%s2 + $0xf88] sm:$0xff]
      %v7365 = vld [vmem:[%s2 + $0xf90] sm:$0xff]
      %v7366 = vld [vmem:[%s2 + $0xf98] sm:$0xff]
      %v7367 = vld [vmem:[%s2 + $0xfa0] sm:$0xf]
      %v7368 = vld [vmem:[%s2 + $0xfa4] sm:$0xff]
      %v7369 = vld [vmem:[%s2 + $0xfac] sm:$0xff]
      %v7370 = vld [vmem:[%s2 + $0xfb4] sm:$0xff]
      %v7371 = vld [vmem:[%s2 + $0xfbc] sm:$0xf]
      %v7372 = vld [vmem:[%s2 + $0xfc0] sm:$0xff]
      %v7373 = vld [vmem:[%s2 + $0xfc8] sm:$0xff]
      %v7374 = vld [vmem:[%s2 + $0xfd0] sm:$0xff]
      %v7375 = vld [vmem:[%s2 + $0xfd8] sm:$0xf]
      %v7376 = vld [vmem:[%s2 + $0xfdc] sm:$0xff]
      %v7377 = vld [vmem:[%s2 + $0xfe4] sm:$0xff]
      %v7378 = vld [vmem:[%s2 + $0xfec] sm:$0xff]
      %v7379 = vld [vmem:[%s2 + $0xff4] sm:$0xf]
      %v7380 = vld [vmem:[%s2 + $0xff8] sm:$0xff]
      %v7381 = vld [vmem:[%s2 + $0x1000] sm:$0xff]
      %v7382 = vld [vmem:[%s2 + $0x1008] sm:$0xff]
      %v7383 = vld [vmem:[%s2 + $0x1010] sm:$0xf]
      %v7384 = vld [vmem:[%s2 + $0x1014] sm:$0xff]
      %v7385 = vld [vmem:[%s2 + $0x101c] sm:$0xff]
      %v7386 = vld [vmem:[%s2 + $0x1024] sm:$0xff]
      %v7387 = vld [vmem:[%s2 + $0x102c] sm:$0xf]
      %v7388 = vld [vmem:[%s2 + $0x1030] sm:$0xff]
      %v7389 = vld [vmem:[%s2 + $0x1038] sm:$0xff]
      %v7390 = vld [vmem:[%s2 + $0x1040] sm:$0xff]
      %v7391 = vld [vmem:[%s2 + $0x1048] sm:$0xf]
      %v7392 = vld [vmem:[%s2 + $0x104c] sm:$0xff]
      %v7393 = vld [vmem:[%s2 + $0x1054] sm:$0xff]
      %v7394 = vld [vmem:[%s2 + $0x105c] sm:$0xff]
      %v7395 = vld [vmem:[%s2 + $0x1064] sm:$0xf]
      %v7396 = vld [vmem:[%s2 + $0x1068] sm:$0xff]
      %v7397 = vld [vmem:[%s2 + $0x1070] sm:$0xff]
      %v7398 = vld [vmem:[%s2 + $0x1078] sm:$0xff]
      %v7399 = vld [vmem:[%s2 + $0x1080] sm:$0xf]
      %v7400 = vld [vmem:[%s2 + $0x1084] sm:$0xff]
      %v7401 = vld [vmem:[%s2 + $0x108c] sm:$0xff]
      %v7402 = vld [vmem:[%s2 + $0x1094] sm:$0xff]
      %v7403 = vld [vmem:[%s2 + $0x109c] sm:$0xf]
      %v7404 = vld [vmem:[%s2 + $0x10a0] sm:$0xff]
      %v7405 = vld [vmem:[%s2 + $0x10a8] sm:$0xff]
      %v7406 = vld [vmem:[%s2 + $0x10b0] sm:$0xff]
      %v7407 = vld [vmem:[%s2 + $0x10b8] sm:$0xf]
      %v7408 = vld [vmem:[%s2 + $0x10bc] sm:$0xff]
      %v7409 = vld [vmem:[%s2 + $0x10c4] sm:$0xff]
      %v7410 = vld [vmem:[%s2 + $0x10cc] sm:$0xff]
      %v7411 = vld [vmem:[%s2 + $0x10d4] sm:$0xf]
      %v7412 = vld [vmem:[%s2 + $0x10d8] sm:$0xff]
      %v7413 = vld [vmem:[%s2 + $0x10e0] sm:$0xff]
      %v7414 = vld [vmem:[%s2 + $0x10e8] sm:$0xff]
      %v7415 = vld [vmem:[%s2 + $0x10f0] sm:$0xf]
      %v7416 = vld [vmem:[%s2 + $0x10f4] sm:$0xff]
      %v7417 = vld [vmem:[%s2 + $0x10fc] sm:$0xff]
      %v7418 = vld [vmem:[%s2 + $0x1104] sm:$0xff]
      %v7419 = vld [vmem:[%s2 + $0x110c] sm:$0xf]
      %v7420 = vld [vmem:[%s2 + $0x1110] sm:$0xff]
      %v7421 = vld [vmem:[%s2 + $0x1118] sm:$0xff]
      %v7422 = vld [vmem:[%s2 + $0x1120] sm:$0xff]
      %v7423 = vld [vmem:[%s2 + $0x1128] sm:$0xf]
      %v7424 = vld [vmem:[%s2 + $0x112c] sm:$0xff]
      %v7425 = vld [vmem:[%s2 + $0x1134] sm:$0xff]
      %v7426 = vld [vmem:[%s2 + $0x113c] sm:$0xff]
      %v7427 = vld [vmem:[%s2 + $0x1144] sm:$0xf]
      %v7428 = vld [vmem:[%s2 + $0x1148] sm:$0xff]
      %v7429 = vld [vmem:[%s2 + $0x1150] sm:$0xff]
      %v7430 = vld [vmem:[%s2 + $0x1158] sm:$0xff]
      %v7431 = vld [vmem:[%s2 + $0x1160] sm:$0xf]
      %v7432 = vld [vmem:[%s2 + $0x1164] sm:$0xff]
      %v7433 = vld [vmem:[%s2 + $0x116c] sm:$0xff]
      %v7434 = vld [vmem:[%s2 + $0x1174] sm:$0xff]
      %v7435 = vld [vmem:[%s2 + $0x117c] sm:$0xf]
      %v7436 = vld [vmem:[%s2 + $0x1180] sm:$0xff]
      %v7437 = vld [vmem:[%s2 + $0x1188] sm:$0xff]
      %v7438 = vld [vmem:[%s2 + $0x1190] sm:$0xff]
      %v7439 = vld [vmem:[%s2 + $0x1198] sm:$0xf]
      %v7440 = vld [vmem:[%s2 + $0x119c] sm:$0xff]
      %v7441 = vld [vmem:[%s2 + $0x11a4] sm:$0xff]
      %v7442 = vld [vmem:[%s2 + $0x11ac] sm:$0xff]
      %v7443 = vld [vmem:[%s2 + $0x11b4] sm:$0xf]
      %v7444 = vld [vmem:[%s2 + $0x11b8] sm:$0xff]
      %v7445 = vld [vmem:[%s2 + $0x11c0] sm:$0xff]
      %v7446 = vld [vmem:[%s2 + $0x11c8] sm:$0xff]
      %v7447 = vld [vmem:[%s2 + $0x11d0] sm:$0xf]
      %v7448 = vld [vmem:[%s2 + $0x11d4] sm:$0xff]
      %v7449 = vld [vmem:[%s2 + $0x11dc] sm:$0xff]
      %v7450 = vld [vmem:[%s2 + $0x11e4] sm:$0xff]
      %v7451 = vld [vmem:[%s2 + $0x11ec] sm:$0xf]
      %v7452 = vld [vmem:[%s2 + $0x11f0] sm:$0xff]
      %v7453 = vld [vmem:[%s2 + $0x11f8] sm:$0xff]
      %v7454 = vld [vmem:[%s2 + $0x1200] sm:$0xff]
      %v7455 = vld [vmem:[%s2 + $0x1208] sm:$0xf]
      %v7456 = vld [vmem:[%s2 + $0x120c] sm:$0xff]
      %v7457 = vld [vmem:[%s2 + $0x1214] sm:$0xff]
      %v7458 = vld [vmem:[%s2 + $0x121c] sm:$0xff]
      %v7459 = vld [vmem:[%s2 + $0x1224] sm:$0xf]
      %v7460 = vld [vmem:[%s2 + $0x1228] sm:$0xff]
      %v7461 = vld [vmem:[%s2 + $0x1230] sm:$0xff]
      %v7462 = vld [vmem:[%s2 + $0x1238] sm:$0xff]
      %v7463 = vld [vmem:[%s2 + $0x1240] sm:$0xf]
      %v7464 = vld [vmem:[%s2 + $0x1244] sm:$0xff]
      %v7465 = vld [vmem:[%s2 + $0x124c] sm:$0xff]
      %v7466 = vld [vmem:[%s2 + $0x1254] sm:$0xff]
      %v7467 = vld [vmem:[%s2 + $0x125c] sm:$0xf]
      %v7468 = vld [vmem:[%s2 + $0x1260] sm:$0xff]
      %v7469 = vld [vmem:[%s2 + $0x1268] sm:$0xff]
      %v7470 = vld [vmem:[%s2 + $0x1270] sm:$0xff]
      %v7471 = vld [vmem:[%s2 + $0x1278] sm:$0xf]
      %v7472 = vld [vmem:[%s2 + $0x127c] sm:$0xff]
      %v7473 = vld [vmem:[%s2 + $0x1284] sm:$0xff]
      %v7474 = vld [vmem:[%s2 + $0x128c] sm:$0xff]
      %v7475 = vld [vmem:[%s2 + $0x1294] sm:$0xf]
      %v7476 = vld [vmem:[%s2 + $0x1298] sm:$0xff]
      %v7477 = vld [vmem:[%s2 + $0x12a0] sm:$0xff]
      %v7478 = vld [vmem:[%s2 + $0x12a8] sm:$0xff]
      %v7479 = vld [vmem:[%s2 + $0x12b0] sm:$0xf]
      %v7480 = vld [vmem:[%s2 + $0x12b4] sm:$0xff]
      %v7481 = vld [vmem:[%s2 + $0x12bc] sm:$0xff]
      %v7482 = vld [vmem:[%s2 + $0x12c4] sm:$0xff]
      %v7483 = vld [vmem:[%s2 + $0x12cc] sm:$0xf]
      %v7484 = vld [vmem:[%s2 + $0x12d0] sm:$0xff]
      %v7485 = vld [vmem:[%s2 + $0x12d8] sm:$0xff]
      %v7486 = vld [vmem:[%s2 + $0x12e0] sm:$0xff]
      %v7487 = vld [vmem:[%s2 + $0x12e8] sm:$0xf]
      %v7488 = vld [vmem:[%s2 + $0x12ec] sm:$0xff]
      %v7489 = vld [vmem:[%s2 + $0x12f4] sm:$0xff]
      %v7490 = vld [vmem:[%s2 + $0x12fc] sm:$0xff]
      %v7491 = vld [vmem:[%s2 + $0x1304] sm:$0xf]
      %v7492 = vld [vmem:[%s2 + $0x1308] sm:$0xff]
      %v7493 = vld [vmem:[%s2 + $0x1310] sm:$0xff]
      %v7494 = vld [vmem:[%s2 + $0x1318] sm:$0xff]
      %v7495 = vld [vmem:[%s2 + $0x1320] sm:$0xf]
      %v7496 = vld [vmem:[%s2 + $0x1324] sm:$0xff]
      %v7497 = vld [vmem:[%s2 + $0x132c] sm:$0xff]
      %v7498 = vld [vmem:[%s2 + $0x1334] sm:$0xff]
      %v7499 = vld [vmem:[%s2 + $0x133c] sm:$0xf]
      %v7500 = vld [vmem:[%s2 + $0x1340] sm:$0xff]
      %v7501 = vld [vmem:[%s2 + $0x1348] sm:$0xff]
      %v7502 = vld [vmem:[%s2 + $0x1350] sm:$0xff]
      %v7503 = vld [vmem:[%s2 + $0x1358] sm:$0xf]
      %v7504 = vld [vmem:[%s2 + $0x135c] sm:$0xff]
      %v7505 = vld [vmem:[%s2 + $0x1364] sm:$0xff]
      %v7506 = vld [vmem:[%s2 + $0x136c] sm:$0xff]
      %v7507 = vld [vmem:[%s2 + $0x1374] sm:$0xf]
      %v7508 = vld [vmem:[%s2 + $0x1378] sm:$0xff]
      %v7509 = vld [vmem:[%s2 + $0x1380] sm:$0xff]
      %v7510 = vld [vmem:[%s2 + $0x1388] sm:$0xff]
      %v7511 = vld [vmem:[%s2 + $0x1390] sm:$0xf]
      %v7512 = vld [vmem:[%s2 + $0x1394] sm:$0xff]
      %v7513 = vld [vmem:[%s2 + $0x139c] sm:$0xff]
      %v7514 = vld [vmem:[%s2 + $0x13a4] sm:$0xff]
      %v7515 = vld [vmem:[%s2 + $0x13ac] sm:$0xf]
      %v7516 = vld [vmem:[%s2 + $0x13b0] sm:$0xff]
      %v7517 = vld [vmem:[%s2 + $0x13b8] sm:$0xff]
      %v7518 = vld [vmem:[%s2 + $0x13c0] sm:$0xff]
      %v7519 = vld [vmem:[%s2 + $0x13c8] sm:$0xf]
      %v7520 = vld [vmem:[%s2 + $0x13cc] sm:$0xff]
      %v7521 = vld [vmem:[%s2 + $0x13d4] sm:$0xff]
      %v7522 = vld [vmem:[%s2 + $0x13dc] sm:$0xff]
      %v7523 = vld [vmem:[%s2 + $0x13e4] sm:$0xf]
      %v7524 = vld [vmem:[%s2 + $0x13e8] sm:$0xff]
      %v7525 = vld [vmem:[%s2 + $0x13f0] sm:$0xff]
      %v7526 = vld [vmem:[%s2 + $0x13f8] sm:$0xff]
      %v7527 = vld [vmem:[%s2 + $0x1400] sm:$0xf]
      %v7528 = vld [vmem:[%s2 + $0x1404] sm:$0xff]
      %v7529 = vld [vmem:[%s2 + $0x140c] sm:$0xff]
      %v7530 = vld [vmem:[%s2 + $0x1414] sm:$0xff]
      %v7531 = vld [vmem:[%s2 + $0x141c] sm:$0xf]
      %v7532 = vld [vmem:[%s2 + $0x1420] sm:$0xff]
      %v7533 = vld [vmem:[%s2 + $0x1428] sm:$0xff]
      %v7534 = vld [vmem:[%s2 + $0x1430] sm:$0xff]
      %v7535 = vld [vmem:[%s2 + $0x1438] sm:$0xf]
      %v7536 = vld [vmem:[%s2 + $0x143c] sm:$0xff]
      %v7537 = vld [vmem:[%s2 + $0x1444] sm:$0xff]
      %v7538 = vld [vmem:[%s2 + $0x144c] sm:$0xff]
      %v7539 = vld [vmem:[%s2 + $0x1454] sm:$0xf]
      %v7540 = vld [vmem:[%s2 + $0x1458] sm:$0xff]
      %v7541 = vld [vmem:[%s2 + $0x1460] sm:$0xff]
      %v7542 = vld [vmem:[%s2 + $0x1468] sm:$0xff]
      %v7543 = vld [vmem:[%s2 + $0x1470] sm:$0xf]
      %v7544 = vld [vmem:[%s2 + $0x1474] sm:$0xff]
      %v7545 = vld [vmem:[%s2 + $0x147c] sm:$0xff]
      %v7546 = vld [vmem:[%s2 + $0x1484] sm:$0xff]
      %v7547 = vld [vmem:[%s2 + $0x148c] sm:$0xf]
      %v7548 = vld [vmem:[%s2 + $0x1490] sm:$0xff]
      %v7549 = vld [vmem:[%s2 + $0x1498] sm:$0xff]
      %v7550 = vld [vmem:[%s2 + $0x14a0] sm:$0xff]
      %v7551 = vld [vmem:[%s2 + $0x14a8] sm:$0xf]
      %v7552 = vld [vmem:[%s2 + $0x14ac] sm:$0xff]
      %v7553 = vld [vmem:[%s2 + $0x14b4] sm:$0xff]
      %v7554 = vld [vmem:[%s2 + $0x14bc] sm:$0xff]
      %v7555 = vld [vmem:[%s2 + $0x14c4] sm:$0xf]
      %v7556 = vld [vmem:[%s2 + $0x14c8] sm:$0xff]
      %v7557 = vld [vmem:[%s2 + $0x14d0] sm:$0xff]
      %v7558 = vld [vmem:[%s2 + $0x14d8] sm:$0xff]
      %v7559 = vld [vmem:[%s2 + $0x14e0] sm:$0xf]
      %v7560 = vld [vmem:[%s2 + $0x14e4] sm:$0xff]
      %v7561 = vld [vmem:[%s2 + $0x14ec] sm:$0xff]
      %v7562 = vld [vmem:[%s2 + $0x14f4] sm:$0xff]
      %v7563 = vld [vmem:[%s2 + $0x14fc] sm:$0xf]
      %v7564 = vld [vmem:[%s2 + $0x1500] sm:$0xff]
      %v7565 = vld [vmem:[%s2 + $0x1508] sm:$0xff]
      %v7566 = vld [vmem:[%s2 + $0x1510] sm:$0xff]
      %v7567 = vld [vmem:[%s2 + $0x1518] sm:$0xf]
      %v7568 = vld [vmem:[%s2 + $0x151c] sm:$0xff]
      %v7569 = vld [vmem:[%s2 + $0x1524] sm:$0xff]
      %v7570 = vld [vmem:[%s2 + $0x152c] sm:$0xff]
      %v7571 = vld [vmem:[%s2 + $0x1534] sm:$0xf]
      %v7572 = vld [vmem:[%s2 + $0x1538] sm:$0xff]
      %v7573 = vld [vmem:[%s2 + $0x1540] sm:$0xff]
      %v7574 = vld [vmem:[%s2 + $0x1548] sm:$0xff]
      %v7575 = vld [vmem:[%s2 + $0x1550] sm:$0xf]
      %v7576 = vld [vmem:[%s2 + $0x1554] sm:$0xff]
      %v7577 = vld [vmem:[%s2 + $0x155c] sm:$0xff]
      %v7578 = vld [vmem:[%s2 + $0x1564] sm:$0xff]
      %v7579 = vld [vmem:[%s2 + $0x156c] sm:$0xf]
      %v7580 = vld [vmem:[%s2 + $0x1570] sm:$0xff]
      %v7581 = vld [vmem:[%s2 + $0x1578] sm:$0xff]
      %v7582 = vld [vmem:[%s2 + $0x1580] sm:$0xff]
      %v7583 = vld [vmem:[%s2 + $0x1588] sm:$0xf]
      %v7584 = vld [vmem:[%s2 + $0x158c] sm:$0xff]
      %v7585 = vld [vmem:[%s2 + $0x1594] sm:$0xff]
      %v7586 = vld [vmem:[%s2 + $0x159c] sm:$0xff]
      %v7587 = vld [vmem:[%s2 + $0x15a4] sm:$0xf]
      %v7588 = vld [vmem:[%s2 + $0x15a8] sm:$0xff]
      %v7589 = vld [vmem:[%s2 + $0x15b0] sm:$0xff]
      %v7590 = vld [vmem:[%s2 + $0x15b8] sm:$0xff]
      %v7591 = vld [vmem:[%s2 + $0x15c0] sm:$0xf]
      %v7592 = vld [vmem:[%s2 + $0x15c4] sm:$0xff]
      %v7593 = vld [vmem:[%s2 + $0x15cc] sm:$0xff]
      %v7594 = vld [vmem:[%s2 + $0x15d4] sm:$0xff]
      %v7595 = vld [vmem:[%s2 + $0x15dc] sm:$0xf]
      %v7596 = vld [vmem:[%s2 + $0x15e0] sm:$0xff]
      %v7597 = vld [vmem:[%s2 + $0x15e8] sm:$0xff]
      %v7598 = vld [vmem:[%s2 + $0x15f0] sm:$0xff]
      %v7599 = vld [vmem:[%s2 + $0x15f8] sm:$0xf]
      %v7600 = vld [vmem:[%s2 + $0x15fc] sm:$0xff]
      %v7601 = vld [vmem:[%s2 + $0x1604] sm:$0xff]
      %v7602 = vld [vmem:[%s2 + $0x160c] sm:$0xff]
      %v7603 = vld [vmem:[%s2 + $0x1614] sm:$0xf]
      %v7604 = vld [vmem:[%s2 + $0x1618] sm:$0xff]
      %v7605 = vld [vmem:[%s2 + $0x1620] sm:$0xff]
      %v7606 = vld [vmem:[%s2 + $0x1628] sm:$0xff]
      %v7607 = vld [vmem:[%s2 + $0x1630] sm:$0xf]
      %v7608 = vld [vmem:[%s2 + $0x1634] sm:$0xff]
      %v7609 = vld [vmem:[%s2 + $0x163c] sm:$0xff]
      %v7610 = vld [vmem:[%s2 + $0x1644] sm:$0xff]
      %v7611 = vld [vmem:[%s2 + $0x164c] sm:$0xf]
      %v7612 = vld [vmem:[%s2 + $0x1650] sm:$0xff]
      %v7613 = vld [vmem:[%s2 + $0x1658] sm:$0xff]
      %v7614 = vld [vmem:[%s2 + $0x1660] sm:$0xff]
      %v7615 = vld [vmem:[%s2 + $0x1668] sm:$0xf]
      %v7616 = vld [vmem:[%s2 + $0x166c] sm:$0xff]
      %v7617 = vld [vmem:[%s2 + $0x1674] sm:$0xff]
      %v7618 = vld [vmem:[%s2 + $0x167c] sm:$0xff]
      %v7619 = vld [vmem:[%s2 + $0x1684] sm:$0xf]
      %v7620 = vld [vmem:[%s2 + $0x1688] sm:$0xff]
      %v7621 = vld [vmem:[%s2 + $0x1690] sm:$0xff]
      %v7622 = vld [vmem:[%s2 + $0x1698] sm:$0xff]
      %v7623 = vld [vmem:[%s2 + $0x16a0] sm:$0xf]
      %v7624 = vld [vmem:[%s2 + $0x16a4] sm:$0xff]
      %v7625 = vld [vmem:[%s2 + $0x16ac] sm:$0xff]
      %v7626 = vld [vmem:[%s2 + $0x16b4] sm:$0xff]
      %v7627 = vld [vmem:[%s2 + $0x16bc] sm:$0xf]
      %v7628 = vld [vmem:[%s2 + $0x16c0] sm:$0xff]
      %v7629 = vld [vmem:[%s2 + $0x16c8] sm:$0xff]
      %v7630 = vld [vmem:[%s2 + $0x16d0] sm:$0xff]
      %v7631 = vld [vmem:[%s2 + $0x16d8] sm:$0xf]
      %v7632 = vld [vmem:[%s2 + $0x16dc] sm:$0xff]
      %v7633 = vld [vmem:[%s2 + $0x16e4] sm:$0xff]
      %v7634 = vld [vmem:[%s2 + $0x16ec] sm:$0xff]
      %v7635 = vld [vmem:[%s2 + $0x16f4] sm:$0xf]
      %v7636 = vld [vmem:[%s2 + $0x16f8] sm:$0xff]
      %v7637 = vld [vmem:[%s2 + $0x1700] sm:$0xff]
      %v7638 = vld [vmem:[%s2 + $0x1708] sm:$0xff]
      %v7639 = vld [vmem:[%s2 + $0x1710] sm:$0xf]
      %v7640 = vld [vmem:[%s2 + $0x1714] sm:$0xff]
      %v7641 = vld [vmem:[%s2 + $0x171c] sm:$0xff]
      %v7642 = vld [vmem:[%s2 + $0x1724] sm:$0xff]
      %v7643 = vld [vmem:[%s2 + $0x172c] sm:$0xf]
      %v7644 = vld [vmem:[%s2 + $0x1730] sm:$0xff]
      %v7645 = vld [vmem:[%s2 + $0x1738] sm:$0xff]
      %v7646 = vld [vmem:[%s2 + $0x1740] sm:$0xff]
      %v7647 = vld [vmem:[%s2 + $0x1748] sm:$0xf]
      %v7648 = vld [vmem:[%s2 + $0x174c] sm:$0xff]
      %v7649 = vld [vmem:[%s2 + $0x1754] sm:$0xff]
      %v7650 = vld [vmem:[%s2 + $0x175c] sm:$0xff]
      %v7651 = vld [vmem:[%s2 + $0x1764] sm:$0xf]
      %v7652 = vld [vmem:[%s2 + $0x1768] sm:$0xff]
      %v7653 = vld [vmem:[%s2 + $0x1770] sm:$0xff]
      %v7654 = vld [vmem:[%s2 + $0x1778] sm:$0xff]
      %v7655 = vld [vmem:[%s2 + $0x1780] sm:$0xf]
      %v7656 = vld [vmem:[%s2 + $0x1784] sm:$0xff]
      %v7657 = vld [vmem:[%s2 + $0x178c] sm:$0xff]
      %v7658 = vld [vmem:[%s2 + $0x1794] sm:$0xff]
      %v7659 = vld [vmem:[%s2 + $0x179c] sm:$0xf]
      %v7660 = vld [vmem:[%s2 + $0x17a0] sm:$0xff]
      %v7661 = vld [vmem:[%s2 + $0x17a8] sm:$0xff]
      %v7662 = vld [vmem:[%s2 + $0x17b0] sm:$0xff]
      %v7663 = vld [vmem:[%s2 + $0x17b8] sm:$0xf]
      %v7664 = vld [vmem:[%s2 + $0x17bc] sm:$0xff]
      %v7665 = vld [vmem:[%s2 + $0x17c4] sm:$0xff]
      %v7666 = vld [vmem:[%s2 + $0x17cc] sm:$0xff]
      %v7667 = vld [vmem:[%s2 + $0x17d4] sm:$0xf]
      %v7668 = vld [vmem:[%s2 + $0x17d8] sm:$0xff]
      %v7669 = vld [vmem:[%s2 + $0x17e0] sm:$0xff]
      %v7670 = vld [vmem:[%s2 + $0x17e8] sm:$0xff]
      %v7671 = vld [vmem:[%s2 + $0x17f0] sm:$0xf]
      %v7672 = vld [vmem:[%s2 + $0x17f4] sm:$0xff]
      %v7673 = vld [vmem:[%s2 + $0x17fc] sm:$0xff]
      %v7674 = vld [vmem:[%s2 + $0x1804] sm:$0xff]
      %v7675 = vld [vmem:[%s2 + $0x180c] sm:$0xf]
      %v7676 = vld [vmem:[%s2 + $0x1810] sm:$0xff]
      %v7677 = vld [vmem:[%s2 + $0x1818] sm:$0xff]
      %v7678 = vld [vmem:[%s2 + $0x1820] sm:$0xff]
      %v7679 = vld [vmem:[%s2 + $0x1828] sm:$0xf]
      %v7680 = vld [vmem:[%s2 + $0x182c] sm:$0xff]
      %v7681 = vld [vmem:[%s2 + $0x1834] sm:$0xff]
      %v7682 = vld [vmem:[%s2 + $0x183c] sm:$0xff]
      %v7683 = vld [vmem:[%s2 + $0x1844] sm:$0xf]
      %v7684 = vld [vmem:[%s2 + $0x1848] sm:$0xff]
      %v7685 = vld [vmem:[%s2 + $0x1850] sm:$0xff]
      %v7686 = vld [vmem:[%s2 + $0x1858] sm:$0xff]
      %v7687 = vld [vmem:[%s2 + $0x1860] sm:$0xf]
      %v7688 = vld [vmem:[%s2 + $0x1864] sm:$0xff]
      %v7689 = vld [vmem:[%s2 + $0x186c] sm:$0xff]
      %v7690 = vld [vmem:[%s2 + $0x1874] sm:$0xff]
      %v7691 = vld [vmem:[%s2 + $0x187c] sm:$0xf]
      %v8588 = vunpack.c.l.b16 %v6796
      %v8589 = vunpack.c.h.b16 %v6796
      %v8590 = vunpack.c.l.b16 %v6797
      %v8591 = vunpack.c.h.b16 %v6797
      %v8592 = vunpack.c.l.b16 %v6798
      %v8593 = vunpack.c.h.b16 %v6798
      %v8594 = vunpack.c.l.b16 %v6799
      %v8595 = vunpack.c.l.b16 %v6800
      %v8596 = vunpack.c.h.b16 %v6800
      %v8597 = vunpack.c.l.b16 %v6801
      %v8598 = vunpack.c.h.b16 %v6801
      %v8599 = vunpack.c.l.b16 %v6802
      %v8600 = vunpack.c.h.b16 %v6802
      %v8601 = vunpack.c.l.b16 %v6803
      %v8602 = vunpack.c.l.b16 %v6804
      %v8603 = vunpack.c.h.b16 %v6804
      %v8604 = vunpack.c.l.b16 %v6805
      %v8605 = vunpack.c.h.b16 %v6805
      %v8606 = vunpack.c.l.b16 %v6806
      %v8607 = vunpack.c.h.b16 %v6806
      %v8608 = vunpack.c.l.b16 %v6807
      %v8609 = vunpack.c.l.b16 %v6808
      %v8610 = vunpack.c.h.b16 %v6808
      %v8611 = vunpack.c.l.b16 %v6809
      %v8612 = vunpack.c.h.b16 %v6809
      %v8613 = vunpack.c.l.b16 %v6810
      %v8614 = vunpack.c.h.b16 %v6810
      %v8615 = vunpack.c.l.b16 %v6811
      %v8616 = vunpack.c.l.b16 %v6812
      %v8617 = vunpack.c.h.b16 %v6812
      %v8618 = vunpack.c.l.b16 %v6813
      %v8619 = vunpack.c.h.b16 %v6813
      %v8620 = vunpack.c.l.b16 %v6814
      %v8621 = vunpack.c.h.b16 %v6814
      %v8622 = vunpack.c.l.b16 %v6815
      %v8623 = vunpack.c.l.b16 %v6816
      %v8624 = vunpack.c.h.b16 %v6816
      %v8625 = vunpack.c.l.b16 %v6817
      %v8626 = vunpack.c.h.b16 %v6817
      %v8627 = vunpack.c.l.b16 %v6818
      %v8628 = vunpack.c.h.b16 %v6818
      %v8629 = vunpack.c.l.b16 %v6819
      %v8630 = vunpack.c.l.b16 %v6820
      %v8631 = vunpack.c.h.b16 %v6820
      %v8632 = vunpack.c.l.b16 %v6821
      %v8633 = vunpack.c.h.b16 %v6821
      %v8634 = vunpack.c.l.b16 %v6822
      %v8635 = vunpack.c.h.b16 %v6822
      %v8636 = vunpack.c.l.b16 %v6823
      %v8637 = vunpack.c.l.b16 %v6824
      %v8638 = vunpack.c.h.b16 %v6824
      %v8639 = vunpack.c.l.b16 %v6825
      %v8640 = vunpack.c.h.b16 %v6825
      %v8641 = vunpack.c.l.b16 %v6826
      %v8642 = vunpack.c.h.b16 %v6826
      %v8643 = vunpack.c.l.b16 %v6827
      %v8644 = vunpack.c.l.b16 %v6828
      %v8645 = vunpack.c.h.b16 %v6828
      %v8646 = vunpack.c.l.b16 %v6829
      %v8647 = vunpack.c.h.b16 %v6829
      %v8648 = vunpack.c.l.b16 %v6830
      %v8649 = vunpack.c.h.b16 %v6830
      %v8650 = vunpack.c.l.b16 %v6831
      %v8651 = vunpack.c.l.b16 %v6832
      %v8652 = vunpack.c.h.b16 %v6832
      %v8653 = vunpack.c.l.b16 %v6833
      %v8654 = vunpack.c.h.b16 %v6833
      %v8655 = vunpack.c.l.b16 %v6834
      %v8656 = vunpack.c.h.b16 %v6834
      %v8657 = vunpack.c.l.b16 %v6835
      %v8658 = vunpack.c.l.b16 %v6836
      %v8659 = vunpack.c.h.b16 %v6836
      %v8660 = vunpack.c.l.b16 %v6837
      %v8661 = vunpack.c.h.b16 %v6837
      %v8662 = vunpack.c.l.b16 %v6838
      %v8663 = vunpack.c.h.b16 %v6838
      %v8664 = vunpack.c.l.b16 %v6839
      %v8665 = vunpack.c.l.b16 %v6840
      %v8666 = vunpack.c.h.b16 %v6840
      %v8667 = vunpack.c.l.b16 %v6841
      %v8668 = vunpack.c.h.b16 %v6841
      %v8669 = vunpack.c.l.b16 %v6842
      %v8670 = vunpack.c.h.b16 %v6842
      %v8671 = vunpack.c.l.b16 %v6843
      %v8672 = vunpack.c.l.b16 %v6844
      %v8673 = vunpack.c.h.b16 %v6844
      %v8674 = vunpack.c.l.b16 %v6845
      %v8675 = vunpack.c.h.b16 %v6845
      %v8676 = vunpack.c.l.b16 %v6846
      %v8677 = vunpack.c.h.b16 %v6846
      %v8678 = vunpack.c.l.b16 %v6847
      %v8679 = vunpack.c.l.b16 %v6848
      %v8680 = vunpack.c.h.b16 %v6848
      %v8681 = vunpack.c.l.b16 %v6849
      %v8682 = vunpack.c.h.b16 %v6849
      %v8683 = vunpack.c.l.b16 %v6850
      %v8684 = vunpack.c.h.b16 %v6850
      %v8685 = vunpack.c.l.b16 %v6851
      %v8686 = vunpack.c.l.b16 %v6852
      %v8687 = vunpack.c.h.b16 %v6852
      %v8688 = vunpack.c.l.b16 %v6853
      %v8689 = vunpack.c.h.b16 %v6853
      %v8690 = vunpack.c.l.b16 %v6854
      %v8691 = vunpack.c.h.b16 %v6854
      %v8692 = vunpack.c.l.b16 %v6855
      %v8693 = vunpack.c.l.b16 %v6856
      %v8694 = vunpack.c.h.b16 %v6856
      %v8695 = vunpack.c.l.b16 %v6857
      %v8696 = vunpack.c.h.b16 %v6857
      %v8697 = vunpack.c.l.b16 %v6858
      %v8698 = vunpack.c.h.b16 %v6858
      %v8699 = vunpack.c.l.b16 %v6859
      %v8700 = vunpack.c.l.b16 %v6860
      %v8701 = vunpack.c.h.b16 %v6860
      %v8702 = vunpack.c.l.b16 %v6861
      %v8703 = vunpack.c.h.b16 %v6861
      %v8704 = vunpack.c.l.b16 %v6862
      %v8705 = vunpack.c.h.b16 %v6862
      %v8706 = vunpack.c.l.b16 %v6863
      %v8707 = vunpack.c.l.b16 %v6864
      %v8708 = vunpack.c.h.b16 %v6864
      %v8709 = vunpack.c.l.b16 %v6865
      %v8710 = vunpack.c.h.b16 %v6865
      %v8711 = vunpack.c.l.b16 %v6866
      %v8712 = vunpack.c.h.b16 %v6866
      %v8713 = vunpack.c.l.b16 %v6867
      %v8714 = vunpack.c.l.b16 %v6868
      %v8715 = vunpack.c.h.b16 %v6868
      %v8716 = vunpack.c.l.b16 %v6869
      %v8717 = vunpack.c.h.b16 %v6869
      %v8718 = vunpack.c.l.b16 %v6870
      %v8719 = vunpack.c.h.b16 %v6870
      %v8720 = vunpack.c.l.b16 %v6871
      %v8721 = vunpack.c.l.b16 %v6872
      %v8722 = vunpack.c.h.b16 %v6872
      %v8723 = vunpack.c.l.b16 %v6873
      %v8724 = vunpack.c.h.b16 %v6873
      %v8725 = vunpack.c.l.b16 %v6874
      %v8726 = vunpack.c.h.b16 %v6874
      %v8727 = vunpack.c.l.b16 %v6875
      %v8728 = vunpack.c.l.b16 %v6876
      %v8729 = vunpack.c.h.b16 %v6876
      %v8730 = vunpack.c.l.b16 %v6877
      %v8731 = vunpack.c.h.b16 %v6877
      %v8732 = vunpack.c.l.b16 %v6878
      %v8733 = vunpack.c.h.b16 %v6878
      %v8734 = vunpack.c.l.b16 %v6879
      %v8735 = vunpack.c.l.b16 %v6880
      %v8736 = vunpack.c.h.b16 %v6880
      %v8737 = vunpack.c.l.b16 %v6881
      %v8738 = vunpack.c.h.b16 %v6881
      %v8739 = vunpack.c.l.b16 %v6882
      %v8740 = vunpack.c.h.b16 %v6882
      %v8741 = vunpack.c.l.b16 %v6883
      %v8742 = vunpack.c.l.b16 %v6884
      %v8743 = vunpack.c.h.b16 %v6884
      %v8744 = vunpack.c.l.b16 %v6885
      %v8745 = vunpack.c.h.b16 %v6885
      %v8746 = vunpack.c.l.b16 %v6886
      %v8747 = vunpack.c.h.b16 %v6886
      %v8748 = vunpack.c.l.b16 %v6887
      %v8749 = vunpack.c.l.b16 %v6888
      %v8750 = vunpack.c.h.b16 %v6888
      %v8751 = vunpack.c.l.b16 %v6889
      %v8752 = vunpack.c.h.b16 %v6889
      %v8753 = vunpack.c.l.b16 %v6890
      %v8754 = vunpack.c.h.b16 %v6890
      %v8755 = vunpack.c.l.b16 %v6891
      %v8756 = vunpack.c.l.b16 %v6892
      %v8757 = vunpack.c.h.b16 %v6892
      %v8758 = vunpack.c.l.b16 %v6893
      %v8759 = vunpack.c.h.b16 %v6893
      %v8760 = vunpack.c.l.b16 %v6894
      %v8761 = vunpack.c.h.b16 %v6894
      %v8762 = vunpack.c.l.b16 %v6895
      %v8763 = vunpack.c.l.b16 %v6896
      %v8764 = vunpack.c.h.b16 %v6896
      %v8765 = vunpack.c.l.b16 %v6897
      %v8766 = vunpack.c.h.b16 %v6897
      %v8767 = vunpack.c.l.b16 %v6898
      %v8768 = vunpack.c.h.b16 %v6898
      %v8769 = vunpack.c.l.b16 %v6899
      %v8770 = vunpack.c.l.b16 %v6900
      %v8771 = vunpack.c.h.b16 %v6900
      %v8772 = vunpack.c.l.b16 %v6901
      %v8773 = vunpack.c.h.b16 %v6901
      %v8774 = vunpack.c.l.b16 %v6902
      %v8775 = vunpack.c.h.b16 %v6902
      %v8776 = vunpack.c.l.b16 %v6903
      %v8777 = vunpack.c.l.b16 %v6904
      %v8778 = vunpack.c.h.b16 %v6904
      %v8779 = vunpack.c.l.b16 %v6905
      %v8780 = vunpack.c.h.b16 %v6905
      %v8781 = vunpack.c.l.b16 %v6906
      %v8782 = vunpack.c.h.b16 %v6906
      %v8783 = vunpack.c.l.b16 %v6907
      %v8784 = vunpack.c.l.b16 %v6908
      %v8785 = vunpack.c.h.b16 %v6908
      %v8786 = vunpack.c.l.b16 %v6909
      %v8787 = vunpack.c.h.b16 %v6909
      %v8788 = vunpack.c.l.b16 %v6910
      %v8789 = vunpack.c.h.b16 %v6910
      %v8790 = vunpack.c.l.b16 %v6911
      %v8791 = vunpack.c.l.b16 %v6912
      %v8792 = vunpack.c.h.b16 %v6912
      %v8793 = vunpack.c.l.b16 %v6913
      %v8794 = vunpack.c.h.b16 %v6913
      %v8795 = vunpack.c.l.b16 %v6914
      %v8796 = vunpack.c.h.b16 %v6914
      %v8797 = vunpack.c.l.b16 %v6915
      %v8798 = vunpack.c.l.b16 %v6916
      %v8799 = vunpack.c.h.b16 %v6916
      %v8800 = vunpack.c.l.b16 %v6917
      %v8801 = vunpack.c.h.b16 %v6917
      %v8802 = vunpack.c.l.b16 %v6918
      %v8803 = vunpack.c.h.b16 %v6918
      %v8804 = vunpack.c.l.b16 %v6919
      %v8805 = vunpack.c.l.b16 %v6920
      %v8806 = vunpack.c.h.b16 %v6920
      %v8807 = vunpack.c.l.b16 %v6921
      %v8808 = vunpack.c.h.b16 %v6921
      %v8809 = vunpack.c.l.b16 %v6922
      %v8810 = vunpack.c.h.b16 %v6922
      %v8811 = vunpack.c.l.b16 %v6923
      %v8812 = vunpack.c.l.b16 %v6924
      %v8813 = vunpack.c.h.b16 %v6924
      %v8814 = vunpack.c.l.b16 %v6925
      %v8815 = vunpack.c.h.b16 %v6925
      %v8816 = vunpack.c.l.b16 %v6926
      %v8817 = vunpack.c.h.b16 %v6926
      %v8818 = vunpack.c.l.b16 %v6927
      %v8819 = vunpack.c.l.b16 %v6928
      %v8820 = vunpack.c.h.b16 %v6928
      %v8821 = vunpack.c.l.b16 %v6929
      %v8822 = vunpack.c.h.b16 %v6929
      %v8823 = vunpack.c.l.b16 %v6930
      %v8824 = vunpack.c.h.b16 %v6930
      %v8825 = vunpack.c.l.b16 %v6931
      %v8826 = vunpack.c.l.b16 %v6932
      %v8827 = vunpack.c.h.b16 %v6932
      %v8828 = vunpack.c.l.b16 %v6933
      %v8829 = vunpack.c.h.b16 %v6933
      %v8830 = vunpack.c.l.b16 %v6934
      %v8831 = vunpack.c.h.b16 %v6934
      %v8832 = vunpack.c.l.b16 %v6935
      %v8833 = vunpack.c.l.b16 %v6936
      %v8834 = vunpack.c.h.b16 %v6936
      %v8835 = vunpack.c.l.b16 %v6937
      %v8836 = vunpack.c.h.b16 %v6937
      %v8837 = vunpack.c.l.b16 %v6938
      %v8838 = vunpack.c.h.b16 %v6938
      %v8839 = vunpack.c.l.b16 %v6939
      %v8840 = vunpack.c.l.b16 %v6940
      %v8841 = vunpack.c.h.b16 %v6940
      %v8842 = vunpack.c.l.b16 %v6941
      %v8843 = vunpack.c.h.b16 %v6941
      %v8844 = vunpack.c.l.b16 %v6942
      %v8845 = vunpack.c.h.b16 %v6942
      %v8846 = vunpack.c.l.b16 %v6943
      %v8847 = vunpack.c.l.b16 %v6944
      %v8848 = vunpack.c.h.b16 %v6944
      %v8849 = vunpack.c.l.b16 %v6945
      %v8850 = vunpack.c.h.b16 %v6945
      %v8851 = vunpack.c.l.b16 %v6946
      %v8852 = vunpack.c.h.b16 %v6946
      %v8853 = vunpack.c.l.b16 %v6947
      %v8854 = vunpack.c.l.b16 %v6948
      %v8855 = vunpack.c.h.b16 %v6948
      %v8856 = vunpack.c.l.b16 %v6949
      %v8857 = vunpack.c.h.b16 %v6949
      %v8858 = vunpack.c.l.b16 %v6950
      %v8859 = vunpack.c.h.b16 %v6950
      %v8860 = vunpack.c.l.b16 %v6951
      %v8861 = vunpack.c.l.b16 %v6952
      %v8862 = vunpack.c.h.b16 %v6952
      %v8863 = vunpack.c.l.b16 %v6953
      %v8864 = vunpack.c.h.b16 %v6953
      %v8865 = vunpack.c.l.b16 %v6954
      %v8866 = vunpack.c.h.b16 %v6954
      %v8867 = vunpack.c.l.b16 %v6955
      %v8868 = vunpack.c.l.b16 %v6956
      %v8869 = vunpack.c.h.b16 %v6956
      %v8870 = vunpack.c.l.b16 %v6957
      %v8871 = vunpack.c.h.b16 %v6957
      %v8872 = vunpack.c.l.b16 %v6958
      %v8873 = vunpack.c.h.b16 %v6958
      %v8874 = vunpack.c.l.b16 %v6959
      %v8875 = vunpack.c.l.b16 %v6960
      %v8876 = vunpack.c.h.b16 %v6960
      %v8877 = vunpack.c.l.b16 %v6961
      %v8878 = vunpack.c.h.b16 %v6961
      %v8879 = vunpack.c.l.b16 %v6962
      %v8880 = vunpack.c.h.b16 %v6962
      %v8881 = vunpack.c.l.b16 %v6963
      %v8882 = vunpack.c.l.b16 %v6964
      %v8883 = vunpack.c.h.b16 %v6964
      %v8884 = vunpack.c.l.b16 %v6965
      %v8885 = vunpack.c.h.b16 %v6965
      %v8886 = vunpack.c.l.b16 %v6966
      %v8887 = vunpack.c.h.b16 %v6966
      %v8888 = vunpack.c.l.b16 %v6967
      %v8889 = vunpack.c.l.b16 %v6968
      %v8890 = vunpack.c.h.b16 %v6968
      %v8891 = vunpack.c.l.b16 %v6969
      %v8892 = vunpack.c.h.b16 %v6969
      %v8893 = vunpack.c.l.b16 %v6970
      %v8894 = vunpack.c.h.b16 %v6970
      %v8895 = vunpack.c.l.b16 %v6971
      %v8896 = vunpack.c.l.b16 %v6972
      %v8897 = vunpack.c.h.b16 %v6972
      %v8898 = vunpack.c.l.b16 %v6973
      %v8899 = vunpack.c.h.b16 %v6973
      %v8900 = vunpack.c.l.b16 %v6974
      %v8901 = vunpack.c.h.b16 %v6974
      %v8902 = vunpack.c.l.b16 %v6975
      %v8903 = vunpack.c.l.b16 %v6976
      %v8904 = vunpack.c.h.b16 %v6976
      %v8905 = vunpack.c.l.b16 %v6977
      %v8906 = vunpack.c.h.b16 %v6977
      %v8907 = vunpack.c.l.b16 %v6978
      %v8908 = vunpack.c.h.b16 %v6978
      %v8909 = vunpack.c.l.b16 %v6979
      %v8910 = vunpack.c.l.b16 %v6980
      %v8911 = vunpack.c.h.b16 %v6980
      %v8912 = vunpack.c.l.b16 %v6981
      %v8913 = vunpack.c.h.b16 %v6981
      %v8914 = vunpack.c.l.b16 %v6982
      %v8915 = vunpack.c.h.b16 %v6982
      %v8916 = vunpack.c.l.b16 %v6983
      %v8917 = vunpack.c.l.b16 %v6984
      %v8918 = vunpack.c.h.b16 %v6984
      %v8919 = vunpack.c.l.b16 %v6985
      %v8920 = vunpack.c.h.b16 %v6985
      %v8921 = vunpack.c.l.b16 %v6986
      %v8922 = vunpack.c.h.b16 %v6986
      %v8923 = vunpack.c.l.b16 %v6987
      %v8924 = vunpack.c.l.b16 %v6988
      %v8925 = vunpack.c.h.b16 %v6988
      %v8926 = vunpack.c.l.b16 %v6989
      %v8927 = vunpack.c.h.b16 %v6989
      %v8928 = vunpack.c.l.b16 %v6990
      %v8929 = vunpack.c.h.b16 %v6990
      %v8930 = vunpack.c.l.b16 %v6991
      %v8931 = vunpack.c.l.b16 %v6992
      %v8932 = vunpack.c.h.b16 %v6992
      %v8933 = vunpack.c.l.b16 %v6993
      %v8934 = vunpack.c.h.b16 %v6993
      %v8935 = vunpack.c.l.b16 %v6994
      %v8936 = vunpack.c.h.b16 %v6994
      %v8937 = vunpack.c.l.b16 %v6995
      %v8938 = vunpack.c.l.b16 %v6996
      %v8939 = vunpack.c.h.b16 %v6996
      %v8940 = vunpack.c.l.b16 %v6997
      %v8941 = vunpack.c.h.b16 %v6997
      %v8942 = vunpack.c.l.b16 %v6998
      %v8943 = vunpack.c.h.b16 %v6998
      %v8944 = vunpack.c.l.b16 %v6999
      %v8945 = vunpack.c.l.b16 %v7000
      %v8946 = vunpack.c.h.b16 %v7000
      %v8947 = vunpack.c.l.b16 %v7001
      %v8948 = vunpack.c.h.b16 %v7001
      %v8949 = vunpack.c.l.b16 %v7002
      %v8950 = vunpack.c.h.b16 %v7002
      %v8951 = vunpack.c.l.b16 %v7003
      %v8952 = vunpack.c.l.b16 %v7004
      %v8953 = vunpack.c.h.b16 %v7004
      %v8954 = vunpack.c.l.b16 %v7005
      %v8955 = vunpack.c.h.b16 %v7005
      %v8956 = vunpack.c.l.b16 %v7006
      %v8957 = vunpack.c.h.b16 %v7006
      %v8958 = vunpack.c.l.b16 %v7007
      %v8959 = vunpack.c.l.b16 %v7008
      %v8960 = vunpack.c.h.b16 %v7008
      %v8961 = vunpack.c.l.b16 %v7009
      %v8962 = vunpack.c.h.b16 %v7009
      %v8963 = vunpack.c.l.b16 %v7010
      %v8964 = vunpack.c.h.b16 %v7010
      %v8965 = vunpack.c.l.b16 %v7011
      %v8966 = vunpack.c.l.b16 %v7012
      %v8967 = vunpack.c.h.b16 %v7012
      %v8968 = vunpack.c.l.b16 %v7013
      %v8969 = vunpack.c.h.b16 %v7013
      %v8970 = vunpack.c.l.b16 %v7014
      %v8971 = vunpack.c.h.b16 %v7014
      %v8972 = vunpack.c.l.b16 %v7015
      %v8973 = vunpack.c.l.b16 %v7016
      %v8974 = vunpack.c.h.b16 %v7016
      %v8975 = vunpack.c.l.b16 %v7017
      %v8976 = vunpack.c.h.b16 %v7017
      %v8977 = vunpack.c.l.b16 %v7018
      %v8978 = vunpack.c.h.b16 %v7018
      %v8979 = vunpack.c.l.b16 %v7019
      %v8980 = vunpack.c.l.b16 %v7020
      %v8981 = vunpack.c.h.b16 %v7020
      %v8982 = vunpack.c.l.b16 %v7021
      %v8983 = vunpack.c.h.b16 %v7021
      %v8984 = vunpack.c.l.b16 %v7022
      %v8985 = vunpack.c.h.b16 %v7022
      %v8986 = vunpack.c.l.b16 %v7023
      %v8987 = vunpack.c.l.b16 %v7024
      %v8988 = vunpack.c.h.b16 %v7024
      %v8989 = vunpack.c.l.b16 %v7025
      %v8990 = vunpack.c.h.b16 %v7025
      %v8991 = vunpack.c.l.b16 %v7026
      %v8992 = vunpack.c.h.b16 %v7026
      %v8993 = vunpack.c.l.b16 %v7027
      %v8994 = vunpack.c.l.b16 %v7028
      %v8995 = vunpack.c.h.b16 %v7028
      %v8996 = vunpack.c.l.b16 %v7029
      %v8997 = vunpack.c.h.b16 %v7029
      %v8998 = vunpack.c.l.b16 %v7030
      %v8999 = vunpack.c.h.b16 %v7030
      %v9000 = vunpack.c.l.b16 %v7031
      %v9001 = vunpack.c.l.b16 %v7032
      %v9002 = vunpack.c.h.b16 %v7032
      %v9003 = vunpack.c.l.b16 %v7033
      %v9004 = vunpack.c.h.b16 %v7033
      %v9005 = vunpack.c.l.b16 %v7034
      %v9006 = vunpack.c.h.b16 %v7034
      %v9007 = vunpack.c.l.b16 %v7035
      %v9008 = vunpack.c.l.b16 %v7036
      %v9009 = vunpack.c.h.b16 %v7036
      %v9010 = vunpack.c.l.b16 %v7037
      %v9011 = vunpack.c.h.b16 %v7037
      %v9012 = vunpack.c.l.b16 %v7038
      %v9013 = vunpack.c.h.b16 %v7038
      %v9014 = vunpack.c.l.b16 %v7039
      %v9015 = vunpack.c.l.b16 %v7040
      %v9016 = vunpack.c.h.b16 %v7040
      %v9017 = vunpack.c.l.b16 %v7041
      %v9018 = vunpack.c.h.b16 %v7041
      %v9019 = vunpack.c.l.b16 %v7042
      %v9020 = vunpack.c.h.b16 %v7042
      %v9021 = vunpack.c.l.b16 %v7043
      %v9022 = vunpack.c.l.b16 %v7044
      %v9023 = vunpack.c.h.b16 %v7044
      %v9024 = vunpack.c.l.b16 %v7045
      %v9025 = vunpack.c.h.b16 %v7045
      %v9026 = vunpack.c.l.b16 %v7046
      %v9027 = vunpack.c.h.b16 %v7046
      %v9028 = vunpack.c.l.b16 %v7047
      %v9029 = vunpack.c.l.b16 %v7048
      %v9030 = vunpack.c.h.b16 %v7048
      %v9031 = vunpack.c.l.b16 %v7049
      %v9032 = vunpack.c.h.b16 %v7049
      %v9033 = vunpack.c.l.b16 %v7050
      %v9034 = vunpack.c.h.b16 %v7050
      %v9035 = vunpack.c.l.b16 %v7051
      %v9036 = vunpack.c.l.b16 %v7052
      %v9037 = vunpack.c.h.b16 %v7052
      %v9038 = vunpack.c.l.b16 %v7053
      %v9039 = vunpack.c.h.b16 %v7053
      %v9040 = vunpack.c.l.b16 %v7054
      %v9041 = vunpack.c.h.b16 %v7054
      %v9042 = vunpack.c.l.b16 %v7055
      %v9043 = vunpack.c.l.b16 %v7056
      %v9044 = vunpack.c.h.b16 %v7056
      %v9045 = vunpack.c.l.b16 %v7057
      %v9046 = vunpack.c.h.b16 %v7057
      %v9047 = vunpack.c.l.b16 %v7058
      %v9048 = vunpack.c.h.b16 %v7058
      %v9049 = vunpack.c.l.b16 %v7059
      %v9050 = vunpack.c.l.b16 %v7060
      %v9051 = vunpack.c.h.b16 %v7060
      %v9052 = vunpack.c.l.b16 %v7061
      %v9053 = vunpack.c.h.b16 %v7061
      %v9054 = vunpack.c.l.b16 %v7062
      %v9055 = vunpack.c.h.b16 %v7062
      %v9056 = vunpack.c.l.b16 %v7063
      %v9057 = vunpack.c.l.b16 %v7064
      %v9058 = vunpack.c.h.b16 %v7064
      %v9059 = vunpack.c.l.b16 %v7065
      %v9060 = vunpack.c.h.b16 %v7065
      %v9061 = vunpack.c.l.b16 %v7066
      %v9062 = vunpack.c.h.b16 %v7066
      %v9063 = vunpack.c.l.b16 %v7067
      %v9064 = vunpack.c.l.b16 %v7068
      %v9065 = vunpack.c.h.b16 %v7068
      %v9066 = vunpack.c.l.b16 %v7069
      %v9067 = vunpack.c.h.b16 %v7069
      %v9068 = vunpack.c.l.b16 %v7070
      %v9069 = vunpack.c.h.b16 %v7070
      %v9070 = vunpack.c.l.b16 %v7071
      %v9071 = vunpack.c.l.b16 %v7072
      %v9072 = vunpack.c.h.b16 %v7072
      %v9073 = vunpack.c.l.b16 %v7073
      %v9074 = vunpack.c.h.b16 %v7073
      %v9075 = vunpack.c.l.b16 %v7074
      %v9076 = vunpack.c.h.b16 %v7074
      %v9077 = vunpack.c.l.b16 %v7075
      %v9078 = vunpack.c.l.b16 %v7076
      %v9079 = vunpack.c.h.b16 %v7076
      %v9080 = vunpack.c.l.b16 %v7077
      %v9081 = vunpack.c.h.b16 %v7077
      %v9082 = vunpack.c.l.b16 %v7078
      %v9083 = vunpack.c.h.b16 %v7078
      %v9084 = vunpack.c.l.b16 %v7079
      %v9085 = vunpack.c.l.b16 %v7080
      %v9086 = vunpack.c.h.b16 %v7080
      %v9087 = vunpack.c.l.b16 %v7081
      %v9088 = vunpack.c.h.b16 %v7081
      %v9089 = vunpack.c.l.b16 %v7082
      %v9090 = vunpack.c.h.b16 %v7082
      %v9091 = vunpack.c.l.b16 %v7083
      %v9092 = vunpack.c.l.b16 %v7084
      %v9093 = vunpack.c.h.b16 %v7084
      %v9094 = vunpack.c.l.b16 %v7085
      %v9095 = vunpack.c.h.b16 %v7085
      %v9096 = vunpack.c.l.b16 %v7086
      %v9097 = vunpack.c.h.b16 %v7086
      %v9098 = vunpack.c.l.b16 %v7087
      %v9099 = vunpack.c.l.b16 %v7088
      %v9100 = vunpack.c.h.b16 %v7088
      %v9101 = vunpack.c.l.b16 %v7089
      %v9102 = vunpack.c.h.b16 %v7089
      %v9103 = vunpack.c.l.b16 %v7090
      %v9104 = vunpack.c.h.b16 %v7090
      %v9105 = vunpack.c.l.b16 %v7091
      %v9106 = vunpack.c.l.b16 %v7092
      %v9107 = vunpack.c.h.b16 %v7092
      %v9108 = vunpack.c.l.b16 %v7093
      %v9109 = vunpack.c.h.b16 %v7093
      %v9110 = vunpack.c.l.b16 %v7094
      %v9111 = vunpack.c.h.b16 %v7094
      %v9112 = vunpack.c.l.b16 %v7095
      %v9113 = vunpack.c.l.b16 %v7096
      %v9114 = vunpack.c.h.b16 %v7096
      %v9115 = vunpack.c.l.b16 %v7097
      %v9116 = vunpack.c.h.b16 %v7097
      %v9117 = vunpack.c.l.b16 %v7098
      %v9118 = vunpack.c.h.b16 %v7098
      %v9119 = vunpack.c.l.b16 %v7099
      %v9120 = vunpack.c.l.b16 %v7100
      %v9121 = vunpack.c.h.b16 %v7100
      %v9122 = vunpack.c.l.b16 %v7101
      %v9123 = vunpack.c.h.b16 %v7101
      %v9124 = vunpack.c.l.b16 %v7102
      %v9125 = vunpack.c.h.b16 %v7102
      %v9126 = vunpack.c.l.b16 %v7103
      %v9127 = vunpack.c.l.b16 %v7104
      %v9128 = vunpack.c.h.b16 %v7104
      %v9129 = vunpack.c.l.b16 %v7105
      %v9130 = vunpack.c.h.b16 %v7105
      %v9131 = vunpack.c.l.b16 %v7106
      %v9132 = vunpack.c.h.b16 %v7106
      %v9133 = vunpack.c.l.b16 %v7107
      %v9134 = vunpack.c.l.b16 %v7108
      %v9135 = vunpack.c.h.b16 %v7108
      %v9136 = vunpack.c.l.b16 %v7109
      %v9137 = vunpack.c.h.b16 %v7109
      %v9138 = vunpack.c.l.b16 %v7110
      %v9139 = vunpack.c.h.b16 %v7110
      %v9140 = vunpack.c.l.b16 %v7111
      %v9141 = vunpack.c.l.b16 %v7112
      %v9142 = vunpack.c.h.b16 %v7112
      %v9143 = vunpack.c.l.b16 %v7113
      %v9144 = vunpack.c.h.b16 %v7113
      %v9145 = vunpack.c.l.b16 %v7114
      %v9146 = vunpack.c.h.b16 %v7114
      %v9147 = vunpack.c.l.b16 %v7115
      %v9148 = vunpack.c.l.b16 %v7116
      %v9149 = vunpack.c.h.b16 %v7116
      %v9150 = vunpack.c.l.b16 %v7117
      %v9151 = vunpack.c.h.b16 %v7117
      %v9152 = vunpack.c.l.b16 %v7118
      %v9153 = vunpack.c.h.b16 %v7118
      %v9154 = vunpack.c.l.b16 %v7119
      %v9155 = vunpack.c.l.b16 %v7120
      %v9156 = vunpack.c.h.b16 %v7120
      %v9157 = vunpack.c.l.b16 %v7121
      %v9158 = vunpack.c.h.b16 %v7121
      %v9159 = vunpack.c.l.b16 %v7122
      %v9160 = vunpack.c.h.b16 %v7122
      %v9161 = vunpack.c.l.b16 %v7123
      %v9162 = vunpack.c.l.b16 %v7124
      %v9163 = vunpack.c.h.b16 %v7124
      %v9164 = vunpack.c.l.b16 %v7125
      %v9165 = vunpack.c.h.b16 %v7125
      %v9166 = vunpack.c.l.b16 %v7126
      %v9167 = vunpack.c.h.b16 %v7126
      %v9168 = vunpack.c.l.b16 %v7127
      %v9169 = vunpack.c.l.b16 %v7128
      %v9170 = vunpack.c.h.b16 %v7128
      %v9171 = vunpack.c.l.b16 %v7129
      %v9172 = vunpack.c.h.b16 %v7129
      %v9173 = vunpack.c.l.b16 %v7130
      %v9174 = vunpack.c.h.b16 %v7130
      %v9175 = vunpack.c.l.b16 %v7131
      %v9176 = vunpack.c.l.b16 %v7132
      %v9177 = vunpack.c.h.b16 %v7132
      %v9178 = vunpack.c.l.b16 %v7133
      %v9179 = vunpack.c.h.b16 %v7133
      %v9180 = vunpack.c.l.b16 %v7134
      %v9181 = vunpack.c.h.b16 %v7134
      %v9182 = vunpack.c.l.b16 %v7135
      %v9183 = vunpack.c.l.b16 %v7136
      %v9184 = vunpack.c.h.b16 %v7136
      %v9185 = vunpack.c.l.b16 %v7137
      %v9186 = vunpack.c.h.b16 %v7137
      %v9187 = vunpack.c.l.b16 %v7138
      %v9188 = vunpack.c.h.b16 %v7138
      %v9189 = vunpack.c.l.b16 %v7139
      %v9190 = vunpack.c.l.b16 %v7140
      %v9191 = vunpack.c.h.b16 %v7140
      %v9192 = vunpack.c.l.b16 %v7141
      %v9193 = vunpack.c.h.b16 %v7141
      %v9194 = vunpack.c.l.b16 %v7142
      %v9195 = vunpack.c.h.b16 %v7142
      %v9196 = vunpack.c.l.b16 %v7143
      %v9197 = vunpack.c.l.b16 %v7144
      %v9198 = vunpack.c.h.b16 %v7144
      %v9199 = vunpack.c.l.b16 %v7145
      %v9200 = vunpack.c.h.b16 %v7145
      %v9201 = vunpack.c.l.b16 %v7146
      %v9202 = vunpack.c.h.b16 %v7146
      %v9203 = vunpack.c.l.b16 %v7147
      %v9204 = vunpack.c.l.b16 %v7148
      %v9205 = vunpack.c.h.b16 %v7148
      %v9206 = vunpack.c.l.b16 %v7149
      %v9207 = vunpack.c.h.b16 %v7149
      %v9208 = vunpack.c.l.b16 %v7150
      %v9209 = vunpack.c.h.b16 %v7150
      %v9210 = vunpack.c.l.b16 %v7151
      %v9211 = vunpack.c.l.b16 %v7152
      %v9212 = vunpack.c.h.b16 %v7152
      %v9213 = vunpack.c.l.b16 %v7153
      %v9214 = vunpack.c.h.b16 %v7153
      %v9215 = vunpack.c.l.b16 %v7154
      %v9216 = vunpack.c.h.b16 %v7154
      %v9217 = vunpack.c.l.b16 %v7155
      %v9218 = vunpack.c.l.b16 %v7156
      %v9219 = vunpack.c.h.b16 %v7156
      %v9220 = vunpack.c.l.b16 %v7157
      %v9221 = vunpack.c.h.b16 %v7157
      %v9222 = vunpack.c.l.b16 %v7158
      %v9223 = vunpack.c.h.b16 %v7158
      %v9224 = vunpack.c.l.b16 %v7159
      %v9225 = vunpack.c.l.b16 %v7160
      %v9226 = vunpack.c.h.b16 %v7160
      %v9227 = vunpack.c.l.b16 %v7161
      %v9228 = vunpack.c.h.b16 %v7161
      %v9229 = vunpack.c.l.b16 %v7162
      %v9230 = vunpack.c.h.b16 %v7162
      %v9231 = vunpack.c.l.b16 %v7163
      %v9232 = vunpack.c.l.b16 %v7164
      %v9233 = vunpack.c.h.b16 %v7164
      %v9234 = vunpack.c.l.b16 %v7165
      %v9235 = vunpack.c.h.b16 %v7165
      %v9236 = vunpack.c.l.b16 %v7166
      %v9237 = vunpack.c.h.b16 %v7166
      %v9238 = vunpack.c.l.b16 %v7167
      %v9239 = vunpack.c.l.b16 %v7168
      %v9240 = vunpack.c.h.b16 %v7168
      %v9241 = vunpack.c.l.b16 %v7169
      %v9242 = vunpack.c.h.b16 %v7169
      %v9243 = vunpack.c.l.b16 %v7170
      %v9244 = vunpack.c.h.b16 %v7170
      %v9245 = vunpack.c.l.b16 %v7171
      %v9246 = vunpack.c.l.b16 %v7172
      %v9247 = vunpack.c.h.b16 %v7172
      %v9248 = vunpack.c.l.b16 %v7173
      %v9249 = vunpack.c.h.b16 %v7173
      %v9250 = vunpack.c.l.b16 %v7174
      %v9251 = vunpack.c.h.b16 %v7174
      %v9252 = vunpack.c.l.b16 %v7175
      %v9253 = vunpack.c.l.b16 %v7176
      %v9254 = vunpack.c.h.b16 %v7176
      %v9255 = vunpack.c.l.b16 %v7177
      %v9256 = vunpack.c.h.b16 %v7177
      %v9257 = vunpack.c.l.b16 %v7178
      %v9258 = vunpack.c.h.b16 %v7178
      %v9259 = vunpack.c.l.b16 %v7179
      %v9260 = vunpack.c.l.b16 %v7180
      %v9261 = vunpack.c.h.b16 %v7180
      %v9262 = vunpack.c.l.b16 %v7181
      %v9263 = vunpack.c.h.b16 %v7181
      %v9264 = vunpack.c.l.b16 %v7182
      %v9265 = vunpack.c.h.b16 %v7182
      %v9266 = vunpack.c.l.b16 %v7183
      %v9267 = vunpack.c.l.b16 %v7184
      %v9268 = vunpack.c.h.b16 %v7184
      %v9269 = vunpack.c.l.b16 %v7185
      %v9270 = vunpack.c.h.b16 %v7185
      %v9271 = vunpack.c.l.b16 %v7186
      %v9272 = vunpack.c.h.b16 %v7186
      %v9273 = vunpack.c.l.b16 %v7187
      %v9274 = vunpack.c.l.b16 %v7188
      %v9275 = vunpack.c.h.b16 %v7188
      %v9276 = vunpack.c.l.b16 %v7189
      %v9277 = vunpack.c.h.b16 %v7189
      %v9278 = vunpack.c.l.b16 %v7190
      %v9279 = vunpack.c.h.b16 %v7190
      %v9280 = vunpack.c.l.b16 %v7191
      %v9281 = vunpack.c.l.b16 %v7192
      %v9282 = vunpack.c.h.b16 %v7192
      %v9283 = vunpack.c.l.b16 %v7193
      %v9284 = vunpack.c.h.b16 %v7193
      %v9285 = vunpack.c.l.b16 %v7194
      %v9286 = vunpack.c.h.b16 %v7194
      %v9287 = vunpack.c.l.b16 %v7195
      %v9288 = vunpack.c.l.b16 %v7196
      %v9289 = vunpack.c.h.b16 %v7196
      %v9290 = vunpack.c.l.b16 %v7197
      %v9291 = vunpack.c.h.b16 %v7197
      %v9292 = vunpack.c.l.b16 %v7198
      %v9293 = vunpack.c.h.b16 %v7198
      %v9294 = vunpack.c.l.b16 %v7199
      %v9295 = vunpack.c.l.b16 %v7200
      %v9296 = vunpack.c.h.b16 %v7200
      %v9297 = vunpack.c.l.b16 %v7201
      %v9298 = vunpack.c.h.b16 %v7201
      %v9299 = vunpack.c.l.b16 %v7202
      %v9300 = vunpack.c.h.b16 %v7202
      %v9301 = vunpack.c.l.b16 %v7203
      %v9302 = vunpack.c.l.b16 %v7204
      %v9303 = vunpack.c.h.b16 %v7204
      %v9304 = vunpack.c.l.b16 %v7205
      %v9305 = vunpack.c.h.b16 %v7205
      %v9306 = vunpack.c.l.b16 %v7206
      %v9307 = vunpack.c.h.b16 %v7206
      %v9308 = vunpack.c.l.b16 %v7207
      %v9309 = vunpack.c.l.b16 %v7208
      %v9310 = vunpack.c.h.b16 %v7208
      %v9311 = vunpack.c.l.b16 %v7209
      %v9312 = vunpack.c.h.b16 %v7209
      %v9313 = vunpack.c.l.b16 %v7210
      %v9314 = vunpack.c.h.b16 %v7210
      %v9315 = vunpack.c.l.b16 %v7211
      %v9316 = vunpack.c.l.b16 %v7212
      %v9317 = vunpack.c.h.b16 %v7212
      %v9318 = vunpack.c.l.b16 %v7213
      %v9319 = vunpack.c.h.b16 %v7213
      %v9320 = vunpack.c.l.b16 %v7214
      %v9321 = vunpack.c.h.b16 %v7214
      %v9322 = vunpack.c.l.b16 %v7215
      %v9323 = vunpack.c.l.b16 %v7216
      %v9324 = vunpack.c.h.b16 %v7216
      %v9325 = vunpack.c.l.b16 %v7217
      %v9326 = vunpack.c.h.b16 %v7217
      %v9327 = vunpack.c.l.b16 %v7218
      %v9328 = vunpack.c.h.b16 %v7218
      %v9329 = vunpack.c.l.b16 %v7219
      %v9330 = vunpack.c.l.b16 %v7220
      %v9331 = vunpack.c.h.b16 %v7220
      %v9332 = vunpack.c.l.b16 %v7221
      %v9333 = vunpack.c.h.b16 %v7221
      %v9334 = vunpack.c.l.b16 %v7222
      %v9335 = vunpack.c.h.b16 %v7222
      %v9336 = vunpack.c.l.b16 %v7223
      %v9337 = vunpack.c.l.b16 %v7224
      %v9338 = vunpack.c.h.b16 %v7224
      %v9339 = vunpack.c.l.b16 %v7225
      %v9340 = vunpack.c.h.b16 %v7225
      %v9341 = vunpack.c.l.b16 %v7226
      %v9342 = vunpack.c.h.b16 %v7226
      %v9343 = vunpack.c.l.b16 %v7227
      %v9344 = vunpack.c.l.b16 %v7228
      %v9345 = vunpack.c.h.b16 %v7228
      %v9346 = vunpack.c.l.b16 %v7229
      %v9347 = vunpack.c.h.b16 %v7229
      %v9348 = vunpack.c.l.b16 %v7230
      %v9349 = vunpack.c.h.b16 %v7230
      %v9350 = vunpack.c.l.b16 %v7231
      %v9351 = vunpack.c.l.b16 %v7232
      %v9352 = vunpack.c.h.b16 %v7232
      %v9353 = vunpack.c.l.b16 %v7233
      %v9354 = vunpack.c.h.b16 %v7233
      %v9355 = vunpack.c.l.b16 %v7234
      %v9356 = vunpack.c.h.b16 %v7234
      %v9357 = vunpack.c.l.b16 %v7235
      %v9358 = vunpack.c.l.b16 %v7236
      %v9359 = vunpack.c.h.b16 %v7236
      %v9360 = vunpack.c.l.b16 %v7237
      %v9361 = vunpack.c.h.b16 %v7237
      %v9362 = vunpack.c.l.b16 %v7238
      %v9363 = vunpack.c.h.b16 %v7238
      %v9364 = vunpack.c.l.b16 %v7239
      %v9365 = vunpack.c.l.b16 %v7240
      %v9366 = vunpack.c.h.b16 %v7240
      %v9367 = vunpack.c.l.b16 %v7241
      %v9368 = vunpack.c.h.b16 %v7241
      %v9369 = vunpack.c.l.b16 %v7242
      %v9370 = vunpack.c.h.b16 %v7242
      %v9371 = vunpack.c.l.b16 %v7243
      %v9372 = vunpack.c.l.b16 %v7244
      %v9373 = vunpack.c.h.b16 %v7244
      %v9374 = vunpack.c.l.b16 %v7245
      %v9375 = vunpack.c.h.b16 %v7245
      %v9376 = vunpack.c.l.b16 %v7246
      %v9377 = vunpack.c.h.b16 %v7246
      %v9378 = vunpack.c.l.b16 %v7247
      %v9379 = vunpack.c.l.b16 %v7248
      %v9380 = vunpack.c.h.b16 %v7248
      %v9381 = vunpack.c.l.b16 %v7249
      %v9382 = vunpack.c.h.b16 %v7249
      %v9383 = vunpack.c.l.b16 %v7250
      %v9384 = vunpack.c.h.b16 %v7250
      %v9385 = vunpack.c.l.b16 %v7251
      %v9386 = vunpack.c.l.b16 %v7252
      %v9387 = vunpack.c.h.b16 %v7252
      %v9388 = vunpack.c.l.b16 %v7253
      %v9389 = vunpack.c.h.b16 %v7253
      %v9390 = vunpack.c.l.b16 %v7254
      %v9391 = vunpack.c.h.b16 %v7254
      %v9392 = vunpack.c.l.b16 %v7255
      %v9393 = vunpack.c.l.b16 %v7256
      %v9394 = vunpack.c.h.b16 %v7256
      %v9395 = vunpack.c.l.b16 %v7257
      %v9396 = vunpack.c.h.b16 %v7257
      %v9397 = vunpack.c.l.b16 %v7258
      %v9398 = vunpack.c.h.b16 %v7258
      %v9399 = vunpack.c.l.b16 %v7259
      %v9400 = vunpack.c.l.b16 %v7260
      %v9401 = vunpack.c.h.b16 %v7260
      %v9402 = vunpack.c.l.b16 %v7261
      %v9403 = vunpack.c.h.b16 %v7261
      %v9404 = vunpack.c.l.b16 %v7262
      %v9405 = vunpack.c.h.b16 %v7262
      %v9406 = vunpack.c.l.b16 %v7263
      %v9407 = vunpack.c.l.b16 %v7264
      %v9408 = vunpack.c.h.b16 %v7264
      %v9409 = vunpack.c.l.b16 %v7265
      %v9410 = vunpack.c.h.b16 %v7265
      %v9411 = vunpack.c.l.b16 %v7266
      %v9412 = vunpack.c.h.b16 %v7266
      %v9413 = vunpack.c.l.b16 %v7267
      %v9414 = vunpack.c.l.b16 %v7268
      %v9415 = vunpack.c.h.b16 %v7268
      %v9416 = vunpack.c.l.b16 %v7269
      %v9417 = vunpack.c.h.b16 %v7269
      %v9418 = vunpack.c.l.b16 %v7270
      %v9419 = vunpack.c.h.b16 %v7270
      %v9420 = vunpack.c.l.b16 %v7271
      %v9421 = vunpack.c.l.b16 %v7272
      %v9422 = vunpack.c.h.b16 %v7272
      %v9423 = vunpack.c.l.b16 %v7273
      %v9424 = vunpack.c.h.b16 %v7273
      %v9425 = vunpack.c.l.b16 %v7274
      %v9426 = vunpack.c.h.b16 %v7274
      %v9427 = vunpack.c.l.b16 %v7275
      %v9428 = vunpack.c.l.b16 %v7276
      %v9429 = vunpack.c.h.b16 %v7276
      %v9430 = vunpack.c.l.b16 %v7277
      %v9431 = vunpack.c.h.b16 %v7277
      %v9432 = vunpack.c.l.b16 %v7278
      %v9433 = vunpack.c.h.b16 %v7278
      %v9434 = vunpack.c.l.b16 %v7279
      %v9435 = vunpack.c.l.b16 %v7280
      %v9436 = vunpack.c.h.b16 %v7280
      %v9437 = vunpack.c.l.b16 %v7281
      %v9438 = vunpack.c.h.b16 %v7281
      %v9439 = vunpack.c.l.b16 %v7282
      %v9440 = vunpack.c.h.b16 %v7282
      %v9441 = vunpack.c.l.b16 %v7283
      %v9442 = vunpack.c.l.b16 %v7284
      %v9443 = vunpack.c.h.b16 %v7284
      %v9444 = vunpack.c.l.b16 %v7285
      %v9445 = vunpack.c.h.b16 %v7285
      %v9446 = vunpack.c.l.b16 %v7286
      %v9447 = vunpack.c.h.b16 %v7286
      %v9448 = vunpack.c.l.b16 %v7287
      %v9449 = vunpack.c.l.b16 %v7288
      %v9450 = vunpack.c.h.b16 %v7288
      %v9451 = vunpack.c.l.b16 %v7289
      %v9452 = vunpack.c.h.b16 %v7289
      %v9453 = vunpack.c.l.b16 %v7290
      %v9454 = vunpack.c.h.b16 %v7290
      %v9455 = vunpack.c.l.b16 %v7291
      %v9456 = vunpack.c.l.b16 %v7292
      %v9457 = vunpack.c.h.b16 %v7292
      %v9458 = vunpack.c.l.b16 %v7293
      %v9459 = vunpack.c.h.b16 %v7293
      %v9460 = vunpack.c.l.b16 %v7294
      %v9461 = vunpack.c.h.b16 %v7294
      %v9462 = vunpack.c.l.b16 %v7295
      %v9463 = vunpack.c.l.b16 %v7296
      %v9464 = vunpack.c.h.b16 %v7296
      %v9465 = vunpack.c.l.b16 %v7297
      %v9466 = vunpack.c.h.b16 %v7297
      %v9467 = vunpack.c.l.b16 %v7298
      %v9468 = vunpack.c.h.b16 %v7298
      %v9469 = vunpack.c.l.b16 %v7299
      %v9470 = vunpack.c.l.b16 %v7300
      %v9471 = vunpack.c.h.b16 %v7300
      %v9472 = vunpack.c.l.b16 %v7301
      %v9473 = vunpack.c.h.b16 %v7301
      %v9474 = vunpack.c.l.b16 %v7302
      %v9475 = vunpack.c.h.b16 %v7302
      %v9476 = vunpack.c.l.b16 %v7303
      %v9477 = vunpack.c.l.b16 %v7304
      %v9478 = vunpack.c.h.b16 %v7304
      %v9479 = vunpack.c.l.b16 %v7305
      %v9480 = vunpack.c.h.b16 %v7305
      %v9481 = vunpack.c.l.b16 %v7306
      %v9482 = vunpack.c.h.b16 %v7306
      %v9483 = vunpack.c.l.b16 %v7307
      %v9484 = vunpack.c.l.b16 %v7308
      %v9485 = vunpack.c.h.b16 %v7308
      %v9486 = vunpack.c.l.b16 %v7309
      %v9487 = vunpack.c.h.b16 %v7309
      %v9488 = vunpack.c.l.b16 %v7310
      %v9489 = vunpack.c.h.b16 %v7310
      %v9490 = vunpack.c.l.b16 %v7311
      %v9491 = vunpack.c.l.b16 %v7312
      %v9492 = vunpack.c.h.b16 %v7312
      %v9493 = vunpack.c.l.b16 %v7313
      %v9494 = vunpack.c.h.b16 %v7313
      %v9495 = vunpack.c.l.b16 %v7314
      %v9496 = vunpack.c.h.b16 %v7314
      %v9497 = vunpack.c.l.b16 %v7315
      %v9498 = vunpack.c.l.b16 %v7316
      %v9499 = vunpack.c.h.b16 %v7316
      %v9500 = vunpack.c.l.b16 %v7317
      %v9501 = vunpack.c.h.b16 %v7317
      %v9502 = vunpack.c.l.b16 %v7318
      %v9503 = vunpack.c.h.b16 %v7318
      %v9504 = vunpack.c.l.b16 %v7319
      %v9505 = vunpack.c.l.b16 %v7320
      %v9506 = vunpack.c.h.b16 %v7320
      %v9507 = vunpack.c.l.b16 %v7321
      %v9508 = vunpack.c.h.b16 %v7321
      %v9509 = vunpack.c.l.b16 %v7322
      %v9510 = vunpack.c.h.b16 %v7322
      %v9511 = vunpack.c.l.b16 %v7323
      %v9512 = vunpack.c.l.b16 %v7324
      %v9513 = vunpack.c.h.b16 %v7324
      %v9514 = vunpack.c.l.b16 %v7325
      %v9515 = vunpack.c.h.b16 %v7325
      %v9516 = vunpack.c.l.b16 %v7326
      %v9517 = vunpack.c.h.b16 %v7326
      %v9518 = vunpack.c.l.b16 %v7327
      %v9519 = vunpack.c.l.b16 %v7328
      %v9520 = vunpack.c.h.b16 %v7328
      %v9521 = vunpack.c.l.b16 %v7329
      %v9522 = vunpack.c.h.b16 %v7329
      %v9523 = vunpack.c.l.b16 %v7330
      %v9524 = vunpack.c.h.b16 %v7330
      %v9525 = vunpack.c.l.b16 %v7331
      %v9526 = vunpack.c.l.b16 %v7332
      %v9527 = vunpack.c.h.b16 %v7332
      %v9528 = vunpack.c.l.b16 %v7333
      %v9529 = vunpack.c.h.b16 %v7333
      %v9530 = vunpack.c.l.b16 %v7334
      %v9531 = vunpack.c.h.b16 %v7334
      %v9532 = vunpack.c.l.b16 %v7335
      %v9533 = vunpack.c.l.b16 %v7336
      %v9534 = vunpack.c.h.b16 %v7336
      %v9535 = vunpack.c.l.b16 %v7337
      %v9536 = vunpack.c.h.b16 %v7337
      %v9537 = vunpack.c.l.b16 %v7338
      %v9538 = vunpack.c.h.b16 %v7338
      %v9539 = vunpack.c.l.b16 %v7339
      %v9540 = vunpack.c.l.b16 %v7340
      %v9541 = vunpack.c.h.b16 %v7340
      %v9542 = vunpack.c.l.b16 %v7341
      %v9543 = vunpack.c.h.b16 %v7341
      %v9544 = vunpack.c.l.b16 %v7342
      %v9545 = vunpack.c.h.b16 %v7342
      %v9546 = vunpack.c.l.b16 %v7343
      %v9547 = vunpack.c.l.b16 %v7344
      %v9548 = vunpack.c.h.b16 %v7344
      %v9549 = vunpack.c.l.b16 %v7345
      %v9550 = vunpack.c.h.b16 %v7345
      %v9551 = vunpack.c.l.b16 %v7346
      %v9552 = vunpack.c.h.b16 %v7346
      %v9553 = vunpack.c.l.b16 %v7347
      %v9554 = vunpack.c.l.b16 %v7348
      %v9555 = vunpack.c.h.b16 %v7348
      %v9556 = vunpack.c.l.b16 %v7349
      %v9557 = vunpack.c.h.b16 %v7349
      %v9558 = vunpack.c.l.b16 %v7350
      %v9559 = vunpack.c.h.b16 %v7350
      %v9560 = vunpack.c.l.b16 %v7351
      %v9561 = vunpack.c.l.b16 %v7352
      %v9562 = vunpack.c.h.b16 %v7352
      %v9563 = vunpack.c.l.b16 %v7353
      %v9564 = vunpack.c.h.b16 %v7353
      %v9565 = vunpack.c.l.b16 %v7354
      %v9566 = vunpack.c.h.b16 %v7354
      %v9567 = vunpack.c.l.b16 %v7355
      %v9568 = vunpack.c.l.b16 %v7356
      %v9569 = vunpack.c.h.b16 %v7356
      %v9570 = vunpack.c.l.b16 %v7357
      %v9571 = vunpack.c.h.b16 %v7357
      %v9572 = vunpack.c.l.b16 %v7358
      %v9573 = vunpack.c.h.b16 %v7358
      %v9574 = vunpack.c.l.b16 %v7359
      %v9575 = vunpack.c.l.b16 %v7360
      %v9576 = vunpack.c.h.b16 %v7360
      %v9577 = vunpack.c.l.b16 %v7361
      %v9578 = vunpack.c.h.b16 %v7361
      %v9579 = vunpack.c.l.b16 %v7362
      %v9580 = vunpack.c.h.b16 %v7362
      %v9581 = vunpack.c.l.b16 %v7363
      %v9582 = vunpack.c.l.b16 %v7364
      %v9583 = vunpack.c.h.b16 %v7364
      %v9584 = vunpack.c.l.b16 %v7365
      %v9585 = vunpack.c.h.b16 %v7365
      %v9586 = vunpack.c.l.b16 %v7366
      %v9587 = vunpack.c.h.b16 %v7366
      %v9588 = vunpack.c.l.b16 %v7367
      %v9589 = vunpack.c.l.b16 %v7368
      %v9590 = vunpack.c.h.b16 %v7368
      %v9591 = vunpack.c.l.b16 %v7369
      %v9592 = vunpack.c.h.b16 %v7369
      %v9593 = vunpack.c.l.b16 %v7370
      %v9594 = vunpack.c.h.b16 %v7370
      %v9595 = vunpack.c.l.b16 %v7371
      %v9596 = vunpack.c.l.b16 %v7372
      %v9597 = vunpack.c.h.b16 %v7372
      %v9598 = vunpack.c.l.b16 %v7373
      %v9599 = vunpack.c.h.b16 %v7373
      %v9600 = vunpack.c.l.b16 %v7374
      %v9601 = vunpack.c.h.b16 %v7374
      %v9602 = vunpack.c.l.b16 %v7375
      %v9603 = vunpack.c.l.b16 %v7376
      %v9604 = vunpack.c.h.b16 %v7376
      %v9605 = vunpack.c.l.b16 %v7377
      %v9606 = vunpack.c.h.b16 %v7377
      %v9607 = vunpack.c.l.b16 %v7378
      %v9608 = vunpack.c.h.b16 %v7378
      %v9609 = vunpack.c.l.b16 %v7379
      %v9610 = vunpack.c.l.b16 %v7380
      %v9611 = vunpack.c.h.b16 %v7380
      %v9612 = vunpack.c.l.b16 %v7381
      %v9613 = vunpack.c.h.b16 %v7381
      %v9614 = vunpack.c.l.b16 %v7382
      %v9615 = vunpack.c.h.b16 %v7382
      %v9616 = vunpack.c.l.b16 %v7383
      %v9617 = vunpack.c.l.b16 %v7384
      %v9618 = vunpack.c.h.b16 %v7384
      %v9619 = vunpack.c.l.b16 %v7385
      %v9620 = vunpack.c.h.b16 %v7385
      %v9621 = vunpack.c.l.b16 %v7386
      %v9622 = vunpack.c.h.b16 %v7386
      %v9623 = vunpack.c.l.b16 %v7387
      %v9624 = vunpack.c.l.b16 %v7388
      %v9625 = vunpack.c.h.b16 %v7388
      %v9626 = vunpack.c.l.b16 %v7389
      %v9627 = vunpack.c.h.b16 %v7389
      %v9628 = vunpack.c.l.b16 %v7390
      %v9629 = vunpack.c.h.b16 %v7390
      %v9630 = vunpack.c.l.b16 %v7391
      %v9631 = vunpack.c.l.b16 %v7392
      %v9632 = vunpack.c.h.b16 %v7392
      %v9633 = vunpack.c.l.b16 %v7393
      %v9634 = vunpack.c.h.b16 %v7393
      %v9635 = vunpack.c.l.b16 %v7394
      %v9636 = vunpack.c.h.b16 %v7394
      %v9637 = vunpack.c.l.b16 %v7395
      %v9638 = vunpack.c.l.b16 %v7396
      %v9639 = vunpack.c.h.b16 %v7396
      %v9640 = vunpack.c.l.b16 %v7397
      %v9641 = vunpack.c.h.b16 %v7397
      %v9642 = vunpack.c.l.b16 %v7398
      %v9643 = vunpack.c.h.b16 %v7398
      %v9644 = vunpack.c.l.b16 %v7399
      %v9645 = vunpack.c.l.b16 %v7400
      %v9646 = vunpack.c.h.b16 %v7400
      %v9647 = vunpack.c.l.b16 %v7401
      %v9648 = vunpack.c.h.b16 %v7401
      %v9649 = vunpack.c.l.b16 %v7402
      %v9650 = vunpack.c.h.b16 %v7402
      %v9651 = vunpack.c.l.b16 %v7403
      %v9652 = vunpack.c.l.b16 %v7404
      %v9653 = vunpack.c.h.b16 %v7404
      %v9654 = vunpack.c.l.b16 %v7405
      %v9655 = vunpack.c.h.b16 %v7405
      %v9656 = vunpack.c.l.b16 %v7406
      %v9657 = vunpack.c.h.b16 %v7406
      %v9658 = vunpack.c.l.b16 %v7407
      %v9659 = vunpack.c.l.b16 %v7408
      %v9660 = vunpack.c.h.b16 %v7408
      %v9661 = vunpack.c.l.b16 %v7409
      %v9662 = vunpack.c.h.b16 %v7409
      %v9663 = vunpack.c.l.b16 %v7410
      %v9664 = vunpack.c.h.b16 %v7410
      %v9665 = vunpack.c.l.b16 %v7411
      %v9666 = vunpack.c.l.b16 %v7412
      %v9667 = vunpack.c.h.b16 %v7412
      %v9668 = vunpack.c.l.b16 %v7413
      %v9669 = vunpack.c.h.b16 %v7413
      %v9670 = vunpack.c.l.b16 %v7414
      %v9671 = vunpack.c.h.b16 %v7414
      %v9672 = vunpack.c.l.b16 %v7415
      %v9673 = vunpack.c.l.b16 %v7416
      %v9674 = vunpack.c.h.b16 %v7416
      %v9675 = vunpack.c.l.b16 %v7417
      %v9676 = vunpack.c.h.b16 %v7417
      %v9677 = vunpack.c.l.b16 %v7418
      %v9678 = vunpack.c.h.b16 %v7418
      %v9679 = vunpack.c.l.b16 %v7419
      %v9680 = vunpack.c.l.b16 %v7420
      %v9681 = vunpack.c.h.b16 %v7420
      %v9682 = vunpack.c.l.b16 %v7421
      %v9683 = vunpack.c.h.b16 %v7421
      %v9684 = vunpack.c.l.b16 %v7422
      %v9685 = vunpack.c.h.b16 %v7422
      %v9686 = vunpack.c.l.b16 %v7423
      %v9687 = vunpack.c.l.b16 %v7424
      %v9688 = vunpack.c.h.b16 %v7424
      %v9689 = vunpack.c.l.b16 %v7425
      %v9690 = vunpack.c.h.b16 %v7425
      %v9691 = vunpack.c.l.b16 %v7426
      %v9692 = vunpack.c.h.b16 %v7426
      %v9693 = vunpack.c.l.b16 %v7427
      %v9694 = vunpack.c.l.b16 %v7428
      %v9695 = vunpack.c.h.b16 %v7428
      %v9696 = vunpack.c.l.b16 %v7429
      %v9697 = vunpack.c.h.b16 %v7429
      %v9698 = vunpack.c.l.b16 %v7430
      %v9699 = vunpack.c.h.b16 %v7430
      %v9700 = vunpack.c.l.b16 %v7431
      %v9701 = vunpack.c.l.b16 %v7432
      %v9702 = vunpack.c.h.b16 %v7432
      %v9703 = vunpack.c.l.b16 %v7433
      %v9704 = vunpack.c.h.b16 %v7433
      %v9705 = vunpack.c.l.b16 %v7434
      %v9706 = vunpack.c.h.b16 %v7434
      %v9707 = vunpack.c.l.b16 %v7435
      %v9708 = vunpack.c.l.b16 %v7436
      %v9709 = vunpack.c.h.b16 %v7436
      %v9710 = vunpack.c.l.b16 %v7437
      %v9711 = vunpack.c.h.b16 %v7437
      %v9712 = vunpack.c.l.b16 %v7438
      %v9713 = vunpack.c.h.b16 %v7438
      %v9714 = vunpack.c.l.b16 %v7439
      %v9715 = vunpack.c.l.b16 %v7440
      %v9716 = vunpack.c.h.b16 %v7440
      %v9717 = vunpack.c.l.b16 %v7441
      %v9718 = vunpack.c.h.b16 %v7441
      %v9719 = vunpack.c.l.b16 %v7442
      %v9720 = vunpack.c.h.b16 %v7442
      %v9721 = vunpack.c.l.b16 %v7443
      %v9722 = vunpack.c.l.b16 %v7444
      %v9723 = vunpack.c.h.b16 %v7444
      %v9724 = vunpack.c.l.b16 %v7445
      %v9725 = vunpack.c.h.b16 %v7445
      %v9726 = vunpack.c.l.b16 %v7446
      %v9727 = vunpack.c.h.b16 %v7446
      %v9728 = vunpack.c.l.b16 %v7447
      %v9729 = vunpack.c.l.b16 %v7448
      %v9730 = vunpack.c.h.b16 %v7448
      %v9731 = vunpack.c.l.b16 %v7449
      %v9732 = vunpack.c.h.b16 %v7449
      %v9733 = vunpack.c.l.b16 %v7450
      %v9734 = vunpack.c.h.b16 %v7450
      %v9735 = vunpack.c.l.b16 %v7451
      %v9736 = vunpack.c.l.b16 %v7452
      %v9737 = vunpack.c.h.b16 %v7452
      %v9738 = vunpack.c.l.b16 %v7453
      %v9739 = vunpack.c.h.b16 %v7453
      %v9740 = vunpack.c.l.b16 %v7454
      %v9741 = vunpack.c.h.b16 %v7454
      %v9742 = vunpack.c.l.b16 %v7455
      %v9743 = vunpack.c.l.b16 %v7456
      %v9744 = vunpack.c.h.b16 %v7456
      %v9745 = vunpack.c.l.b16 %v7457
      %v9746 = vunpack.c.h.b16 %v7457
      %v9747 = vunpack.c.l.b16 %v7458
      %v9748 = vunpack.c.h.b16 %v7458
      %v9749 = vunpack.c.l.b16 %v7459
      %v9750 = vunpack.c.l.b16 %v7460
      %v9751 = vunpack.c.h.b16 %v7460
      %v9752 = vunpack.c.l.b16 %v7461
      %v9753 = vunpack.c.h.b16 %v7461
      %v9754 = vunpack.c.l.b16 %v7462
      %v9755 = vunpack.c.h.b16 %v7462
      %v9756 = vunpack.c.l.b16 %v7463
      %v9757 = vunpack.c.l.b16 %v7464
      %v9758 = vunpack.c.h.b16 %v7464
      %v9759 = vunpack.c.l.b16 %v7465
      %v9760 = vunpack.c.h.b16 %v7465
      %v9761 = vunpack.c.l.b16 %v7466
      %v9762 = vunpack.c.h.b16 %v7466
      %v9763 = vunpack.c.l.b16 %v7467
      %v9764 = vunpack.c.l.b16 %v7468
      %v9765 = vunpack.c.h.b16 %v7468
      %v9766 = vunpack.c.l.b16 %v7469
      %v9767 = vunpack.c.h.b16 %v7469
      %v9768 = vunpack.c.l.b16 %v7470
      %v9769 = vunpack.c.h.b16 %v7470
      %v9770 = vunpack.c.l.b16 %v7471
      %v9771 = vunpack.c.l.b16 %v7472
      %v9772 = vunpack.c.h.b16 %v7472
      %v9773 = vunpack.c.l.b16 %v7473
      %v9774 = vunpack.c.h.b16 %v7473
      %v9775 = vunpack.c.l.b16 %v7474
      %v9776 = vunpack.c.h.b16 %v7474
      %v9777 = vunpack.c.l.b16 %v7475
      %v9778 = vunpack.c.l.b16 %v7476
      %v9779 = vunpack.c.h.b16 %v7476
      %v9780 = vunpack.c.l.b16 %v7477
      %v9781 = vunpack.c.h.b16 %v7477
      %v9782 = vunpack.c.l.b16 %v7478
      %v9783 = vunpack.c.h.b16 %v7478
      %v9784 = vunpack.c.l.b16 %v7479
      %v9785 = vunpack.c.l.b16 %v7480
      %v9786 = vunpack.c.h.b16 %v7480
      %v9787 = vunpack.c.l.b16 %v7481
      %v9788 = vunpack.c.h.b16 %v7481
      %v9789 = vunpack.c.l.b16 %v7482
      %v9790 = vunpack.c.h.b16 %v7482
      %v9791 = vunpack.c.l.b16 %v7483
      %v9792 = vunpack.c.l.b16 %v7484
      %v9793 = vunpack.c.h.b16 %v7484
      %v9794 = vunpack.c.l.b16 %v7485
      %v9795 = vunpack.c.h.b16 %v7485
      %v9796 = vunpack.c.l.b16 %v7486
      %v9797 = vunpack.c.h.b16 %v7486
      %v9798 = vunpack.c.l.b16 %v7487
      %v9799 = vunpack.c.l.b16 %v7488
      %v9800 = vunpack.c.h.b16 %v7488
      %v9801 = vunpack.c.l.b16 %v7489
      %v9802 = vunpack.c.h.b16 %v7489
      %v9803 = vunpack.c.l.b16 %v7490
      %v9804 = vunpack.c.h.b16 %v7490
      %v9805 = vunpack.c.l.b16 %v7491
      %v9806 = vunpack.c.l.b16 %v7492
      %v9807 = vunpack.c.h.b16 %v7492
      %v9808 = vunpack.c.l.b16 %v7493
      %v9809 = vunpack.c.h.b16 %v7493
      %v9810 = vunpack.c.l.b16 %v7494
      %v9811 = vunpack.c.h.b16 %v7494
      %v9812 = vunpack.c.l.b16 %v7495
      %v9813 = vunpack.c.l.b16 %v7496
      %v9814 = vunpack.c.h.b16 %v7496
      %v9815 = vunpack.c.l.b16 %v7497
      %v9816 = vunpack.c.h.b16 %v7497
      %v9817 = vunpack.c.l.b16 %v7498
      %v9818 = vunpack.c.h.b16 %v7498
      %v9819 = vunpack.c.l.b16 %v7499
      %v9820 = vunpack.c.l.b16 %v7500
      %v9821 = vunpack.c.h.b16 %v7500
      %v9822 = vunpack.c.l.b16 %v7501
      %v9823 = vunpack.c.h.b16 %v7501
      %v9824 = vunpack.c.l.b16 %v7502
      %v9825 = vunpack.c.h.b16 %v7502
      %v9826 = vunpack.c.l.b16 %v7503
      %v9827 = vunpack.c.l.b16 %v7504
      %v9828 = vunpack.c.h.b16 %v7504
      %v9829 = vunpack.c.l.b16 %v7505
      %v9830 = vunpack.c.h.b16 %v7505
      %v9831 = vunpack.c.l.b16 %v7506
      %v9832 = vunpack.c.h.b16 %v7506
      %v9833 = vunpack.c.l.b16 %v7507
      %v9834 = vunpack.c.l.b16 %v7508
      %v9835 = vunpack.c.h.b16 %v7508
      %v9836 = vunpack.c.l.b16 %v7509
      %v9837 = vunpack.c.h.b16 %v7509
      %v9838 = vunpack.c.l.b16 %v7510
      %v9839 = vunpack.c.h.b16 %v7510
      %v9840 = vunpack.c.l.b16 %v7511
      %v9841 = vunpack.c.l.b16 %v7512
      %v9842 = vunpack.c.h.b16 %v7512
      %v9843 = vunpack.c.l.b16 %v7513
      %v9844 = vunpack.c.h.b16 %v7513
      %v9845 = vunpack.c.l.b16 %v7514
      %v9846 = vunpack.c.h.b16 %v7514
      %v9847 = vunpack.c.l.b16 %v7515
      %v9848 = vunpack.c.l.b16 %v7516
      %v9849 = vunpack.c.h.b16 %v7516
      %v9850 = vunpack.c.l.b16 %v7517
      %v9851 = vunpack.c.h.b16 %v7517
      %v9852 = vunpack.c.l.b16 %v7518
      %v9853 = vunpack.c.h.b16 %v7518
      %v9854 = vunpack.c.l.b16 %v7519
      %v9855 = vunpack.c.l.b16 %v7520
      %v9856 = vunpack.c.h.b16 %v7520
      %v9857 = vunpack.c.l.b16 %v7521
      %v9858 = vunpack.c.h.b16 %v7521
      %v9859 = vunpack.c.l.b16 %v7522
      %v9860 = vunpack.c.h.b16 %v7522
      %v9861 = vunpack.c.l.b16 %v7523
      %v9862 = vunpack.c.l.b16 %v7524
      %v9863 = vunpack.c.h.b16 %v7524
      %v9864 = vunpack.c.l.b16 %v7525
      %v9865 = vunpack.c.h.b16 %v7525
      %v9866 = vunpack.c.l.b16 %v7526
      %v9867 = vunpack.c.h.b16 %v7526
      %v9868 = vunpack.c.l.b16 %v7527
      %v9869 = vunpack.c.l.b16 %v7528
      %v9870 = vunpack.c.h.b16 %v7528
      %v9871 = vunpack.c.l.b16 %v7529
      %v9872 = vunpack.c.h.b16 %v7529
      %v9873 = vunpack.c.l.b16 %v7530
      %v9874 = vunpack.c.h.b16 %v7530
      %v9875 = vunpack.c.l.b16 %v7531
      %v9876 = vunpack.c.l.b16 %v7532
      %v9877 = vunpack.c.h.b16 %v7532
      %v9878 = vunpack.c.l.b16 %v7533
      %v9879 = vunpack.c.h.b16 %v7533
      %v9880 = vunpack.c.l.b16 %v7534
      %v9881 = vunpack.c.h.b16 %v7534
      %v9882 = vunpack.c.l.b16 %v7535
      %v9883 = vunpack.c.l.b16 %v7536
      %v9884 = vunpack.c.h.b16 %v7536
      %v9885 = vunpack.c.l.b16 %v7537
      %v9886 = vunpack.c.h.b16 %v7537
      %v9887 = vunpack.c.l.b16 %v7538
      %v9888 = vunpack.c.h.b16 %v7538
      %v9889 = vunpack.c.l.b16 %v7539
      %v9890 = vunpack.c.l.b16 %v7540
      %v9891 = vunpack.c.h.b16 %v7540
      %v9892 = vunpack.c.l.b16 %v7541
      %v9893 = vunpack.c.h.b16 %v7541
      %v9894 = vunpack.c.l.b16 %v7542
      %v9895 = vunpack.c.h.b16 %v7542
      %v9896 = vunpack.c.l.b16 %v7543
      %v9897 = vunpack.c.l.b16 %v7544
      %v9898 = vunpack.c.h.b16 %v7544
      %v9899 = vunpack.c.l.b16 %v7545
      %v9900 = vunpack.c.h.b16 %v7545
      %v9901 = vunpack.c.l.b16 %v7546
      %v9902 = vunpack.c.h.b16 %v7546
      %v9903 = vunpack.c.l.b16 %v7547
      %v9904 = vunpack.c.l.b16 %v7548
      %v9905 = vunpack.c.h.b16 %v7548
      %v9906 = vunpack.c.l.b16 %v7549
      %v9907 = vunpack.c.h.b16 %v7549
      %v9908 = vunpack.c.l.b16 %v7550
      %v9909 = vunpack.c.h.b16 %v7550
      %v9910 = vunpack.c.l.b16 %v7551
      %v9911 = vunpack.c.l.b16 %v7552
      %v9912 = vunpack.c.h.b16 %v7552
      %v9913 = vunpack.c.l.b16 %v7553
      %v9914 = vunpack.c.h.b16 %v7553
      %v9915 = vunpack.c.l.b16 %v7554
      %v9916 = vunpack.c.h.b16 %v7554
      %v9917 = vunpack.c.l.b16 %v7555
      %v9918 = vunpack.c.l.b16 %v7556
      %v9919 = vunpack.c.h.b16 %v7556
      %v9920 = vunpack.c.l.b16 %v7557
      %v9921 = vunpack.c.h.b16 %v7557
      %v9922 = vunpack.c.l.b16 %v7558
      %v9923 = vunpack.c.h.b16 %v7558
      %v9924 = vunpack.c.l.b16 %v7559
      %v9925 = vunpack.c.l.b16 %v7560
      %v9926 = vunpack.c.h.b16 %v7560
      %v9927 = vunpack.c.l.b16 %v7561
      %v9928 = vunpack.c.h.b16 %v7561
      %v9929 = vunpack.c.l.b16 %v7562
      %v9930 = vunpack.c.h.b16 %v7562
      %v9931 = vunpack.c.l.b16 %v7563
      %v9932 = vunpack.c.l.b16 %v7564
      %v9933 = vunpack.c.h.b16 %v7564
      %v9934 = vunpack.c.l.b16 %v7565
      %v9935 = vunpack.c.h.b16 %v7565
      %v9936 = vunpack.c.l.b16 %v7566
      %v9937 = vunpack.c.h.b16 %v7566
      %v9938 = vunpack.c.l.b16 %v7567
      %v9939 = vunpack.c.l.b16 %v7568
      %v9940 = vunpack.c.h.b16 %v7568
      %v9941 = vunpack.c.l.b16 %v7569
      %v9942 = vunpack.c.h.b16 %v7569
      %v9943 = vunpack.c.l.b16 %v7570
      %v9944 = vunpack.c.h.b16 %v7570
      %v9945 = vunpack.c.l.b16 %v7571
      %v9946 = vunpack.c.l.b16 %v7572
      %v9947 = vunpack.c.h.b16 %v7572
      %v9948 = vunpack.c.l.b16 %v7573
      %v9949 = vunpack.c.h.b16 %v7573
      %v9950 = vunpack.c.l.b16 %v7574
      %v9951 = vunpack.c.h.b16 %v7574
      %v9952 = vunpack.c.l.b16 %v7575
      %v9953 = vunpack.c.l.b16 %v7576
      %v9954 = vunpack.c.h.b16 %v7576
      %v9955 = vunpack.c.l.b16 %v7577
      %v9956 = vunpack.c.h.b16 %v7577
      %v9957 = vunpack.c.l.b16 %v7578
      %v9958 = vunpack.c.h.b16 %v7578
      %v9959 = vunpack.c.l.b16 %v7579
      %v9960 = vunpack.c.l.b16 %v7580
      %v9961 = vunpack.c.h.b16 %v7580
      %v9962 = vunpack.c.l.b16 %v7581
      %v9963 = vunpack.c.h.b16 %v7581
      %v9964 = vunpack.c.l.b16 %v7582
      %v9965 = vunpack.c.h.b16 %v7582
      %v9966 = vunpack.c.l.b16 %v7583
      %v9967 = vunpack.c.l.b16 %v7584
      %v9968 = vunpack.c.h.b16 %v7584
      %v9969 = vunpack.c.l.b16 %v7585
      %v9970 = vunpack.c.h.b16 %v7585
      %v9971 = vunpack.c.l.b16 %v7586
      %v9972 = vunpack.c.h.b16 %v7586
      %v9973 = vunpack.c.l.b16 %v7587
      %v9974 = vunpack.c.l.b16 %v7588
      %v9975 = vunpack.c.h.b16 %v7588
      %v9976 = vunpack.c.l.b16 %v7589
      %v9977 = vunpack.c.h.b16 %v7589
      %v9978 = vunpack.c.l.b16 %v7590
      %v9979 = vunpack.c.h.b16 %v7590
      %v9980 = vunpack.c.l.b16 %v7591
      %v9981 = vunpack.c.l.b16 %v7592
      %v9982 = vunpack.c.h.b16 %v7592
      %v9983 = vunpack.c.l.b16 %v7593
      %v9984 = vunpack.c.h.b16 %v7593
      %v9985 = vunpack.c.l.b16 %v7594
      %v9986 = vunpack.c.h.b16 %v7594
      %v9987 = vunpack.c.l.b16 %v7595
      %v9988 = vunpack.c.l.b16 %v7596
      %v9989 = vunpack.c.h.b16 %v7596
      %v9990 = vunpack.c.l.b16 %v7597
      %v9991 = vunpack.c.h.b16 %v7597
      %v9992 = vunpack.c.l.b16 %v7598
      %v9993 = vunpack.c.h.b16 %v7598
      %v9994 = vunpack.c.l.b16 %v7599
      %v9995 = vunpack.c.l.b16 %v7600
      %v9996 = vunpack.c.h.b16 %v7600
      %v9997 = vunpack.c.l.b16 %v7601
      %v9998 = vunpack.c.h.b16 %v7601
      %v9999 = vunpack.c.l.b16 %v7602
      %v10000 = vunpack.c.h.b16 %v7602
      %v10001 = vunpack.c.l.b16 %v7603
      %v10002 = vunpack.c.l.b16 %v7604
      %v10003 = vunpack.c.h.b16 %v7604
      %v10004 = vunpack.c.l.b16 %v7605
      %v10005 = vunpack.c.h.b16 %v7605
      %v10006 = vunpack.c.l.b16 %v7606
      %v10007 = vunpack.c.h.b16 %v7606
      %v10008 = vunpack.c.l.b16 %v7607
      %v10009 = vunpack.c.l.b16 %v7608
      %v10010 = vunpack.c.h.b16 %v7608
      %v10011 = vunpack.c.l.b16 %v7609
      %v10012 = vunpack.c.h.b16 %v7609
      %v10013 = vunpack.c.l.b16 %v7610
      %v10014 = vunpack.c.h.b16 %v7610
      %v10015 = vunpack.c.l.b16 %v7611
      %v10016 = vunpack.c.l.b16 %v7612
      %v10017 = vunpack.c.h.b16 %v7612
      %v10018 = vunpack.c.l.b16 %v7613
      %v10019 = vunpack.c.h.b16 %v7613
      %v10020 = vunpack.c.l.b16 %v7614
      %v10021 = vunpack.c.h.b16 %v7614
      %v10022 = vunpack.c.l.b16 %v7615
      %v10023 = vunpack.c.l.b16 %v7616
      %v10024 = vunpack.c.h.b16 %v7616
      %v10025 = vunpack.c.l.b16 %v7617
      %v10026 = vunpack.c.h.b16 %v7617
      %v10027 = vunpack.c.l.b16 %v7618
      %v10028 = vunpack.c.h.b16 %v7618
      %v10029 = vunpack.c.l.b16 %v7619
      %v10030 = vunpack.c.l.b16 %v7620
      %v10031 = vunpack.c.h.b16 %v7620
      %v10032 = vunpack.c.l.b16 %v7621
      %v10033 = vunpack.c.h.b16 %v7621
      %v10034 = vunpack.c.l.b16 %v7622
      %v10035 = vunpack.c.h.b16 %v7622
      %v10036 = vunpack.c.l.b16 %v7623
      %v10037 = vunpack.c.l.b16 %v7624
      %v10038 = vunpack.c.h.b16 %v7624
      %v10039 = vunpack.c.l.b16 %v7625
      %v10040 = vunpack.c.h.b16 %v7625
      %v10041 = vunpack.c.l.b16 %v7626
      %v10042 = vunpack.c.h.b16 %v7626
      %v10043 = vunpack.c.l.b16 %v7627
      %v10044 = vunpack.c.l.b16 %v7628
      %v10045 = vunpack.c.h.b16 %v7628
      %v10046 = vunpack.c.l.b16 %v7629
      %v10047 = vunpack.c.h.b16 %v7629
      %v10048 = vunpack.c.l.b16 %v7630
      %v10049 = vunpack.c.h.b16 %v7630
      %v10050 = vunpack.c.l.b16 %v7631
      %v10051 = vunpack.c.l.b16 %v7632
      %v10052 = vunpack.c.h.b16 %v7632
      %v10053 = vunpack.c.l.b16 %v7633
      %v10054 = vunpack.c.h.b16 %v7633
      %v10055 = vunpack.c.l.b16 %v7634
      %v10056 = vunpack.c.h.b16 %v7634
      %v10057 = vunpack.c.l.b16 %v7635
      %v10058 = vunpack.c.l.b16 %v7636
      %v10059 = vunpack.c.h.b16 %v7636
      %v10060 = vunpack.c.l.b16 %v7637
      %v10061 = vunpack.c.h.b16 %v7637
      %v10062 = vunpack.c.l.b16 %v7638
      %v10063 = vunpack.c.h.b16 %v7638
      %v10064 = vunpack.c.l.b16 %v7639
      %v10065 = vunpack.c.l.b16 %v7640
      %v10066 = vunpack.c.h.b16 %v7640
      %v10067 = vunpack.c.l.b16 %v7641
      %v10068 = vunpack.c.h.b16 %v7641
      %v10069 = vunpack.c.l.b16 %v7642
      %v10070 = vunpack.c.h.b16 %v7642
      %v10071 = vunpack.c.l.b16 %v7643
      %v10072 = vunpack.c.l.b16 %v7644
      %v10073 = vunpack.c.h.b16 %v7644
      %v10074 = vunpack.c.l.b16 %v7645
      %v10075 = vunpack.c.h.b16 %v7645
      %v10076 = vunpack.c.l.b16 %v7646
      %v10077 = vunpack.c.h.b16 %v7646
      %v10078 = vunpack.c.l.b16 %v7647
      %v10079 = vunpack.c.l.b16 %v7648
      %v10080 = vunpack.c.h.b16 %v7648
      %v10081 = vunpack.c.l.b16 %v7649
      %v10082 = vunpack.c.h.b16 %v7649
      %v10083 = vunpack.c.l.b16 %v7650
      %v10084 = vunpack.c.h.b16 %v7650
      %v10085 = vunpack.c.l.b16 %v7651
      %v10086 = vunpack.c.l.b16 %v7652
      %v10087 = vunpack.c.h.b16 %v7652
      %v10088 = vunpack.c.l.b16 %v7653
      %v10089 = vunpack.c.h.b16 %v7653
      %v10090 = vunpack.c.l.b16 %v7654
      %v10091 = vunpack.c.h.b16 %v7654
      %v10092 = vunpack.c.l.b16 %v7655
      %v10093 = vunpack.c.l.b16 %v7656
      %v10094 = vunpack.c.h.b16 %v7656
      %v10095 = vunpack.c.l.b16 %v7657
      %v10096 = vunpack.c.h.b16 %v7657
      %v10097 = vunpack.c.l.b16 %v7658
      %v10098 = vunpack.c.h.b16 %v7658
      %v10099 = vunpack.c.l.b16 %v7659
      %v10100 = vunpack.c.l.b16 %v7660
      %v10101 = vunpack.c.h.b16 %v7660
      %v10102 = vunpack.c.l.b16 %v7661
      %v10103 = vunpack.c.h.b16 %v7661
      %v10104 = vunpack.c.l.b16 %v7662
      %v10105 = vunpack.c.h.b16 %v7662
      %v10106 = vunpack.c.l.b16 %v7663
      %v10107 = vunpack.c.l.b16 %v7664
      %v10108 = vunpack.c.h.b16 %v7664
      %v10109 = vunpack.c.l.b16 %v7665
      %v10110 = vunpack.c.h.b16 %v7665
      %v10111 = vunpack.c.l.b16 %v7666
      %v10112 = vunpack.c.h.b16 %v7666
      %v10113 = vunpack.c.l.b16 %v7667
      %v10114 = vunpack.c.l.b16 %v7668
      %v10115 = vunpack.c.h.b16 %v7668
      %v10116 = vunpack.c.l.b16 %v7669
      %v10117 = vunpack.c.h.b16 %v7669
      %v10118 = vunpack.c.l.b16 %v7670
      %v10119 = vunpack.c.h.b16 %v7670
      %v10120 = vunpack.c.l.b16 %v7671
      %v10121 = vunpack.c.l.b16 %v7672
      %v10122 = vunpack.c.h.b16 %v7672
      %v10123 = vunpack.c.l.b16 %v7673
      %v10124 = vunpack.c.h.b16 %v7673
      %v10125 = vunpack.c.l.b16 %v7674
      %v10126 = vunpack.c.h.b16 %v7674
      %v10127 = vunpack.c.l.b16 %v7675
      %v10128 = vunpack.c.l.b16 %v7676
      %v10129 = vunpack.c.h.b16 %v7676
      %v10130 = vunpack.c.l.b16 %v7677
      %v10131 = vunpack.c.h.b16 %v7677
      %v10132 = vunpack.c.l.b16 %v7678
      %v10133 = vunpack.c.h.b16 %v7678
      %v10134 = vunpack.c.l.b16 %v7679
      %v10135 = vunpack.c.l.b16 %v7680
      %v10136 = vunpack.c.h.b16 %v7680
      %v10137 = vunpack.c.l.b16 %v7681
      %v10138 = vunpack.c.h.b16 %v7681
      %v10139 = vunpack.c.l.b16 %v7682
      %v10140 = vunpack.c.h.b16 %v7682
      %v10141 = vunpack.c.l.b16 %v7683
      %v10142 = vunpack.c.l.b16 %v7684
      %v10143 = vunpack.c.h.b16 %v7684
      %v10144 = vunpack.c.l.b16 %v7685
      %v10145 = vunpack.c.h.b16 %v7685
      %v10146 = vunpack.c.l.b16 %v7686
      %v10147 = vunpack.c.h.b16 %v7686
      %v10148 = vunpack.c.l.b16 %v7687
      %v10149 = vunpack.c.l.b16 %v7688
      %v10150 = vunpack.c.h.b16 %v7688
      %v10151 = vunpack.c.l.b16 %v7689
      %v10152 = vunpack.c.h.b16 %v7689
      %v10153 = vunpack.c.l.b16 %v7690
      %v10154 = vunpack.c.h.b16 %v7690
      %v10155 = vunpack.c.l.b16 %v7691
      %v10156 = vpack.c.b16 %v8595, %v8588
      %v10157 = vpack.c.b16 %v8596, %v8589
      %v10158 = vpack.c.b16 %v8597, %v8590
      %v10159 = vpack.c.b16 %v8598, %v8591
      %v10160 = vpack.c.b16 %v8599, %v8592
      %v10161 = vpack.c.b16 %v8600, %v8593
      %v10162 = vpack.c.b16 %v8601, %v8594
      %v10163 = vpack.c.b16 %v8609, %v8602
      %v10164 = vpack.c.b16 %v8610, %v8603
      %v10165 = vpack.c.b16 %v8611, %v8604
      %v10166 = vpack.c.b16 %v8612, %v8605
      %v10167 = vpack.c.b16 %v8613, %v8606
      %v10168 = vpack.c.b16 %v8614, %v8607
      %v10169 = vpack.c.b16 %v8615, %v8608
      %v10170 = vpack.c.b16 %v8623, %v8616
      %v10171 = vpack.c.b16 %v8624, %v8617
      %v10172 = vpack.c.b16 %v8625, %v8618
      %v10173 = vpack.c.b16 %v8626, %v8619
      %v10174 = vpack.c.b16 %v8627, %v8620
      %v10175 = vpack.c.b16 %v8628, %v8621
      %v10176 = vpack.c.b16 %v8629, %v8622
      %v10177 = vpack.c.b16 %v8637, %v8630
      %v10178 = vpack.c.b16 %v8638, %v8631
      %v10179 = vpack.c.b16 %v8639, %v8632
      %v10180 = vpack.c.b16 %v8640, %v8633
      %v10181 = vpack.c.b16 %v8641, %v8634
      %v10182 = vpack.c.b16 %v8642, %v8635
      %v10183 = vpack.c.b16 %v8643, %v8636
      %v10184 = vpack.c.b16 %v8651, %v8644
      %v10185 = vpack.c.b16 %v8652, %v8645
      %v10186 = vpack.c.b16 %v8653, %v8646
      %v10187 = vpack.c.b16 %v8654, %v8647
      %v10188 = vpack.c.b16 %v8655, %v8648
      %v10189 = vpack.c.b16 %v8656, %v8649
      %v10190 = vpack.c.b16 %v8657, %v8650
      %v10191 = vpack.c.b16 %v8665, %v8658
      %v10192 = vpack.c.b16 %v8666, %v8659
      %v10193 = vpack.c.b16 %v8667, %v8660
      %v10194 = vpack.c.b16 %v8668, %v8661
      %v10195 = vpack.c.b16 %v8669, %v8662
      %v10196 = vpack.c.b16 %v8670, %v8663
      %v10197 = vpack.c.b16 %v8671, %v8664
      %v10198 = vpack.c.b16 %v8679, %v8672
      %v10199 = vpack.c.b16 %v8680, %v8673
      %v10200 = vpack.c.b16 %v8681, %v8674
      %v10201 = vpack.c.b16 %v8682, %v8675
      %v10202 = vpack.c.b16 %v8683, %v8676
      %v10203 = vpack.c.b16 %v8684, %v8677
      %v10204 = vpack.c.b16 %v8685, %v8678
      %v10205 = vpack.c.b16 %v8693, %v8686
      %v10206 = vpack.c.b16 %v8694, %v8687
      %v10207 = vpack.c.b16 %v8695, %v8688
      %v10208 = vpack.c.b16 %v8696, %v8689
      %v10209 = vpack.c.b16 %v8697, %v8690
      %v10210 = vpack.c.b16 %v8698, %v8691
      %v10211 = vpack.c.b16 %v8699, %v8692
      %v10212 = vpack.c.b16 %v8707, %v8700
      %v10213 = vpack.c.b16 %v8708, %v8701
      %v10214 = vpack.c.b16 %v8709, %v8702
      %v10215 = vpack.c.b16 %v8710, %v8703
      %v10216 = vpack.c.b16 %v8711, %v8704
      %v10217 = vpack.c.b16 %v8712, %v8705
      %v10218 = vpack.c.b16 %v8713, %v8706
      %v10219 = vpack.c.b16 %v8721, %v8714
      %v10220 = vpack.c.b16 %v8722, %v8715
      %v10221 = vpack.c.b16 %v8723, %v8716
      %v10222 = vpack.c.b16 %v8724, %v8717
      %v10223 = vpack.c.b16 %v8725, %v8718
      %v10224 = vpack.c.b16 %v8726, %v8719
      %v10225 = vpack.c.b16 %v8727, %v8720
      %v10226 = vpack.c.b16 %v8735, %v8728
      %v10227 = vpack.c.b16 %v8736, %v8729
      %v10228 = vpack.c.b16 %v8737, %v8730
      %v10229 = vpack.c.b16 %v8738, %v8731
      %v10230 = vpack.c.b16 %v8739, %v8732
      %v10231 = vpack.c.b16 %v8740, %v8733
      %v10232 = vpack.c.b16 %v8741, %v8734
      %v10233 = vpack.c.b16 %v8749, %v8742
      %v10234 = vpack.c.b16 %v8750, %v8743
      %v10235 = vpack.c.b16 %v8751, %v8744
      %v10236 = vpack.c.b16 %v8752, %v8745
      %v10237 = vpack.c.b16 %v8753, %v8746
      %v10238 = vpack.c.b16 %v8754, %v8747
      %v10239 = vpack.c.b16 %v8755, %v8748
      %v10240 = vpack.c.b16 %v8763, %v8756
      %v10241 = vpack.c.b16 %v8764, %v8757
      %v10242 = vpack.c.b16 %v8765, %v8758
      %v10243 = vpack.c.b16 %v8766, %v8759
      %v10244 = vpack.c.b16 %v8767, %v8760
      %v10245 = vpack.c.b16 %v8768, %v8761
      %v10246 = vpack.c.b16 %v8769, %v8762
      %v10247 = vpack.c.b16 %v8777, %v8770
      %v10248 = vpack.c.b16 %v8778, %v8771
      %v10249 = vpack.c.b16 %v8779, %v8772
      %v10250 = vpack.c.b16 %v8780, %v8773
      %v10251 = vpack.c.b16 %v8781, %v8774
      %v10252 = vpack.c.b16 %v8782, %v8775
      %v10253 = vpack.c.b16 %v8783, %v8776
      %v10254 = vpack.c.b16 %v8791, %v8784
      %v10255 = vpack.c.b16 %v8792, %v8785
      %v10256 = vpack.c.b16 %v8793, %v8786
      %v10257 = vpack.c.b16 %v8794, %v8787
      %v10258 = vpack.c.b16 %v8795, %v8788
      %v10259 = vpack.c.b16 %v8796, %v8789
      %v10260 = vpack.c.b16 %v8797, %v8790
      %v10261 = vpack.c.b16 %v8805, %v8798
      %v10262 = vpack.c.b16 %v8806, %v8799
      %v10263 = vpack.c.b16 %v8807, %v8800
      %v10264 = vpack.c.b16 %v8808, %v8801
      %v10265 = vpack.c.b16 %v8809, %v8802
      %v10266 = vpack.c.b16 %v8810, %v8803
      %v10267 = vpack.c.b16 %v8811, %v8804
      %v10268 = vpack.c.b16 %v8819, %v8812
      %v10269 = vpack.c.b16 %v8820, %v8813
      %v10270 = vpack.c.b16 %v8821, %v8814
      %v10271 = vpack.c.b16 %v8822, %v8815
      %v10272 = vpack.c.b16 %v8823, %v8816
      %v10273 = vpack.c.b16 %v8824, %v8817
      %v10274 = vpack.c.b16 %v8825, %v8818
      %v10275 = vpack.c.b16 %v8833, %v8826
      %v10276 = vpack.c.b16 %v8834, %v8827
      %v10277 = vpack.c.b16 %v8835, %v8828
      %v10278 = vpack.c.b16 %v8836, %v8829
      %v10279 = vpack.c.b16 %v8837, %v8830
      %v10280 = vpack.c.b16 %v8838, %v8831
      %v10281 = vpack.c.b16 %v8839, %v8832
      %v10282 = vpack.c.b16 %v8847, %v8840
      %v10283 = vpack.c.b16 %v8848, %v8841
      %v10284 = vpack.c.b16 %v8849, %v8842
      %v10285 = vpack.c.b16 %v8850, %v8843
      %v10286 = vpack.c.b16 %v8851, %v8844
      %v10287 = vpack.c.b16 %v8852, %v8845
      %v10288 = vpack.c.b16 %v8853, %v8846
      %v10289 = vpack.c.b16 %v8861, %v8854
      %v10290 = vpack.c.b16 %v8862, %v8855
      %v10291 = vpack.c.b16 %v8863, %v8856
      %v10292 = vpack.c.b16 %v8864, %v8857
      %v10293 = vpack.c.b16 %v8865, %v8858
      %v10294 = vpack.c.b16 %v8866, %v8859
      %v10295 = vpack.c.b16 %v8867, %v8860
      %v10296 = vpack.c.b16 %v8875, %v8868
      %v10297 = vpack.c.b16 %v8876, %v8869
      %v10298 = vpack.c.b16 %v8877, %v8870
      %v10299 = vpack.c.b16 %v8878, %v8871
      %v10300 = vpack.c.b16 %v8879, %v8872
      %v10301 = vpack.c.b16 %v8880, %v8873
      %v10302 = vpack.c.b16 %v8881, %v8874
      %v10303 = vpack.c.b16 %v8889, %v8882
      %v10304 = vpack.c.b16 %v8890, %v8883
      %v10305 = vpack.c.b16 %v8891, %v8884
      %v10306 = vpack.c.b16 %v8892, %v8885
      %v10307 = vpack.c.b16 %v8893, %v8886
      %v10308 = vpack.c.b16 %v8894, %v8887
      %v10309 = vpack.c.b16 %v8895, %v8888
      %v10310 = vpack.c.b16 %v8903, %v8896
      %v10311 = vpack.c.b16 %v8904, %v8897
      %v10312 = vpack.c.b16 %v8905, %v8898
      %v10313 = vpack.c.b16 %v8906, %v8899
      %v10314 = vpack.c.b16 %v8907, %v8900
      %v10315 = vpack.c.b16 %v8908, %v8901
      %v10316 = vpack.c.b16 %v8909, %v8902
      %v10317 = vpack.c.b16 %v8917, %v8910
      %v10318 = vpack.c.b16 %v8918, %v8911
      %v10319 = vpack.c.b16 %v8919, %v8912
      %v10320 = vpack.c.b16 %v8920, %v8913
      %v10321 = vpack.c.b16 %v8921, %v8914
      %v10322 = vpack.c.b16 %v8922, %v8915
      %v10323 = vpack.c.b16 %v8923, %v8916
      %v10324 = vpack.c.b16 %v8931, %v8924
      %v10325 = vpack.c.b16 %v8932, %v8925
      %v10326 = vpack.c.b16 %v8933, %v8926
      %v10327 = vpack.c.b16 %v8934, %v8927
      %v10328 = vpack.c.b16 %v8935, %v8928
      %v10329 = vpack.c.b16 %v8936, %v8929
      %v10330 = vpack.c.b16 %v8937, %v8930
      %v10331 = vpack.c.b16 %v8945, %v8938
      %v10332 = vpack.c.b16 %v8946, %v8939
      %v10333 = vpack.c.b16 %v8947, %v8940
      %v10334 = vpack.c.b16 %v8948, %v8941
      %v10335 = vpack.c.b16 %v8949, %v8942
      %v10336 = vpack.c.b16 %v8950, %v8943
      %v10337 = vpack.c.b16 %v8951, %v8944
      %v10338 = vpack.c.b16 %v8959, %v8952
      %v10339 = vpack.c.b16 %v8960, %v8953
      %v10340 = vpack.c.b16 %v8961, %v8954
      %v10341 = vpack.c.b16 %v8962, %v8955
      %v10342 = vpack.c.b16 %v8963, %v8956
      %v10343 = vpack.c.b16 %v8964, %v8957
      %v10344 = vpack.c.b16 %v8965, %v8958
      %v10345 = vpack.c.b16 %v8973, %v8966
      %v10346 = vpack.c.b16 %v8974, %v8967
      %v10347 = vpack.c.b16 %v8975, %v8968
      %v10348 = vpack.c.b16 %v8976, %v8969
      %v10349 = vpack.c.b16 %v8977, %v8970
      %v10350 = vpack.c.b16 %v8978, %v8971
      %v10351 = vpack.c.b16 %v8979, %v8972
      %v10352 = vpack.c.b16 %v8987, %v8980
      %v10353 = vpack.c.b16 %v8988, %v8981
      %v10354 = vpack.c.b16 %v8989, %v8982
      %v10355 = vpack.c.b16 %v8990, %v8983
      %v10356 = vpack.c.b16 %v8991, %v8984
      %v10357 = vpack.c.b16 %v8992, %v8985
      %v10358 = vpack.c.b16 %v8993, %v8986
      %v10359 = vpack.c.b16 %v9001, %v8994
      %v10360 = vpack.c.b16 %v9002, %v8995
      %v10361 = vpack.c.b16 %v9003, %v8996
      %v10362 = vpack.c.b16 %v9004, %v8997
      %v10363 = vpack.c.b16 %v9005, %v8998
      %v10364 = vpack.c.b16 %v9006, %v8999
      %v10365 = vpack.c.b16 %v9007, %v9000
      %v10366 = vpack.c.b16 %v9015, %v9008
      %v10367 = vpack.c.b16 %v9016, %v9009
      %v10368 = vpack.c.b16 %v9017, %v9010
      %v10369 = vpack.c.b16 %v9018, %v9011
      %v10370 = vpack.c.b16 %v9019, %v9012
      %v10371 = vpack.c.b16 %v9020, %v9013
      %v10372 = vpack.c.b16 %v9021, %v9014
      %v10373 = vpack.c.b16 %v9029, %v9022
      %v10374 = vpack.c.b16 %v9030, %v9023
      %v10375 = vpack.c.b16 %v9031, %v9024
      %v10376 = vpack.c.b16 %v9032, %v9025
      %v10377 = vpack.c.b16 %v9033, %v9026
      %v10378 = vpack.c.b16 %v9034, %v9027
      %v10379 = vpack.c.b16 %v9035, %v9028
      %v10380 = vpack.c.b16 %v9043, %v9036
      %v10381 = vpack.c.b16 %v9044, %v9037
      %v10382 = vpack.c.b16 %v9045, %v9038
      %v10383 = vpack.c.b16 %v9046, %v9039
      %v10384 = vpack.c.b16 %v9047, %v9040
      %v10385 = vpack.c.b16 %v9048, %v9041
      %v10386 = vpack.c.b16 %v9049, %v9042
      %v10387 = vpack.c.b16 %v9057, %v9050
      %v10388 = vpack.c.b16 %v9058, %v9051
      %v10389 = vpack.c.b16 %v9059, %v9052
      %v10390 = vpack.c.b16 %v9060, %v9053
      %v10391 = vpack.c.b16 %v9061, %v9054
      %v10392 = vpack.c.b16 %v9062, %v9055
      %v10393 = vpack.c.b16 %v9063, %v9056
      %v10394 = vpack.c.b16 %v9071, %v9064
      %v10395 = vpack.c.b16 %v9072, %v9065
      %v10396 = vpack.c.b16 %v9073, %v9066
      %v10397 = vpack.c.b16 %v9074, %v9067
      %v10398 = vpack.c.b16 %v9075, %v9068
      %v10399 = vpack.c.b16 %v9076, %v9069
      %v10400 = vpack.c.b16 %v9077, %v9070
      %v10401 = vpack.c.b16 %v9085, %v9078
      %v10402 = vpack.c.b16 %v9086, %v9079
      %v10403 = vpack.c.b16 %v9087, %v9080
      %v10404 = vpack.c.b16 %v9088, %v9081
      %v10405 = vpack.c.b16 %v9089, %v9082
      %v10406 = vpack.c.b16 %v9090, %v9083
      %v10407 = vpack.c.b16 %v9091, %v9084
      %v10408 = vpack.c.b16 %v9099, %v9092
      %v10409 = vpack.c.b16 %v9100, %v9093
      %v10410 = vpack.c.b16 %v9101, %v9094
      %v10411 = vpack.c.b16 %v9102, %v9095
      %v10412 = vpack.c.b16 %v9103, %v9096
      %v10413 = vpack.c.b16 %v9104, %v9097
      %v10414 = vpack.c.b16 %v9105, %v9098
      %v10415 = vpack.c.b16 %v9113, %v9106
      %v10416 = vpack.c.b16 %v9114, %v9107
      %v10417 = vpack.c.b16 %v9115, %v9108
      %v10418 = vpack.c.b16 %v9116, %v9109
      %v10419 = vpack.c.b16 %v9117, %v9110
      %v10420 = vpack.c.b16 %v9118, %v9111
      %v10421 = vpack.c.b16 %v9119, %v9112
      %v10422 = vpack.c.b16 %v9127, %v9120
      %v10423 = vpack.c.b16 %v9128, %v9121
      %v10424 = vpack.c.b16 %v9129, %v9122
      %v10425 = vpack.c.b16 %v9130, %v9123
      %v10426 = vpack.c.b16 %v9131, %v9124
      %v10427 = vpack.c.b16 %v9132, %v9125
      %v10428 = vpack.c.b16 %v9133, %v9126
      %v10429 = vpack.c.b16 %v9141, %v9134
      %v10430 = vpack.c.b16 %v9142, %v9135
      %v10431 = vpack.c.b16 %v9143, %v9136
      %v10432 = vpack.c.b16 %v9144, %v9137
      %v10433 = vpack.c.b16 %v9145, %v9138
      %v10434 = vpack.c.b16 %v9146, %v9139
      %v10435 = vpack.c.b16 %v9147, %v9140
      %v10436 = vpack.c.b16 %v9155, %v9148
      %v10437 = vpack.c.b16 %v9156, %v9149
      %v10438 = vpack.c.b16 %v9157, %v9150
      %v10439 = vpack.c.b16 %v9158, %v9151
      %v10440 = vpack.c.b16 %v9159, %v9152
      %v10441 = vpack.c.b16 %v9160, %v9153
      %v10442 = vpack.c.b16 %v9161, %v9154
      %v10443 = vpack.c.b16 %v9169, %v9162
      %v10444 = vpack.c.b16 %v9170, %v9163
      %v10445 = vpack.c.b16 %v9171, %v9164
      %v10446 = vpack.c.b16 %v9172, %v9165
      %v10447 = vpack.c.b16 %v9173, %v9166
      %v10448 = vpack.c.b16 %v9174, %v9167
      %v10449 = vpack.c.b16 %v9175, %v9168
      %v10450 = vpack.c.b16 %v9183, %v9176
      %v10451 = vpack.c.b16 %v9184, %v9177
      %v10452 = vpack.c.b16 %v9185, %v9178
      %v10453 = vpack.c.b16 %v9186, %v9179
      %v10454 = vpack.c.b16 %v9187, %v9180
      %v10455 = vpack.c.b16 %v9188, %v9181
      %v10456 = vpack.c.b16 %v9189, %v9182
      %v10457 = vpack.c.b16 %v9197, %v9190
      %v10458 = vpack.c.b16 %v9198, %v9191
      %v10459 = vpack.c.b16 %v9199, %v9192
      %v10460 = vpack.c.b16 %v9200, %v9193
      %v10461 = vpack.c.b16 %v9201, %v9194
      %v10462 = vpack.c.b16 %v9202, %v9195
      %v10463 = vpack.c.b16 %v9203, %v9196
      %v10464 = vpack.c.b16 %v9211, %v9204
      %v10465 = vpack.c.b16 %v9212, %v9205
      %v10466 = vpack.c.b16 %v9213, %v9206
      %v10467 = vpack.c.b16 %v9214, %v9207
      %v10468 = vpack.c.b16 %v9215, %v9208
      %v10469 = vpack.c.b16 %v9216, %v9209
      %v10470 = vpack.c.b16 %v9217, %v9210
      %v10471 = vpack.c.b16 %v9225, %v9218
      %v10472 = vpack.c.b16 %v9226, %v9219
      %v10473 = vpack.c.b16 %v9227, %v9220
      %v10474 = vpack.c.b16 %v9228, %v9221
      %v10475 = vpack.c.b16 %v9229, %v9222
      %v10476 = vpack.c.b16 %v9230, %v9223
      %v10477 = vpack.c.b16 %v9231, %v9224
      %v10478 = vpack.c.b16 %v9239, %v9232
      %v10479 = vpack.c.b16 %v9240, %v9233
      %v10480 = vpack.c.b16 %v9241, %v9234
      %v10481 = vpack.c.b16 %v9242, %v9235
      %v10482 = vpack.c.b16 %v9243, %v9236
      %v10483 = vpack.c.b16 %v9244, %v9237
      %v10484 = vpack.c.b16 %v9245, %v9238
      %v10485 = vpack.c.b16 %v9253, %v9246
      %v10486 = vpack.c.b16 %v9254, %v9247
      %v10487 = vpack.c.b16 %v9255, %v9248
      %v10488 = vpack.c.b16 %v9256, %v9249
      %v10489 = vpack.c.b16 %v9257, %v9250
      %v10490 = vpack.c.b16 %v9258, %v9251
      %v10491 = vpack.c.b16 %v9259, %v9252
      %v10492 = vpack.c.b16 %v9267, %v9260
      %v10493 = vpack.c.b16 %v9268, %v9261
      %v10494 = vpack.c.b16 %v9269, %v9262
      %v10495 = vpack.c.b16 %v9270, %v9263
      %v10496 = vpack.c.b16 %v9271, %v9264
      %v10497 = vpack.c.b16 %v9272, %v9265
      %v10498 = vpack.c.b16 %v9273, %v9266
      %v10499 = vpack.c.b16 %v9281, %v9274
      %v10500 = vpack.c.b16 %v9282, %v9275
      %v10501 = vpack.c.b16 %v9283, %v9276
      %v10502 = vpack.c.b16 %v9284, %v9277
      %v10503 = vpack.c.b16 %v9285, %v9278
      %v10504 = vpack.c.b16 %v9286, %v9279
      %v10505 = vpack.c.b16 %v9287, %v9280
      %v10506 = vpack.c.b16 %v9295, %v9288
      %v10507 = vpack.c.b16 %v9296, %v9289
      %v10508 = vpack.c.b16 %v9297, %v9290
      %v10509 = vpack.c.b16 %v9298, %v9291
      %v10510 = vpack.c.b16 %v9299, %v9292
      %v10511 = vpack.c.b16 %v9300, %v9293
      %v10512 = vpack.c.b16 %v9301, %v9294
      %v10513 = vpack.c.b16 %v9309, %v9302
      %v10514 = vpack.c.b16 %v9310, %v9303
      %v10515 = vpack.c.b16 %v9311, %v9304
      %v10516 = vpack.c.b16 %v9312, %v9305
      %v10517 = vpack.c.b16 %v9313, %v9306
      %v10518 = vpack.c.b16 %v9314, %v9307
      %v10519 = vpack.c.b16 %v9315, %v9308
      %v10520 = vpack.c.b16 %v9323, %v9316
      %v10521 = vpack.c.b16 %v9324, %v9317
      %v10522 = vpack.c.b16 %v9325, %v9318
      %v10523 = vpack.c.b16 %v9326, %v9319
      %v10524 = vpack.c.b16 %v9327, %v9320
      %v10525 = vpack.c.b16 %v9328, %v9321
      %v10526 = vpack.c.b16 %v9329, %v9322
      %v10527 = vpack.c.b16 %v9337, %v9330
      %v10528 = vpack.c.b16 %v9338, %v9331
      %v10529 = vpack.c.b16 %v9339, %v9332
      %v10530 = vpack.c.b16 %v9340, %v9333
      %v10531 = vpack.c.b16 %v9341, %v9334
      %v10532 = vpack.c.b16 %v9342, %v9335
      %v10533 = vpack.c.b16 %v9343, %v9336
      %v10534 = vpack.c.b16 %v9351, %v9344
      %v10535 = vpack.c.b16 %v9352, %v9345
      %v10536 = vpack.c.b16 %v9353, %v9346
      %v10537 = vpack.c.b16 %v9354, %v9347
      %v10538 = vpack.c.b16 %v9355, %v9348
      %v10539 = vpack.c.b16 %v9356, %v9349
      %v10540 = vpack.c.b16 %v9357, %v9350
      %v10541 = vpack.c.b16 %v9365, %v9358
      %v10542 = vpack.c.b16 %v9366, %v9359
      %v10543 = vpack.c.b16 %v9367, %v9360
      %v10544 = vpack.c.b16 %v9368, %v9361
      %v10545 = vpack.c.b16 %v9369, %v9362
      %v10546 = vpack.c.b16 %v9370, %v9363
      %v10547 = vpack.c.b16 %v9371, %v9364
      %v10548 = vpack.c.b16 %v9379, %v9372
      %v10549 = vpack.c.b16 %v9380, %v9373
      %v10550 = vpack.c.b16 %v9381, %v9374
      %v10551 = vpack.c.b16 %v9382, %v9375
      %v10552 = vpack.c.b16 %v9383, %v9376
      %v10553 = vpack.c.b16 %v9384, %v9377
      %v10554 = vpack.c.b16 %v9385, %v9378
      %v10555 = vpack.c.b16 %v9393, %v9386
      %v10556 = vpack.c.b16 %v9394, %v9387
      %v10557 = vpack.c.b16 %v9395, %v9388
      %v10558 = vpack.c.b16 %v9396, %v9389
      %v10559 = vpack.c.b16 %v9397, %v9390
      %v10560 = vpack.c.b16 %v9398, %v9391
      %v10561 = vpack.c.b16 %v9399, %v9392
      %v10562 = vpack.c.b16 %v9407, %v9400
      %v10563 = vpack.c.b16 %v9408, %v9401
      %v10564 = vpack.c.b16 %v9409, %v9402
      %v10565 = vpack.c.b16 %v9410, %v9403
      %v10566 = vpack.c.b16 %v9411, %v9404
      %v10567 = vpack.c.b16 %v9412, %v9405
      %v10568 = vpack.c.b16 %v9413, %v9406
      %v10569 = vpack.c.b16 %v9421, %v9414
      %v10570 = vpack.c.b16 %v9422, %v9415
      %v10571 = vpack.c.b16 %v9423, %v9416
      %v10572 = vpack.c.b16 %v9424, %v9417
      %v10573 = vpack.c.b16 %v9425, %v9418
      %v10574 = vpack.c.b16 %v9426, %v9419
      %v10575 = vpack.c.b16 %v9427, %v9420
      %v10576 = vpack.c.b16 %v9435, %v9428
      %v10577 = vpack.c.b16 %v9436, %v9429
      %v10578 = vpack.c.b16 %v9437, %v9430
      %v10579 = vpack.c.b16 %v9438, %v9431
      %v10580 = vpack.c.b16 %v9439, %v9432
      %v10581 = vpack.c.b16 %v9440, %v9433
      %v10582 = vpack.c.b16 %v9441, %v9434
      %v10583 = vpack.c.b16 %v9449, %v9442
      %v10584 = vpack.c.b16 %v9450, %v9443
      %v10585 = vpack.c.b16 %v9451, %v9444
      %v10586 = vpack.c.b16 %v9452, %v9445
      %v10587 = vpack.c.b16 %v9453, %v9446
      %v10588 = vpack.c.b16 %v9454, %v9447
      %v10589 = vpack.c.b16 %v9455, %v9448
      %v10590 = vpack.c.b16 %v9463, %v9456
      %v10591 = vpack.c.b16 %v9464, %v9457
      %v10592 = vpack.c.b16 %v9465, %v9458
      %v10593 = vpack.c.b16 %v9466, %v9459
      %v10594 = vpack.c.b16 %v9467, %v9460
      %v10595 = vpack.c.b16 %v9468, %v9461
      %v10596 = vpack.c.b16 %v9469, %v9462
      %v10597 = vpack.c.b16 %v9477, %v9470
      %v10598 = vpack.c.b16 %v9478, %v9471
      %v10599 = vpack.c.b16 %v9479, %v9472
      %v10600 = vpack.c.b16 %v9480, %v9473
      %v10601 = vpack.c.b16 %v9481, %v9474
      %v10602 = vpack.c.b16 %v9482, %v9475
      %v10603 = vpack.c.b16 %v9483, %v9476
      %v10604 = vpack.c.b16 %v9491, %v9484
      %v10605 = vpack.c.b16 %v9492, %v9485
      %v10606 = vpack.c.b16 %v9493, %v9486
      %v10607 = vpack.c.b16 %v9494, %v9487
      %v10608 = vpack.c.b16 %v9495, %v9488
      %v10609 = vpack.c.b16 %v9496, %v9489
      %v10610 = vpack.c.b16 %v9497, %v9490
      %v10611 = vpack.c.b16 %v9505, %v9498
      %v10612 = vpack.c.b16 %v9506, %v9499
      %v10613 = vpack.c.b16 %v9507, %v9500
      %v10614 = vpack.c.b16 %v9508, %v9501
      %v10615 = vpack.c.b16 %v9509, %v9502
      %v10616 = vpack.c.b16 %v9510, %v9503
      %v10617 = vpack.c.b16 %v9511, %v9504
      %v10618 = vpack.c.b16 %v9519, %v9512
      %v10619 = vpack.c.b16 %v9520, %v9513
      %v10620 = vpack.c.b16 %v9521, %v9514
      %v10621 = vpack.c.b16 %v9522, %v9515
      %v10622 = vpack.c.b16 %v9523, %v9516
      %v10623 = vpack.c.b16 %v9524, %v9517
      %v10624 = vpack.c.b16 %v9525, %v9518
      %v10625 = vpack.c.b16 %v9533, %v9526
      %v10626 = vpack.c.b16 %v9534, %v9527
      %v10627 = vpack.c.b16 %v9535, %v9528
      %v10628 = vpack.c.b16 %v9536, %v9529
      %v10629 = vpack.c.b16 %v9537, %v9530
      %v10630 = vpack.c.b16 %v9538, %v9531
      %v10631 = vpack.c.b16 %v9539, %v9532
      %v10632 = vpack.c.b16 %v9547, %v9540
      %v10633 = vpack.c.b16 %v9548, %v9541
      %v10634 = vpack.c.b16 %v9549, %v9542
      %v10635 = vpack.c.b16 %v9550, %v9543
      %v10636 = vpack.c.b16 %v9551, %v9544
      %v10637 = vpack.c.b16 %v9552, %v9545
      %v10638 = vpack.c.b16 %v9553, %v9546
      %v10639 = vpack.c.b16 %v9561, %v9554
      %v10640 = vpack.c.b16 %v9562, %v9555
      %v10641 = vpack.c.b16 %v9563, %v9556
      %v10642 = vpack.c.b16 %v9564, %v9557
      %v10643 = vpack.c.b16 %v9565, %v9558
      %v10644 = vpack.c.b16 %v9566, %v9559
      %v10645 = vpack.c.b16 %v9567, %v9560
      %v10646 = vpack.c.b16 %v9575, %v9568
      %v10647 = vpack.c.b16 %v9576, %v9569
      %v10648 = vpack.c.b16 %v9577, %v9570
      %v10649 = vpack.c.b16 %v9578, %v9571
      %v10650 = vpack.c.b16 %v9579, %v9572
      %v10651 = vpack.c.b16 %v9580, %v9573
      %v10652 = vpack.c.b16 %v9581, %v9574
      %v10653 = vpack.c.b16 %v9589, %v9582
      %v10654 = vpack.c.b16 %v9590, %v9583
      %v10655 = vpack.c.b16 %v9591, %v9584
      %v10656 = vpack.c.b16 %v9592, %v9585
      %v10657 = vpack.c.b16 %v9593, %v9586
      %v10658 = vpack.c.b16 %v9594, %v9587
      %v10659 = vpack.c.b16 %v9595, %v9588
      %v10660 = vpack.c.b16 %v9603, %v9596
      %v10661 = vpack.c.b16 %v9604, %v9597
      %v10662 = vpack.c.b16 %v9605, %v9598
      %v10663 = vpack.c.b16 %v9606, %v9599
      %v10664 = vpack.c.b16 %v9607, %v9600
      %v10665 = vpack.c.b16 %v9608, %v9601
      %v10666 = vpack.c.b16 %v9609, %v9602
      %v10667 = vpack.c.b16 %v9617, %v9610
      %v10668 = vpack.c.b16 %v9618, %v9611
      %v10669 = vpack.c.b16 %v9619, %v9612
      %v10670 = vpack.c.b16 %v9620, %v9613
      %v10671 = vpack.c.b16 %v9621, %v9614
      %v10672 = vpack.c.b16 %v9622, %v9615
      %v10673 = vpack.c.b16 %v9623, %v9616
      %v10674 = vpack.c.b16 %v9631, %v9624
      %v10675 = vpack.c.b16 %v9632, %v9625
      %v10676 = vpack.c.b16 %v9633, %v9626
      %v10677 = vpack.c.b16 %v9634, %v9627
      %v10678 = vpack.c.b16 %v9635, %v9628
      %v10679 = vpack.c.b16 %v9636, %v9629
      %v10680 = vpack.c.b16 %v9637, %v9630
      %v10681 = vpack.c.b16 %v9645, %v9638
      %v10682 = vpack.c.b16 %v9646, %v9639
      %v10683 = vpack.c.b16 %v9647, %v9640
      %v10684 = vpack.c.b16 %v9648, %v9641
      %v10685 = vpack.c.b16 %v9649, %v9642
      %v10686 = vpack.c.b16 %v9650, %v9643
      %v10687 = vpack.c.b16 %v9651, %v9644
      %v10688 = vpack.c.b16 %v9659, %v9652
      %v10689 = vpack.c.b16 %v9660, %v9653
      %v10690 = vpack.c.b16 %v9661, %v9654
      %v10691 = vpack.c.b16 %v9662, %v9655
      %v10692 = vpack.c.b16 %v9663, %v9656
      %v10693 = vpack.c.b16 %v9664, %v9657
      %v10694 = vpack.c.b16 %v9665, %v9658
      %v10695 = vpack.c.b16 %v9673, %v9666
      %v10696 = vpack.c.b16 %v9674, %v9667
      %v10697 = vpack.c.b16 %v9675, %v9668
      %v10698 = vpack.c.b16 %v9676, %v9669
      %v10699 = vpack.c.b16 %v9677, %v9670
      %v10700 = vpack.c.b16 %v9678, %v9671
      %v10701 = vpack.c.b16 %v9679, %v9672
      %v10702 = vpack.c.b16 %v9687, %v9680
      %v10703 = vpack.c.b16 %v9688, %v9681
      %v10704 = vpack.c.b16 %v9689, %v9682
      %v10705 = vpack.c.b16 %v9690, %v9683
      %v10706 = vpack.c.b16 %v9691, %v9684
      %v10707 = vpack.c.b16 %v9692, %v9685
      %v10708 = vpack.c.b16 %v9693, %v9686
      %v10709 = vpack.c.b16 %v9701, %v9694
      %v10710 = vpack.c.b16 %v9702, %v9695
      %v10711 = vpack.c.b16 %v9703, %v9696
      %v10712 = vpack.c.b16 %v9704, %v9697
      %v10713 = vpack.c.b16 %v9705, %v9698
      %v10714 = vpack.c.b16 %v9706, %v9699
      %v10715 = vpack.c.b16 %v9707, %v9700
      %v10716 = vpack.c.b16 %v9715, %v9708
      %v10717 = vpack.c.b16 %v9716, %v9709
      %v10718 = vpack.c.b16 %v9717, %v9710
      %v10719 = vpack.c.b16 %v9718, %v9711
      %v10720 = vpack.c.b16 %v9719, %v9712
      %v10721 = vpack.c.b16 %v9720, %v9713
      %v10722 = vpack.c.b16 %v9721, %v9714
      %v10723 = vpack.c.b16 %v9729, %v9722
      %v10724 = vpack.c.b16 %v9730, %v9723
      %v10725 = vpack.c.b16 %v9731, %v9724
      %v10726 = vpack.c.b16 %v9732, %v9725
      %v10727 = vpack.c.b16 %v9733, %v9726
      %v10728 = vpack.c.b16 %v9734, %v9727
      %v10729 = vpack.c.b16 %v9735, %v9728
      %v10730 = vpack.c.b16 %v9743, %v9736
      %v10731 = vpack.c.b16 %v9744, %v9737
      %v10732 = vpack.c.b16 %v9745, %v9738
      %v10733 = vpack.c.b16 %v9746, %v9739
      %v10734 = vpack.c.b16 %v9747, %v9740
      %v10735 = vpack.c.b16 %v9748, %v9741
      %v10736 = vpack.c.b16 %v9749, %v9742
      %v10737 = vpack.c.b16 %v9757, %v9750
      %v10738 = vpack.c.b16 %v9758, %v9751
      %v10739 = vpack.c.b16 %v9759, %v9752
      %v10740 = vpack.c.b16 %v9760, %v9753
      %v10741 = vpack.c.b16 %v9761, %v9754
      %v10742 = vpack.c.b16 %v9762, %v9755
      %v10743 = vpack.c.b16 %v9763, %v9756
      %v10744 = vpack.c.b16 %v9771, %v9764
      %v10745 = vpack.c.b16 %v9772, %v9765
      %v10746 = vpack.c.b16 %v9773, %v9766
      %v10747 = vpack.c.b16 %v9774, %v9767
      %v10748 = vpack.c.b16 %v9775, %v9768
      %v10749 = vpack.c.b16 %v9776, %v9769
      %v10750 = vpack.c.b16 %v9777, %v9770
      %v10751 = vpack.c.b16 %v9785, %v9778
      %v10752 = vpack.c.b16 %v9786, %v9779
      %v10753 = vpack.c.b16 %v9787, %v9780
      %v10754 = vpack.c.b16 %v9788, %v9781
      %v10755 = vpack.c.b16 %v9789, %v9782
      %v10756 = vpack.c.b16 %v9790, %v9783
      %v10757 = vpack.c.b16 %v9791, %v9784
      %v10758 = vpack.c.b16 %v9799, %v9792
      %v10759 = vpack.c.b16 %v9800, %v9793
      %v10760 = vpack.c.b16 %v9801, %v9794
      %v10761 = vpack.c.b16 %v9802, %v9795
      %v10762 = vpack.c.b16 %v9803, %v9796
      %v10763 = vpack.c.b16 %v9804, %v9797
      %v10764 = vpack.c.b16 %v9805, %v9798
      %v10765 = vpack.c.b16 %v9813, %v9806
      %v10766 = vpack.c.b16 %v9814, %v9807
      %v10767 = vpack.c.b16 %v9815, %v9808
      %v10768 = vpack.c.b16 %v9816, %v9809
      %v10769 = vpack.c.b16 %v9817, %v9810
      %v10770 = vpack.c.b16 %v9818, %v9811
      %v10771 = vpack.c.b16 %v9819, %v9812
      %v10772 = vpack.c.b16 %v9827, %v9820
      %v10773 = vpack.c.b16 %v9828, %v9821
      %v10774 = vpack.c.b16 %v9829, %v9822
      %v10775 = vpack.c.b16 %v9830, %v9823
      %v10776 = vpack.c.b16 %v9831, %v9824
      %v10777 = vpack.c.b16 %v9832, %v9825
      %v10778 = vpack.c.b16 %v9833, %v9826
      %v10779 = vpack.c.b16 %v9841, %v9834
      %v10780 = vpack.c.b16 %v9842, %v9835
      %v10781 = vpack.c.b16 %v9843, %v9836
      %v10782 = vpack.c.b16 %v9844, %v9837
      %v10783 = vpack.c.b16 %v9845, %v9838
      %v10784 = vpack.c.b16 %v9846, %v9839
      %v10785 = vpack.c.b16 %v9847, %v9840
      %v10786 = vpack.c.b16 %v9855, %v9848
      %v10787 = vpack.c.b16 %v9856, %v9849
      %v10788 = vpack.c.b16 %v9857, %v9850
      %v10789 = vpack.c.b16 %v9858, %v9851
      %v10790 = vpack.c.b16 %v9859, %v9852
      %v10791 = vpack.c.b16 %v9860, %v9853
      %v10792 = vpack.c.b16 %v9861, %v9854
      %v10793 = vpack.c.b16 %v9869, %v9862
      %v10794 = vpack.c.b16 %v9870, %v9863
      %v10795 = vpack.c.b16 %v9871, %v9864
      %v10796 = vpack.c.b16 %v9872, %v9865
      %v10797 = vpack.c.b16 %v9873, %v9866
      %v10798 = vpack.c.b16 %v9874, %v9867
      %v10799 = vpack.c.b16 %v9875, %v9868
      %v10800 = vpack.c.b16 %v9883, %v9876
      %v10801 = vpack.c.b16 %v9884, %v9877
      %v10802 = vpack.c.b16 %v9885, %v9878
      %v10803 = vpack.c.b16 %v9886, %v9879
      %v10804 = vpack.c.b16 %v9887, %v9880
      %v10805 = vpack.c.b16 %v9888, %v9881
      %v10806 = vpack.c.b16 %v9889, %v9882
      %v10807 = vpack.c.b16 %v9897, %v9890
      %v10808 = vpack.c.b16 %v9898, %v9891
      %v10809 = vpack.c.b16 %v9899, %v9892
      %v10810 = vpack.c.b16 %v9900, %v9893
      %v10811 = vpack.c.b16 %v9901, %v9894
      %v10812 = vpack.c.b16 %v9902, %v9895
      %v10813 = vpack.c.b16 %v9903, %v9896
      %v10814 = vpack.c.b16 %v9911, %v9904
      %v10815 = vpack.c.b16 %v9912, %v9905
      %v10816 = vpack.c.b16 %v9913, %v9906
      %v10817 = vpack.c.b16 %v9914, %v9907
      %v10818 = vpack.c.b16 %v9915, %v9908
      %v10819 = vpack.c.b16 %v9916, %v9909
      %v10820 = vpack.c.b16 %v9917, %v9910
      %v10821 = vpack.c.b16 %v9925, %v9918
      %v10822 = vpack.c.b16 %v9926, %v9919
      %v10823 = vpack.c.b16 %v9927, %v9920
      %v10824 = vpack.c.b16 %v9928, %v9921
      %v10825 = vpack.c.b16 %v9929, %v9922
      %v10826 = vpack.c.b16 %v9930, %v9923
      %v10827 = vpack.c.b16 %v9931, %v9924
      %v10828 = vpack.c.b16 %v9939, %v9932
      %v10829 = vpack.c.b16 %v9940, %v9933
      %v10830 = vpack.c.b16 %v9941, %v9934
      %v10831 = vpack.c.b16 %v9942, %v9935
      %v10832 = vpack.c.b16 %v9943, %v9936
      %v10833 = vpack.c.b16 %v9944, %v9937
      %v10834 = vpack.c.b16 %v9945, %v9938
      %v10835 = vpack.c.b16 %v9953, %v9946
      %v10836 = vpack.c.b16 %v9954, %v9947
      %v10837 = vpack.c.b16 %v9955, %v9948
      %v10838 = vpack.c.b16 %v9956, %v9949
      %v10839 = vpack.c.b16 %v9957, %v9950
      %v10840 = vpack.c.b16 %v9958, %v9951
      %v10841 = vpack.c.b16 %v9959, %v9952
      %v10842 = vpack.c.b16 %v9967, %v9960
      %v10843 = vpack.c.b16 %v9968, %v9961
      %v10844 = vpack.c.b16 %v9969, %v9962
      %v10845 = vpack.c.b16 %v9970, %v9963
      %v10846 = vpack.c.b16 %v9971, %v9964
      %v10847 = vpack.c.b16 %v9972, %v9965
      %v10848 = vpack.c.b16 %v9973, %v9966
      %v10849 = vpack.c.b16 %v9981, %v9974
      %v10850 = vpack.c.b16 %v9982, %v9975
      %v10851 = vpack.c.b16 %v9983, %v9976
      %v10852 = vpack.c.b16 %v9984, %v9977
      %v10853 = vpack.c.b16 %v9985, %v9978
      %v10854 = vpack.c.b16 %v9986, %v9979
      %v10855 = vpack.c.b16 %v9987, %v9980
      %v10856 = vpack.c.b16 %v9995, %v9988
      %v10857 = vpack.c.b16 %v9996, %v9989
      %v10858 = vpack.c.b16 %v9997, %v9990
      %v10859 = vpack.c.b16 %v9998, %v9991
      %v10860 = vpack.c.b16 %v9999, %v9992
      %v10861 = vpack.c.b16 %v10000, %v9993
      %v10862 = vpack.c.b16 %v10001, %v9994
      %v10863 = vpack.c.b16 %v10009, %v10002
      %v10864 = vpack.c.b16 %v10010, %v10003
      %v10865 = vpack.c.b16 %v10011, %v10004
      %v10866 = vpack.c.b16 %v10012, %v10005
      %v10867 = vpack.c.b16 %v10013, %v10006
      %v10868 = vpack.c.b16 %v10014, %v10007
      %v10869 = vpack.c.b16 %v10015, %v10008
      %v10870 = vpack.c.b16 %v10023, %v10016
      %v10871 = vpack.c.b16 %v10024, %v10017
      %v10872 = vpack.c.b16 %v10025, %v10018
      %v10873 = vpack.c.b16 %v10026, %v10019
      %v10874 = vpack.c.b16 %v10027, %v10020
      %v10875 = vpack.c.b16 %v10028, %v10021
      %v10876 = vpack.c.b16 %v10029, %v10022
      %v10877 = vpack.c.b16 %v10037, %v10030
      %v10878 = vpack.c.b16 %v10038, %v10031
      %v10879 = vpack.c.b16 %v10039, %v10032
      %v10880 = vpack.c.b16 %v10040, %v10033
      %v10881 = vpack.c.b16 %v10041, %v10034
      %v10882 = vpack.c.b16 %v10042, %v10035
      %v10883 = vpack.c.b16 %v10043, %v10036
      %v10884 = vpack.c.b16 %v10051, %v10044
      %v10885 = vpack.c.b16 %v10052, %v10045
      %v10886 = vpack.c.b16 %v10053, %v10046
      %v10887 = vpack.c.b16 %v10054, %v10047
      %v10888 = vpack.c.b16 %v10055, %v10048
      %v10889 = vpack.c.b16 %v10056, %v10049
      %v10890 = vpack.c.b16 %v10057, %v10050
      %v10891 = vpack.c.b16 %v10065, %v10058
      %v10892 = vpack.c.b16 %v10066, %v10059
      %v10893 = vpack.c.b16 %v10067, %v10060
      %v10894 = vpack.c.b16 %v10068, %v10061
      %v10895 = vpack.c.b16 %v10069, %v10062
      %v10896 = vpack.c.b16 %v10070, %v10063
      %v10897 = vpack.c.b16 %v10071, %v10064
      %v10898 = vpack.c.b16 %v10079, %v10072
      %v10899 = vpack.c.b16 %v10080, %v10073
      %v10900 = vpack.c.b16 %v10081, %v10074
      %v10901 = vpack.c.b16 %v10082, %v10075
      %v10902 = vpack.c.b16 %v10083, %v10076
      %v10903 = vpack.c.b16 %v10084, %v10077
      %v10904 = vpack.c.b16 %v10085, %v10078
      %v10905 = vpack.c.b16 %v10093, %v10086
      %v10906 = vpack.c.b16 %v10094, %v10087
      %v10907 = vpack.c.b16 %v10095, %v10088
      %v10908 = vpack.c.b16 %v10096, %v10089
      %v10909 = vpack.c.b16 %v10097, %v10090
      %v10910 = vpack.c.b16 %v10098, %v10091
      %v10911 = vpack.c.b16 %v10099, %v10092
      %v10912 = vpack.c.b16 %v10107, %v10100
      %v10913 = vpack.c.b16 %v10108, %v10101
      %v10914 = vpack.c.b16 %v10109, %v10102
      %v10915 = vpack.c.b16 %v10110, %v10103
      %v10916 = vpack.c.b16 %v10111, %v10104
      %v10917 = vpack.c.b16 %v10112, %v10105
      %v10918 = vpack.c.b16 %v10113, %v10106
      %v10919 = vpack.c.b16 %v10121, %v10114
      %v10920 = vpack.c.b16 %v10122, %v10115
      %v10921 = vpack.c.b16 %v10123, %v10116
      %v10922 = vpack.c.b16 %v10124, %v10117
      %v10923 = vpack.c.b16 %v10125, %v10118
      %v10924 = vpack.c.b16 %v10126, %v10119
      %v10925 = vpack.c.b16 %v10127, %v10120
      %v10926 = vpack.c.b16 %v10135, %v10128
      %v10927 = vpack.c.b16 %v10136, %v10129
      %v10928 = vpack.c.b16 %v10137, %v10130
      %v10929 = vpack.c.b16 %v10138, %v10131
      %v10930 = vpack.c.b16 %v10139, %v10132
      %v10931 = vpack.c.b16 %v10140, %v10133
      %v10932 = vpack.c.b16 %v10141, %v10134
      %v10933 = vpack.c.b16 %v10149, %v10142
      %v10934 = vpack.c.b16 %v10150, %v10143
      %v10935 = vpack.c.b16 %v10151, %v10144
      %v10936 = vpack.c.b16 %v10152, %v10145
      %v10937 = vpack.c.b16 %v10153, %v10146
      %v10938 = vpack.c.b16 %v10154, %v10147
      %v10939 = vpack.c.b16 %v10155, %v10148
      %11724 = vmatprep.subr.bf16.mxu0 %v10157
      %11725 = vmatpush1.bf16.msra.mxu0 %v10156
      %11726 = vmatprep.subr.bf16.mxu0 %v10164
      %11727 = vmatpush1.bf16.msra.mxu0 %v10163
      %11728 = vmatprep.subr.bf16.mxu0 %v10171
      %11729 = vmatpush1.bf16.msra.mxu0 %v10170
      %11730 = vmatprep.subr.bf16.mxu0 %v10178
      %11731 = vmatpush1.bf16.msra.mxu0 %v10177
      %11732 = vmatprep.subr.bf16.mxu0 %v10185
      %11733 = vmatpush1.bf16.msra.mxu0 %v10184
      %11734 = vmatprep.subr.bf16.mxu0 %v10192
      %11735 = vmatpush1.bf16.msra.mxu0 %v10191
      %11736 = vmatprep.subr.bf16.mxu0 %v10199
      %11737 = vmatpush1.bf16.msra.mxu0 %v10198
      %11738 = vmatprep.subr.bf16.mxu0 %v10206
      %11739 = vmatpush1.bf16.msra.mxu0 %v10205
      %11740 = vmatprep.subr.bf16.mxu0 %v10213
      %11741 = vmatpush1.bf16.msra.mxu0 %v10212
      %11742 = vmatprep.subr.bf16.mxu0 %v10220
      %11743 = vmatpush1.bf16.msra.mxu0 %v10219
      %11744 = vmatprep.subr.bf16.mxu0 %v10227
      %11745 = vmatpush1.bf16.msra.mxu0 %v10226
      %11746 = vmatprep.subr.bf16.mxu0 %v10234
      %11747 = vmatpush1.bf16.msra.mxu0 %v10233
      %11748 = vmatprep.subr.bf16.mxu0 %v10241
      %11749 = vmatpush1.bf16.msra.mxu0 %v10240
      %11750 = vmatprep.subr.bf16.mxu0 %v10248
      %11751 = vmatpush1.bf16.msra.mxu0 %v10247
      %11752 = vmatprep.subr.bf16.mxu0 %v10255
      %11753 = vmatpush1.bf16.msra.mxu0 %v10254
      %11754 = vmatprep.subr.bf16.mxu0 %v10262
      %11755 = vmatpush1.bf16.msra.mxu0 %v10261
      %11756 = vmatprep.mubr.bf16.mxu0 %v1225
      %11757 = vmatmul.mubr.bf16.gmra.mrb[0].mxu0 %v1224
      %v11758 = vpop.f32.mrb[0].mxu0
      %v11759 = vadd.f32 0.0, %v11758
      %v11760 = vpop.f32.mrb[0].mxu0
      %v11761 = vadd.f32 0.0, %v11760
      %v11762 = vpop.f32.mrb[0].mxu0
      %v11763 = vadd.f32 0.0, %v11762
      %v11764 = vpop.f32.mrb[0].mxu0
      %v11765 = vadd.f32 0.0, %v11764
      %11766 = vmatprep.mubr.bf16.mxu0 %v1239
      %11767 = vmatmul.mubr.bf16.gmra.mrb[0].mxu0 %v1238
      %v11768 = vpop.f32.mrb[0].mxu0
      %v11769 = vadd.f32 0.0, %v11768
      %v11770 = vpop.f32.mrb[0].mxu0
      %v11771 = vadd.f32 0.0, %v11770
      %v11772 = vpop.f32.mrb[0].mxu0
      %v11773 = vadd.f32 0.0, %v11772
      %v11774 = vpop.f32.mrb[0].mxu0
      %v11775 = vadd.f32 0.0, %v11774
      %11776 = vdwg.mxu0
      %11777 = vmatprep.subr.bf16.mxu0 %v10269
      %11778 = vmatpush1.bf16.msra.mxu0 %v10268
      %11779 = vmatprep.subr.bf16.mxu0 %v10276
      %11780 = vmatpush1.bf16.msra.mxu0 %v10275
      %11781 = vmatprep.subr.bf16.mxu0 %v10283
      %11782 = vmatpush1.bf16.msra.mxu0 %v10282
      %11783 = vmatprep.subr.bf16.mxu0 %v10290
      %11784 = vmatpush1.bf16.msra.mxu0 %v10289
      %11785 = vmatprep.subr.bf16.mxu0 %v10297
      %11786 = vmatpush1.bf16.msra.mxu0 %v10296
      %11787 = vmatprep.subr.bf16.mxu0 %v10304
      %11788 = vmatpush1.bf16.msra.mxu0 %v10303
      %11789 = vmatprep.subr.bf16.mxu0 %v10311
      %11790 = vmatpush1.bf16.msra.mxu0 %v10310
      %11791 = vmatprep.subr.bf16.mxu0 %v10318
      %11792 = vmatpush1.bf16.msra.mxu0 %v10317
      %11793 = vmatprep.subr.bf16.mxu0 %v10325
      %11794 = vmatpush1.bf16.msra.mxu0 %v10324
      %11795 = vmatprep.subr.bf16.mxu0 %v10332
      %11796 = vmatpush1.bf16.msra.mxu0 %v10331
      %11797 = vmatprep.subr.bf16.mxu0 %v10339
      %11798 = vmatpush1.bf16.msra.mxu0 %v10338
      %11799 = vmatprep.subr.bf16.mxu0 %v10346
      %11800 = vmatpush1.bf16.msra.mxu0 %v10345
      %11801 = vmatprep.subr.bf16.mxu0 %v10353
      %11802 = vmatpush1.bf16.msra.mxu0 %v10352
      %11803 = vmatprep.subr.bf16.mxu0 %v10360
      %11804 = vmatpush1.bf16.msra.mxu0 %v10359
      %11805 = vmatprep.subr.bf16.mxu0 %v10367
      %11806 = vmatpush1.bf16.msra.mxu0 %v10366
      %11807 = vmatprep.subr.bf16.mxu0 %v10374
      %11808 = vmatpush1.bf16.msra.mxu0 %v10373
      %11809 = vmatprep.mubr.bf16.mxu0 %v1227
      %11810 = vmatmul.mubr.bf16.gmra.mrb[0].mxu0 %v1226
      %v11811 = vpop.f32.mrb[0].mxu0
      %v11812 = vadd.f32 %v11759, %v11811
      %v11813 = vpop.f32.mrb[0].mxu0
      %v11814 = vadd.f32 %v11761, %v11813
      %v11815 = vpop.f32.mrb[0].mxu0
      %v11816 = vadd.f32 %v11763, %v11815
      %v11817 = vpop.f32.mrb[0].mxu0
      %v11818 = vadd.f32 %v11765, %v11817
      %11819 = vmatprep.mubr.bf16.mxu0 %v1241
      %11820 = vmatmul.mubr.bf16.gmra.mrb[0].mxu0 %v1240
      %v11821 = vpop.f32.mrb[0].mxu0
      %v11822 = vadd.f32 %v11769, %v11821
      %v11823 = vpop.f32.mrb[0].mxu0
      %v11824 = vadd.f32 %v11771, %v11823
      %v11825 = vpop.f32.mrb[0].mxu0
      %v11826 = vadd.f32 %v11773, %v11825
      %v11827 = vpop.f32.mrb[0].mxu0
      %v11828 = vadd.f32 %v11775, %v11827
      %11829 = vdwg.mxu0
      %11830 = vmatprep.subr.bf16.mxu0 %v10381
      %11831 = vmatpush1.bf16.msra.mxu0 %v10380
      %11832 = vmatprep.subr.bf16.mxu0 %v10388
      %11833 = vmatpush1.bf16.msra.mxu0 %v10387
      %11834 = vmatprep.subr.bf16.mxu0 %v10395
      %11835 = vmatpush1.bf16.msra.mxu0 %v10394
      %11836 = vmatprep.subr.bf16.mxu0 %v10402
      %11837 = vmatpush1.bf16.msra.mxu0 %v10401
      %11838 = vmatprep.subr.bf16.mxu0 %v10409
      %11839 = vmatpush1.bf16.msra.mxu0 %v10408
      %11840 = vmatprep.subr.bf16.mxu0 %v10416
      %11841 = vmatpush1.bf16.msra.mxu0 %v10415
      %11842 = vmatprep.subr.bf16.mxu0 %v10423
      %11843 = vmatpush1.bf16.msra.mxu0 %v10422
      %11844 = vmatprep.subr.bf16.mxu0 %v10430
      %11845 = vmatpush1.bf16.msra.mxu0 %v10429
      %11846 = vmatprep.subr.bf16.mxu0 %v10437
      %11847 = vmatpush1.bf16.msra.mxu0 %v10436
      %11848 = vmatprep.subr.bf16.mxu0 %v10444
      %11849 = vmatpush1.bf16.msra.mxu0 %v10443
      %11850 = vmatprep.subr.bf16.mxu0 %v10451
      %11851 = vmatpush1.bf16.msra.mxu0 %v10450
      %11852 = vmatprep.subr.bf16.mxu0 %v10458
      %11853 = vmatpush1.bf16.msra.mxu0 %v10457
      %11854 = vmatprep.subr.bf16.mxu0 %v10465
      %11855 = vmatpush1.bf16.msra.mxu0 %v10464
      %11856 = vmatprep.subr.bf16.mxu0 %v10472
      %11857 = vmatpush1.bf16.msra.mxu0 %v10471
      %11858 = vmatprep.subr.bf16.mxu0 %v10479
      %11859 = vmatpush1.bf16.msra.mxu0 %v10478
      %11860 = vmatprep.subr.bf16.mxu0 %v10486
      %11861 = vmatpush1.bf16.msra.mxu0 %v10485
      %11862 = vmatprep.mubr.bf16.mxu0 %v1229
      %11863 = vmatmul.mubr.bf16.gmra.mrb[0].mxu0 %v1228
      %v11864 = vpop.f32.mrb[0].mxu0
      %v11865 = vadd.f32 %v11812, %v11864
      %v11866 = vpop.f32.mrb[0].mxu0
      %v11867 = vadd.f32 %v11814, %v11866
      %v11868 = vpop.f32.mrb[0].mxu0
      %v11869 = vadd.f32 %v11816, %v11868
      %v11870 = vpop.f32.mrb[0].mxu0
      %v11871 = vadd.f32 %v11818, %v11870
      %11872 = vmatprep.mubr.bf16.mxu0 %v1243
      %11873 = vmatmul.mubr.bf16.gmra.mrb[0].mxu0 %v1242
      %v11874 = vpop.f32.mrb[0].mxu0
      %v11875 = vadd.f32 %v11822, %v11874
      %v11876 = vpop.f32.mrb[0].mxu0
      %v11877 = vadd.f32 %v11824, %v11876
      %v11878 = vpop.f32.mrb[0].mxu0
      %v11879 = vadd.f32 %v11826, %v11878
      %v11880 = vpop.f32.mrb[0].mxu0
      %v11881 = vadd.f32 %v11828, %v11880
      %11882 = vdwg.mxu0
      %11883 = vmatprep.subr.bf16.mxu0 %v10493
      %11884 = vmatpush1.bf16.msra.mxu0 %v10492
      %11885 = vmatprep.subr.bf16.mxu0 %v10500
      %11886 = vmatpush1.bf16.msra.mxu0 %v10499
      %11887 = vmatprep.subr.bf16.mxu0 %v10507
      %11888 = vmatpush1.bf16.msra.mxu0 %v10506
      %11889 = vmatprep.subr.bf16.mxu0 %v10514
      %11890 = vmatpush1.bf16.msra.mxu0 %v10513
      %11891 = vmatprep.subr.bf16.mxu0 %v10521
      %11892 = vmatpush1.bf16.msra.mxu0 %v10520
      %11893 = vmatprep.subr.bf16.mxu0 %v10528
      %11894 = vmatpush1.bf16.msra.mxu0 %v10527
      %11895 = vmatprep.subr.bf16.mxu0 %v10535
      %11896 = vmatpush1.bf16.msra.mxu0 %v10534
      %11897 = vmatprep.subr.bf16.mxu0 %v10542
      %11898 = vmatpush1.bf16.msra.mxu0 %v10541
      %11899 = vmatprep.subr.bf16.mxu0 %v10549
      %11900 = vmatpush1.bf16.msra.mxu0 %v10548
      %11901 = vmatprep.subr.bf16.mxu0 %v10556
      %11902 = vmatpush1.bf16.msra.mxu0 %v10555
      %11903 = vmatprep.subr.bf16.mxu0 %v10563
      %11904 = vmatpush1.bf16.msra.mxu0 %v10562
      %11905 = vmatprep.subr.bf16.mxu0 %v10570
      %11906 = vmatpush1.bf16.msra.mxu0 %v10569
      %11907 = vmatprep.subr.bf16.mxu0 %v10577
      %11908 = vmatpush1.bf16.msra.mxu0 %v10576
      %11909 = vmatprep.subr.bf16.mxu0 %v10584
      %11910 = vmatpush1.bf16.msra.mxu0 %v10583
      %11911 = vmatprep.subr.bf16.mxu0 %v10591
      %11912 = vmatpush1.bf16.msra.mxu0 %v10590
      %11913 = vmatprep.subr.bf16.mxu0 %v10598
      %11914 = vmatpush1.bf16.msra.mxu0 %v10597
      %11915 = vmatprep.mubr.bf16.mxu0 %v1231
      %11916 = vmatmul.mubr.bf16.gmra.mrb[0].mxu0 %v1230
      %v11917 = vpop.f32.mrb[0].mxu0
      %v11918 = vadd.f32 %v11865, %v11917
      %v11919 = vpop.f32.mrb[0].mxu0
      %v11920 = vadd.f32 %v11867, %v11919
      %v11921 = vpop.f32.mrb[0].mxu0
      %v11922 = vadd.f32 %v11869, %v11921
      %v11923 = vpop.f32.mrb[0].mxu0
      %v11924 = vadd.f32 %v11871, %v11923
      %11925 = vmatprep.mubr.bf16.mxu0 %v1245
      %11926 = vmatmul.mubr.bf16.gmra.mrb[0].mxu0 %v1244
      %v11927 = vpop.f32.mrb[0].mxu0
      %v11928 = vadd.f32 %v11875, %v11927
      %v11929 = vpop.f32.mrb[0].mxu0
      %v11930 = vadd.f32 %v11877, %v11929
      %v11931 = vpop.f32.mrb[0].mxu0
      %v11932 = vadd.f32 %v11879, %v11931
      %v11933 = vpop.f32.mrb[0].mxu0
      %v11934 = vadd.f32 %v11881, %v11933
      %11935 = vdwg.mxu0
      %11936 = vmatprep.subr.bf16.mxu0 %v10605
      %11937 = vmatpush1.bf16.msra.mxu0 %v10604
      %11938 = vmatprep.subr.bf16.mxu0 %v10612
      %11939 = vmatpush1.bf16.msra.mxu0 %v10611
      %11940 = vmatprep.subr.bf16.mxu0 %v10619
      %11941 = vmatpush1.bf16.msra.mxu0 %v10618
      %11942 = vmatprep.subr.bf16.mxu0 %v10626
      %11943 = vmatpush1.bf16.msra.mxu0 %v10625
      %11944 = vmatprep.subr.bf16.mxu0 %v10633
      %11945 = vmatpush1.bf16.msra.mxu0 %v10632
      %11946 = vmatprep.subr.bf16.mxu0 %v10640
      %11947 = vmatpush1.bf16.msra.mxu0 %v10639
      %11948 = vmatprep.subr.bf16.mxu0 %v10647
      %11949 = vmatpush1.bf16.msra.mxu0 %v10646
      %11950 = vmatprep.subr.bf16.mxu0 %v10654
      %11951 = vmatpush1.bf16.msra.mxu0 %v10653
      %11952 = vmatprep.subr.bf16.mxu0 %v10661
      %11953 = vmatpush1.bf16.msra.mxu0 %v10660
      %11954 = vmatprep.subr.bf16.mxu0 %v10668
      %11955 = vmatpush1.bf16.msra.mxu0 %v10667
      %11956 = vmatprep.subr.bf16.mxu0 %v10675
      %11957 = vmatpush1.bf16.msra.mxu0 %v10674
      %11958 = vmatprep.subr.bf16.mxu0 %v10682
      %11959 = vmatpush1.bf16.msra.mxu0 %v10681
      %11960 = vmatprep.subr.bf16.mxu0 %v10689
      %11961 = vmatpush1.bf16.msra.mxu0 %v10688
      %11962 = vmatprep.subr.bf16.mxu0 %v10696
      %11963 = vmatpush1.bf16.msra.mxu0 %v10695
      %11964 = vmatprep.subr.bf16.mxu0 %v10703
      %11965 = vmatpush1.bf16.msra.mxu0 %v10702
      %11966 = vmatprep.subr.bf16.mxu0 %v10710
      %11967 = vmatpush1.bf16.msra.mxu0 %v10709
      %11968 = vmatprep.mubr.bf16.mxu0 %v1233
      %11969 = vmatmul.mubr.bf16.gmra.mrb[0].mxu0 %v1232
      %v11970 = vpop.f32.mrb[0].mxu0
      %v11971 = vadd.f32 %v11918, %v11970
      %v11972 = vpop.f32.mrb[0].mxu0
      %v11973 = vadd.f32 %v11920, %v11972
      %v11974 = vpop.f32.mrb[0].mxu0
      %v11975 = vadd.f32 %v11922, %v11974
      %v11976 = vpop.f32.mrb[0].mxu0
      %v11977 = vadd.f32 %v11924, %v11976
      %11978 = vmatprep.mubr.bf16.mxu0 %v1247
      %11979 = vmatmul.mubr.bf16.gmra.mrb[0].mxu0 %v1246
      %v11980 = vpop.f32.mrb[0].mxu0
      %v11981 = vadd.f32 %v11928, %v11980
      %v11982 = vpop.f32.mrb[0].mxu0
      %v11983 = vadd.f32 %v11930, %v11982
      %v11984 = vpop.f32.mrb[0].mxu0
      %v11985 = vadd.f32 %v11932, %v11984
      %v11986 = vpop.f32.mrb[0].mxu0
      %v11987 = vadd.f32 %v11934, %v11986
      %11988 = vdwg.mxu0
      %11989 = vmatprep.subr.bf16.mxu0 %v10717
      %11990 = vmatpush1.bf16.msra.mxu0 %v10716
      %11991 = vmatprep.subr.bf16.mxu0 %v10724
      %11992 = vmatpush1.bf16.msra.mxu0 %v10723
      %11993 = vmatprep.subr.bf16.mxu0 %v10731
      %11994 = vmatpush1.bf16.msra.mxu0 %v10730
      %11995 = vmatprep.subr.bf16.mxu0 %v10738
      %11996 = vmatpush1.bf16.msra.mxu0 %v10737
      %11997 = vmatprep.subr.bf16.mxu0 %v10745
      %11998 = vmatpush1.bf16.msra.mxu0 %v10744
      %11999 = vmatprep.subr.bf16.mxu0 %v10752
      %12000 = vmatpush1.bf16.msra.mxu0 %v10751
      %12001 = vmatprep.subr.bf16.mxu0 %v10759
      %12002 = vmatpush1.bf16.msra.mxu0 %v10758
      %12003 = vmatprep.subr.bf16.mxu0 %v10766
      %12004 = vmatpush1.bf16.msra.mxu0 %v10765
      %12005 = vmatprep.subr.bf16.mxu0 %v10773
      %12006 = vmatpush1.bf16.msra.mxu0 %v10772
      %12007 = vmatprep.subr.bf16.mxu0 %v10780
      %12008 = vmatpush1.bf16.msra.mxu0 %v10779
      %12009 = vmatprep.subr.bf16.mxu0 %v10787
      %12010 = vmatpush1.bf16.msra.mxu0 %v10786
      %12011 = vmatprep.subr.bf16.mxu0 %v10794
      %12012 = vmatpush1.bf16.msra.mxu0 %v10793
      %12013 = vmatprep.subr.bf16.mxu0 %v10801
      %12014 = vmatpush1.bf16.msra.mxu0 %v10800
      %12015 = vmatprep.subr.bf16.mxu0 %v10808
      %12016 = vmatpush1.bf16.msra.mxu0 %v10807
      %12017 = vmatprep.subr.bf16.mxu0 %v10815
      %12018 = vmatpush1.bf16.msra.mxu0 %v10814
      %12019 = vmatprep.subr.bf16.mxu0 %v10822
      %12020 = vmatpush1.bf16.msra.mxu0 %v10821
      %12021 = vmatprep.mubr.bf16.mxu0 %v1235
      %12022 = vmatmul.mubr.bf16.gmra.mrb[0].mxu0 %v1234
      %v12023 = vpop.f32.mrb[0].mxu0
      %v12024 = vadd.f32 %v11971, %v12023
      %v12025 = vpop.f32.mrb[0].mxu0
      %v12026 = vadd.f32 %v11973, %v12025
      %v12027 = vpop.f32.mrb[0].mxu0
      %v12028 = vadd.f32 %v11975, %v12027
      %v12029 = vpop.f32.mrb[0].mxu0
      %v12030 = vadd.f32 %v11977, %v12029
      %12031 = vmatprep.mubr.bf16.mxu0 %v1249
      %12032 = vmatmul.mubr.bf16.gmra.mrb[0].mxu0 %v1248
      %v12033 = vpop.f32.mrb[0].mxu0
      %v12034 = vadd.f32 %v11981, %v12033
      %v12035 = vpop.f32.mrb[0].mxu0
      %v12036 = vadd.f32 %v11983, %v12035
      %v12037 = vpop.f32.mrb[0].mxu0
      %v12038 = vadd.f32 %v11985, %v12037
      %v12039 = vpop.f32.mrb[0].mxu0
      %v12040 = vadd.f32 %v11987, %v12039
      %12041 = vdwg.mxu0
      %12042 = vmatprep.subr.bf16.mxu0 %v10829
      %12043 = vmatpush1.bf16.msra.mxu0 %v10828
      %12044 = vmatprep.subr.bf16.mxu0 %v10836
      %12045 = vmatpush1.bf16.msra.mxu0 %v10835
      %12046 = vmatprep.subr.bf16.mxu0 %v10843
      %12047 = vmatpush1.bf16.msra.mxu0 %v10842
      %12048 = vmatprep.subr.bf16.mxu0 %v10850
      %12049 = vmatpush1.bf16.msra.mxu0 %v10849
      %12050 = vmatprep.subr.bf16.mxu0 %v10857
      %12051 = vmatpush1.bf16.msra.mxu0 %v10856
      %12052 = vmatprep.subr.bf16.mxu0 %v10864
      %12053 = vmatpush1.bf16.msra.mxu0 %v10863
      %12054 = vmatprep.subr.bf16.mxu0 %v10871
      %12055 = vmatpush1.bf16.msra.mxu0 %v10870
      %12056 = vmatprep.subr.bf16.mxu0 %v10878
      %12057 = vmatpush1.bf16.msra.mxu0 %v10877
      %12058 = vmatprep.subr.bf16.mxu0 %v10885
      %12059 = vmatpush1.bf16.msra.mxu0 %v10884
      %12060 = vmatprep.subr.bf16.mxu0 %v10892
      %12061 = vmatpush1.bf16.msra.mxu0 %v10891
      %12062 = vmatprep.subr.bf16.mxu0 %v10899
      %12063 = vmatpush1.bf16.msra.mxu0 %v10898
      %12064 = vmatprep.subr.bf16.mxu0 %v10906
      %12065 = vmatpush1.bf16.msra.mxu0 %v10905
      %12066 = vmatprep.subr.bf16.mxu0 %v10913
      %12067 = vmatpush1.bf16.msra.mxu0 %v10912
      %12068 = vmatprep.subr.bf16.mxu0 %v10920
      %12069 = vmatpush1.bf16.msra.mxu0 %v10919
      %12070 = vmatprep.subr.bf16.mxu0 %v10927
      %12071 = vmatpush1.bf16.msra.mxu0 %v10926
      %12072 = vmatprep.subr.bf16.mxu0 %v10934
      %12073 = vmatpush1.bf16.msra.mxu0 %v10933
      %12074 = vmatprep.mubr.bf16.mxu0 %v1237
      %12075 = vmatmul.mubr.bf16.gmra.mrb[0].mxu0 %v1236
      %v12076 = vpop.f32.mrb[0].mxu0
      %v12077 = vadd.f32 %v12024, %v12076
      %v12078 = vpop.f32.mrb[0].mxu0
      %v12079 = vadd.f32 %v12026, %v12078
      %v12080 = vpop.f32.mrb[0].mxu0
      %v12081 = vadd.f32 %v12028, %v12080
      %v12082 = vpop.f32.mrb[0].mxu0
      %v12083 = vadd.f32 %v12030, %v12082
      %12084 = vmatprep.mubr.bf16.mxu0 %v1251
      %12085 = vmatmul.mubr.bf16.gmra.mrb[0].mxu0 %v1250
      %v12086 = vpop.f32.mrb[0].mxu0
      %v12087 = vadd.f32 %v12034, %v12086
      %v12088 = vpop.f32.mrb[0].mxu0
      %v12089 = vadd.f32 %v12036, %v12088
      %v12090 = vpop.f32.mrb[0].mxu0
      %v12091 = vadd.f32 %v12038, %v12090
      %v12092 = vpop.f32.mrb[0].mxu0
      %v12093 = vadd.f32 %v12040, %v12092
      %12094 = vdwg.mxu0
      %12095 = vmatprep.subr.bf16.mxu0 %v10159
      %12096 = vmatpush1.bf16.msra.mxu0 %v10158
      %12097 = vmatprep.subr.bf16.mxu0 %v10166
      %12098 = vmatpush1.bf16.msra.mxu0 %v10165
      %12099 = vmatprep.subr.bf16.mxu0 %v10173
      %12100 = vmatpush1.bf16.msra.mxu0 %v10172
      %12101 = vmatprep.subr.bf16.mxu0 %v10180
      %12102 = vmatpush1.bf16.msra.mxu0 %v10179
      %12103 = vmatprep.subr.bf16.mxu0 %v10187
      %12104 = vmatpush1.bf16.msra.mxu0 %v10186
      %12105 = vmatprep.subr.bf16.mxu0 %v10194
      %12106 = vmatpush1.bf16.msra.mxu0 %v10193
      %12107 = vmatprep.subr.bf16.mxu0 %v10201
      %12108 = vmatpush1.bf16.msra.mxu0 %v10200
      %12109 = vmatprep.subr.bf16.mxu0 %v10208
      %12110 = vmatpush1.bf16.msra.mxu0 %v10207
      %12111 = vmatprep.subr.bf16.mxu0 %v10215
      %12112 = vmatpush1.bf16.msra.mxu0 %v10214
      %12113 = vmatprep.subr.bf16.mxu0 %v10222
      %12114 = vmatpush1.bf16.msra.mxu0 %v10221
      %12115 = vmatprep.subr.bf16.mxu0 %v10229
      %12116 = vmatpush1.bf16.msra.mxu0 %v10228
      %12117 = vmatprep.subr.bf16.mxu0 %v10236
      %12118 = vmatpush1.bf16.msra.mxu0 %v10235
      %12119 = vmatprep.subr.bf16.mxu0 %v10243
      %12120 = vmatpush1.bf16.msra.mxu0 %v10242
      %12121 = vmatprep.subr.bf16.mxu0 %v10250
      %12122 = vmatpush1.bf16.msra.mxu0 %v10249
      %12123 = vmatprep.subr.bf16.mxu0 %v10257
      %12124 = vmatpush1.bf16.msra.mxu0 %v10256
      %12125 = vmatprep.subr.bf16.mxu0 %v10264
      %12126 = vmatpush1.bf16.msra.mxu0 %v10263
      %12127 = vmatprep.mubr.bf16.mxu0 %v1225
      %12128 = vmatmul.mubr.bf16.gmra.mrb[0].mxu0 %v1224
      %v12129 = vpop.f32.mrb[0].mxu0
      %v12130 = vadd.f32 0.0, %v12129
      %v12131 = vpop.f32.mrb[0].mxu0
      %v12132 = vadd.f32 0.0, %v12131
      %v12133 = vpop.f32.mrb[0].mxu0
      %v12134 = vadd.f32 0.0, %v12133
      %v12135 = vpop.f32.mrb[0].mxu0
      %v12136 = vadd.f32 0.0, %v12135
      %12137 = vmatprep.mubr.bf16.mxu0 %v1239
      %12138 = vmatmul.mubr.bf16.gmra.mrb[0].mxu0 %v1238
      %v12139 = vpop.f32.mrb[0].mxu0
      %v12140 = vadd.f32 0.0, %v12139
      %v12141 = vpop.f32.mrb[0].mxu0
      %v12142 = vadd.f32 0.0, %v12141
      %v12143 = vpop.f32.mrb[0].mxu0
      %v12144 = vadd.f32 0.0, %v12143
      %v12145 = vpop.f32.mrb[0].mxu0
      %v12146 = vadd.f32 0.0, %v12145
      %12147 = vdwg.mxu0
      %12148 = vmatprep.subr.bf16.mxu0 %v10271
      %12149 = vmatpush1.bf16.msra.mxu0 %v10270
      %12150 = vmatprep.subr.bf16.mxu0 %v10278
      %12151 = vmatpush1.bf16.msra.mxu0 %v10277
      %12152 = vmatprep.subr.bf16.mxu0 %v10285
      %12153 = vmatpush1.bf16.msra.mxu0 %v10284
      %12154 = vmatprep.subr.bf16.mxu0 %v10292
      %12155 = vmatpush1.bf16.msra.mxu0 %v10291
      %12156 = vmatprep.subr.bf16.mxu0 %v10299
      %12157 = vmatpush1.bf16.msra.mxu0 %v10298
      %12158 = vmatprep.subr.bf16.mxu0 %v10306
      %12159 = vmatpush1.bf16.msra.mxu0 %v10305
      %12160 = vmatprep.subr.bf16.mxu0 %v10313
      %12161 = vmatpush1.bf16.msra.mxu0 %v10312
      %12162 = vmatprep.subr.bf16.mxu0 %v10320
      %12163 = vmatpush1.bf16.msra.mxu0 %v10319
      %12164 = vmatprep.subr.bf16.mxu0 %v10327
      %12165 = vmatpush1.bf16.msra.mxu0 %v10326
      %12166 = vmatprep.subr.bf16.mxu0 %v10334
      %12167 = vmatpush1.bf16.msra.mxu0 %v10333
      %12168 = vmatprep.subr.bf16.mxu0 %v10341
      %12169 = vmatpush1.bf16.msra.mxu0 %v10340
      %12170 = vmatprep.subr.bf16.mxu0 %v10348
      %12171 = vmatpush1.bf16.msra.mxu0 %v10347
      %12172 = vmatprep.subr.bf16.mxu0 %v10355
      %12173 = vmatpush1.bf16.msra.mxu0 %v10354
      %12174 = vmatprep.subr.bf16.mxu0 %v10362
      %12175 = vmatpush1.bf16.msra.mxu0 %v10361
      %12176 = vmatprep.subr.bf16.mxu0 %v10369
      %12177 = vmatpush1.bf16.msra.mxu0 %v10368
      %12178 = vmatprep.subr.bf16.mxu0 %v10376
      %12179 = vmatpush1.bf16.msra.mxu0 %v10375
      %12180 = vmatprep.mubr.bf16.mxu0 %v1227
      %12181 = vmatmul.mubr.bf16.gmra.mrb[0].mxu0 %v1226
      %v12182 = vpop.f32.mrb[0].mxu0
      %v12183 = vadd.f32 %v12130, %v12182
      %v12184 = vpop.f32.mrb[0].mxu0
      %v12185 = vadd.f32 %v12132, %v12184
      %v12186 = vpop.f32.mrb[0].mxu0
      %v12187 = vadd.f32 %v12134, %v12186
      %v12188 = vpop.f32.mrb[0].mxu0
      %v12189 = vadd.f32 %v12136, %v12188
      %12190 = vmatprep.mubr.bf16.mxu0 %v1241
      %12191 = vmatmul.mubr.bf16.gmra.mrb[0].mxu0 %v1240
      %v12192 = vpop.f32.mrb[0].mxu0
      %v12193 = vadd.f32 %v12140, %v12192
      %v12194 = vpop.f32.mrb[0].mxu0
      %v12195 = vadd.f32 %v12142, %v12194
      %v12196 = vpop.f32.mrb[0].mxu0
      %v12197 = vadd.f32 %v12144, %v12196
      %v12198 = vpop.f32.mrb[0].mxu0
      %v12199 = vadd.f32 %v12146, %v12198
      %12200 = vdwg.mxu0
      %12201 = vmatprep.subr.bf16.mxu0 %v10383
      %12202 = vmatpush1.bf16.msra.mxu0 %v10382
      %12203 = vmatprep.subr.bf16.mxu0 %v10390
      %12204 = vmatpush1.bf16.msra.mxu0 %v10389
      %12205 = vmatprep.subr.bf16.mxu0 %v10397
      %12206 = vmatpush1.bf16.msra.mxu0 %v10396
      %12207 = vmatprep.subr.bf16.mxu0 %v10404
      %12208 = vmatpush1.bf16.msra.mxu0 %v10403
      %12209 = vmatprep.subr.bf16.mxu0 %v10411
      %12210 = vmatpush1.bf16.msra.mxu0 %v10410
      %12211 = vmatprep.subr.bf16.mxu0 %v10418
      %12212 = vmatpush1.bf16.msra.mxu0 %v10417
      %12213 = vmatprep.subr.bf16.mxu0 %v10425
      %12214 = vmatpush1.bf16.msra.mxu0 %v10424
      %12215 = vmatprep.subr.bf16.mxu0 %v10432
      %12216 = vmatpush1.bf16.msra.mxu0 %v10431
      %12217 = vmatprep.subr.bf16.mxu0 %v10439
      %12218 = vmatpush1.bf16.msra.mxu0 %v10438
      %12219 = vmatprep.subr.bf16.mxu0 %v10446
      %12220 = vmatpush1.bf16.msra.mxu0 %v10445
      %12221 = vmatprep.subr.bf16.mxu0 %v10453
      %12222 = vmatpush1.bf16.msra.mxu0 %v10452
      %12223 = vmatprep.subr.bf16.mxu0 %v10460
      %12224 = vmatpush1.bf16.msra.mxu0 %v10459
      %12225 = vmatprep.subr.bf16.mxu0 %v10467
      %12226 = vmatpush1.bf16.msra.mxu0 %v10466
      %12227 = vmatprep.subr.bf16.mxu0 %v10474
      %12228 = vmatpush1.bf16.msra.mxu0 %v10473
      %12229 = vmatprep.subr.bf16.mxu0 %v10481
      %12230 = vmatpush1.bf16.msra.mxu0 %v10480
      %12231 = vmatprep.subr.bf16.mxu0 %v10488
      %12232 = vmatpush1.bf16.msra.mxu0 %v10487
      %12233 = vmatprep.mubr.bf16.mxu0 %v1229
      %12234 = vmatmul.mubr.bf16.gmra.mrb[0].mxu0 %v1228
      %v12235 = vpop.f32.mrb[0].mxu0
      %v12236 = vadd.f32 %v12183, %v12235
      %v12237 = vpop.f32.mrb[0].mxu0
      %v12238 = vadd.f32 %v12185, %v12237
      %v12239 = vpop.f32.mrb[0].mxu0
      %v12240 = vadd.f32 %v12187, %v12239
      %v12241 = vpop.f32.mrb[0].mxu0
      %v12242 = vadd.f32 %v12189, %v12241
      %12243 = vmatprep.mubr.bf16.mxu0 %v1243
      %12244 = vmatmul.mubr.bf16.gmra.mrb[0].mxu0 %v1242
      %v12245 = vpop.f32.mrb[0].mxu0
      %v12246 = vadd.f32 %v12193, %v12245
      %v12247 = vpop.f32.mrb[0].mxu0
      %v12248 = vadd.f32 %v12195, %v12247
      %v12249 = vpop.f32.mrb[0].mxu0
      %v12250 = vadd.f32 %v12197, %v12249
      %v12251 = vpop.f32.mrb[0].mxu0
      %v12252 = vadd.f32 %v12199, %v12251
      %12253 = vdwg.mxu0
      %12254 = vmatprep.subr.bf16.mxu0 %v10495
      %12255 = vmatpush1.bf16.msra.mxu0 %v10494
      %12256 = vmatprep.subr.bf16.mxu0 %v10502
      %12257 = vmatpush1.bf16.msra.mxu0 %v10501
      %12258 = vmatprep.subr.bf16.mxu0 %v10509
      %12259 = vmatpush1.bf16.msra.mxu0 %v10508
      %12260 = vmatprep.subr.bf16.mxu0 %v10516
      %12261 = vmatpush1.bf16.msra.mxu0 %v10515
      %12262 = vmatprep.subr.bf16.mxu0 %v10523
      %12263 = vmatpush1.bf16.msra.mxu0 %v10522
      %12264 = vmatprep.subr.bf16.mxu0 %v10530
      %12265 = vmatpush1.bf16.msra.mxu0 %v10529
      %12266 = vmatprep.subr.bf16.mxu0 %v10537
      %12267 = vmatpush1.bf16.msra.mxu0 %v10536
      %12268 = vmatprep.subr.bf16.mxu0 %v10544
      %12269 = vmatpush1.bf16.msra.mxu0 %v10543
      %12270 = vmatprep.subr.bf16.mxu0 %v10551
      %12271 = vmatpush1.bf16.msra.mxu0 %v10550
      %12272 = vmatprep.subr.bf16.mxu0 %v10558
      %12273 = vmatpush1.bf16.msra.mxu0 %v10557
      %12274 = vmatprep.subr.bf16.mxu0 %v10565
      %12275 = vmatpush1.bf16.msra.mxu0 %v10564
      %12276 = vmatprep.subr.bf16.mxu0 %v10572
      %12277 = vmatpush1.bf16.msra.mxu0 %v10571
      %12278 = vmatprep.subr.bf16.mxu0 %v10579
      %12279 = vmatpush1.bf16.msra.mxu0 %v10578
      %12280 = vmatprep.subr.bf16.mxu0 %v10586
      %12281 = vmatpush1.bf16.msra.mxu0 %v10585
      %12282 = vmatprep.subr.bf16.mxu0 %v10593
      %12283 = vmatpush1.bf16.msra.mxu0 %v10592
      %12284 = vmatprep.subr.bf16.mxu0 %v10600
      %12285 = vmatpush1.bf16.msra.mxu0 %v10599
      %12286 = vmatprep.mubr.bf16.mxu0 %v1231
      %12287 = vmatmul.mubr.bf16.gmra.mrb[0].mxu0 %v1230
      %v12288 = vpop.f32.mrb[0].mxu0
      %v12289 = vadd.f32 %v12236, %v12288
      %v12290 = vpop.f32.mrb[0].mxu0
      %v12291 = vadd.f32 %v12238, %v12290
      %v12292 = vpop.f32.mrb[0].mxu0
      %v12293 = vadd.f32 %v12240, %v12292
      %v12294 = vpop.f32.mrb[0].mxu0
      %v12295 = vadd.f32 %v12242, %v12294
      %12296 = vmatprep.mubr.bf16.mxu0 %v1245
      %12297 = vmatmul.mubr.bf16.gmra.mrb[0].mxu0 %v1244
      %v12298 = vpop.f32.mrb[0].mxu0
      %v12299 = vadd.f32 %v12246, %v12298
      %v12300 = vpop.f32.mrb[0].mxu0
      %v12301 = vadd.f32 %v12248, %v12300
      %v12302 = vpop.f32.mrb[0].mxu0
      %v12303 = vadd.f32 %v12250, %v12302
      %v12304 = vpop.f32.mrb[0].mxu0
      %v12305 = vadd.f32 %v12252, %v12304
      %12306 = vdwg.mxu0
      %12307 = vmatprep.subr.bf16.mxu0 %v10607
      %12308 = vmatpush1.bf16.msra.mxu0 %v10606
      %12309 = vmatprep.subr.bf16.mxu0 %v10614
      %12310 = vmatpush1.bf16.msra.mxu0 %v10613
      %12311 = vmatprep.subr.bf16.mxu0 %v10621
      %12312 = vmatpush1.bf16.msra.mxu0 %v10620
      %12313 = vmatprep.subr.bf16.mxu0 %v10628
      %12314 = vmatpush1.bf16.msra.mxu0 %v10627
      %12315 = vmatprep.subr.bf16.mxu0 %v10635
      %12316 = vmatpush1.bf16.msra.mxu0 %v10634
      %12317 = vmatprep.subr.bf16.mxu0 %v10642
      %12318 = vmatpush1.bf16.msra.mxu0 %v10641
      %12319 = vmatprep.subr.bf16.mxu0 %v10649
      %12320 = vmatpush1.bf16.msra.mxu0 %v10648
      %12321 = vmatprep.subr.bf16.mxu0 %v10656
      %12322 = vmatpush1.bf16.msra.mxu0 %v10655
      %12323 = vmatprep.subr.bf16.mxu0 %v10663
      %12324 = vmatpush1.bf16.msra.mxu0 %v10662
      %12325 = vmatprep.subr.bf16.mxu0 %v10670
      %12326 = vmatpush1.bf16.msra.mxu0 %v10669
      %12327 = vmatprep.subr.bf16.mxu0 %v10677
      %12328 = vmatpush1.bf16.msra.mxu0 %v10676
      %12329 = vmatprep.subr.bf16.mxu0 %v10684
      %12330 = vmatpush1.bf16.msra.mxu0 %v10683
      %12331 = vmatprep.subr.bf16.mxu0 %v10691
      %12332 = vmatpush1.bf16.msra.mxu0 %v10690
      %12333 = vmatprep.subr.bf16.mxu0 %v10698
      %12334 = vmatpush1.bf16.msra.mxu0 %v10697
      %12335 = vmatprep.subr.bf16.mxu0 %v10705
      %12336 = vmatpush1.bf16.msra.mxu0 %v10704
      %12337 = vmatprep.subr.bf16.mxu0 %v10712
      %12338 = vmatpush1.bf16.msra.mxu0 %v10711
      %12339 = vmatprep.mubr.bf16.mxu0 %v1233
      %12340 = vmatmul.mubr.bf16.gmra.mrb[0].mxu0 %v1232
      %v12341 = vpop.f32.mrb[0].mxu0
      %v12342 = vadd.f32 %v12289, %v12341
      %v12343 = vpop.f32.mrb[0].mxu0
      %v12344 = vadd.f32 %v12291, %v12343
      %v12345 = vpop.f32.mrb[0].mxu0
      %v12346 = vadd.f32 %v12293, %v12345
      %v12347 = vpop.f32.mrb[0].mxu0
      %v12348 = vadd.f32 %v12295, %v12347
      %12349 = vmatprep.mubr.bf16.mxu0 %v1247
      %12350 = vmatmul.mubr.bf16.gmra.mrb[0].mxu0 %v1246
      %v12351 = vpop.f32.mrb[0].mxu0
      %v12352 = vadd.f32 %v12299, %v12351
      %v12353 = vpop.f32.mrb[0].mxu0
      %v12354 = vadd.f32 %v12301, %v12353
      %v12355 = vpop.f32.mrb[0].mxu0
      %v12356 = vadd.f32 %v12303, %v12355
      %v12357 = vpop.f32.mrb[0].mxu0
      %v12358 = vadd.f32 %v12305, %v12357
      %12359 = vdwg.mxu0
      %12360 = vmatprep.subr.bf16.mxu0 %v10719
      %12361 = vmatpush1.bf16.msra.mxu0 %v10718
      %12362 = vmatprep.subr.bf16.mxu0 %v10726
      %12363 = vmatpush1.bf16.msra.mxu0 %v10725
      %12364 = vmatprep.subr.bf16.mxu0 %v10733
      %12365 = vmatpush1.bf16.msra.mxu0 %v10732
      %12366 = vmatprep.subr.bf16.mxu0 %v10740
      %12367 = vmatpush1.bf16.msra.mxu0 %v10739
      %12368 = vmatprep.subr.bf16.mxu0 %v10747
      %12369 = vmatpush1.bf16.msra.mxu0 %v10746
      %12370 = vmatprep.subr.bf16.mxu0 %v10754
      %12371 = vmatpush1.bf16.msra.mxu0 %v10753
      %12372 = vmatprep.subr.bf16.mxu0 %v10761
      %12373 = vmatpush1.bf16.msra.mxu0 %v10760
      %12374 = vmatprep.subr.bf16.mxu0 %v10768
      %12375 = vmatpush1.bf16.msra.mxu0 %v10767
      %12376 = vmatprep.subr.bf16.mxu0 %v10775
      %12377 = vmatpush1.bf16.msra.mxu0 %v10774
      %12378 = vmatprep.subr.bf16.mxu0 %v10782
      %12379 = vmatpush1.bf16.msra.mxu0 %v10781
      %12380 = vmatprep.subr.bf16.mxu0 %v10789
      %12381 = vmatpush1.bf16.msra.mxu0 %v10788
      %12382 = vmatprep.subr.bf16.mxu0 %v10796
      %12383 = vmatpush1.bf16.msra.mxu0 %v10795
      %12384 = vmatprep.subr.bf16.mxu0 %v10803
      %12385 = vmatpush1.bf16.msra.mxu0 %v10802
      %12386 = vmatprep.subr.bf16.mxu0 %v10810
      %12387 = vmatpush1.bf16.msra.mxu0 %v10809
      %12388 = vmatprep.subr.bf16.mxu0 %v10817
      %12389 = vmatpush1.bf16.msra.mxu0 %v10816
      %12390 = vmatprep.subr.bf16.mxu0 %v10824
      %12391 = vmatpush1.bf16.msra.mxu0 %v10823
      %12392 = vmatprep.mubr.bf16.mxu0 %v1235
      %12393 = vmatmul.mubr.bf16.gmra.mrb[0].mxu0 %v1234
      %v12394 = vpop.f32.mrb[0].mxu0
      %v12395 = vadd.f32 %v12342, %v12394
      %v12396 = vpop.f32.mrb[0].mxu0
      %v12397 = vadd.f32 %v12344, %v12396
      %v12398 = vpop.f32.mrb[0].mxu0
      %v12399 = vadd.f32 %v12346, %v12398
      %v12400 = vpop.f32.mrb[0].mxu0
      %v12401 = vadd.f32 %v12348, %v12400
      %12402 = vmatprep.mubr.bf16.mxu0 %v1249
      %12403 = vmatmul.mubr.bf16.gmra.mrb[0].mxu0 %v1248
      %v12404 = vpop.f32.mrb[0].mxu0
      %v12405 = vadd.f32 %v12352, %v12404
      %v12406 = vpop.f32.mrb[0].mxu0
      %v12407 = vadd.f32 %v12354, %v12406
      %v12408 = vpop.f32.mrb[0].mxu0
      %v12409 = vadd.f32 %v12356, %v12408
      %v12410 = vpop.f32.mrb[0].mxu0
      %v12411 = vadd.f32 %v12358, %v12410
      %12412 = vdwg.mxu0
      %12413 = vmatprep.subr.bf16.mxu0 %v10831
      %12414 = vmatpush1.bf16.msra.mxu0 %v10830
      %12415 = vmatprep.subr.bf16.mxu0 %v10838
      %12416 = vmatpush1.bf16.msra.mxu0 %v10837
      %12417 = vmatprep.subr.bf16.mxu0 %v10845
      %12418 = vmatpush1.bf16.msra.mxu0 %v10844
      %12419 = vmatprep.subr.bf16.mxu0 %v10852
      %12420 = vmatpush1.bf16.msra.mxu0 %v10851
      %12421 = vmatprep.subr.bf16.mxu0 %v10859
      %12422 = vmatpush1.bf16.msra.mxu0 %v10858
      %12423 = vmatprep.subr.bf16.mxu0 %v10866
      %12424 = vmatpush1.bf16.msra.mxu0 %v10865
      %12425 = vmatprep.subr.bf16.mxu0 %v10873
      %12426 = vmatpush1.bf16.msra.mxu0 %v10872
      %12427 = vmatprep.subr.bf16.mxu0 %v10880
      %12428 = vmatpush1.bf16.msra.mxu0 %v10879
      %12429 = vmatprep.subr.bf16.mxu0 %v10887
      %12430 = vmatpush1.bf16.msra.mxu0 %v10886
      %12431 = vmatprep.subr.bf16.mxu0 %v10894
      %12432 = vmatpush1.bf16.msra.mxu0 %v10893
      %12433 = vmatprep.subr.bf16.mxu0 %v10901
      %12434 = vmatpush1.bf16.msra.mxu0 %v10900
      %12435 = vmatprep.subr.bf16.mxu0 %v10908
      %12436 = vmatpush1.bf16.msra.mxu0 %v10907
      %12437 = vmatprep.subr.bf16.mxu0 %v10915
      %12438 = vmatpush1.bf16.msra.mxu0 %v10914
      %12439 = vmatprep.subr.bf16.mxu0 %v10922
      %12440 = vmatpush1.bf16.msra.mxu0 %v10921
      %12441 = vmatprep.subr.bf16.mxu0 %v10929
      %12442 = vmatpush1.bf16.msra.mxu0 %v10928
      %12443 = vmatprep.subr.bf16.mxu0 %v10936
      %12444 = vmatpush1.bf16.msra.mxu0 %v10935
      %12445 = vmatprep.mubr.bf16.mxu0 %v1237
      %12446 = vmatmul.mubr.bf16.gmra.mrb[0].mxu0 %v1236
      %v12447 = vpop.f32.mrb[0].mxu0
      %v12448 = vadd.f32 %v12395, %v12447
      %v12449 = vpop.f32.mrb[0].mxu0
      %v12450 = vadd.f32 %v12397, %v12449
      %v12451 = vpop.f32.mrb[0].mxu0
      %v12452 = vadd.f32 %v12399, %v12451
      %v12453 = vpop.f32.mrb[0].mxu0
      %v12454 = vadd.f32 %v12401, %v12453
      %12455 = vmatprep.mubr.bf16.mxu0 %v1251
      %12456 = vmatmul.mubr.bf16.gmra.mrb[0].mxu0 %v1250
      %v12457 = vpop.f32.mrb[0].mxu0
      %v12458 = vadd.f32 %v12405, %v12457
      %v12459 = vpop.f32.mrb[0].mxu0
      %v12460 = vadd.f32 %v12407, %v12459
      %v12461 = vpop.f32.mrb[0].mxu0
      %v12462 = vadd.f32 %v12409, %v12461
      %v12463 = vpop.f32.mrb[0].mxu0
      %v12464 = vadd.f32 %v12411, %v12463
      %12465 = vdwg.mxu0
      %12466 = vmatprep.subr.bf16.mxu0 %v10161
      %12467 = vmatpush1.bf16.msra.mxu0 %v10160
      %12468 = vmatprep.subr.bf16.mxu0 %v10168
      %12469 = vmatpush1.bf16.msra.mxu0 %v10167
      %12470 = vmatprep.subr.bf16.mxu0 %v10175
      %12471 = vmatpush1.bf16.msra.mxu0 %v10174
      %12472 = vmatprep.subr.bf16.mxu0 %v10182
      %12473 = vmatpush1.bf16.msra.mxu0 %v10181
      %12474 = vmatprep.subr.bf16.mxu0 %v10189
      %12475 = vmatpush1.bf16.msra.mxu0 %v10188
      %12476 = vmatprep.subr.bf16.mxu0 %v10196
      %12477 = vmatpush1.bf16.msra.mxu0 %v10195
      %12478 = vmatprep.subr.bf16.mxu0 %v10203
      %12479 = vmatpush1.bf16.msra.mxu0 %v10202
      %12480 = vmatprep.subr.bf16.mxu0 %v10210
      %12481 = vmatpush1.bf16.msra.mxu0 %v10209
      %12482 = vmatprep.subr.bf16.mxu0 %v10217
      %12483 = vmatpush1.bf16.msra.mxu0 %v10216
      %12484 = vmatprep.subr.bf16.mxu0 %v10224
      %12485 = vmatpush1.bf16.msra.mxu0 %v10223
      %12486 = vmatprep.subr.bf16.mxu0 %v10231
      %12487 = vmatpush1.bf16.msra.mxu0 %v10230
      %12488 = vmatprep.subr.bf16.mxu0 %v10238
      %12489 = vmatpush1.bf16.msra.mxu0 %v10237
      %12490 = vmatprep.subr.bf16.mxu0 %v10245
      %12491 = vmatpush1.bf16.msra.mxu0 %v10244
      %12492 = vmatprep.subr.bf16.mxu0 %v10252
      %12493 = vmatpush1.bf16.msra.mxu0 %v10251
      %12494 = vmatprep.subr.bf16.mxu0 %v10259
      %12495 = vmatpush1.bf16.msra.mxu0 %v10258
      %12496 = vmatprep.subr.bf16.mxu0 %v10266
      %12497 = vmatpush1.bf16.msra.mxu0 %v10265
      %12498 = vmatprep.mubr.bf16.mxu0 %v1225
      %12499 = vmatmul.mubr.bf16.gmra.mrb[0].mxu0 %v1224
      %v12500 = vpop.f32.mrb[0].mxu0
      %v12501 = vadd.f32 0.0, %v12500
      %v12502 = vpop.f32.mrb[0].mxu0
      %v12503 = vadd.f32 0.0, %v12502
      %v12504 = vpop.f32.mrb[0].mxu0
      %v12505 = vadd.f32 0.0, %v12504
      %v12506 = vpop.f32.mrb[0].mxu0
      %v12507 = vadd.f32 0.0, %v12506
      %12508 = vmatprep.mubr.bf16.mxu0 %v1239
      %12509 = vmatmul.mubr.bf16.gmra.mrb[0].mxu0 %v1238
      %v12510 = vpop.f32.mrb[0].mxu0
      %v12511 = vadd.f32 0.0, %v12510
      %v12512 = vpop.f32.mrb[0].mxu0
      %v12513 = vadd.f32 0.0, %v12512
      %v12514 = vpop.f32.mrb[0].mxu0
      %v12515 = vadd.f32 0.0, %v12514
      %v12516 = vpop.f32.mrb[0].mxu0
      %v12517 = vadd.f32 0.0, %v12516
      %12518 = vdwg.mxu0
      %12519 = vmatprep.subr.bf16.mxu0 %v10273
      %12520 = vmatpush1.bf16.msra.mxu0 %v10272
      %12521 = vmatprep.subr.bf16.mxu0 %v10280
      %12522 = vmatpush1.bf16.msra.mxu0 %v10279
      %12523 = vmatprep.subr.bf16.mxu0 %v10287
      %12524 = vmatpush1.bf16.msra.mxu0 %v10286
      %12525 = vmatprep.subr.bf16.mxu0 %v10294
      %12526 = vmatpush1.bf16.msra.mxu0 %v10293
      %12527 = vmatprep.subr.bf16.mxu0 %v10301
      %12528 = vmatpush1.bf16.msra.mxu0 %v10300
      %12529 = vmatprep.subr.bf16.mxu0 %v10308
      %12530 = vmatpush1.bf16.msra.mxu0 %v10307
      %12531 = vmatprep.subr.bf16.mxu0 %v10315
      %12532 = vmatpush1.bf16.msra.mxu0 %v10314
      %12533 = vmatprep.subr.bf16.mxu0 %v10322
      %12534 = vmatpush1.bf16.msra.mxu0 %v10321
      %12535 = vmatprep.subr.bf16.mxu0 %v10329
      %12536 = vmatpush1.bf16.msra.mxu0 %v10328
      %12537 = vmatprep.subr.bf16.mxu0 %v10336
      %12538 = vmatpush1.bf16.msra.mxu0 %v10335
      %12539 = vmatprep.subr.bf16.mxu0 %v10343
      %12540 = vmatpush1.bf16.msra.mxu0 %v10342
      %12541 = vmatprep.subr.bf16.mxu0 %v10350
      %12542 = vmatpush1.bf16.msra.mxu0 %v10349
      %12543 = vmatprep.subr.bf16.mxu0 %v10357
      %12544 = vmatpush1.bf16.msra.mxu0 %v10356
      %12545 = vmatprep.subr.bf16.mxu0 %v10364
      %12546 = vmatpush1.bf16.msra.mxu0 %v10363
      %12547 = vmatprep.subr.bf16.mxu0 %v10371
      %12548 = vmatpush1.bf16.msra.mxu0 %v10370
      %12549 = vmatprep.subr.bf16.mxu0 %v10378
      %12550 = vmatpush1.bf16.msra.mxu0 %v10377
      %12551 = vmatprep.mubr.bf16.mxu0 %v1227
      %12552 = vmatmul.mubr.bf16.gmra.mrb[0].mxu0 %v1226
      %v12553 = vpop.f32.mrb[0].mxu0
      %v12554 = vadd.f32 %v12501, %v12553
      %v12555 = vpop.f32.mrb[0].mxu0
      %v12556 = vadd.f32 %v12503, %v12555
      %v12557 = vpop.f32.mrb[0].mxu0
      %v12558 = vadd.f32 %v12505, %v12557
      %v12559 = vpop.f32.mrb[0].mxu0
      %v12560 = vadd.f32 %v12507, %v12559
      %12561 = vmatprep.mubr.bf16.mxu0 %v1241
      %12562 = vmatmul.mubr.bf16.gmra.mrb[0].mxu0 %v1240
      %v12563 = vpop.f32.mrb[0].mxu0
      %v12564 = vadd.f32 %v12511, %v12563
      %v12565 = vpop.f32.mrb[0].mxu0
      %v12566 = vadd.f32 %v12513, %v12565
      %v12567 = vpop.f32.mrb[0].mxu0
      %v12568 = vadd.f32 %v12515, %v12567
      %v12569 = vpop.f32.mrb[0].mxu0
      %v12570 = vadd.f32 %v12517, %v12569
      %12571 = vdwg.mxu0
      %12572 = vmatprep.subr.bf16.mxu0 %v10385
      %12573 = vmatpush1.bf16.msra.mxu0 %v10384
      %12574 = vmatprep.subr.bf16.mxu0 %v10392
      %12575 = vmatpush1.bf16.msra.mxu0 %v10391
      %12576 = vmatprep.subr.bf16.mxu0 %v10399
      %12577 = vmatpush1.bf16.msra.mxu0 %v10398
      %12578 = vmatprep.subr.bf16.mxu0 %v10406
      %12579 = vmatpush1.bf16.msra.mxu0 %v10405
      %12580 = vmatprep.subr.bf16.mxu0 %v10413
      %12581 = vmatpush1.bf16.msra.mxu0 %v10412
      %12582 = vmatprep.subr.bf16.mxu0 %v10420
      %12583 = vmatpush1.bf16.msra.mxu0 %v10419
      %12584 = vmatprep.subr.bf16.mxu0 %v10427
      %12585 = vmatpush1.bf16.msra.mxu0 %v10426
      %12586 = vmatprep.subr.bf16.mxu0 %v10434
      %12587 = vmatpush1.bf16.msra.mxu0 %v10433
      %12588 = vmatprep.subr.bf16.mxu0 %v10441
      %12589 = vmatpush1.bf16.msra.mxu0 %v10440
      %12590 = vmatprep.subr.bf16.mxu0 %v10448
      %12591 = vmatpush1.bf16.msra.mxu0 %v10447
      %12592 = vmatprep.subr.bf16.mxu0 %v10455
      %12593 = vmatpush1.bf16.msra.mxu0 %v10454
      %12594 = vmatprep.subr.bf16.mxu0 %v10462
      %12595 = vmatpush1.bf16.msra.mxu0 %v10461
      %12596 = vmatprep.subr.bf16.mxu0 %v10469
      %12597 = vmatpush1.bf16.msra.mxu0 %v10468
      %12598 = vmatprep.subr.bf16.mxu0 %v10476
      %12599 = vmatpush1.bf16.msra.mxu0 %v10475
      %12600 = vmatprep.subr.bf16.mxu0 %v10483
      %12601 = vmatpush1.bf16.msra.mxu0 %v10482
      %12602 = vmatprep.subr.bf16.mxu0 %v10490
      %12603 = vmatpush1.bf16.msra.mxu0 %v10489
      %12604 = vmatprep.mubr.bf16.mxu0 %v1229
      %12605 = vmatmul.mubr.bf16.gmra.mrb[0].mxu0 %v1228
      %v12606 = vpop.f32.mrb[0].mxu0
      %v12607 = vadd.f32 %v12554, %v12606
      %v12608 = vpop.f32.mrb[0].mxu0
      %v12609 = vadd.f32 %v12556, %v12608
      %v12610 = vpop.f32.mrb[0].mxu0
      %v12611 = vadd.f32 %v12558, %v12610
      %v12612 = vpop.f32.mrb[0].mxu0
      %v12613 = vadd.f32 %v12560, %v12612
      %12614 = vmatprep.mubr.bf16.mxu0 %v1243
      %12615 = vmatmul.mubr.bf16.gmra.mrb[0].mxu0 %v1242
      %v12616 = vpop.f32.mrb[0].mxu0
      %v12617 = vadd.f32 %v12564, %v12616
      %v12618 = vpop.f32.mrb[0].mxu0
      %v12619 = vadd.f32 %v12566, %v12618
      %v12620 = vpop.f32.mrb[0].mxu0
      %v12621 = vadd.f32 %v12568, %v12620
      %v12622 = vpop.f32.mrb[0].mxu0
      %v12623 = vadd.f32 %v12570, %v12622
      %12624 = vdwg.mxu0
      %12625 = vmatprep.subr.bf16.mxu0 %v10497
      %12626 = vmatpush1.bf16.msra.mxu0 %v10496
      %12627 = vmatprep.subr.bf16.mxu0 %v10504
      %12628 = vmatpush1.bf16.msra.mxu0 %v10503
      %12629 = vmatprep.subr.bf16.mxu0 %v10511
      %12630 = vmatpush1.bf16.msra.mxu0 %v10510
      %12631 = vmatprep.subr.bf16.mxu0 %v10518
      %12632 = vmatpush1.bf16.msra.mxu0 %v10517
      %12633 = vmatprep.subr.bf16.mxu0 %v10525
      %12634 = vmatpush1.bf16.msra.mxu0 %v10524
      %12635 = vmatprep.subr.bf16.mxu0 %v10532
      %12636 = vmatpush1.bf16.msra.mxu0 %v10531
      %12637 = vmatprep.subr.bf16.mxu0 %v10539
      %12638 = vmatpush1.bf16.msra.mxu0 %v10538
      %12639 = vmatprep.subr.bf16.mxu0 %v10546
      %12640 = vmatpush1.bf16.msra.mxu0 %v10545
      %12641 = vmatprep.subr.bf16.mxu0 %v10553
      %12642 = vmatpush1.bf16.msra.mxu0 %v10552
      %12643 = vmatprep.subr.bf16.mxu0 %v10560
      %12644 = vmatpush1.bf16.msra.mxu0 %v10559
      %12645 = vmatprep.subr.bf16.mxu0 %v10567
      %12646 = vmatpush1.bf16.msra.mxu0 %v10566
      %12647 = vmatprep.subr.bf16.mxu0 %v10574
      %12648 = vmatpush1.bf16.msra.mxu0 %v10573
      %12649 = vmatprep.subr.bf16.mxu0 %v10581
      %12650 = vmatpush1.bf16.msra.mxu0 %v10580
      %12651 = vmatprep.subr.bf16.mxu0 %v10588
      %12652 = vmatpush1.bf16.msra.mxu0 %v10587
      %12653 = vmatprep.subr.bf16.mxu0 %v10595
      %12654 = vmatpush1.bf16.msra.mxu0 %v10594
      %12655 = vmatprep.subr.bf16.mxu0 %v10602
      %12656 = vmatpush1.bf16.msra.mxu0 %v10601
      %12657 = vmatprep.mubr.bf16.mxu0 %v1231
      %12658 = vmatmul.mubr.bf16.gmra.mrb[0].mxu0 %v1230
      %v12659 = vpop.f32.mrb[0].mxu0
      %v12660 = vadd.f32 %v12607, %v12659
      %v12661 = vpop.f32.mrb[0].mxu0
      %v12662 = vadd.f32 %v12609, %v12661
      %v12663 = vpop.f32.mrb[0].mxu0
      %v12664 = vadd.f32 %v12611, %v12663
      %v12665 = vpop.f32.mrb[0].mxu0
      %v12666 = vadd.f32 %v12613, %v12665
      %12667 = vmatprep.mubr.bf16.mxu0 %v1245
      %12668 = vmatmul.mubr.bf16.gmra.mrb[0].mxu0 %v1244
      %v12669 = vpop.f32.mrb[0].mxu0
      %v12670 = vadd.f32 %v12617, %v12669
      %v12671 = vpop.f32.mrb[0].mxu0
      %v12672 = vadd.f32 %v12619, %v12671
      %v12673 = vpop.f32.mrb[0].mxu0
      %v12674 = vadd.f32 %v12621, %v12673
      %v12675 = vpop.f32.mrb[0].mxu0
      %v12676 = vadd.f32 %v12623, %v12675
      %12677 = vdwg.mxu0
      %12678 = vmatprep.subr.bf16.mxu0 %v10609
      %12679 = vmatpush1.bf16.msra.mxu0 %v10608
      %12680 = vmatprep.subr.bf16.mxu0 %v10616
      %12681 = vmatpush1.bf16.msra.mxu0 %v10615
      %12682 = vmatprep.subr.bf16.mxu0 %v10623
      %12683 = vmatpush1.bf16.msra.mxu0 %v10622
      %12684 = vmatprep.subr.bf16.mxu0 %v10630
      %12685 = vmatpush1.bf16.msra.mxu0 %v10629
      %12686 = vmatprep.subr.bf16.mxu0 %v10637
      %12687 = vmatpush1.bf16.msra.mxu0 %v10636
      %12688 = vmatprep.subr.bf16.mxu0 %v10644
      %12689 = vmatpush1.bf16.msra.mxu0 %v10643
      %12690 = vmatprep.subr.bf16.mxu0 %v10651
      %12691 = vmatpush1.bf16.msra.mxu0 %v10650
      %12692 = vmatprep.subr.bf16.mxu0 %v10658
      %12693 = vmatpush1.bf16.msra.mxu0 %v10657
      %12694 = vmatprep.subr.bf16.mxu0 %v10665
      %12695 = vmatpush1.bf16.msra.mxu0 %v10664
      %12696 = vmatprep.subr.bf16.mxu0 %v10672
      %12697 = vmatpush1.bf16.msra.mxu0 %v10671
      %12698 = vmatprep.subr.bf16.mxu0 %v10679
      %12699 = vmatpush1.bf16.msra.mxu0 %v10678
      %12700 = vmatprep.subr.bf16.mxu0 %v10686
      %12701 = vmatpush1.bf16.msra.mxu0 %v10685
      %12702 = vmatprep.subr.bf16.mxu0 %v10693
      %12703 = vmatpush1.bf16.msra.mxu0 %v10692
      %12704 = vmatprep.subr.bf16.mxu0 %v10700
      %12705 = vmatpush1.bf16.msra.mxu0 %v10699
      %12706 = vmatprep.subr.bf16.mxu0 %v10707
      %12707 = vmatpush1.bf16.msra.mxu0 %v10706
      %12708 = vmatprep.subr.bf16.mxu0 %v10714
      %12709 = vmatpush1.bf16.msra.mxu0 %v10713
      %12710 = vmatprep.mubr.bf16.mxu0 %v1233
      %12711 = vmatmul.mubr.bf16.gmra.mrb[0].mxu0 %v1232
      %v12712 = vpop.f32.mrb[0].mxu0
      %v12713 = vadd.f32 %v12660, %v12712
      %v12714 = vpop.f32.mrb[0].mxu0
      %v12715 = vadd.f32 %v12662, %v12714
      %v12716 = vpop.f32.mrb[0].mxu0
      %v12717 = vadd.f32 %v12664, %v12716
      %v12718 = vpop.f32.mrb[0].mxu0
      %v12719 = vadd.f32 %v12666, %v12718
      %12720 = vmatprep.mubr.bf16.mxu0 %v1247
      %12721 = vmatmul.mubr.bf16.gmra.mrb[0].mxu0 %v1246
      %v12722 = vpop.f32.mrb[0].mxu0
      %v12723 = vadd.f32 %v12670, %v12722
      %v12724 = vpop.f32.mrb[0].mxu0
      %v12725 = vadd.f32 %v12672, %v12724
      %v12726 = vpop.f32.mrb[0].mxu0
      %v12727 = vadd.f32 %v12674, %v12726
      %v12728 = vpop.f32.mrb[0].mxu0
      %v12729 = vadd.f32 %v12676, %v12728
      %12730 = vdwg.mxu0
      %12731 = vmatprep.subr.bf16.mxu0 %v10721
      %12732 = vmatpush1.bf16.msra.mxu0 %v10720
      %12733 = vmatprep.subr.bf16.mxu0 %v10728
      %12734 = vmatpush1.bf16.msra.mxu0 %v10727
      %12735 = vmatprep.subr.bf16.mxu0 %v10735
      %12736 = vmatpush1.bf16.msra.mxu0 %v10734
      %12737 = vmatprep.subr.bf16.mxu0 %v10742
      %12738 = vmatpush1.bf16.msra.mxu0 %v10741
      %12739 = vmatprep.subr.bf16.mxu0 %v10749
      %12740 = vmatpush1.bf16.msra.mxu0 %v10748
      %12741 = vmatprep.subr.bf16.mxu0 %v10756
      %12742 = vmatpush1.bf16.msra.mxu0 %v10755
      %12743 = vmatprep.subr.bf16.mxu0 %v10763
      %12744 = vmatpush1.bf16.msra.mxu0 %v10762
      %12745 = vmatprep.subr.bf16.mxu0 %v10770
      %12746 = vmatpush1.bf16.msra.mxu0 %v10769
      %12747 = vmatprep.subr.bf16.mxu0 %v10777
      %12748 = vmatpush1.bf16.msra.mxu0 %v10776
      %12749 = vmatprep.subr.bf16.mxu0 %v10784
      %12750 = vmatpush1.bf16.msra.mxu0 %v10783
      %12751 = vmatprep.subr.bf16.mxu0 %v10791
      %12752 = vmatpush1.bf16.msra.mxu0 %v10790
      %12753 = vmatprep.subr.bf16.mxu0 %v10798
      %12754 = vmatpush1.bf16.msra.mxu0 %v10797
      %12755 = vmatprep.subr.bf16.mxu0 %v10805
      %12756 = vmatpush1.bf16.msra.mxu0 %v10804
      %12757 = vmatprep.subr.bf16.mxu0 %v10812
      %12758 = vmatpush1.bf16.msra.mxu0 %v10811
      %12759 = vmatprep.subr.bf16.mxu0 %v10819
      %12760 = vmatpush1.bf16.msra.mxu0 %v10818
      %12761 = vmatprep.subr.bf16.mxu0 %v10826
      %12762 = vmatpush1.bf16.msra.mxu0 %v10825
      %12763 = vmatprep.mubr.bf16.mxu0 %v1235
      %12764 = vmatmul.mubr.bf16.gmra.mrb[0].mxu0 %v1234
      %v12765 = vpop.f32.mrb[0].mxu0
      %v12766 = vadd.f32 %v12713, %v12765
      %v12767 = vpop.f32.mrb[0].mxu0
      %v12768 = vadd.f32 %v12715, %v12767
      %v12769 = vpop.f32.mrb[0].mxu0
      %v12770 = vadd.f32 %v12717, %v12769
      %v12771 = vpop.f32.mrb[0].mxu0
      %v12772 = vadd.f32 %v12719, %v12771
      %12773 = vmatprep.mubr.bf16.mxu0 %v1249
      %12774 = vmatmul.mubr.bf16.gmra.mrb[0].mxu0 %v1248
      %v12775 = vpop.f32.mrb[0].mxu0
      %v12776 = vadd.f32 %v12723, %v12775
      %v12777 = vpop.f32.mrb[0].mxu0
      %v12778 = vadd.f32 %v12725, %v12777
      %v12779 = vpop.f32.mrb[0].mxu0
      %v12780 = vadd.f32 %v12727, %v12779
      %v12781 = vpop.f32.mrb[0].mxu0
      %v12782 = vadd.f32 %v12729, %v12781
      %12783 = vdwg.mxu0
      %12784 = vmatprep.subr.bf16.mxu0 %v10833
      %12785 = vmatpush1.bf16.msra.mxu0 %v10832
      %12786 = vmatprep.subr.bf16.mxu0 %v10840
      %12787 = vmatpush1.bf16.msra.mxu0 %v10839
      %12788 = vmatprep.subr.bf16.mxu0 %v10847
      %12789 = vmatpush1.bf16.msra.mxu0 %v10846
      %12790 = vmatprep.subr.bf16.mxu0 %v10854
      %12791 = vmatpush1.bf16.msra.mxu0 %v10853
      %12792 = vmatprep.subr.bf16.mxu0 %v10861
      %12793 = vmatpush1.bf16.msra.mxu0 %v10860
      %12794 = vmatprep.subr.bf16.mxu0 %v10868
      %12795 = vmatpush1.bf16.msra.mxu0 %v10867
      %12796 = vmatprep.subr.bf16.mxu0 %v10875
      %12797 = vmatpush1.bf16.msra.mxu0 %v10874
      %12798 = vmatprep.subr.bf16.mxu0 %v10882
      %12799 = vmatpush1.bf16.msra.mxu0 %v10881
      %12800 = vmatprep.subr.bf16.mxu0 %v10889
      %12801 = vmatpush1.bf16.msra.mxu0 %v10888
      %12802 = vmatprep.subr.bf16.mxu0 %v10896
      %12803 = vmatpush1.bf16.msra.mxu0 %v10895
      %12804 = vmatprep.subr.bf16.mxu0 %v10903
      %12805 = vmatpush1.bf16.msra.mxu0 %v10902
      %12806 = vmatprep.subr.bf16.mxu0 %v10910
      %12807 = vmatpush1.bf16.msra.mxu0 %v10909
      %12808 = vmatprep.subr.bf16.mxu0 %v10917
      %12809 = vmatpush1.bf16.msra.mxu0 %v10916
      %12810 = vmatprep.subr.bf16.mxu0 %v10924
      %12811 = vmatpush1.bf16.msra.mxu0 %v10923
      %12812 = vmatprep.subr.bf16.mxu0 %v10931
      %12813 = vmatpush1.bf16.msra.mxu0 %v10930
      %12814 = vmatprep.subr.bf16.mxu0 %v10938
      %12815 = vmatpush1.bf16.msra.mxu0 %v10937
      %12816 = vmatprep.mubr.bf16.mxu0 %v1237
      %12817 = vmatmul.mubr.bf16.gmra.mrb[0].mxu0 %v1236
      %v12818 = vpop.f32.mrb[0].mxu0
      %v12819 = vadd.f32 %v12766, %v12818
      %v12820 = vpop.f32.mrb[0].mxu0
      %v12821 = vadd.f32 %v12768, %v12820
      %v12822 = vpop.f32.mrb[0].mxu0
      %v12823 = vadd.f32 %v12770, %v12822
      %v12824 = vpop.f32.mrb[0].mxu0
      %v12825 = vadd.f32 %v12772, %v12824
      %12826 = vmatprep.mubr.bf16.mxu0 %v1251
      %12827 = vmatmul.mubr.bf16.gmra.mrb[0].mxu0 %v1250
      %v12828 = vpop.f32.mrb[0].mxu0
      %v12829 = vadd.f32 %v12776, %v12828
      %v12830 = vpop.f32.mrb[0].mxu0
      %v12831 = vadd.f32 %v12778, %v12830
      %v12832 = vpop.f32.mrb[0].mxu0
      %v12833 = vadd.f32 %v12780, %v12832
      %v12834 = vpop.f32.mrb[0].mxu0
      %v12835 = vadd.f32 %v12782, %v12834
      %12836 = vdwg.mxu0
      %12837 = vmatprep.subr.bf16.mxu0 0
      %12838 = vmatpush1.bf16.msra.mxu0 %v10162
      %12839 = vmatprep.subr.bf16.mxu0 0
      %12840 = vmatpush1.bf16.msra.mxu0 %v10169
      %12841 = vmatprep.subr.bf16.mxu0 0
      %12842 = vmatpush1.bf16.msra.mxu0 %v10176
      %12843 = vmatprep.subr.bf16.mxu0 0
      %12844 = vmatpush1.bf16.msra.mxu0 %v10183
      %12845 = vmatprep.subr.bf16.mxu0 0
      %12846 = vmatpush1.bf16.msra.mxu0 %v10190
      %12847 = vmatprep.subr.bf16.mxu0 0
      %12848 = vmatpush1.bf16.msra.mxu0 %v10197
      %12849 = vmatprep.subr.bf16.mxu0 0
      %12850 = vmatpush1.bf16.msra.mxu0 %v10204
      %12851 = vmatprep.subr.bf16.mxu0 0
      %12852 = vmatpush1.bf16.msra.mxu0 %v10211
      %12853 = vmatprep.subr.bf16.mxu0 0
      %12854 = vmatpush1.bf16.msra.mxu0 %v10218
      %12855 = vmatprep.subr.bf16.mxu0 0
      %12856 = vmatpush1.bf16.msra.mxu0 %v10225
      %12857 = vmatprep.subr.bf16.mxu0 0
      %12858 = vmatpush1.bf16.msra.mxu0 %v10232
      %12859 = vmatprep.subr.bf16.mxu0 0
      %12860 = vmatpush1.bf16.msra.mxu0 %v10239
      %12861 = vmatprep.subr.bf16.mxu0 0
      %12862 = vmatpush1.bf16.msra.mxu0 %v10246
      %12863 = vmatprep.subr.bf16.mxu0 0
      %12864 = vmatpush1.bf16.msra.mxu0 %v10253
      %12865 = vmatprep.subr.bf16.mxu0 0
      %12866 = vmatpush1.bf16.msra.mxu0 %v10260
      %12867 = vmatprep.subr.bf16.mxu0 0
      %12868 = vmatpush1.bf16.msra.mxu0 %v10267
      %12869 = vmatprep.mubr.bf16.mxu0 %v1225
      %12870 = vmatmul.mubr.bf16.gmra.mrb[0].mxu0 %v1224
      %v12871 = vpop.f32.mrb[0].mxu0
      %v12872 = vadd.f32 0.0, %v12871
      %v12873 = vpop.f32.mrb[0].mxu0
      %v12874 = vpop.f32.mrb[0].mxu0
      %v12875 = vadd.f32 0.0, %v12874
      %v12876 = vpop.f32.mrb[0].mxu0
      %12877 = vmatprep.mubr.bf16.mxu0 %v1239
      %12878 = vmatmul.mubr.bf16.gmra.mrb[0].mxu0 %v1238
      %v12879 = vpop.f32.mrb[0].mxu0
      %v12880 = vadd.f32 0.0, %v12879
      %v12881 = vpop.f32.mrb[0].mxu0
      %v12882 = vpop.f32.mrb[0].mxu0
      %v12883 = vadd.f32 0.0, %v12882
      %v12884 = vpop.f32.mrb[0].mxu0
      %12885 = vdwg.mxu0
      %12886 = vmatprep.subr.bf16.mxu0 0
      %12887 = vmatpush1.bf16.msra.mxu0 %v10274
      %12888 = vmatprep.subr.bf16.mxu0 0
      %12889 = vmatpush1.bf16.msra.mxu0 %v10281
      %12890 = vmatprep.subr.bf16.mxu0 0
      %12891 = vmatpush1.bf16.msra.mxu0 %v10288
      %12892 = vmatprep.subr.bf16.mxu0 0
      %12893 = vmatpush1.bf16.msra.mxu0 %v10295
      %12894 = vmatprep.subr.bf16.mxu0 0
      %12895 = vmatpush1.bf16.msra.mxu0 %v10302
      %12896 = vmatprep.subr.bf16.mxu0 0
      %12897 = vmatpush1.bf16.msra.mxu0 %v10309
      %12898 = vmatprep.subr.bf16.mxu0 0
      %12899 = vmatpush1.bf16.msra.mxu0 %v10316
      %12900 = vmatprep.subr.bf16.mxu0 0
      %12901 = vmatpush1.bf16.msra.mxu0 %v10323
      %12902 = vmatprep.subr.bf16.mxu0 0
      %12903 = vmatpush1.bf16.msra.mxu0 %v10330
      %12904 = vmatprep.subr.bf16.mxu0 0
      %12905 = vmatpush1.bf16.msra.mxu0 %v10337
      %12906 = vmatprep.subr.bf16.mxu0 0
      %12907 = vmatpush1.bf16.msra.mxu0 %v10344
      %12908 = vmatprep.subr.bf16.mxu0 0
      %12909 = vmatpush1.bf16.msra.mxu0 %v10351
      %12910 = vmatprep.subr.bf16.mxu0 0
      %12911 = vmatpush1.bf16.msra.mxu0 %v10358
      %12912 = vmatprep.subr.bf16.mxu0 0
      %12913 = vmatpush1.bf16.msra.mxu0 %v10365
      %12914 = vmatprep.subr.bf16.mxu0 0
      %12915 = vmatpush1.bf16.msra.mxu0 %v10372
      %12916 = vmatprep.subr.bf16.mxu0 0
      %12917 = vmatpush1.bf16.msra.mxu0 %v10379
      %12918 = vmatprep.mubr.bf16.mxu0 %v1227
      %12919 = vmatmul.mubr.bf16.gmra.mrb[0].mxu0 %v1226
      %v12920 = vpop.f32.mrb[0].mxu0
      %v12921 = vadd.f32 %v12872, %v12920
      %v12922 = vpop.f32.mrb[0].mxu0
      %v12923 = vpop.f32.mrb[0].mxu0
      %v12924 = vadd.f32 %v12875, %v12923
      %v12925 = vpop.f32.mrb[0].mxu0
      %12926 = vmatprep.mubr.bf16.mxu0 %v1241
      %12927 = vmatmul.mubr.bf16.gmra.mrb[0].mxu0 %v1240
      %v12928 = vpop.f32.mrb[0].mxu0
      %v12929 = vadd.f32 %v12880, %v12928
      %v12930 = vpop.f32.mrb[0].mxu0
      %v12931 = vpop.f32.mrb[0].mxu0
      %v12932 = vadd.f32 %v12883, %v12931
      %v12933 = vpop.f32.mrb[0].mxu0
      %12934 = vdwg.mxu0
      %12935 = vmatprep.subr.bf16.mxu0 0
      %12936 = vmatpush1.bf16.msra.mxu0 %v10386
      %12937 = vmatprep.subr.bf16.mxu0 0
      %12938 = vmatpush1.bf16.msra.mxu0 %v10393
      %12939 = vmatprep.subr.bf16.mxu0 0
      %12940 = vmatpush1.bf16.msra.mxu0 %v10400
      %12941 = vmatprep.subr.bf16.mxu0 0
      %12942 = vmatpush1.bf16.msra.mxu0 %v10407
      %12943 = vmatprep.subr.bf16.mxu0 0
      %12944 = vmatpush1.bf16.msra.mxu0 %v10414
      %12945 = vmatprep.subr.bf16.mxu0 0
      %12946 = vmatpush1.bf16.msra.mxu0 %v10421
      %12947 = vmatprep.subr.bf16.mxu0 0
      %12948 = vmatpush1.bf16.msra.mxu0 %v10428
      %12949 = vmatprep.subr.bf16.mxu0 0
      %12950 = vmatpush1.bf16.msra.mxu0 %v10435
      %12951 = vmatprep.subr.bf16.mxu0 0
      %12952 = vmatpush1.bf16.msra.mxu0 %v10442
      %12953 = vmatprep.subr.bf16.mxu0 0
      %12954 = vmatpush1.bf16.msra.mxu0 %v10449
      %12955 = vmatprep.subr.bf16.mxu0 0
      %12956 = vmatpush1.bf16.msra.mxu0 %v10456
      %12957 = vmatprep.subr.bf16.mxu0 0
      %12958 = vmatpush1.bf16.msra.mxu0 %v10463
      %12959 = vmatprep.subr.bf16.mxu0 0
      %12960 = vmatpush1.bf16.msra.mxu0 %v10470
      %12961 = vmatprep.subr.bf16.mxu0 0
      %12962 = vmatpush1.bf16.msra.mxu0 %v10477
      %12963 = vmatprep.subr.bf16.mxu0 0
      %12964 = vmatpush1.bf16.msra.mxu0 %v10484
      %12965 = vmatprep.subr.bf16.mxu0 0
      %12966 = vmatpush1.bf16.msra.mxu0 %v10491
      %12967 = vmatprep.mubr.bf16.mxu0 %v1229
      %12968 = vmatmul.mubr.bf16.gmra.mrb[0].mxu0 %v1228
      %v12969 = vpop.f32.mrb[0].mxu0
      %v12970 = vadd.f32 %v12921, %v12969
      %v12971 = vpop.f32.mrb[0].mxu0
      %v12972 = vpop.f32.mrb[0].mxu0
      %v12973 = vadd.f32 %v12924, %v12972
      %v12974 = vpop.f32.mrb[0].mxu0
      %12975 = vmatprep.mubr.bf16.mxu0 %v1243
      %12976 = vmatmul.mubr.bf16.gmra.mrb[0].mxu0 %v1242
      %v12977 = vpop.f32.mrb[0].mxu0
      %v12978 = vadd.f32 %v12929, %v12977
      %v12979 = vpop.f32.mrb[0].mxu0
      %v12980 = vpop.f32.mrb[0].mxu0
      %v12981 = vadd.f32 %v12932, %v12980
      %v12982 = vpop.f32.mrb[0].mxu0
      %12983 = vdwg.mxu0
      %12984 = vmatprep.subr.bf16.mxu0 0
      %12985 = vmatpush1.bf16.msra.mxu0 %v10498
      %12986 = vmatprep.subr.bf16.mxu0 0
      %12987 = vmatpush1.bf16.msra.mxu0 %v10505
      %12988 = vmatprep.subr.bf16.mxu0 0
      %12989 = vmatpush1.bf16.msra.mxu0 %v10512
      %12990 = vmatprep.subr.bf16.mxu0 0
      %12991 = vmatpush1.bf16.msra.mxu0 %v10519
      %12992 = vmatprep.subr.bf16.mxu0 0
      %12993 = vmatpush1.bf16.msra.mxu0 %v10526
      %12994 = vmatprep.subr.bf16.mxu0 0
      %12995 = vmatpush1.bf16.msra.mxu0 %v10533
      %12996 = vmatprep.subr.bf16.mxu0 0
      %12997 = vmatpush1.bf16.msra.mxu0 %v10540
      %12998 = vmatprep.subr.bf16.mxu0 0
      %12999 = vmatpush1.bf16.msra.mxu0 %v10547
      %13000 = vmatprep.subr.bf16.mxu0 0
      %13001 = vmatpush1.bf16.msra.mxu0 %v10554
      %13002 = vmatprep.subr.bf16.mxu0 0
      %13003 = vmatpush1.bf16.msra.mxu0 %v10561
      %13004 = vmatprep.subr.bf16.mxu0 0
      %13005 = vmatpush1.bf16.msra.mxu0 %v10568
      %13006 = vmatprep.subr.bf16.mxu0 0
      %13007 = vmatpush1.bf16.msra.mxu0 %v10575
      %13008 = vmatprep.subr.bf16.mxu0 0
      %13009 = vmatpush1.bf16.msra.mxu0 %v10582
      %13010 = vmatprep.subr.bf16.mxu0 0
      %13011 = vmatpush1.bf16.msra.mxu0 %v10589
      %13012 = vmatprep.subr.bf16.mxu0 0
      %13013 = vmatpush1.bf16.msra.mxu0 %v10596
      %13014 = vmatprep.subr.bf16.mxu0 0
      %13015 = vmatpush1.bf16.msra.mxu0 %v10603
      %13016 = vmatprep.mubr.bf16.mxu0 %v1231
      %13017 = vmatmul.mubr.bf16.gmra.mrb[0].mxu0 %v1230
      %v13018 = vpop.f32.mrb[0].mxu0
      %v13019 = vadd.f32 %v12970, %v13018
      %v13020 = vpop.f32.mrb[0].mxu0
      %v13021 = vpop.f32.mrb[0].mxu0
      %v13022 = vadd.f32 %v12973, %v13021
      %v13023 = vpop.f32.mrb[0].mxu0
      %13024 = vmatprep.mubr.bf16.mxu0 %v1245
      %13025 = vmatmul.mubr.bf16.gmra.mrb[0].mxu0 %v1244
      %v13026 = vpop.f32.mrb[0].mxu0
      %v13027 = vadd.f32 %v12978, %v13026
      %v13028 = vpop.f32.mrb[0].mxu0
      %v13029 = vpop.f32.mrb[0].mxu0
      %v13030 = vadd.f32 %v12981, %v13029
      %v13031 = vpop.f32.mrb[0].mxu0
      %13032 = vdwg.mxu0
      %13033 = vmatprep.subr.bf16.mxu0 0
      %13034 = vmatpush1.bf16.msra.mxu0 %v10610
      %13035 = vmatprep.subr.bf16.mxu0 0
      %13036 = vmatpush1.bf16.msra.mxu0 %v10617
      %13037 = vmatprep.subr.bf16.mxu0 0
      %13038 = vmatpush1.bf16.msra.mxu0 %v10624
      %13039 = vmatprep.subr.bf16.mxu0 0
      %13040 = vmatpush1.bf16.msra.mxu0 %v10631
      %13041 = vmatprep.subr.bf16.mxu0 0
      %13042 = vmatpush1.bf16.msra.mxu0 %v10638
      %13043 = vmatprep.subr.bf16.mxu0 0
      %13044 = vmatpush1.bf16.msra.mxu0 %v10645
      %13045 = vmatprep.subr.bf16.mxu0 0
      %13046 = vmatpush1.bf16.msra.mxu0 %v10652
      %13047 = vmatprep.subr.bf16.mxu0 0
      %13048 = vmatpush1.bf16.msra.mxu0 %v10659
      %13049 = vmatprep.subr.bf16.mxu0 0
      %13050 = vmatpush1.bf16.msra.mxu0 %v10666
      %13051 = vmatprep.subr.bf16.mxu0 0
      %13052 = vmatpush1.bf16.msra.mxu0 %v10673
      %13053 = vmatprep.subr.bf16.mxu0 0
      %13054 = vmatpush1.bf16.msra.mxu0 %v10680
      %13055 = vmatprep.subr.bf16.mxu0 0
      %13056 = vmatpush1.bf16.msra.mxu0 %v10687
      %13057 = vmatprep.subr.bf16.mxu0 0
      %13058 = vmatpush1.bf16.msra.mxu0 %v10694
      %13059 = vmatprep.subr.bf16.mxu0 0
      %13060 = vmatpush1.bf16.msra.mxu0 %v10701
      %13061 = vmatprep.subr.bf16.mxu0 0
      %13062 = vmatpush1.bf16.msra.mxu0 %v10708
      %13063 = vmatprep.subr.bf16.mxu0 0
      %13064 = vmatpush1.bf16.msra.mxu0 %v10715
      %13065 = vmatprep.mubr.bf16.mxu0 %v1233
      %13066 = vmatmul.mubr.bf16.gmra.mrb[0].mxu0 %v1232
      %v13067 = vpop.f32.mrb[0].mxu0
      %v13068 = vadd.f32 %v13019, %v13067
      %v13069 = vpop.f32.mrb[0].mxu0
      %v13070 = vpop.f32.mrb[0].mxu0
      %v13071 = vadd.f32 %v13022, %v13070
      %v13072 = vpop.f32.mrb[0].mxu0
      %13073 = vmatprep.mubr.bf16.mxu0 %v1247
      %13074 = vmatmul.mubr.bf16.gmra.mrb[0].mxu0 %v1246
      %v13075 = vpop.f32.mrb[0].mxu0
      %v13076 = vadd.f32 %v13027, %v13075
      %v13077 = vpop.f32.mrb[0].mxu0
      %v13078 = vpop.f32.mrb[0].mxu0
      %v13079 = vadd.f32 %v13030, %v13078
      %v13080 = vpop.f32.mrb[0].mxu0
      %13081 = vdwg.mxu0
      %13082 = vmatprep.subr.bf16.mxu0 0
      %13083 = vmatpush1.bf16.msra.mxu0 %v10722
      %13084 = vmatprep.subr.bf16.mxu0 0
      %13085 = vmatpush1.bf16.msra.mxu0 %v10729
      %13086 = vmatprep.subr.bf16.mxu0 0
      %13087 = vmatpush1.bf16.msra.mxu0 %v10736
      %13088 = vmatprep.subr.bf16.mxu0 0
      %13089 = vmatpush1.bf16.msra.mxu0 %v10743
      %13090 = vmatprep.subr.bf16.mxu0 0
      %13091 = vmatpush1.bf16.msra.mxu0 %v10750
      %13092 = vmatprep.subr.bf16.mxu0 0
      %13093 = vmatpush1.bf16.msra.mxu0 %v10757
      %13094 = vmatprep.subr.bf16.mxu0 0
      %13095 = vmatpush1.bf16.msra.mxu0 %v10764
      %13096 = vmatprep.subr.bf16.mxu0 0
      %13097 = vmatpush1.bf16.msra.mxu0 %v10771
      %13098 = vmatprep.subr.bf16.mxu0 0
      %13099 = vmatpush1.bf16.msra.mxu0 %v10778
      %13100 = vmatprep.subr.bf16.mxu0 0
      %13101 = vmatpush1.bf16.msra.mxu0 %v10785
      %13102 = vmatprep.subr.bf16.mxu0 0
      %13103 = vmatpush1.bf16.msra.mxu0 %v10792
      %13104 = vmatprep.subr.bf16.mxu0 0
      %13105 = vmatpush1.bf16.msra.mxu0 %v10799
      %13106 = vmatprep.subr.bf16.mxu0 0
      %13107 = vmatpush1.bf16.msra.mxu0 %v10806
      %13108 = vmatprep.subr.bf16.mxu0 0
      %13109 = vmatpush1.bf16.msra.mxu0 %v10813
      %13110 = vmatprep.subr.bf16.mxu0 0
      %13111 = vmatpush1.bf16.msra.mxu0 %v10820
      %13112 = vmatprep.subr.bf16.mxu0 0
      %13113 = vmatpush1.bf16.msra.mxu0 %v10827
      %13114 = vmatprep.mubr.bf16.mxu0 %v1235
      %13115 = vmatmul.mubr.bf16.gmra.mrb[0].mxu0 %v1234
      %v13116 = vpop.f32.mrb[0].mxu0
      %v13117 = vadd.f32 %v13068, %v13116
      %v13118 = vpop.f32.mrb[0].mxu0
      %v13119 = vpop.f32.mrb[0].mxu0
      %v13120 = vadd.f32 %v13071, %v13119
      %v13121 = vpop.f32.mrb[0].mxu0
      %13122 = vmatprep.mubr.bf16.mxu0 %v1249
      %13123 = vmatmul.mubr.bf16.gmra.mrb[0].mxu0 %v1248
      %v13124 = vpop.f32.mrb[0].mxu0
      %v13125 = vadd.f32 %v13076, %v13124
      %v13126 = vpop.f32.mrb[0].mxu0
      %v13127 = vpop.f32.mrb[0].mxu0
      %v13128 = vadd.f32 %v13079, %v13127
      %v13129 = vpop.f32.mrb[0].mxu0
      %13130 = vdwg.mxu0
      %13131 = vmatprep.subr.bf16.mxu0 0
      %13132 = vmatpush1.bf16.msra.mxu0 %v10834
      %13133 = vmatprep.subr.bf16.mxu0 0
      %13134 = vmatpush1.bf16.msra.mxu0 %v10841
      %13135 = vmatprep.subr.bf16.mxu0 0
      %13136 = vmatpush1.bf16.msra.mxu0 %v10848
      %13137 = vmatprep.subr.bf16.mxu0 0
      %13138 = vmatpush1.bf16.msra.mxu0 %v10855
      %13139 = vmatprep.subr.bf16.mxu0 0
      %13140 = vmatpush1.bf16.msra.mxu0 %v10862
      %13141 = vmatprep.subr.bf16.mxu0 0
      %13142 = vmatpush1.bf16.msra.mxu0 %v10869
      %13143 = vmatprep.subr.bf16.mxu0 0
      %13144 = vmatpush1.bf16.msra.mxu0 %v10876
      %13145 = vmatprep.subr.bf16.mxu0 0
      %13146 = vmatpush1.bf16.msra.mxu0 %v10883
      %13147 = vmatprep.subr.bf16.mxu0 0
      %13148 = vmatpush1.bf16.msra.mxu0 %v10890
      %13149 = vmatprep.subr.bf16.mxu0 0
      %13150 = vmatpush1.bf16.msra.mxu0 %v10897
      %13151 = vmatprep.subr.bf16.mxu0 0
      %13152 = vmatpush1.bf16.msra.mxu0 %v10904
      %13153 = vmatprep.subr.bf16.mxu0 0
      %13154 = vmatpush1.bf16.msra.mxu0 %v10911
      %13155 = vmatprep.subr.bf16.mxu0 0
      %13156 = vmatpush1.bf16.msra.mxu0 %v10918
      %13157 = vmatprep.subr.bf16.mxu0 0
      %13158 = vmatpush1.bf16.msra.mxu0 %v10925
      %13159 = vmatprep.subr.bf16.mxu0 0
      %13160 = vmatpush1.bf16.msra.mxu0 %v10932
      %13161 = vmatprep.subr.bf16.mxu0 0
      %13162 = vmatpush1.bf16.msra.mxu0 %v10939
      %13163 = vmatprep.mubr.bf16.mxu0 %v1237
      %13164 = vmatmul.mubr.bf16.gmra.mrb[0].mxu0 %v1236
      %v13165 = vpop.f32.mrb[0].mxu0
      %v13166 = vadd.f32 %v13117, %v13165
      %v13167 = vpop.f32.mrb[0].mxu0
      %v13168 = vpop.f32.mrb[0].mxu0
      %v13169 = vadd.f32 %v13120, %v13168
      %v13170 = vpop.f32.mrb[0].mxu0
      %13171 = vmatprep.mubr.bf16.mxu0 %v1251
      %13172 = vmatmul.mubr.bf16.gmra.mrb[0].mxu0 %v1250
      %v13173 = vpop.f32.mrb[0].mxu0
      %v13174 = vadd.f32 %v13125, %v13173
      %v13175 = vpop.f32.mrb[0].mxu0
      %v13176 = vpop.f32.mrb[0].mxu0
      %v13177 = vadd.f32 %v13128, %v13176
      %v13178 = vpop.f32.mrb[0].mxu0
      %13179 = vdwg.mxu0
      %v13180 = vmul.f32 %v12077, %v12077
      %v13181 = vmul.f32 %v12079, %v12079
      %v13182 = vmul.f32 %v12448, %v12448
      %v13183 = vmul.f32 %v12450, %v12450
      %v13184 = vmul.f32 %v12819, %v12819
      %v13185 = vmul.f32 %v12821, %v12821
      %v13186 = vmul.f32 %v13166, %v13166
      %v13187 = vmul.f32 %v12081, %v12081
      %v13188 = vmul.f32 %v12083, %v12083
      %v13189 = vmul.f32 %v12452, %v12452
      %v13190 = vmul.f32 %v12454, %v12454
      %v13191 = vmul.f32 %v12823, %v12823
      %v13192 = vmul.f32 %v12825, %v12825
      %v13193 = vmul.f32 %v13169, %v13169
      %v13194 = vmul.f32 %v12087, %v12087
      %v13195 = vmul.f32 %v12089, %v12089
      %v13196 = vmul.f32 %v12458, %v12458
      %v13197 = vmul.f32 %v12460, %v12460
      %v13198 = vmul.f32 %v12829, %v12829
      %v13199 = vmul.f32 %v12831, %v12831
      %v13200 = vmul.f32 %v13174, %v13174
      %v13201 = vmul.f32 %v12091, %v12091
      %v13202 = vmul.f32 %v12093, %v12093
      %v13203 = vmul.f32 %v12462, %v12462
      %v13204 = vmul.f32 %v12464, %v12464
      %v13205 = vmul.f32 %v12833, %v12833
      %v13206 = vmul.f32 %v12835, %v12835
      %v13207 = vmul.f32 %v13177, %v13177
      %v13208 = vadd.f32 %v6768, %v13180
      %v13209 = vadd.f32 %v6769, %v13181
      %v13210 = vadd.f32 %v6770, %v13182
      %v13211 = vadd.f32 %v6771, %v13183
      %v13212 = vadd.f32 %v6772, %v13184
      %v13213 = vadd.f32 %v6773, %v13185
      %v13214 = vadd.f32 %v6774, %v13186
      %v13215 = vadd.f32 %v6775, %v13187
      %v13216 = vadd.f32 %v6776, %v13188
      %v13217 = vadd.f32 %v6777, %v13189
      %v13218 = vadd.f32 %v6778, %v13190
      %v13219 = vadd.f32 %v6779, %v13191
      %v13220 = vadd.f32 %v6780, %v13192
      %v13221 = vadd.f32 %v6781, %v13193
      %v13222 = vadd.f32 %v6782, %v13194
      %v13223 = vadd.f32 %v6783, %v13195
      %v13224 = vadd.f32 %v6784, %v13196
      %v13225 = vadd.f32 %v6785, %v13197
      %v13226 = vadd.f32 %v6786, %v13198
      %v13227 = vadd.f32 %v6787, %v13199
      %v13228 = vadd.f32 %v6788, %v13200
      %v13229 = vadd.f32 %v6789, %v13201
      %v13230 = vadd.f32 %v6790, %v13202
      %v13231 = vadd.f32 %v6791, %v13203
      %v13232 = vadd.f32 %v6792, %v13204
      %v13233 = vadd.f32 %v6793, %v13205
      %v13234 = vadd.f32 %v6794, %v13206
      %v13235 = vadd.f32 %v6795, %v13207
      %v13236 = vmax.f32 %v13208, 1e-30
      %v13237 = vmax.f32 %v13209, 1e-30
      %v13238 = vmax.f32 %v13210, 1e-30
      %v13239 = vmax.f32 %v13211, 1e-30
      %v13240 = vmax.f32 %v13212, 1e-30
      %v13241 = vmax.f32 %v13213, 1e-30
      %v13242 = vmax.f32 %v13214, 1e-30
      %v13243 = vmax.f32 %v13215, 1e-30
      %v13244 = vmax.f32 %v13216, 1e-30
      %v13245 = vmax.f32 %v13217, 1e-30
      %v13246 = vmax.f32 %v13218, 1e-30
      %v13247 = vmax.f32 %v13219, 1e-30
      %v13248 = vmax.f32 %v13220, 1e-30
      %v13249 = vmax.f32 %v13221, 1e-30
      %v13250 = vmax.f32 %v13222, 1e-30
      %v13251 = vmax.f32 %v13223, 1e-30
      %v13252 = vmax.f32 %v13224, 1e-30
      %v13253 = vmax.f32 %v13225, 1e-30
      %v13254 = vmax.f32 %v13226, 1e-30
      %v13255 = vmax.f32 %v13227, 1e-30
      %v13256 = vmax.f32 %v13228, 1e-30
      %v13257 = vmax.f32 %v13229, 1e-30
      %v13258 = vmax.f32 %v13230, 1e-30
      %v13259 = vmax.f32 %v13231, 1e-30
      %v13260 = vmax.f32 %v13232, 1e-30
      %v13261 = vmax.f32 %v13233, 1e-30
      %v13262 = vmax.f32 %v13234, 1e-30
      %v13263 = vmax.f32 %v13235, 1e-30
      %v13264 = vlog2.pop %v13236
      %v13265 = vmul.f32 %v13264, 0.6931472
      %v13266 = vlog2.pop %v13237
      %v13267 = vmul.f32 %v13266, 0.6931472
      %v13268 = vlog2.pop %v13238
      %v13269 = vmul.f32 %v13268, 0.6931472
      %v13270 = vlog2.pop %v13239
      %v13271 = vmul.f32 %v13270, 0.6931472
      %v13272 = vlog2.pop %v13240
      %v13273 = vmul.f32 %v13272, 0.6931472
      %v13274 = vlog2.pop %v13241
      %v13275 = vmul.f32 %v13274, 0.6931472
      %v13276 = vlog2.pop %v13242
      %v13277 = vmul.f32 %v13276, 0.6931472
      %v13278 = vlog2.pop %v13243
      %v13279 = vmul.f32 %v13278, 0.6931472
      %v13280 = vlog2.pop %v13244
      %v13281 = vmul.f32 %v13280, 0.6931472
      %v13282 = vlog2.pop %v13245
      %v13283 = vmul.f32 %v13282, 0.6931472
      %v13284 = vlog2.pop %v13246
      %v13285 = vmul.f32 %v13284, 0.6931472
      %v13286 = vlog2.pop %v13247
      %v13287 = vmul.f32 %v13286, 0.6931472
      %v13288 = vlog2.pop %v13248
      %v13289 = vmul.f32 %v13288, 0.6931472
      %v13290 = vlog2.pop %v13249
      %v13291 = vmul.f32 %v13290, 0.6931472
      %v13292 = vlog2.pop %v13250
      %v13293 = vmul.f32 %v13292, 0.6931472
      %v13294 = vlog2.pop %v13251
      %v13295 = vmul.f32 %v13294, 0.6931472
      %v13296 = vlog2.pop %v13252
      %v13297 = vmul.f32 %v13296, 0.6931472
      %v13298 = vlog2.pop %v13253
      %v13299 = vmul.f32 %v13298, 0.6931472
      %v13300 = vlog2.pop %v13254
      %v13301 = vmul.f32 %v13300, 0.6931472
      %v13302 = vlog2.pop %v13255
      %v13303 = vmul.f32 %v13302, 0.6931472
      %v13304 = vlog2.pop %v13256
      %v13305 = vmul.f32 %v13304, 0.6931472
      %v13306 = vlog2.pop %v13257
      %v13307 = vmul.f32 %v13306, 0.6931472
      %v13308 = vlog2.pop %v13258
      %v13309 = vmul.f32 %v13308, 0.6931472
      %v13310 = vlog2.pop %v13259
      %v13311 = vmul.f32 %v13310, 0.6931472
      %v13312 = vlog2.pop %v13260
      %v13313 = vmul.f32 %v13312, 0.6931472
      %v13314 = vlog2.pop %v13261
      %v13315 = vmul.f32 %v13314, 0.6931472
      %v13316 = vlog2.pop %v13262
      %v13317 = vmul.f32 %v13316, 0.6931472
      %v13318 = vlog2.pop %v13263
      %v13319 = vmul.f32 %v13318, 0.6931472
      %v13320 = vmul.f32 %v13265, 4.3429446
      %v13321 = vmul.f32 %v13267, 4.3429446
      %v13322 = vmul.f32 %v13269, 4.3429446
      %v13323 = vmul.f32 %v13271, 4.3429446
      %v13324 = vmul.f32 %v13273, 4.3429446
      %v13325 = vmul.f32 %v13275, 4.3429446
      %v13326 = vmul.f32 %v13277, 4.3429446
      %v13327 = vmul.f32 %v13279, 4.3429446
      %v13328 = vmul.f32 %v13281, 4.3429446
      %v13329 = vmul.f32 %v13283, 4.3429446
      %v13330 = vmul.f32 %v13285, 4.3429446
      %v13331 = vmul.f32 %v13287, 4.3429446
      %v13332 = vmul.f32 %v13289, 4.3429446
      %v13333 = vmul.f32 %v13291, 4.3429446
      %v13334 = vmul.f32 %v13293, 4.3429446
      %v13335 = vmul.f32 %v13295, 4.3429446
      %v13336 = vmul.f32 %v13297, 4.3429446
      %v13337 = vmul.f32 %v13299, 4.3429446
      %v13338 = vmul.f32 %v13301, 4.3429446
      %v13339 = vmul.f32 %v13303, 4.3429446
      %v13340 = vmul.f32 %v13305, 4.3429446
      %v13341 = vmul.f32 %v13307, 4.3429446
      %v13342 = vmul.f32 %v13309, 4.3429446
      %v13343 = vmul.f32 %v13311, 4.3429446
      %v13344 = vmul.f32 %v13313, 4.3429446
      %v13345 = vmul.f32 %v13315, 4.3429446
      %v13346 = vmul.f32 %v13317, 4.3429446
      %v13347 = vmul.f32 %v13319, 4.3429446
      %13348 = vst [vmem:[%s213] sm:$0xff] %v13320
      %13349 = vst [vmem:[%s213 + $0x8] sm:$0xff] %v13321
      %13350 = vst [vmem:[%s213 + $0x10] sm:$0xff] %v13322
      %13351 = vst [vmem:[%s213 + $0x18] sm:$0xff] %v13323
      %13352 = vst [vmem:[%s213 + $0x20] sm:$0xff] %v13324
      %13353 = vst [vmem:[%s213 + $0x28] sm:$0xff] %v13325
      %13354 = vst [vmem:[%s213 + $0x30] sm:$0xff] %v13326
      %13355 = vst [vmem:[%s213 + $0x38] sm:$0xff] %v13327
      %13356 = vst [vmem:[%s213 + $0x40] sm:$0xff] %v13328
      %13357 = vst [vmem:[%s213 + $0x48] sm:$0xff] %v13329
      %13358 = vst [vmem:[%s213 + $0x50] sm:$0xff] %v13330
      %13359 = vst [vmem:[%s213 + $0x58] sm:$0xff] %v13331
      %13360 = vst [vmem:[%s213 + $0x60] sm:$0xff] %v13332
      %13361 = vst [vmem:[%s213 + $0x68] sm:$0xff] %v13333
      %13362 = vst [vmem:[%s213 + $0x70] sm:$0xff] %v13334
      %13363 = vst [vmem:[%s213 + $0x78] sm:$0xff] %v13335
      %13364 = vst [vmem:[%s213 + $0x80] sm:$0xff] %v13336
      %13365 = vst [vmem:[%s213 + $0x88] sm:$0xff] %v13337
      %13366 = vst [vmem:[%s213 + $0x90] sm:$0xff] %v13338
      %13367 = vst [vmem:[%s213 + $0x98] sm:$0xff] %v13339
      %13368 = vst [vmem:[%s213 + $0xa0] sm:$0xff] %v13340
      %13369 = vst [vmem:[%s213 + $0xa8] sm:$0xff] %v13341
      %13370 = vst [vmem:[%s213 + $0xb0] sm:$0xff] %v13342
      %13371 = vst [vmem:[%s213 + $0xb8] sm:$0xff] %v13343
      %13372 = vst [vmem:[%s213 + $0xc0] sm:$0xff] %v13344
      %13373 = vst [vmem:[%s213 + $0xc8] sm:$0xff] %v13345
      %13374 = vst [vmem:[%s213 + $0xd0] sm:$0xff] %v13346
      %13375 = vst [vmem:[%s213 + $0xd8] sm:$0xff] %v13347
      %s13376 = smul.u32 4, %s19
      %p13377 = scmp.lt.s32.totalorder %s18, 1
      %s13378 = scalar_select %p13377, %s18, 1
      %p13379 = scmp.lt.s32.totalorder %s13376, 3
      %s13380 = scalar_select %p13379, %s13376, 3
      %s13381 = smul.addr %s13380, 7
      %s13382 = smul.addr %s13378, 28
      %s13383 = sadd.s32 %s13381, %s13382
      %s13384 = smul.addr %s13383, 8
      %s13385 = scalar_lea.vmem %s3, %s13384
      // Predicated region
      $region33: #{cmlps_forward.1} parent=31 // pred_check
        %p13386 = pneg %p116
      $region34: #{cmlps_forward.1} parent=31 // pred_check_branch
        %13388 = sbr.rel (%p13386) target = $region36
      $region35: #{cmlps_forward.1} parent=31 // pred_region
        %s13389 = smul.u32 4, %s19
      $region36: #{cmlps_forward.1} parent=31 // pred_fallthru
        _
    $region32: #{cmlps_forward.1} parent=5 // pred_fallthru
      _
    %p13390 = scmp.le.s32.totalorder 2, %s9
    // Predicated region
    $region37: #{cmlps_forward.1} parent=5 // pred_check
      %p13391 = pneg %p13390
    $region38: #{cmlps_forward.1} parent=5 // pred_check_branch
      %13393 = sbr.rel (%p13391) target = $region40
    $region39: #{cmlps_forward.1} parent=5 // pred_region
      %s13394 = ssub.s32 %s9, 2
      // Predicated region
      $region41: #{cmlps_forward.1} parent=39 // pred_check
        %p13395 = pneg %p122
      $region42: #{cmlps_forward.1} parent=39 // pred_check_branch
        %13397 = sbr.rel (%p13395) target = $region44
      $region43: #{cmlps_forward.1} parent=39 // pred_region
        %s13398 = smul.u32 4, %s21
        %p13399 = scmp.lt.s32.totalorder %s20, 1
        %s13400 = scalar_select %p13399, %s20, 1
        %p13401 = scmp.lt.s32.totalorder %s13398, 3
        %s13402 = scalar_select %p13401, %s13398, 3
        %s13403 = smul.addr %s13402, 7
        %s13404 = smul.addr %s13400, 28
        %s13405 = sadd.s32 %s13403, %s13404
        %s13406 = smul.addr %s13405, 8
        %s13407 = scalar_lea.vmem %s3, %s13406
      $region44: #{cmlps_forward.1} parent=39 // pred_fallthru
        _
    $region40: #{cmlps_forward.1} parent=5 // pred_fallthru
      _
  $region6: #{cmlps_forward.1} parent=0 // loop_footer
    %s13 = sadd.s32 1, %s9
  $region7: #{cmlps_forward.1} parent=0 // loop_footer_branch
    %8 = sbr.rel target = $region3
  $region8: #{cmlps_forward.1} parent=0 // loop_exit
    _

</llo_original>
